<compile_context>
chip_gen: v7x
topology: tpu7x:2x2x1
jax: 0.10.0
libtpu: 0.0.40
codegen_flags: <defaults>
</compile_context>

<pallas_src>
import functools

import jax
import jax.numpy as jnp
from jax.experimental import pallas as pl
from jax.experimental.pallas import tpu as pltpu

BN_EPS = 1e-5
BRANCHES = ('origin', 'branch0', 'branch1', 'branch2')
DILATIONS = (1, 2, 3, 5)          # vision=1: origin=1, vision+1, vision+2, vision+4
MAX_PAD = max(DILATIONS)
VMEM_LIMIT = 48 * 1024 * 1024     # < v7x 64 MiB physical, leaves double-buffer headroom


# ----------------------------- Pallas kernel ------------------------------- #

def _rfb_fused_kernel(x_ref, wpt_ref, spt_ref, bpt_ref,
                      w3_ref, s3_ref, b3_ref,
                      wl_ref, sl_ref, bl_ref,
                      o_ref, pad_ref,
                      *, H, W, inter, cout, dilations, max_pad, rfb_scale):
    HW = H * W
    cin = x_ref.shape[-1]

    # --- fused pointwise stage: 4 branch 1x1 convs + shortcut 1x1, one matmul ---
    xs = x_ref[0].reshape(HW, cin)
    t = jnp.dot(xs, wpt_ref[...], preferred_element_type=jnp.float32)
    t = t * spt_ref[...] + bpt_ref[...]
    short = t[:, 4 * inter:]                                 # (HW, cout), f32

    # --- scatter branch activations into the branch-major padded VMEM scratch ---
    # Zero every grid step (scratch is per-core; do NOT rely on program_id==0
    # under megacore sharding), then overwrite the interior: pad-after-affine,
    # so the halo is true zeros rather than the BN bias.
    pad_ref[...] = jnp.zeros_like(pad_ref)
    for b in range(4):
        pad_ref[b, max_pad:max_pad + H, max_pad:max_pad + W, :] = (
            t[:, b * inter:(b + 1) * inter]
            .reshape(H, W, inter).astype(pad_ref.dtype))

    # --- 4 dilated 3x3 convs: 9 taps stacked along K -> one matmul per branch ---
    ys = []
    for b, d in enumerate(dilations):
        off = max_pad - d
        taps = [
            pad_ref[b,
                    off + ky * d: off + ky * d + H,
                    off + kx * d: off + kx * d + W, :].reshape(HW, inter)
            for ky in range(3) for kx in range(3)
        ]
        im2col = jnp.concatenate(taps, axis=-1)              # (HW, 9*inter), VMEM only
        y = jnp.dot(im2col, w3_ref[b], preferred_element_type=jnp.float32)
        y = y * s3_ref[b] + b3_ref[b]
        if b == 0:                                           # only `origin` has ReLU here
            y = jnp.maximum(y, 0.0)
        ys.append(y.astype(wl_ref.dtype))

    # --- ConvLinear: single K = 8*inter matmul (concat lives only in VMEM) ---
    cat = jnp.concatenate(ys, axis=-1)                       # (HW, 8*inter)
    lin = jnp.dot(cat, wl_ref[...], preferred_element_type=jnp.float32)
    out = lin * sl_ref[...] + bl_ref[...]

    # --- residual scale + final ReLU ---
    out = jnp.maximum(out * rfb_scale + short, 0.0)
    o_ref[...] = out.reshape(1, H, W, cout).astype(o_ref.dtype)


# ----------------------------- kernel wrapper ------------------------------- #

def basic_rfb_forward(x_nchw, params, scale=0.1, *, compute_dtype=jnp.bfloat16):
    x = jnp.transpose(x_nchw, (0, 2, 3, 1)).astype(compute_dtype)   # NCHW -> NHWC
    n, h, w_, cin = x.shape
    assert w_ % 8 == 0, "kernel assumes W % 8 == 0 (in-kernel (H,W,C)->(H*W,C) reshape)"

    inter = params['origin']['w1'].shape[1]
    cout = params['lin']['w'].shape[1]

    # fused pointwise weights: [origin | branch0 | branch1 | branch2 | shortcut]
    w_pt = jnp.concatenate([params[k]['w1'] for k in BRANCHES]
                           + [params['short']['w']], axis=1).astype(compute_dtype)
    s_pt = jnp.concatenate([params[k]['s1'] for k in BRANCHES]
                           + [params['short']['s']], axis=1)
    b_pt = jnp.concatenate([params[k]['b1'] for k in BRANCHES]
                           + [params['short']['b']], axis=1)

    # per-branch dilated-conv weights in im2col (K = 9*inter) layout + BN affines
    w3 = jnp.stack([params[k]['w2'].reshape(9 * inter, 2 * inter)
                    for k in BRANCHES], axis=0).astype(compute_dtype)   # (4, 9i, 2i)
    s3 = jnp.stack([params[k]['s2'] for k in BRANCHES], axis=0)         # (4, 1, 2i)
    b3 = jnp.stack([params[k]['b2'] for k in BRANCHES], axis=0)
    wl = params['lin']['w'].astype(compute_dtype)                       # (8i, cout)
    sl, bl = params['lin']['s'], params['lin']['b']

    hp, wp = h + 2 * MAX_PAD, w_ + 2 * MAX_PAD
    c_pt = 4 * inter + cout

    kern = functools.partial(_rfb_fused_kernel, H=h, W=w_, inter=inter, cout=cout,
                             dilations=DILATIONS, max_pad=MAX_PAD, rfb_scale=scale)
    out = pl.pallas_call(
        kern,
        out_shape=jax.ShapeDtypeStruct((n, h, w_, cout), jnp.float32),
        grid_spec=pltpu.PrefetchScalarGridSpec(
            num_scalar_prefetch=0,
            grid=(n,),
            in_specs=[
                pl.BlockSpec((1, h, w_, cin), lambda i: (i, 0, 0, 0)),
                # weights / affines: constant index maps -> stay resident in VMEM
                pl.BlockSpec((cin, c_pt), lambda i: (0, 0)),
                pl.BlockSpec((1, c_pt), lambda i: (0, 0)),
                pl.BlockSpec((1, c_pt), lambda i: (0, 0)),
                pl.BlockSpec((4, 9 * inter, 2 * inter), lambda i: (0, 0, 0)),
                pl.BlockSpec((4, 1, 2 * inter), lambda i: (0, 0, 0)),
                pl.BlockSpec((4, 1, 2 * inter), lambda i: (0, 0, 0)),
                pl.BlockSpec((8 * inter, cout), lambda i: (0, 0)),
                pl.BlockSpec((1, cout), lambda i: (0, 0)),
                pl.BlockSpec((1, cout), lambda i: (0, 0)),
            ],
            out_specs=pl.BlockSpec((1, h, w_, cout), lambda i: (i, 0, 0, 0)),
            scratch_shapes=[pltpu.VMEM((4, hp, wp, inter), compute_dtype)],
        ),
        compiler_params=pltpu.CompilerParams(
            dimension_semantics=("parallel",),
            vmem_limit_bytes=VMEM_LIMIT),
    )(x, w_pt, s_pt, b_pt, w3, s3, b3, wl, sl, bl)

    return jnp.transpose(out, (0, 3, 1, 2))     # back to NCHW


# ------------------------- parameters (deterministic) ----------------------- #

def _fold_bn(gamma, beta, mean, var):
    s = gamma / jnp.sqrt(var + BN_EPS)
    b = beta - mean * s
    return s.reshape(1, -1), b.reshape(1, -1)


def _init_bn(key, c):
    k1, k2, k3, k4 = jax.random.split(key, 4)
    gamma = 1.0 + 0.1 * jax.random.normal(k1, (c,), jnp.float32)
    beta = 0.1 * jax.random.normal(k2, (c,), jnp.float32)
    mean = 0.05 * jax.random.normal(k3, (c,), jnp.float32)
    var = 1.0 + 0.2 * jax.random.uniform(k4, (c,), jnp.float32)
    return gamma, beta, mean, var


def init_params(key, in_planes, out_planes, map_reduce=8):
    inter = in_planes // map_reduce
    keys = iter(jax.random.split(key, 64))

    def conv_w(shape):
        fan_in = 1
        for d in shape[:-1]:
            fan_in *= d
        return jax.random.normal(next(keys), shape, jnp.float32) / jnp.sqrt(float(fan_in))

    def bn_affine(c):
        return _fold_bn(*_init_bn(next(keys), c))

    def seq():
        s1, b1 = bn_affine(inter)
        s2, b2 = bn_affine(2 * inter)
        return dict(w1=conv_w((in_planes, inter)), s1=s1, b1=b1,
                    w2=conv_w((3, 3, inter, 2 * inter)), s2=s2, b2=b2)

    params = dict(origin=seq(), branch0=seq(), branch1=seq(), branch2=seq())

    sl, bl = bn_affine(out_planes)
    params['lin'] = dict(w=conv_w((8 * inter, out_planes)), s=sl, b=bl)

    s1, b1 = bn_affine(out_planes)       # shortcut BasicConv BN
    s2, b2 = bn_affine(out_planes)       # outer self.bn (applied to shortcut output)
    params['short'] = dict(w=conv_w((in_planes, out_planes)),
                           s=s1 * s2, b=b1 * s2 + b2)
    return params


# ------------------------- pure-JAX reference (check) ----------------------- #

def _ref_conv_bn(x, w, s, b, relu, padding=0, dilation=1):
    y = jax.lax.conv_general_dilated(
        x, w, (1, 1), [(padding, padding), (padding, padding)],
        rhs_dilation=(dilation, dilation),
        dimension_numbers=('NHWC', 'HWIO', 'NHWC'))
    y = y * s.reshape(1, 1, 1, -1) + b.reshape(1, 1, 1, -1)
    return jnp.maximum(y, 0.0) if relu else y


def ref_forward(x_nchw, params, scale=0.1):
    x = jnp.transpose(x_nchw, (0, 2, 3, 1))

    def b1x1(inp, w, s, b, relu):
        return _ref_conv_bn(inp, w.reshape(1, 1, *w.shape), s, b, relu)

    def branch(p, dil, relu2):
        t = b1x1(x, p['w1'], p['s1'], p['b1'], False)
        return _ref_conv_bn(t, p['w2'], p['s2'], p['b2'], relu2,
                            padding=dil, dilation=dil)

    origin = branch(params['origin'], 1, True)
    x0 = branch(params['branch0'], 2, False)
    x1 = branch(params['branch1'], 3, False)
    x2 = branch(params['branch2'], 5, False)
    cat = jnp.concatenate([origin, x0, x1, x2], -1)
    out = b1x1(cat, params['lin']['w'], params['lin']['s'], params['lin']['b'], False)
    short = b1x1(x, params['short']['w'], params['short']['s'], params['short']['b'], False)
    out = jnp.maximum(out * scale + short, 0.0)
    return jnp.transpose(out, (0, 3, 1, 2))


# ------------------------------------ main ---------------------------------- #

if __name__ == "__main__":
    key = jax.random.PRNGKey(0)
    kx, kp = jax.random.split(key)

    N, C, H, W = 2, 16, 16, 16           # in_planes=16, map_reduce=8 -> inter=2
    OUT = 16
    x = jax.random.normal(kx, (N, C, H, W), jnp.float32)
    params = init_params(kp, in_planes=C, out_planes=OUT)

    ref = ref_forward(x, params, scale=0.1)

    # f32 MXU operands: tight check against the pure-JAX reference.
    fwd32 = jax.jit(functools.partial(basic_rfb_forward, scale=0.1,
                                      compute_dtype=jnp.float32))
    out32 = jax.block_until_ready(fwd32(x, params))
    assert out32.shape == (N, OUT, H, W), out32.shape
    err32 = float(jnp.max(jnp.abs(out32 - ref)))
    assert jnp.allclose(out32, ref, atol=1e-4, rtol=1e-4), err32

    # bf16 MXU operands (production default; f32 accumulation / affines / residual).
    fwd16 = jax.jit(functools.partial(basic_rfb_forward, scale=0.1))
    out16 = jax.block_until_ready(fwd16(x, params))
    err16 = float(jnp.max(jnp.abs(out16 - ref)))
    assert err16 < 5e-2 * (float(jnp.max(jnp.abs(ref))) + 1.0), err16

    print("KERNEL_OK")
</pallas_src>

<mosaic_0001>
module attributes {stable_mosaic.version = 11 : i64} {
  func.func @_rfb_fused_kernel(%arg0: i32, %arg1: memref<1x16x16x16xf32, #tpu.memory_space<vmem>>, %arg2: memref<16x24xf32, #tpu.memory_space<vmem>>, %arg3: memref<1x24xf32, #tpu.memory_space<vmem>>, %arg4: memref<1x24xf32, #tpu.memory_space<vmem>>, %arg5: memref<4x18x4xf32, #tpu.memory_space<vmem>>, %arg6: memref<4x1x4xf32, #tpu.memory_space<vmem>>, %arg7: memref<4x1x4xf32, #tpu.memory_space<vmem>>, %arg8: memref<16x16xf32, #tpu.memory_space<vmem>>, %arg9: memref<1x16xf32, #tpu.memory_space<vmem>>, %arg10: memref<1x16xf32, #tpu.memory_space<vmem>>, %arg11: memref<1x16x16x16xf32, #tpu.memory_space<vmem>>, %arg12: memref<4x26x26x2xf32, #tpu.memory_space<vmem>>) attributes {dimension_semantics = [#tpu.dimension_semantics<parallel>], iteration_bounds = array<i64: 2>, scalar_prefetch = 0 : i64, scratch_operands = 1 : i64, tpu.core_type = #tpu.core_type<tc>, window_params = [{transform_indices = @transform_0, window_bounds = array<i64: 1, 16, 16, 16>}, {pipeline_mode = #tpu.pipeline_mode<synchronous>, transform_indices = @transform_1, window_bounds = array<i64: 16, 24>}, {pipeline_mode = #tpu.pipeline_mode<synchronous>, transform_indices = @transform_2, window_bounds = array<i64: 1, 24>}, {pipeline_mode = #tpu.pipeline_mode<synchronous>, transform_indices = @transform_3, window_bounds = array<i64: 1, 24>}, {pipeline_mode = #tpu.pipeline_mode<synchronous>, transform_indices = @transform_4, window_bounds = array<i64: 4, 18, 4>}, {pipeline_mode = #tpu.pipeline_mode<synchronous>, transform_indices = @transform_5, window_bounds = array<i64: 4, 1, 4>}, {pipeline_mode = #tpu.pipeline_mode<synchronous>, transform_indices = @transform_6, window_bounds = array<i64: 4, 1, 4>}, {pipeline_mode = #tpu.pipeline_mode<synchronous>, transform_indices = @transform_7, window_bounds = array<i64: 16, 16>}, {pipeline_mode = #tpu.pipeline_mode<synchronous>, transform_indices = @transform_8, window_bounds = array<i64: 1, 16>}, {pipeline_mode = #tpu.pipeline_mode<synchronous>, transform_indices = @transform_9, window_bounds = array<i64: 1, 16>}, {transform_indices = @transform_10, window_bounds = array<i64: 1, 16, 16, 16>}]} {
    %c0 = arith.constant 0 : index
    %c0_0 = arith.constant 0 : index
    %c0_1 = arith.constant 0 : index
    %c0_2 = arith.constant 0 : index
    %0 = vector.load %arg1[%c0, %c0_0, %c0_1, %c0_2] : memref<1x16x16x16xf32, #tpu.memory_space<vmem>>, vector<1x16x16x16xf32>
    %1 = vector.shape_cast %0 : vector<1x16x16x16xf32> to vector<16x16x16xf32>
    %2 = vector.shape_cast %1 : vector<16x16x16xf32> to vector<256x16xf32>
    %c0_3 = arith.constant 0 : index
    %c0_4 = arith.constant 0 : index
    %3 = vector.load %arg2[%c0_3, %c0_4] : memref<16x24xf32, #tpu.memory_space<vmem>>, vector<16x24xf32>
    %cst = arith.constant dense<0.000000e+00> : vector<256x24xf32>
    %4 = tpu.matmul %2, %3, %cst {dimension_numbers = #tpu.dot_dimension_numbers<[1], [0], [0], [1], [0, 0, 1, 1], [], []>} : vector<256x16xf32>, vector<16x24xf32>, vector<256x24xf32> -> vector<256x24xf32>
    %c0_5 = arith.constant 0 : index
    %c0_6 = arith.constant 0 : index
    %5 = vector.load %arg3[%c0_5, %c0_6] : memref<1x24xf32, #tpu.memory_space<vmem>>, vector<1x24xf32>
    %6 = vector.broadcast %5 : vector<1x24xf32> to vector<256x24xf32>
    %7 = arith.mulf %4, %6 : vector<256x24xf32>
    %c0_7 = arith.constant 0 : index
    %c0_8 = arith.constant 0 : index
    %8 = vector.load %arg4[%c0_7, %c0_8] : memref<1x24xf32, #tpu.memory_space<vmem>>, vector<1x24xf32>
    %9 = vector.broadcast %8 : vector<1x24xf32> to vector<256x24xf32>
    %10 = arith.addf %7, %9 : vector<256x24xf32>
    %11 = vector.extract_strided_slice %10 {offsets = [0, 8], sizes = [256, 16], strides = [1, 1]} : vector<256x24xf32> to vector<256x16xf32>
    %cst_9 = arith.constant 0.000000e+00 : f32
    %12 = vector.broadcast %cst_9 : f32 to vector<4x26x26x2xf32>
    %c0_10 = arith.constant 0 : index
    %c0_11 = arith.constant 0 : index
    %c0_12 = arith.constant 0 : index
    %c0_13 = arith.constant 0 : index
    %13 = vector.load %arg12[%c0_10, %c0_11, %c0_12, %c0_13] : memref<4x26x26x2xf32, #tpu.memory_space<vmem>>, vector<4x26x26x2xf32>
    tpu.vector_store %arg12[%c0_10, %c0_11, %c0_12, %c0_13], %12 {strides = array<i32>} : memref<4x26x26x2xf32, #tpu.memory_space<vmem>>, vector<4x26x26x2xf32>,
    %14 = vector.extract_strided_slice %10 {offsets = [0, 0], sizes = [256, 2], strides = [1, 1]} : vector<256x24xf32> to vector<256x2xf32>
    %15 = vector.shape_cast %14 : vector<256x2xf32> to vector<16x16x2xf32>
    %c0_14 = arith.constant 0 : index
    %c5 = arith.constant 5 : index
    %c5_15 = arith.constant 5 : index
    %c0_16 = arith.constant 0 : index
    %16 = vector.load %arg12[%c0_14, %c5, %c5_15, %c0_16] : memref<4x26x26x2xf32, #tpu.memory_space<vmem>>, vector<1x16x16x2xf32>
    %17 = vector.shape_cast %16 : vector<1x16x16x2xf32> to vector<16x16x2xf32>
    %18 = vector.shape_cast %15 : vector<16x16x2xf32> to vector<1x16x16x2xf32>
    tpu.vector_store %arg12[%c0_14, %c5, %c5_15, %c0_16], %18 {strides = array<i32>} : memref<4x26x26x2xf32, #tpu.memory_space<vmem>>, vector<1x16x16x2xf32>,
    %19 = vector.extract_strided_slice %10 {offsets = [0, 2], sizes = [256, 2], strides = [1, 1]} : vector<256x24xf32> to vector<256x2xf32>
    %20 = vector.shape_cast %19 : vector<256x2xf32> to vector<16x16x2xf32>
    %c1 = arith.constant 1 : index
    %c5_17 = arith.constant 5 : index
    %c5_18 = arith.constant 5 : index
    %c0_19 = arith.constant 0 : index
    %21 = vector.load %arg12[%c1, %c5_17, %c5_18, %c0_19] : memref<4x26x26x2xf32, #tpu.memory_space<vmem>>, vector<1x16x16x2xf32>
    %22 = vector.shape_cast %21 : vector<1x16x16x2xf32> to vector<16x16x2xf32>
    %23 = vector.shape_cast %20 : vector<16x16x2xf32> to vector<1x16x16x2xf32>
    tpu.vector_store %arg12[%c1, %c5_17, %c5_18, %c0_19], %23 {strides = array<i32>} : memref<4x26x26x2xf32, #tpu.memory_space<vmem>>, vector<1x16x16x2xf32>,
    %24 = vector.extract_strided_slice %10 {offsets = [0, 4], sizes = [256, 2], strides = [1, 1]} : vector<256x24xf32> to vector<256x2xf32>
    %25 = vector.shape_cast %24 : vector<256x2xf32> to vector<16x16x2xf32>
    %c2 = arith.constant 2 : index
    %c5_20 = arith.constant 5 : index
    %c5_21 = arith.constant 5 : index
    %c0_22 = arith.constant 0 : index
    %26 = vector.load %arg12[%c2, %c5_20, %c5_21, %c0_22] : memref<4x26x26x2xf32, #tpu.memory_space<vmem>>, vector<1x16x16x2xf32>
    %27 = vector.shape_cast %26 : vector<1x16x16x2xf32> to vector<16x16x2xf32>
    %28 = vector.shape_cast %25 : vector<16x16x2xf32> to vector<1x16x16x2xf32>
    tpu.vector_store %arg12[%c2, %c5_20, %c5_21, %c0_22], %28 {strides = array<i32>} : memref<4x26x26x2xf32, #tpu.memory_space<vmem>>, vector<1x16x16x2xf32>,
    %29 = vector.extract_strided_slice %10 {offsets = [0, 6], sizes = [256, 2], strides = [1, 1]} : vector<256x24xf32> to vector<256x2xf32>
    %30 = vector.shape_cast %29 : vector<256x2xf32> to vector<16x16x2xf32>
    %c3 = arith.constant 3 : index
    %c5_23 = arith.constant 5 : index
    %c5_24 = arith.constant 5 : index
    %c0_25 = arith.constant 0 : index
    %31 = vector.load %arg12[%c3, %c5_23, %c5_24, %c0_25] : memref<4x26x26x2xf32, #tpu.memory_space<vmem>>, vector<1x16x16x2xf32>
    %32 = vector.shape_cast %31 : vector<1x16x16x2xf32> to vector<16x16x2xf32>
    %33 = vector.shape_cast %30 : vector<16x16x2xf32> to vector<1x16x16x2xf32>
    tpu.vector_store %arg12[%c3, %c5_23, %c5_24, %c0_25], %33 {strides = array<i32>} : memref<4x26x26x2xf32, #tpu.memory_space<vmem>>, vector<1x16x16x2xf32>,
    %c0_26 = arith.constant 0 : index
    %c4 = arith.constant 4 : index
    %c4_27 = arith.constant 4 : index
    %c0_28 = arith.constant 0 : index
    %34 = vector.load %arg12[%c0_26, %c4, %c4_27, %c0_28] : memref<4x26x26x2xf32, #tpu.memory_space<vmem>>, vector<1x16x16x2xf32>
    %35 = vector.shape_cast %34 : vector<1x16x16x2xf32> to vector<16x16x2xf32>
    %36 = vector.shape_cast %35 : vector<16x16x2xf32> to vector<256x2xf32>
    %c0_29 = arith.constant 0 : index
    %c4_30 = arith.constant 4 : index
    %c5_31 = arith.constant 5 : index
    %c0_32 = arith.constant 0 : index
    %37 = vector.load %arg12[%c0_29, %c4_30, %c5_31, %c0_32] : memref<4x26x26x2xf32, #tpu.memory_space<vmem>>, vector<1x16x16x2xf32>
    %38 = vector.shape_cast %37 : vector<1x16x16x2xf32> to vector<16x16x2xf32>
    %39 = vector.shape_cast %38 : vector<16x16x2xf32> to vector<256x2xf32>
    %c0_33 = arith.constant 0 : index
    %c4_34 = arith.constant 4 : index
    %c6 = arith.constant 6 : index
    %c0_35 = arith.constant 0 : index
    %40 = vector.load %arg12[%c0_33, %c4_34, %c6, %c0_35] : memref<4x26x26x2xf32, #tpu.memory_space<vmem>>, vector<1x16x16x2xf32>
    %41 = vector.shape_cast %40 : vector<1x16x16x2xf32> to vector<16x16x2xf32>
    %42 = vector.shape_cast %41 : vector<16x16x2xf32> to vector<256x2xf32>
    %c0_36 = arith.constant 0 : index
    %c5_37 = arith.constant 5 : index
    %c4_38 = arith.constant 4 : index
    %c0_39 = arith.constant 0 : index
    %43 = vector.load %arg12[%c0_36, %c5_37, %c4_38, %c0_39] : memref<4x26x26x2xf32, #tpu.memory_space<vmem>>, vector<1x16x16x2xf32>
    %44 = vector.shape_cast %43 : vector<1x16x16x2xf32> to vector<16x16x2xf32>
    %45 = vector.shape_cast %44 : vector<16x16x2xf32> to vector<256x2xf32>
    %c0_40 = arith.constant 0 : index
    %c5_41 = arith.constant 5 : index
    %c5_42 = arith.constant 5 : index
    %c0_43 = arith.constant 0 : index
    %46 = vector.load %arg12[%c0_40, %c5_41, %c5_42, %c0_43] : memref<4x26x26x2xf32, #tpu.memory_space<vmem>>, vector<1x16x16x2xf32>
    %47 = vector.shape_cast %46 : vector<1x16x16x2xf32> to vector<16x16x2xf32>
    %48 = vector.shape_cast %47 : vector<16x16x2xf32> to vector<256x2xf32>
    %c0_44 = arith.constant 0 : index
    %c5_45 = arith.constant 5 : index
    %c6_46 = arith.constant 6 : index
    %c0_47 = arith.constant 0 : index
    %49 = vector.load %arg12[%c0_44, %c5_45, %c6_46, %c0_47] : memref<4x26x26x2xf32, #tpu.memory_space<vmem>>, vector<1x16x16x2xf32>
    %50 = vector.shape_cast %49 : vector<1x16x16x2xf32> to vector<16x16x2xf32>
    %51 = vector.shape_cast %50 : vector<16x16x2xf32> to vector<256x2xf32>
    %c0_48 = arith.constant 0 : index
    %c6_49 = arith.constant 6 : index
    %c4_50 = arith.constant 4 : index
    %c0_51 = arith.constant 0 : index
    %52 = vector.load %arg12[%c0_48, %c6_49, %c4_50, %c0_51] : memref<4x26x26x2xf32, #tpu.memory_space<vmem>>, vector<1x16x16x2xf32>
    %53 = vector.shape_cast %52 : vector<1x16x16x2xf32> to vector<16x16x2xf32>
    %54 = vector.shape_cast %53 : vector<16x16x2xf32> to vector<256x2xf32>
    %c0_52 = arith.constant 0 : index
    %c6_53 = arith.constant 6 : index
    %c5_54 = arith.constant 5 : index
    %c0_55 = arith.constant 0 : index
    %55 = vector.load %arg12[%c0_52, %c6_53, %c5_54, %c0_55] : memref<4x26x26x2xf32, #tpu.memory_space<vmem>>, vector<1x16x16x2xf32>
    %56 = vector.shape_cast %55 : vector<1x16x16x2xf32> to vector<16x16x2xf32>
    %57 = vector.shape_cast %56 : vector<16x16x2xf32> to vector<256x2xf32>
    %c0_56 = arith.constant 0 : index
    %c6_57 = arith.constant 6 : index
    %c6_58 = arith.constant 6 : index
    %c0_59 = arith.constant 0 : index
    %58 = vector.load %arg12[%c0_56, %c6_57, %c6_58, %c0_59] : memref<4x26x26x2xf32, #tpu.memory_space<vmem>>, vector<1x16x16x2xf32>
    %59 = vector.shape_cast %58 : vector<1x16x16x2xf32> to vector<16x16x2xf32>
    %60 = vector.shape_cast %59 : vector<16x16x2xf32> to vector<256x2xf32>
    %61 = tpu.concatenate %36, %39, %42, %45, %48, %51, %54, %57, %60 in 1 : vector<256x2xf32>, vector<256x2xf32>, vector<256x2xf32>, vector<256x2xf32>, vector<256x2xf32>, vector<256x2xf32>, vector<256x2xf32>, vector<256x2xf32>, vector<256x2xf32> -> vector<256x18xf32>
    %c0_60 = arith.constant 0 : index
    %c0_61 = arith.constant 0 : index
    %c0_62 = arith.constant 0 : index
    %62 = vector.load %arg5[%c0_60, %c0_61, %c0_62] : memref<4x18x4xf32, #tpu.memory_space<vmem>>, vector<1x18x4xf32>
    %63 = vector.shape_cast %62 : vector<1x18x4xf32> to vector<18x4xf32>
    %cst_63 = arith.constant dense<0.000000e+00> : vector<256x4xf32>
    %64 = tpu.matmul %61, %63, %cst_63 {dimension_numbers = #tpu.dot_dimension_numbers<[1], [0], [0], [1], [0, 0, 1, 1], [], []>} : vector<256x18xf32>, vector<18x4xf32>, vector<256x4xf32> -> vector<256x4xf32>
    %c0_64 = arith.constant 0 : index
    %c0_65 = arith.constant 0 : index
    %c0_66 = arith.constant 0 : index
    %65 = vector.load %arg6[%c0_64, %c0_65, %c0_66] : memref<4x1x4xf32, #tpu.memory_space<vmem>>, vector<1x1x4xf32>
    %66 = vector.shape_cast %65 : vector<1x1x4xf32> to vector<1x4xf32>
    %67 = vector.broadcast %66 : vector<1x4xf32> to vector<256x4xf32>
    %68 = arith.mulf %64, %67 : vector<256x4xf32>
    %c0_67 = arith.constant 0 : index
    %c0_68 = arith.constant 0 : index
    %c0_69 = arith.constant 0 : index
    %69 = vector.load %arg7[%c0_67, %c0_68, %c0_69] : memref<4x1x4xf32, #tpu.memory_space<vmem>>, vector<1x1x4xf32>
    %70 = vector.shape_cast %69 : vector<1x1x4xf32> to vector<1x4xf32>
    %71 = vector.broadcast %70 : vector<1x4xf32> to vector<256x4xf32>
    %72 = arith.addf %68, %71 : vector<256x4xf32>
    %cst_70 = arith.constant 0.000000e+00 : f32
    %73 = vector.broadcast %cst_70 : f32 to vector<256x4xf32>
    %74 = arith.maximumf %72, %73 : vector<256x4xf32>
    %c1_71 = arith.constant 1 : index
    %c3_72 = arith.constant 3 : index
    %c3_73 = arith.constant 3 : index
    %c0_74 = arith.constant 0 : index
    %75 = vector.load %arg12[%c1_71, %c3_72, %c3_73, %c0_74] : memref<4x26x26x2xf32, #tpu.memory_space<vmem>>, vector<1x16x16x2xf32>
    %76 = vector.shape_cast %75 : vector<1x16x16x2xf32> to vector<16x16x2xf32>
    %77 = vector.shape_cast %76 : vector<16x16x2xf32> to vector<256x2xf32>
    %c1_75 = arith.constant 1 : index
    %c3_76 = arith.constant 3 : index
    %c5_77 = arith.constant 5 : index
    %c0_78 = arith.constant 0 : index
    %78 = vector.load %arg12[%c1_75, %c3_76, %c5_77, %c0_78] : memref<4x26x26x2xf32, #tpu.memory_space<vmem>>, vector<1x16x16x2xf32>
    %79 = vector.shape_cast %78 : vector<1x16x16x2xf32> to vector<16x16x2xf32>
    %80 = vector.shape_cast %79 : vector<16x16x2xf32> to vector<256x2xf32>
    %c1_79 = arith.constant 1 : index
    %c3_80 = arith.constant 3 : index
    %c7 = arith.constant 7 : index
    %c0_81 = arith.constant 0 : index
    %81 = vector.load %arg12[%c1_79, %c3_80, %c7, %c0_81] : memref<4x26x26x2xf32, #tpu.memory_space<vmem>>, vector<1x16x16x2xf32>
    %82 = vector.shape_cast %81 : vector<1x16x16x2xf32> to vector<16x16x2xf32>
    %83 = vector.shape_cast %82 : vector<16x16x2xf32> to vector<256x2xf32>
    %c1_82 = arith.constant 1 : index
    %c5_83 = arith.constant 5 : index
    %c3_84 = arith.constant 3 : index
    %c0_85 = arith.constant 0 : index
    %84 = vector.load %arg12[%c1_82, %c5_83, %c3_84, %c0_85] : memref<4x26x26x2xf32, #tpu.memory_space<vmem>>, vector<1x16x16x2xf32>
    %85 = vector.shape_cast %84 : vector<1x16x16x2xf32> to vector<16x16x2xf32>
    %86 = vector.shape_cast %85 : vector<16x16x2xf32> to vector<256x2xf32>
    %c1_86 = arith.constant 1 : index
    %c5_87 = arith.constant 5 : index
    %c5_88 = arith.constant 5 : index
    %c0_89 = arith.constant 0 : index
    %87 = vector.load %arg12[%c1_86, %c5_87, %c5_88, %c0_89] : memref<4x26x26x2xf32, #tpu.memory_space<vmem>>, vector<1x16x16x2xf32>
    %88 = vector.shape_cast %87 : vector<1x16x16x2xf32> to vector<16x16x2xf32>
    %89 = vector.shape_cast %88 : vector<16x16x2xf32> to vector<256x2xf32>
    %c1_90 = arith.constant 1 : index
    %c5_91 = arith.constant 5 : index
    %c7_92 = arith.constant 7 : index
    %c0_93 = arith.constant 0 : index
    %90 = vector.load %arg12[%c1_90, %c5_91, %c7_92, %c0_93] : memref<4x26x26x2xf32, #tpu.memory_space<vmem>>, vector<1x16x16x2xf32>
    %91 = vector.shape_cast %90 : vector<1x16x16x2xf32> to vector<16x16x2xf32>
    %92 = vector.shape_cast %91 : vector<16x16x2xf32> to vector<256x2xf32>
    %c1_94 = arith.constant 1 : index
    %c7_95 = arith.constant 7 : index
    %c3_96 = arith.constant 3 : index
    %c0_97 = arith.constant 0 : index
    %93 = vector.load %arg12[%c1_94, %c7_95, %c3_96, %c0_97] : memref<4x26x26x2xf32, #tpu.memory_space<vmem>>, vector<1x16x16x2xf32>
    %94 = vector.shape_cast %93 : vector<1x16x16x2xf32> to vector<16x16x2xf32>
    %95 = vector.shape_cast %94 : vector<16x16x2xf32> to vector<256x2xf32>
    %c1_98 = arith.constant 1 : index
    %c7_99 = arith.constant 7 : index
    %c5_100 = arith.constant 5 : index
    %c0_101 = arith.constant 0 : index
    %96 = vector.load %arg12[%c1_98, %c7_99, %c5_100, %c0_101] : memref<4x26x26x2xf32, #tpu.memory_space<vmem>>, vector<1x16x16x2xf32>
    %97 = vector.shape_cast %96 : vector<1x16x16x2xf32> to vector<16x16x2xf32>
    %98 = vector.shape_cast %97 : vector<16x16x2xf32> to vector<256x2xf32>
    %c1_102 = arith.constant 1 : index
    %c7_103 = arith.constant 7 : index
    %c7_104 = arith.constant 7 : index
    %c0_105 = arith.constant 0 : index
    %99 = vector.load %arg12[%c1_102, %c7_103, %c7_104, %c0_105] : memref<4x26x26x2xf32, #tpu.memory_space<vmem>>, vector<1x16x16x2xf32>
    %100 = vector.shape_cast %99 : vector<1x16x16x2xf32> to vector<16x16x2xf32>
    %101 = vector.shape_cast %100 : vector<16x16x2xf32> to vector<256x2xf32>
    %102 = tpu.concatenate %77, %80, %83, %86, %89, %92, %95, %98, %101 in 1 : vector<256x2xf32>, vector<256x2xf32>, vector<256x2xf32>, vector<256x2xf32>, vector<256x2xf32>, vector<256x2xf32>, vector<256x2xf32>, vector<256x2xf32>, vector<256x2xf32> -> vector<256x18xf32>
    %c1_106 = arith.constant 1 : index
    %c0_107 = arith.constant 0 : index
    %c0_108 = arith.constant 0 : index
    %103 = vector.load %arg5[%c1_106, %c0_107, %c0_108] : memref<4x18x4xf32, #tpu.memory_space<vmem>>, vector<1x18x4xf32>
    %104 = vector.shape_cast %103 : vector<1x18x4xf32> to vector<18x4xf32>
    %cst_109 = arith.constant dense<0.000000e+00> : vector<256x4xf32>
    %105 = tpu.matmul %102, %104, %cst_109 {dimension_numbers = #tpu.dot_dimension_numbers<[1], [0], [0], [1], [0, 0, 1, 1], [], []>} : vector<256x18xf32>, vector<18x4xf32>, vector<256x4xf32> -> vector<256x4xf32>
    %c1_110 = arith.constant 1 : index
    %c0_111 = arith.constant 0 : index
    %c0_112 = arith.constant 0 : index
    %106 = vector.load %arg6[%c1_110, %c0_111, %c0_112] : memref<4x1x4xf32, #tpu.memory_space<vmem>>, vector<1x1x4xf32>
    %107 = vector.shape_cast %106 : vector<1x1x4xf32> to vector<1x4xf32>
    %108 = vector.broadcast %107 : vector<1x4xf32> to vector<256x4xf32>
    %109 = arith.mulf %105, %108 : vector<256x4xf32>
    %c1_113 = arith.constant 1 : index
    %c0_114 = arith.constant 0 : index
    %c0_115 = arith.constant 0 : index
    %110 = vector.load %arg7[%c1_113, %c0_114, %c0_115] : memref<4x1x4xf32, #tpu.memory_space<vmem>>, vector<1x1x4xf32>
    %111 = vector.shape_cast %110 : vector<1x1x4xf32> to vector<1x4xf32>
    %112 = vector.broadcast %111 : vector<1x4xf32> to vector<256x4xf32>
    %113 = arith.addf %109, %112 : vector<256x4xf32>
    %c2_116 = arith.constant 2 : index
    %c2_117 = arith.constant 2 : index
    %c2_118 = arith.constant 2 : index
    %c0_119 = arith.constant 0 : index
    %114 = vector.load %arg12[%c2_116, %c2_117, %c2_118, %c0_119] : memref<4x26x26x2xf32, #tpu.memory_space<vmem>>, vector<1x16x16x2xf32>
    %115 = vector.shape_cast %114 : vector<1x16x16x2xf32> to vector<16x16x2xf32>
    %116 = vector.shape_cast %115 : vector<16x16x2xf32> to vector<256x2xf32>
    %c2_120 = arith.constant 2 : index
    %c2_121 = arith.constant 2 : index
    %c5_122 = arith.constant 5 : index
    %c0_123 = arith.constant 0 : index
    %117 = vector.load %arg12[%c2_120, %c2_121, %c5_122, %c0_123] : memref<4x26x26x2xf32, #tpu.memory_space<vmem>>, vector<1x16x16x2xf32>
    %118 = vector.shape_cast %117 : vector<1x16x16x2xf32> to vector<16x16x2xf32>
    %119 = vector.shape_cast %118 : vector<16x16x2xf32> to vector<256x2xf32>
    %c2_124 = arith.constant 2 : index
    %c2_125 = arith.constant 2 : index
    %c8 = arith.constant 8 : index
    %c0_126 = arith.constant 0 : index
    %120 = vector.load %arg12[%c2_124, %c2_125, %c8, %c0_126] : memref<4x26x26x2xf32, #tpu.memory_space<vmem>>, vector<1x16x16x2xf32>
    %121 = vector.shape_cast %120 : vector<1x16x16x2xf32> to vector<16x16x2xf32>
    %122 = vector.shape_cast %121 : vector<16x16x2xf32> to vector<256x2xf32>
    %c2_127 = arith.constant 2 : index
    %c5_128 = arith.constant 5 : index
    %c2_129 = arith.constant 2 : index
    %c0_130 = arith.constant 0 : index
    %123 = vector.load %arg12[%c2_127, %c5_128, %c2_129, %c0_130] : memref<4x26x26x2xf32, #tpu.memory_space<vmem>>, vector<1x16x16x2xf32>
    %124 = vector.shape_cast %123 : vector<1x16x16x2xf32> to vector<16x16x2xf32>
    %125 = vector.shape_cast %124 : vector<16x16x2xf32> to vector<256x2xf32>
    %c2_131 = arith.constant 2 : index
    %c5_132 = arith.constant 5 : index
    %c5_133 = arith.constant 5 : index
    %c0_134 = arith.constant 0 : index
    %126 = vector.load %arg12[%c2_131, %c5_132, %c5_133, %c0_134] : memref<4x26x26x2xf32, #tpu.memory_space<vmem>>, vector<1x16x16x2xf32>
    %127 = vector.shape_cast %126 : vector<1x16x16x2xf32> to vector<16x16x2xf32>
    %128 = vector.shape_cast %127 : vector<16x16x2xf32> to vector<256x2xf32>
    %c2_135 = arith.constant 2 : index
    %c5_136 = arith.constant 5 : index
    %c8_137 = arith.constant 8 : index
    %c0_138 = arith.constant 0 : index
    %129 = vector.load %arg12[%c2_135, %c5_136, %c8_137, %c0_138] : memref<4x26x26x2xf32, #tpu.memory_space<vmem>>, vector<1x16x16x2xf32>
    %130 = vector.shape_cast %129 : vector<1x16x16x2xf32> to vector<16x16x2xf32>
    %131 = vector.shape_cast %130 : vector<16x16x2xf32> to vector<256x2xf32>
    %c2_139 = arith.constant 2 : index
    %c8_140 = arith.constant 8 : index
    %c2_141 = arith.constant 2 : index
    %c0_142 = arith.constant 0 : index
    %132 = vector.load %arg12[%c2_139, %c8_140, %c2_141, %c0_142] : memref<4x26x26x2xf32, #tpu.memory_space<vmem>>, vector<1x16x16x2xf32>
    %133 = vector.shape_cast %132 : vector<1x16x16x2xf32> to vector<16x16x2xf32>
    %134 = vector.shape_cast %133 : vector<16x16x2xf32> to vector<256x2xf32>
    %c2_143 = arith.constant 2 : index
    %c8_144 = arith.constant 8 : index
    %c5_145 = arith.constant 5 : index
    %c0_146 = arith.constant 0 : index
    %135 = vector.load %arg12[%c2_143, %c8_144, %c5_145, %c0_146] : memref<4x26x26x2xf32, #tpu.memory_space<vmem>>, vector<1x16x16x2xf32>
    %136 = vector.shape_cast %135 : vector<1x16x16x2xf32> to vector<16x16x2xf32>
    %137 = vector.shape_cast %136 : vector<16x16x2xf32> to vector<256x2xf32>
    %c2_147 = arith.constant 2 : index
    %c8_148 = arith.constant 8 : index
    %c8_149 = arith.constant 8 : index
    %c0_150 = arith.constant 0 : index
    %138 = vector.load %arg12[%c2_147, %c8_148, %c8_149, %c0_150] : memref<4x26x26x2xf32, #tpu.memory_space<vmem>>, vector<1x16x16x2xf32>
    %139 = vector.shape_cast %138 : vector<1x16x16x2xf32> to vector<16x16x2xf32>
    %140 = vector.shape_cast %139 : vector<16x16x2xf32> to vector<256x2xf32>
    %141 = tpu.concatenate %116, %119, %122, %125, %128, %131, %134, %137, %140 in 1 : vector<256x2xf32>, vector<256x2xf32>, vector<256x2xf32>, vector<256x2xf32>, vector<256x2xf32>, vector<256x2xf32>, vector<256x2xf32>, vector<256x2xf32>, vector<256x2xf32> -> vector<256x18xf32>
    %c2_151 = arith.constant 2 : index
    %c0_152 = arith.constant 0 : index
    %c0_153 = arith.constant 0 : index
    %142 = vector.load %arg5[%c2_151, %c0_152, %c0_153] : memref<4x18x4xf32, #tpu.memory_space<vmem>>, vector<1x18x4xf32>
    %143 = vector.shape_cast %142 : vector<1x18x4xf32> to vector<18x4xf32>
    %cst_154 = arith.constant dense<0.000000e+00> : vector<256x4xf32>
    %144 = tpu.matmul %141, %143, %cst_154 {dimension_numbers = #tpu.dot_dimension_numbers<[1], [0], [0], [1], [0, 0, 1, 1], [], []>} : vector<256x18xf32>, vector<18x4xf32>, vector<256x4xf32> -> vector<256x4xf32>
    %c2_155 = arith.constant 2 : index
    %c0_156 = arith.constant 0 : index
    %c0_157 = arith.constant 0 : index
    %145 = vector.load %arg6[%c2_155, %c0_156, %c0_157] : memref<4x1x4xf32, #tpu.memory_space<vmem>>, vector<1x1x4xf32>
    %146 = vector.shape_cast %145 : vector<1x1x4xf32> to vector<1x4xf32>
    %147 = vector.broadcast %146 : vector<1x4xf32> to vector<256x4xf32>
    %148 = arith.mulf %144, %147 : vector<256x4xf32>
    %c2_158 = arith.constant 2 : index
    %c0_159 = arith.constant 0 : index
    %c0_160 = arith.constant 0 : index
    %149 = vector.load %arg7[%c2_158, %c0_159, %c0_160] : memref<4x1x4xf32, #tpu.memory_space<vmem>>, vector<1x1x4xf32>
    %150 = vector.shape_cast %149 : vector<1x1x4xf32> to vector<1x4xf32>
    %151 = vector.broadcast %150 : vector<1x4xf32> to vector<256x4xf32>
    %152 = arith.addf %148, %151 : vector<256x4xf32>
    %c3_161 = arith.constant 3 : index
    %c0_162 = arith.constant 0 : index
    %c0_163 = arith.constant 0 : index
    %c0_164 = arith.constant 0 : index
    %153 = vector.load %arg12[%c3_161, %c0_162, %c0_163, %c0_164] : memref<4x26x26x2xf32, #tpu.memory_space<vmem>>, vector<1x16x16x2xf32>
    %154 = vector.shape_cast %153 : vector<1x16x16x2xf32> to vector<16x16x2xf32>
    %155 = vector.shape_cast %154 : vector<16x16x2xf32> to vector<256x2xf32>
    %c3_165 = arith.constant 3 : index
    %c0_166 = arith.constant 0 : index
    %c5_167 = arith.constant 5 : index
    %c0_168 = arith.constant 0 : index
    %156 = vector.load %arg12[%c3_165, %c0_166, %c5_167, %c0_168] : memref<4x26x26x2xf32, #tpu.memory_space<vmem>>, vector<1x16x16x2xf32>
    %157 = vector.shape_cast %156 : vector<1x16x16x2xf32> to vector<16x16x2xf32>
    %158 = vector.shape_cast %157 : vector<16x16x2xf32> to vector<256x2xf32>
    %c3_169 = arith.constant 3 : index
    %c0_170 = arith.constant 0 : index
    %c10 = arith.constant 10 : index
    %c0_171 = arith.constant 0 : index
    %159 = vector.load %arg12[%c3_169, %c0_170, %c10, %c0_171] : memref<4x26x26x2xf32, #tpu.memory_space<vmem>>, vector<1x16x16x2xf32>
    %160 = vector.shape_cast %159 : vector<1x16x16x2xf32> to vector<16x16x2xf32>
    %161 = vector.shape_cast %160 : vector<16x16x2xf32> to vector<256x2xf32>
    %c3_172 = arith.constant 3 : index
    %c5_173 = arith.constant 5 : index
    %c0_174 = arith.constant 0 : index
    %c0_175 = arith.constant 0 : index
    %162 = vector.load %arg12[%c3_172, %c5_173, %c0_174, %c0_175] : memref<4x26x26x2xf32, #tpu.memory_space<vmem>>, vector<1x16x16x2xf32>
    %163 = vector.shape_cast %162 : vector<1x16x16x2xf32> to vector<16x16x2xf32>
    %164 = vector.shape_cast %163 : vector<16x16x2xf32> to vector<256x2xf32>
    %c3_176 = arith.constant 3 : index
    %c5_177 = arith.constant 5 : index
    %c5_178 = arith.constant 5 : index
    %c0_179 = arith.constant 0 : index
    %165 = vector.load %arg12[%c3_176, %c5_177, %c5_178, %c0_179] : memref<4x26x26x2xf32, #tpu.memory_space<vmem>>, vector<1x16x16x2xf32>
    %166 = vector.shape_cast %165 : vector<1x16x16x2xf32> to vector<16x16x2xf32>
    %167 = vector.shape_cast %166 : vector<16x16x2xf32> to vector<256x2xf32>
    %c3_180 = arith.constant 3 : index
    %c5_181 = arith.constant 5 : index
    %c10_182 = arith.constant 10 : index
    %c0_183 = arith.constant 0 : index
    %168 = vector.load %arg12[%c3_180, %c5_181, %c10_182, %c0_183] : memref<4x26x26x2xf32, #tpu.memory_space<vmem>>, vector<1x16x16x2xf32>
    %169 = vector.shape_cast %168 : vector<1x16x16x2xf32> to vector<16x16x2xf32>
    %170 = vector.shape_cast %169 : vector<16x16x2xf32> to vector<256x2xf32>
    %c3_184 = arith.constant 3 : index
    %c10_185 = arith.constant 10 : index
    %c0_186 = arith.constant 0 : index
    %c0_187 = arith.constant 0 : index
    %171 = vector.load %arg12[%c3_184, %c10_185, %c0_186, %c0_187] : memref<4x26x26x2xf32, #tpu.memory_space<vmem>>, vector<1x16x16x2xf32>
    %172 = vector.shape_cast %171 : vector<1x16x16x2xf32> to vector<16x16x2xf32>
    %173 = vector.shape_cast %172 : vector<16x16x2xf32> to vector<256x2xf32>
    %c3_188 = arith.constant 3 : index
    %c10_189 = arith.constant 10 : index
    %c5_190 = arith.constant 5 : index
    %c0_191 = arith.constant 0 : index
    %174 = vector.load %arg12[%c3_188, %c10_189, %c5_190, %c0_191] : memref<4x26x26x2xf32, #tpu.memory_space<vmem>>, vector<1x16x16x2xf32>
    %175 = vector.shape_cast %174 : vector<1x16x16x2xf32> to vector<16x16x2xf32>
    %176 = vector.shape_cast %175 : vector<16x16x2xf32> to vector<256x2xf32>
    %c3_192 = arith.constant 3 : index
    %c10_193 = arith.constant 10 : index
    %c10_194 = arith.constant 10 : index
    %c0_195 = arith.constant 0 : index
    %177 = vector.load %arg12[%c3_192, %c10_193, %c10_194, %c0_195] : memref<4x26x26x2xf32, #tpu.memory_space<vmem>>, vector<1x16x16x2xf32>
    %178 = vector.shape_cast %177 : vector<1x16x16x2xf32> to vector<16x16x2xf32>
    %179 = vector.shape_cast %178 : vector<16x16x2xf32> to vector<256x2xf32>
    %180 = tpu.concatenate %155, %158, %161, %164, %167, %170, %173, %176, %179 in 1 : vector<256x2xf32>, vector<256x2xf32>, vector<256x2xf32>, vector<256x2xf32>, vector<256x2xf32>, vector<256x2xf32>, vector<256x2xf32>, vector<256x2xf32>, vector<256x2xf32> -> vector<256x18xf32>
    %c3_196 = arith.constant 3 : index
    %c0_197 = arith.constant 0 : index
    %c0_198 = arith.constant 0 : index
    %181 = vector.load %arg5[%c3_196, %c0_197, %c0_198] : memref<4x18x4xf32, #tpu.memory_space<vmem>>, vector<1x18x4xf32>
    %182 = vector.shape_cast %181 : vector<1x18x4xf32> to vector<18x4xf32>
    %cst_199 = arith.constant dense<0.000000e+00> : vector<256x4xf32>
    %183 = tpu.matmul %180, %182, %cst_199 {dimension_numbers = #tpu.dot_dimension_numbers<[1], [0], [0], [1], [0, 0, 1, 1], [], []>} : vector<256x18xf32>, vector<18x4xf32>, vector<256x4xf32> -> vector<256x4xf32>
    %c3_200 = arith.constant 3 : index
    %c0_201 = arith.constant 0 : index
    %c0_202 = arith.constant 0 : index
    %184 = vector.load %arg6[%c3_200, %c0_201, %c0_202] : memref<4x1x4xf32, #tpu.memory_space<vmem>>, vector<1x1x4xf32>
    %185 = vector.shape_cast %184 : vector<1x1x4xf32> to vector<1x4xf32>
    %186 = vector.broadcast %185 : vector<1x4xf32> to vector<256x4xf32>
    %187 = arith.mulf %183, %186 : vector<256x4xf32>
    %c3_203 = arith.constant 3 : index
    %c0_204 = arith.constant 0 : index
    %c0_205 = arith.constant 0 : index
    %188 = vector.load %arg7[%c3_203, %c0_204, %c0_205] : memref<4x1x4xf32, #tpu.memory_space<vmem>>, vector<1x1x4xf32>
    %189 = vector.shape_cast %188 : vector<1x1x4xf32> to vector<1x4xf32>
    %190 = vector.broadcast %189 : vector<1x4xf32> to vector<256x4xf32>
    %191 = arith.addf %187, %190 : vector<256x4xf32>
    %192 = tpu.concatenate %74, %113, %152, %191 in 1 : vector<256x4xf32>, vector<256x4xf32>, vector<256x4xf32>, vector<256x4xf32> -> vector<256x16xf32>
    %c0_206 = arith.constant 0 : index
    %c0_207 = arith.constant 0 : index
    %193 = vector.load %arg8[%c0_206, %c0_207] : memref<16x16xf32, #tpu.memory_space<vmem>>, vector<16x16xf32>
    %cst_208 = arith.constant dense<0.000000e+00> : vector<256x16xf32>
    %194 = tpu.matmul %192, %193, %cst_208 {dimension_numbers = #tpu.dot_dimension_numbers<[1], [0], [0], [1], [0, 0, 1, 1], [], []>} : vector<256x16xf32>, vector<16x16xf32>, vector<256x16xf32> -> vector<256x16xf32>
    %c0_209 = arith.constant 0 : index
    %c0_210 = arith.constant 0 : index
    %195 = vector.load %arg9[%c0_209, %c0_210] : memref<1x16xf32, #tpu.memory_space<vmem>>, vector<1x16xf32>
    %196 = vector.broadcast %195 : vector<1x16xf32> to vector<256x16xf32>
    %197 = arith.mulf %194, %196 : vector<256x16xf32>
    %c0_211 = arith.constant 0 : index
    %c0_212 = arith.constant 0 : index
    %198 = vector.load %arg10[%c0_211, %c0_212] : memref<1x16xf32, #tpu.memory_space<vmem>>, vector<1x16xf32>
    %199 = vector.broadcast %198 : vector<1x16xf32> to vector<256x16xf32>
    %200 = arith.addf %197, %199 : vector<256x16xf32>
    %cst_213 = arith.constant 1.000000e-01 : f32
    %201 = vector.broadcast %cst_213 : f32 to vector<256x16xf32>
    %202 = arith.mulf %200, %201 : vector<256x16xf32>
    %203 = arith.addf %202, %11 : vector<256x16xf32>
    %cst_214 = arith.constant 0.000000e+00 : f32
    %204 = vector.broadcast %cst_214 : f32 to vector<256x16xf32>
    %205 = arith.maximumf %203, %204 : vector<256x16xf32>
    %206 = vector.shape_cast %205 : vector<256x16xf32> to vector<1x16x16x16xf32>
    %c0_215 = arith.constant 0 : index
    %c0_216 = arith.constant 0 : index
    %c0_217 = arith.constant 0 : index
    %c0_218 = arith.constant 0 : index
    %207 = vector.load %arg11[%c0_215, %c0_216, %c0_217, %c0_218] : memref<1x16x16x16xf32, #tpu.memory_space<vmem>>, vector<1x16x16x16xf32>
    tpu.vector_store %arg11[%c0_215, %c0_216, %c0_217, %c0_218], %206 {strides = array<i32>} : memref<1x16x16x16xf32, #tpu.memory_space<vmem>>, vector<1x16x16x16xf32>,
    return
  }
  func.func @transform_0(%arg0: i32) -> (i32, i32, i32, i32) {
    %c0_i32 = arith.constant 0 : i32
    %c0_i32_0 = arith.constant 0 : i32
    %c0_i32_1 = arith.constant 0 : i32
    %c0_i32_2 = arith.constant 0 : i32
    return %arg0, %c0_i32, %c0_i32_0, %c0_i32_1 : i32, i32, i32, i32
  }
  func.func @transform_1(%arg0: i32) -> (i32, i32) {
    %c0_i32 = arith.constant 0 : i32
    %c0_i32_0 = arith.constant 0 : i32
    %c0_i32_1 = arith.constant 0 : i32
    return %c0_i32, %c0_i32_0 : i32, i32
  }
  func.func @transform_2(%arg0: i32) -> (i32, i32) {
    %c0_i32 = arith.constant 0 : i32
    %c0_i32_0 = arith.constant 0 : i32
    %c0_i32_1 = arith.constant 0 : i32
    return %c0_i32, %c0_i32_0 : i32, i32
  }
  func.func @transform_3(%arg0: i32) -> (i32, i32) {
    %c0_i32 = arith.constant 0 : i32
    %c0_i32_0 = arith.constant 0 : i32
    %c0_i32_1 = arith.constant 0 : i32
    return %c0_i32, %c0_i32_0 : i32, i32
  }
  func.func @transform_4(%arg0: i32) -> (i32, i32, i32) {
    %c0_i32 = arith.constant 0 : i32
    %c0_i32_0 = arith.constant 0 : i32
    %c0_i32_1 = arith.constant 0 : i32
    %c0_i32_2 = arith.constant 0 : i32
    return %c0_i32, %c0_i32_0, %c0_i32_1 : i32, i32, i32
  }
  func.func @transform_5(%arg0: i32) -> (i32, i32, i32) {
    %c0_i32 = arith.constant 0 : i32
    %c0_i32_0 = arith.constant 0 : i32
    %c0_i32_1 = arith.constant 0 : i32
    %c0_i32_2 = arith.constant 0 : i32
    return %c0_i32, %c0_i32_0, %c0_i32_1 : i32, i32, i32
  }
  func.func @transform_6(%arg0: i32) -> (i32, i32, i32) {
    %c0_i32 = arith.constant 0 : i32
    %c0_i32_0 = arith.constant 0 : i32
    %c0_i32_1 = arith.constant 0 : i32
    %c0_i32_2 = arith.constant 0 : i32
    return %c0_i32, %c0_i32_0, %c0_i32_1 : i32, i32, i32
  }
  func.func @transform_7(%arg0: i32) -> (i32, i32) {
    %c0_i32 = arith.constant 0 : i32
    %c0_i32_0 = arith.constant 0 : i32
    %c0_i32_1 = arith.constant 0 : i32
    return %c0_i32, %c0_i32_0 : i32, i32
  }
  func.func @transform_8(%arg0: i32) -> (i32, i32) {
    %c0_i32 = arith.constant 0 : i32
    %c0_i32_0 = arith.constant 0 : i32
    %c0_i32_1 = arith.constant 0 : i32
    return %c0_i32, %c0_i32_0 : i32, i32
  }
  func.func @transform_9(%arg0: i32) -> (i32, i32) {
    %c0_i32 = arith.constant 0 : i32
    %c0_i32_0 = arith.constant 0 : i32
    %c0_i32_1 = arith.constant 0 : i32
    return %c0_i32, %c0_i32_0 : i32, i32
  }
  func.func @transform_10(%arg0: i32) -> (i32, i32, i32, i32) {
    %c0_i32 = arith.constant 0 : i32
    %c0_i32_0 = arith.constant 0 : i32
    %c0_i32_1 = arith.constant 0 : i32
    %c0_i32_2 = arith.constant 0 : i32
    return %arg0, %c0_i32, %c0_i32_0, %c0_i32_1 : i32, i32, i32, i32
  }
}

</mosaic_0001>

<llo_original>
// kernel: basic_rfb_forward.1
$region0: #{basic_rfb_forward.1}
  #allocation0 [shape = 'u32[]', space=smem, size = 0x4, offset = 0x4, fixed_abs, tag = 'smem constant byte address 0x4 - core index']
  #allocation1 [shape = 'u32[144,128]{1,0:T(1,128)}', space=vmem, size = 0x12000, scoped, tag = 'internal scratch']
  #allocation2 [shape = 'f32[4,26,26,2]{3,2,1,0:T(8,128)}', space=vmem, size = 0x1a0000, scoped, tag = 'scratch operand']
  %s0 = inlined_call_operand.vmem [shape: f32[2,16,16,16], index: 0, kind: input, shape index: {}]
  %s1 = inlined_call_operand.vmem [shape: f32[16,24], index: 1, kind: input, shape index: {}]
  %s2 = inlined_call_operand.vmem [shape: f32[1,24], index: 2, kind: input, shape index: {}]
  %s3 = inlined_call_operand.vmem [shape: f32[1,24], index: 3, kind: input, shape index: {}]
  %s4 = inlined_call_operand.vmem [shape: f32[4,18,4], index: 4, kind: input, shape index: {}]
  %s5 = inlined_call_operand.vmem [shape: f32[4,1,4], index: 5, kind: input, shape index: {}]
  %s6 = inlined_call_operand.vmem [shape: f32[4,1,4], index: 6, kind: input, shape index: {}]
  %s7 = inlined_call_operand.vmem [shape: f32[16,16], index: 7, kind: input, shape index: {}]
  %s8 = inlined_call_operand.vmem [shape: f32[1,16], index: 8, kind: input, shape index: {}]
  %s9 = inlined_call_operand.vmem [shape: f32[1,16], index: 9, kind: input, shape index: {}]
  %s10 = inlined_call_operand.vmem [shape: f32[2,16,16,16], index: 10, kind: output, shape index: {}]
  %s11 = sld [smem:[#allocation0]]
  $region73: #{basic_rfb_forward.1} parent=0
    _
  %s13 = ssub.s32 1, %s11
  %s14 = scalar_select 0, %s13, %s11
  loop: start=0, step=1, limit=4
  $region2: #{basic_rfb_forward.1} parent=0 // loop_pre_header
    _
  $region3: #{basic_rfb_forward.1} parent=0 // loop_header
    %s16 = sphi 0, %s20
    %p17 = scmp.ge.s32.totalorder %s16, 4
    %s26 = sphi 0, %s28
    %s29 = sphi 0, %s26
    %s30 = sphi 0, %s29
    %s46 = sphi 0, %s30
    %s50 = sphi 0, %s50
    %s52 = sphi 0, %s50
    %s53 = sphi 0, %s52
    %s67 = sphi 0, %s53
    %s71 = sphi 0, %s71
    %s73 = sphi 0, %s71
    %s74 = sphi 0, %s73
    %s88 = sphi 0, %s74
    %s92 = sphi 0, %s92
    %s94 = sphi 0, %s92
    %s95 = sphi 0, %s94
    %s109 = sphi 0, %s95
    %s113 = sphi 0, %s113
    %s115 = sphi 0, %s113
    %s116 = sphi 0, %s115
    %s130 = sphi 0, %s116
    %s134 = sphi 0, %s134
    %s136 = sphi 0, %s134
    %s137 = sphi 0, %s136
    %s151 = sphi 0, %s137
    %s155 = sphi 0, %s155
    %s157 = sphi 0, %s155
    %s158 = sphi 0, %s157
    %s172 = sphi 0, %s158
    %s176 = sphi 0, %s176
    %s178 = sphi 0, %s176
    %s179 = sphi 0, %s178
    %s193 = sphi 0, %s179
    %s197 = sphi 0, %s197
    %s199 = sphi 0, %s197
    %s200 = sphi 0, %s199
    %s214 = sphi 0, %s200
    %s218 = sphi 0, %s218
    %s220 = sphi 0, %s218
    %s221 = sphi 0, %s220
    %s235 = sphi 0, %s221
    %s241 = sphi 0, %s243
    %s244 = sphi 0, %s241
    %s245 = sphi 0, %s244
    %s261 = sphi 0, %s245
  $region4: #{basic_rfb_forward.1} parent=0 // loop_header_branch
    %19 = sbr.rel (%p17) target = $region8
  $region5: #{basic_rfb_forward.1} parent=0 // loop_body
    %s21 = ssub.s32 %s16, 1
    %s22 = ssub.s32 %s16, 2
    %s23 = sadd.s32 %s16, 1
    %s24 = ssub.s32 %s16, %s23
    %p25 = scmp.eq.s32.totalorder %s24, 0
    %s27 = sadd.s32 %s26, 1
    %s28 = scalar_select %p25, %s26, %s27
    %p31 = pneg %p25
    %p32 = scmp.eq.s32.totalorder %s16, 1
    %p33 = por %p31, %p32
    %p34 = scmp.ne.s32.totalorder %s26, %s29
    %p35 = scmp.eq.s32.totalorder %s16, 0
    %p36 = por %p34, %p35
    %p37 = scmp.ne.s32.totalorder %s26, %s29
    %p38 = scmp.eq.s32.totalorder %s21, 1
    %p39 = por %p37, %p38
    %p40 = scmp.ne.s32.totalorder %s29, %s30
    %p41 = scmp.eq.s32.totalorder %s21, 0
    %p42 = por %p40, %p41
    %p43 = scmp.ne.s32.totalorder %s29, %s30
    %p44 = scmp.eq.s32.totalorder %s22, 1
    %p45 = por %p43, %p44
    %p47 = scmp.ne.s32.totalorder %s30, %s46
    %p48 = scmp.eq.s32.totalorder %s22, 0
    %p49 = por %p47, %p48
    %s51 = sadd.s32 %s50, 1
    %p54 = scmp.eq.s32.totalorder %s16, 1
    %p55 = scmp.ne.s32.totalorder %s50, %s52
    %p56 = scmp.eq.s32.totalorder %s16, 0
    %p57 = por %p55, %p56
    %p58 = scmp.ne.s32.totalorder %s50, %s52
    %p59 = scmp.eq.s32.totalorder %s21, 1
    %p60 = por %p58, %p59
    %p61 = scmp.ne.s32.totalorder %s52, %s53
    %p62 = scmp.eq.s32.totalorder %s21, 0
    %p63 = por %p61, %p62
    %p64 = scmp.ne.s32.totalorder %s52, %s53
    %p65 = scmp.eq.s32.totalorder %s22, 1
    %p66 = por %p64, %p65
    %p68 = scmp.ne.s32.totalorder %s53, %s67
    %p69 = scmp.eq.s32.totalorder %s22, 0
    %p70 = por %p68, %p69
    %s72 = sadd.s32 %s71, 1
    %p75 = scmp.eq.s32.totalorder %s16, 1
    %p76 = scmp.ne.s32.totalorder %s71, %s73
    %p77 = scmp.eq.s32.totalorder %s16, 0
    %p78 = por %p76, %p77
    %p79 = scmp.ne.s32.totalorder %s71, %s73
    %p80 = scmp.eq.s32.totalorder %s21, 1
    %p81 = por %p79, %p80
    %p82 = scmp.ne.s32.totalorder %s73, %s74
    %p83 = scmp.eq.s32.totalorder %s21, 0
    %p84 = por %p82, %p83
    %p85 = scmp.ne.s32.totalorder %s73, %s74
    %p86 = scmp.eq.s32.totalorder %s22, 1
    %p87 = por %p85, %p86
    %p89 = scmp.ne.s32.totalorder %s74, %s88
    %p90 = scmp.eq.s32.totalorder %s22, 0
    %p91 = por %p89, %p90
    %s93 = sadd.s32 %s92, 1
    %p96 = scmp.eq.s32.totalorder %s16, 1
    %p97 = scmp.ne.s32.totalorder %s92, %s94
    %p98 = scmp.eq.s32.totalorder %s16, 0
    %p99 = por %p97, %p98
    %p100 = scmp.ne.s32.totalorder %s92, %s94
    %p101 = scmp.eq.s32.totalorder %s21, 1
    %p102 = por %p100, %p101
    %p103 = scmp.ne.s32.totalorder %s94, %s95
    %p104 = scmp.eq.s32.totalorder %s21, 0
    %p105 = por %p103, %p104
    %p106 = scmp.ne.s32.totalorder %s94, %s95
    %p107 = scmp.eq.s32.totalorder %s22, 1
    %p108 = por %p106, %p107
    %p110 = scmp.ne.s32.totalorder %s95, %s109
    %p111 = scmp.eq.s32.totalorder %s22, 0
    %p112 = por %p110, %p111
    %s114 = sadd.s32 %s113, 1
    %p117 = scmp.eq.s32.totalorder %s16, 1
    %p118 = scmp.ne.s32.totalorder %s113, %s115
    %p119 = scmp.eq.s32.totalorder %s16, 0
    %p120 = por %p118, %p119
    %p121 = scmp.ne.s32.totalorder %s113, %s115
    %p122 = scmp.eq.s32.totalorder %s21, 1
    %p123 = por %p121, %p122
    %p124 = scmp.ne.s32.totalorder %s115, %s116
    %p125 = scmp.eq.s32.totalorder %s21, 0
    %p126 = por %p124, %p125
    %p127 = scmp.ne.s32.totalorder %s115, %s116
    %p128 = scmp.eq.s32.totalorder %s22, 1
    %p129 = por %p127, %p128
    %p131 = scmp.ne.s32.totalorder %s116, %s130
    %p132 = scmp.eq.s32.totalorder %s22, 0
    %p133 = por %p131, %p132
    %s135 = sadd.s32 %s134, 1
    %p138 = scmp.eq.s32.totalorder %s16, 1
    %p139 = scmp.ne.s32.totalorder %s134, %s136
    %p140 = scmp.eq.s32.totalorder %s16, 0
    %p141 = por %p139, %p140
    %p142 = scmp.ne.s32.totalorder %s134, %s136
    %p143 = scmp.eq.s32.totalorder %s21, 1
    %p144 = por %p142, %p143
    %p145 = scmp.ne.s32.totalorder %s136, %s137
    %p146 = scmp.eq.s32.totalorder %s21, 0
    %p147 = por %p145, %p146
    %p148 = scmp.ne.s32.totalorder %s136, %s137
    %p149 = scmp.eq.s32.totalorder %s22, 1
    %p150 = por %p148, %p149
    %p152 = scmp.ne.s32.totalorder %s137, %s151
    %p153 = scmp.eq.s32.totalorder %s22, 0
    %p154 = por %p152, %p153
    %s156 = sadd.s32 %s155, 1
    %p159 = scmp.eq.s32.totalorder %s16, 1
    %p160 = scmp.ne.s32.totalorder %s155, %s157
    %p161 = scmp.eq.s32.totalorder %s16, 0
    %p162 = por %p160, %p161
    %p163 = scmp.ne.s32.totalorder %s155, %s157
    %p164 = scmp.eq.s32.totalorder %s21, 1
    %p165 = por %p163, %p164
    %p166 = scmp.ne.s32.totalorder %s157, %s158
    %p167 = scmp.eq.s32.totalorder %s21, 0
    %p168 = por %p166, %p167
    %p169 = scmp.ne.s32.totalorder %s157, %s158
    %p170 = scmp.eq.s32.totalorder %s22, 1
    %p171 = por %p169, %p170
    %p173 = scmp.ne.s32.totalorder %s158, %s172
    %p174 = scmp.eq.s32.totalorder %s22, 0
    %p175 = por %p173, %p174
    %s177 = sadd.s32 %s176, 1
    %p180 = scmp.eq.s32.totalorder %s16, 1
    %p181 = scmp.ne.s32.totalorder %s176, %s178
    %p182 = scmp.eq.s32.totalorder %s16, 0
    %p183 = por %p181, %p182
    %p184 = scmp.ne.s32.totalorder %s176, %s178
    %p185 = scmp.eq.s32.totalorder %s21, 1
    %p186 = por %p184, %p185
    %p187 = scmp.ne.s32.totalorder %s178, %s179
    %p188 = scmp.eq.s32.totalorder %s21, 0
    %p189 = por %p187, %p188
    %p190 = scmp.ne.s32.totalorder %s178, %s179
    %p191 = scmp.eq.s32.totalorder %s22, 1
    %p192 = por %p190, %p191
    %p194 = scmp.ne.s32.totalorder %s179, %s193
    %p195 = scmp.eq.s32.totalorder %s22, 0
    %p196 = por %p194, %p195
    %s198 = sadd.s32 %s197, 1
    %p201 = scmp.eq.s32.totalorder %s16, 1
    %p202 = scmp.ne.s32.totalorder %s197, %s199
    %p203 = scmp.eq.s32.totalorder %s16, 0
    %p204 = por %p202, %p203
    %p205 = scmp.ne.s32.totalorder %s197, %s199
    %p206 = scmp.eq.s32.totalorder %s21, 1
    %p207 = por %p205, %p206
    %p208 = scmp.ne.s32.totalorder %s199, %s200
    %p209 = scmp.eq.s32.totalorder %s21, 0
    %p210 = por %p208, %p209
    %p211 = scmp.ne.s32.totalorder %s199, %s200
    %p212 = scmp.eq.s32.totalorder %s22, 1
    %p213 = por %p211, %p212
    %p215 = scmp.ne.s32.totalorder %s200, %s214
    %p216 = scmp.eq.s32.totalorder %s22, 0
    %p217 = por %p215, %p216
    %s219 = sadd.s32 %s218, 1
    %p222 = scmp.eq.s32.totalorder %s16, 1
    %p223 = scmp.ne.s32.totalorder %s218, %s220
    %p224 = scmp.eq.s32.totalorder %s16, 0
    %p225 = por %p223, %p224
    %p226 = scmp.ne.s32.totalorder %s218, %s220
    %p227 = scmp.eq.s32.totalorder %s21, 1
    %p228 = por %p226, %p227
    %p229 = scmp.ne.s32.totalorder %s220, %s221
    %p230 = scmp.eq.s32.totalorder %s21, 0
    %p231 = por %p229, %p230
    %p232 = scmp.ne.s32.totalorder %s220, %s221
    %p233 = scmp.eq.s32.totalorder %s22, 1
    %p234 = por %p232, %p233
    %p236 = scmp.ne.s32.totalorder %s221, %s235
    %p237 = scmp.eq.s32.totalorder %s22, 0
    %p238 = por %p236, %p237
    %s239 = ssub.s32 %s16, %s23
    %p240 = scmp.eq.s32.totalorder %s239, 0
    %s242 = sadd.s32 %s241, 1
    %s243 = scalar_select %p240, %s241, %s242
    %p246 = pneg %p240
    %p247 = scmp.eq.s32.totalorder %s16, 1
    %p248 = por %p246, %p247
    %p249 = scmp.ne.s32.totalorder %s241, %s244
    %p250 = scmp.eq.s32.totalorder %s16, 0
    %p251 = por %p249, %p250
    %p252 = scmp.ne.s32.totalorder %s241, %s244
    %p253 = scmp.eq.s32.totalorder %s21, 1
    %p254 = por %p252, %p253
    %p255 = scmp.ne.s32.totalorder %s244, %s245
    %p256 = scmp.eq.s32.totalorder %s21, 0
    %p257 = por %p255, %p256
    %p258 = scmp.ne.s32.totalorder %s244, %s245
    %p259 = scmp.eq.s32.totalorder %s22, 1
    %p260 = por %p258, %p259
    %p262 = scmp.ne.s32.totalorder %s245, %s261
    %p263 = scmp.eq.s32.totalorder %s22, 0
    %p264 = por %p262, %p263
    %p265 = scmp.le.s32.totalorder 1, %s16
    %p266 = scmp.lt.s32.totalorder %s16, 3
    %p267 = pnand %p265, %p266
    %p268 = pneg %p267
    // Predicated region
    $region9: #{basic_rfb_forward.1} parent=5 // pred_check
      _
    $region10: #{basic_rfb_forward.1} parent=5 // pred_check_branch
      %270 = sbr.rel (%p267) target = $region12
    $region11: #{basic_rfb_forward.1} parent=5 // pred_region
      %s271 = ssub.s32 %s16, 1
      // Predicated region
      $region13: #{basic_rfb_forward.1} parent=11 // pred_check
        %p272 = pneg %p63
      $region14: #{basic_rfb_forward.1} parent=11 // pred_check_branch
        %274 = sbr.rel (%p272) target = $region16
      $region15: #{basic_rfb_forward.1} parent=11 // pred_region
        _
      $region16: #{basic_rfb_forward.1} parent=11 // pred_fallthru
        _
      // Predicated region
      $region17: #{basic_rfb_forward.1} parent=11 // pred_check
        %p275 = pneg %p84
      $region18: #{basic_rfb_forward.1} parent=11 // pred_check_branch
        %277 = sbr.rel (%p275) target = $region20
      $region19: #{basic_rfb_forward.1} parent=11 // pred_region
        _
      $region20: #{basic_rfb_forward.1} parent=11 // pred_fallthru
        _
      // Predicated region
      $region21: #{basic_rfb_forward.1} parent=11 // pred_check
        %p278 = pneg %p105
      $region22: #{basic_rfb_forward.1} parent=11 // pred_check_branch
        %280 = sbr.rel (%p278) target = $region24
      $region23: #{basic_rfb_forward.1} parent=11 // pred_region
        _
      $region24: #{basic_rfb_forward.1} parent=11 // pred_fallthru
        _
      // Predicated region
      $region25: #{basic_rfb_forward.1} parent=11 // pred_check
        %p281 = pneg %p126
      $region26: #{basic_rfb_forward.1} parent=11 // pred_check_branch
        %283 = sbr.rel (%p281) target = $region28
      $region27: #{basic_rfb_forward.1} parent=11 // pred_region
        _
      $region28: #{basic_rfb_forward.1} parent=11 // pred_fallthru
        _
      // Predicated region
      $region29: #{basic_rfb_forward.1} parent=11 // pred_check
        %p284 = pneg %p147
      $region30: #{basic_rfb_forward.1} parent=11 // pred_check_branch
        %286 = sbr.rel (%p284) target = $region32
      $region31: #{basic_rfb_forward.1} parent=11 // pred_region
        _
      $region32: #{basic_rfb_forward.1} parent=11 // pred_fallthru
        _
      // Predicated region
      $region33: #{basic_rfb_forward.1} parent=11 // pred_check
        %p287 = pneg %p168
      $region34: #{basic_rfb_forward.1} parent=11 // pred_check_branch
        %289 = sbr.rel (%p287) target = $region36
      $region35: #{basic_rfb_forward.1} parent=11 // pred_region
        _
      $region36: #{basic_rfb_forward.1} parent=11 // pred_fallthru
        _
      // Predicated region
      $region37: #{basic_rfb_forward.1} parent=11 // pred_check
        %p290 = pneg %p189
      $region38: #{basic_rfb_forward.1} parent=11 // pred_check_branch
        %292 = sbr.rel (%p290) target = $region40
      $region39: #{basic_rfb_forward.1} parent=11 // pred_region
        _
      $region40: #{basic_rfb_forward.1} parent=11 // pred_fallthru
        _
      // Predicated region
      $region41: #{basic_rfb_forward.1} parent=11 // pred_check
        %p293 = pneg %p210
      $region42: #{basic_rfb_forward.1} parent=11 // pred_check_branch
        %295 = sbr.rel (%p293) target = $region44
      $region43: #{basic_rfb_forward.1} parent=11 // pred_region
        _
      $region44: #{basic_rfb_forward.1} parent=11 // pred_fallthru
        _
      // Predicated region
      $region45: #{basic_rfb_forward.1} parent=11 // pred_check
        %p296 = pneg %p231
      $region46: #{basic_rfb_forward.1} parent=11 // pred_check_branch
        %298 = sbr.rel (%p296) target = $region48
      $region47: #{basic_rfb_forward.1} parent=11 // pred_region
        _
      $region48: #{basic_rfb_forward.1} parent=11 // pred_fallthru
        _
    $region12: #{basic_rfb_forward.1} parent=5 // pred_fallthru
      _
    %p299 = scmp.lt.s32.totalorder %s16, 2
    // Predicated region
    $region49: #{basic_rfb_forward.1} parent=5 // pred_check
      %p300 = pneg %p299
    $region50: #{basic_rfb_forward.1} parent=5 // pred_check_branch
      %302 = sbr.rel (%p300) target = $region52
    $region51: #{basic_rfb_forward.1} parent=5 // pred_region
      // Predicated region
      $region53: #{basic_rfb_forward.1} parent=51 // pred_check
        %p303 = pneg %p36
      $region54: #{basic_rfb_forward.1} parent=51 // pred_check_branch
        %305 = sbr.rel (%p303) target = $region56
      $region55: #{basic_rfb_forward.1} parent=51 // pred_region
        %p306 = scmp.lt.s32.totalorder %s16, 1
        %s307 = scalar_select %p306, %s16, 1
        %s308 = smul.addr %s307, 32
        %s309 = smul.addr %s308, 8
        %s310 = scalar_lea.vmem %s0, %s309
      $region56: #{basic_rfb_forward.1} parent=51 // pred_fallthru
        _
    $region52: #{basic_rfb_forward.1} parent=5 // pred_fallthru
      _
    %p311 = scmp.le.s32.totalorder 1, %s16
    %p312 = scmp.lt.s32.totalorder %s16, 3
    %p313 = pnand %p311, %p312
    %p314 = pneg %p313
    // Predicated region
    $region57: #{basic_rfb_forward.1} parent=5 // pred_check
      _
    $region58: #{basic_rfb_forward.1} parent=5 // pred_check_branch
      %316 = sbr.rel (%p313) target = $region60
    $region59: #{basic_rfb_forward.1} parent=5 // pred_region
      %s317 = ssub.s32 %s16, 1
      %p318 = scmp.lt.s32.totalorder %s21, 1
      %s319 = scalar_select %p318, %s21, 1
      %s320 = smul.addr %s319, 32
      %s321 = smul.addr %s320, 8
      %s322 = scalar_lea.vmem %s0, %s321
      %p323 = pneg %p42
      %p324 = pneg %p39
      %p325 = pneg %p63
      %p326 = pneg %p60
      %p327 = pneg %p84
      %p328 = pneg %p81
      %p329 = pneg %p105
      %p330 = pneg %p102
      %p331 = pneg %p126
      %p332 = pneg %p123
      %p333 = pneg %p147
      %p334 = pneg %p144
      %p335 = pneg %p168
      %p336 = pneg %p165
      %p337 = pneg %p189
      %p338 = pneg %p186
      %p339 = pneg %p210
      %p340 = pneg %p207
      %p341 = pneg %p231
      %p342 = pneg %p228
      %p343 = pneg %p257
      %p344 = pneg %p254
      %p345 = scmp.lt.s32.totalorder %s21, 1
      %s346 = scalar_select %p345, %s21, 1
      %s347 = smul.addr %s346, 32
      %s348 = smul.addr %s347, 8
      %s349 = scalar_lea.vmem %s10, %s348
      %p350 = scmp.lt.s32.totalorder %s21, 1
      %s351 = scalar_select %p350, %s21, 1
      %s352 = smul.addr %s351, 32
      %s353 = smul.addr %s352, 8
      %s354 = scalar_lea.vmem %s0, %s353
      %p355 = scmp.lt.s32.totalorder %s21, 1
      %s356 = scalar_select %p355, %s21, 1
      %s357 = smul.addr %s356, 32
      %s358 = smul.addr %s357, 8
      %s359 = scalar_lea.vmem %s10, %s358
      %v360 = vld [vmem:[%s354] sm:$0xff]
      %v361 = vld [vmem:[%s354 + $0x8] sm:$0xff]
      %v362 = vld [vmem:[%s354 + $0x10] sm:$0xff]
      %v363 = vld [vmem:[%s354 + $0x18] sm:$0xff]
      %v364 = vld [vmem:[%s354 + $0x20] sm:$0xff]
      %v365 = vld [vmem:[%s354 + $0x28] sm:$0xff]
      %v366 = vld [vmem:[%s354 + $0x30] sm:$0xff]
      %v367 = vld [vmem:[%s354 + $0x38] sm:$0xff]
      %v368 = vld [vmem:[%s354 + $0x40] sm:$0xff]
      %v369 = vld [vmem:[%s354 + $0x48] sm:$0xff]
      %v370 = vld [vmem:[%s354 + $0x50] sm:$0xff]
      %v371 = vld [vmem:[%s354 + $0x58] sm:$0xff]
      %v372 = vld [vmem:[%s354 + $0x60] sm:$0xff]
      %v373 = vld [vmem:[%s354 + $0x68] sm:$0xff]
      %v374 = vld [vmem:[%s354 + $0x70] sm:$0xff]
      %v375 = vld [vmem:[%s354 + $0x78] sm:$0xff]
      %v376 = vld [vmem:[%s354 + $0x80] sm:$0xff]
      %v377 = vld [vmem:[%s354 + $0x88] sm:$0xff]
      %v378 = vld [vmem:[%s354 + $0x90] sm:$0xff]
      %v379 = vld [vmem:[%s354 + $0x98] sm:$0xff]
      %v380 = vld [vmem:[%s354 + $0xa0] sm:$0xff]
      %v381 = vld [vmem:[%s354 + $0xa8] sm:$0xff]
      %v382 = vld [vmem:[%s354 + $0xb0] sm:$0xff]
      %v383 = vld [vmem:[%s354 + $0xb8] sm:$0xff]
      %v384 = vld [vmem:[%s354 + $0xc0] sm:$0xff]
      %v385 = vld [vmem:[%s354 + $0xc8] sm:$0xff]
      %v386 = vld [vmem:[%s354 + $0xd0] sm:$0xff]
      %v387 = vld [vmem:[%s354 + $0xd8] sm:$0xff]
      %v388 = vld [vmem:[%s354 + $0xe0] sm:$0xff]
      %v389 = vld [vmem:[%s354 + $0xe8] sm:$0xff]
      %v390 = vld [vmem:[%s354 + $0xf0] sm:$0xff]
      %v391 = vld [vmem:[%s354 + $0xf8] sm:$0xff]
      %v392 = vld [vmem:[%s1] sm:$0xff]
      %v393 = vld [vmem:[%s1 + $0x8] sm:$0xff]
      %vm394 = vcmask 130048
      %v396 = vsel %vm394, %v360, 0
      %v399 = vsel %vm394, %v361, 0
      %v402 = vsel %vm394, %v362, 0
      %v405 = vsel %vm394, %v363, 0
      %v408 = vsel %vm394, %v364, 0
      %v411 = vsel %vm394, %v365, 0
      %v414 = vsel %vm394, %v366, 0
      %v417 = vsel %vm394, %v367, 0
      %v420 = vsel %vm394, %v368, 0
      %v423 = vsel %vm394, %v369, 0
      %v426 = vsel %vm394, %v370, 0
      %v429 = vsel %vm394, %v371, 0
      %v432 = vsel %vm394, %v372, 0
      %v435 = vsel %vm394, %v373, 0
      %v438 = vsel %vm394, %v374, 0
      %v441 = vsel %vm394, %v375, 0
      %v444 = vsel %vm394, %v376, 0
      %v447 = vsel %vm394, %v377, 0
      %v450 = vsel %vm394, %v378, 0
      %v453 = vsel %vm394, %v379, 0
      %v456 = vsel %vm394, %v380, 0
      %v459 = vsel %vm394, %v381, 0
      %v462 = vsel %vm394, %v382, 0
      %v465 = vsel %vm394, %v383, 0
      %v468 = vsel %vm394, %v384, 0
      %v471 = vsel %vm394, %v385, 0
      %v474 = vsel %vm394, %v386, 0
      %v477 = vsel %vm394, %v387, 0
      %v480 = vsel %vm394, %v388, 0
      %v483 = vsel %vm394, %v389, 0
      %v486 = vsel %vm394, %v390, 0
      %v489 = vsel %vm394, %v391, 0
      %491 = vmatprep.subr.mxu0 0.0
      %492 = vmatpush1.msra.mxu0 %v392
      %493 = vmatprep.subr.mxu0 0.0
      %494 = vmatpush1.msra.mxu0 %v393
      %495 = vmatprep.subr.mxu0 0.0
      %496 = vmatpush1.msra.mxu0 0.0
      %497 = vmatprep.subr.mxu0 0.0
      %498 = vmatpush1.msra.mxu0 0.0
      %499 = vmatprep.subr.mxu0 0.0
      %500 = vmatpush1.msra.mxu0 0.0
      %501 = vmatprep.subr.mxu0 0.0
      %502 = vmatpush1.msra.mxu0 0.0
      %503 = vmatprep.subr.mxu0 0.0
      %504 = vmatpush1.msra.mxu0 0.0
      %505 = vmatprep.subr.mxu0 0.0
      %506 = vmatpush1.msra.mxu0 0.0
      %507 = vmatprep.subr.mxu0 0.0
      %508 = vmatpush1.msra.mxu0 0.0
      %509 = vmatprep.subr.mxu0 0.0
      %510 = vmatpush1.msra.mxu0 0.0
      %511 = vmatprep.subr.mxu0 0.0
      %512 = vmatpush1.msra.mxu0 0.0
      %513 = vmatprep.subr.mxu0 0.0
      %514 = vmatpush1.msra.mxu0 0.0
      %515 = vmatprep.subr.mxu0 0.0
      %516 = vmatpush1.msra.mxu0 0.0
      %517 = vmatprep.subr.mxu0 0.0
      %518 = vmatpush1.msra.mxu0 0.0
      %519 = vmatprep.subr.mxu0 0.0
      %520 = vmatpush1.msra.mxu0 0.0
      %521 = vmatprep.subr.mxu0 0.0
      %522 = vmatpush1.msra.mxu0 0.0
      %523 = vmatprep.subr.mxu0 0.0
      %524 = vmatpush1.msra.mxu0 0.0
      %525 = vmatprep.subr.mxu0 0.0
      %526 = vmatpush1.msra.mxu0 0.0
      %527 = vmatprep.subr.mxu0 0.0
      %528 = vmatpush1.msra.mxu0 0.0
      %529 = vmatprep.subr.mxu0 0.0
      %530 = vmatpush1.msra.mxu0 0.0
      %531 = vmatprep.subr.mxu0 0.0
      %532 = vmatpush1.msra.mxu0 0.0
      %533 = vmatprep.subr.mxu0 0.0
      %534 = vmatpush1.msra.mxu0 0.0
      %535 = vmatprep.subr.mxu0 0.0
      %536 = vmatpush1.msra.mxu0 0.0
      %537 = vmatprep.subr.mxu0 0.0
      %538 = vmatpush1.msra.mxu0 0.0
      %539 = vmatprep.subr.mxu0 0.0
      %540 = vmatpush1.msra.mxu0 0.0
      %541 = vmatprep.subr.mxu0 0.0
      %542 = vmatpush1.msra.mxu0 0.0
      %543 = vmatprep.subr.mxu0 0.0
      %544 = vmatpush1.msra.mxu0 0.0
      %545 = vmatprep.subr.mxu0 0.0
      %546 = vmatpush1.msra.mxu0 0.0
      %547 = vmatprep.subr.mxu0 0.0
      %548 = vmatpush1.msra.mxu0 0.0
      %549 = vmatprep.subr.mxu0 0.0
      %550 = vmatpush1.msra.mxu0 0.0
      %551 = vmatprep.subr.mxu0 0.0
      %552 = vmatpush1.msra.mxu0 0.0
      %553 = vmatprep.subr.mxu0 0.0
      %554 = vmatpush1.msra.mxu0 0.0
      %555 = vmatprep.mubr.f32.mxu0 0.0
      %556 = vmatmul.mubr.f32.gmra.mrb[0].mxu0 %v396
      %v557 = vpop.f32.mrb[0].mxu0
      %v558 = vadd.f32 0.0, %v557
      %v559 = vpop.f32.mrb[0].mxu0
      %560 = vmatprep.mubr.f32.mxu0 0.0
      %561 = vmatmul.mubr.f32.gmra.mrb[0].mxu0 %v399
      %v562 = vpop.f32.mrb[0].mxu0
      %v563 = vadd.f32 0.0, %v562
      %v564 = vpop.f32.mrb[0].mxu0
      %565 = vmatprep.mubr.f32.mxu0 0.0
      %566 = vmatmul.mubr.f32.gmra.mrb[0].mxu0 %v402
      %v567 = vpop.f32.mrb[0].mxu0
      %v568 = vadd.f32 0.0, %v567
      %v569 = vpop.f32.mrb[0].mxu0
      %570 = vmatprep.mubr.f32.mxu0 0.0
      %571 = vmatmul.mubr.f32.gmra.mrb[0].mxu0 %v405
      %v572 = vpop.f32.mrb[0].mxu0
      %v573 = vadd.f32 0.0, %v572
      %v574 = vpop.f32.mrb[0].mxu0
      %575 = vmatprep.mubr.f32.mxu0 0.0
      %576 = vmatmul.mubr.f32.gmra.mrb[0].mxu0 %v408
      %v577 = vpop.f32.mrb[0].mxu0
      %v578 = vadd.f32 0.0, %v577
      %v579 = vpop.f32.mrb[0].mxu0
      %580 = vmatprep.mubr.f32.mxu0 0.0
      %581 = vmatmul.mubr.f32.gmra.mrb[0].mxu0 %v411
      %v582 = vpop.f32.mrb[0].mxu0
      %v583 = vadd.f32 0.0, %v582
      %v584 = vpop.f32.mrb[0].mxu0
      %585 = vmatprep.mubr.f32.mxu0 0.0
      %586 = vmatmul.mubr.f32.gmra.mrb[0].mxu0 %v414
      %v587 = vpop.f32.mrb[0].mxu0
      %v588 = vadd.f32 0.0, %v587
      %v589 = vpop.f32.mrb[0].mxu0
      %590 = vmatprep.mubr.f32.mxu0 0.0
      %591 = vmatmul.mubr.f32.gmra.mrb[0].mxu0 %v417
      %v592 = vpop.f32.mrb[0].mxu0
      %v593 = vadd.f32 0.0, %v592
      %v594 = vpop.f32.mrb[0].mxu0
      %595 = vmatprep.mubr.f32.mxu0 0.0
      %596 = vmatmul.mubr.f32.gmra.mrb[0].mxu0 %v420
      %v597 = vpop.f32.mrb[0].mxu0
      %v598 = vadd.f32 0.0, %v597
      %v599 = vpop.f32.mrb[0].mxu0
      %600 = vmatprep.mubr.f32.mxu0 0.0
      %601 = vmatmul.mubr.f32.gmra.mrb[0].mxu0 %v423
      %v602 = vpop.f32.mrb[0].mxu0
      %v603 = vadd.f32 0.0, %v602
      %v604 = vpop.f32.mrb[0].mxu0
      %605 = vmatprep.mubr.f32.mxu0 0.0
      %606 = vmatmul.mubr.f32.gmra.mrb[0].mxu0 %v426
      %v607 = vpop.f32.mrb[0].mxu0
      %v608 = vadd.f32 0.0, %v607
      %v609 = vpop.f32.mrb[0].mxu0
      %610 = vmatprep.mubr.f32.mxu0 0.0
      %611 = vmatmul.mubr.f32.gmra.mrb[0].mxu0 %v429
      %v612 = vpop.f32.mrb[0].mxu0
      %v613 = vadd.f32 0.0, %v612
      %v614 = vpop.f32.mrb[0].mxu0
      %615 = vmatprep.mubr.f32.mxu0 0.0
      %616 = vmatmul.mubr.f32.gmra.mrb[0].mxu0 %v432
      %v617 = vpop.f32.mrb[0].mxu0
      %v618 = vadd.f32 0.0, %v617
      %v619 = vpop.f32.mrb[0].mxu0
      %620 = vmatprep.mubr.f32.mxu0 0.0
      %621 = vmatmul.mubr.f32.gmra.mrb[0].mxu0 %v435
      %v622 = vpop.f32.mrb[0].mxu0
      %v623 = vadd.f32 0.0, %v622
      %v624 = vpop.f32.mrb[0].mxu0
      %625 = vmatprep.mubr.f32.mxu0 0.0
      %626 = vmatmul.mubr.f32.gmra.mrb[0].mxu0 %v438
      %v627 = vpop.f32.mrb[0].mxu0
      %v628 = vadd.f32 0.0, %v627
      %v629 = vpop.f32.mrb[0].mxu0
      %630 = vmatprep.mubr.f32.mxu0 0.0
      %631 = vmatmul.mubr.f32.gmra.mrb[0].mxu0 %v441
      %v632 = vpop.f32.mrb[0].mxu0
      %v633 = vadd.f32 0.0, %v632
      %v634 = vpop.f32.mrb[0].mxu0
      %635 = vmatprep.mubr.f32.mxu0 0.0
      %636 = vmatmul.mubr.f32.gmra.mrb[0].mxu0 %v444
      %v637 = vpop.f32.mrb[0].mxu0
      %v638 = vadd.f32 0.0, %v637
      %v639 = vpop.f32.mrb[0].mxu0
      %640 = vmatprep.mubr.f32.mxu0 0.0
      %641 = vmatmul.mubr.f32.gmra.mrb[0].mxu0 %v447
      %v642 = vpop.f32.mrb[0].mxu0
      %v643 = vadd.f32 0.0, %v642
      %v644 = vpop.f32.mrb[0].mxu0
      %645 = vmatprep.mubr.f32.mxu0 0.0
      %646 = vmatmul.mubr.f32.gmra.mrb[0].mxu0 %v450
      %v647 = vpop.f32.mrb[0].mxu0
      %v648 = vadd.f32 0.0, %v647
      %v649 = vpop.f32.mrb[0].mxu0
      %650 = vmatprep.mubr.f32.mxu0 0.0
      %651 = vmatmul.mubr.f32.gmra.mrb[0].mxu0 %v453
      %v652 = vpop.f32.mrb[0].mxu0
      %v653 = vadd.f32 0.0, %v652
      %v654 = vpop.f32.mrb[0].mxu0
      %655 = vmatprep.mubr.f32.mxu0 0.0
      %656 = vmatmul.mubr.f32.gmra.mrb[0].mxu0 %v456
      %v657 = vpop.f32.mrb[0].mxu0
      %v658 = vadd.f32 0.0, %v657
      %v659 = vpop.f32.mrb[0].mxu0
      %660 = vmatprep.mubr.f32.mxu0 0.0
      %661 = vmatmul.mubr.f32.gmra.mrb[0].mxu0 %v459
      %v662 = vpop.f32.mrb[0].mxu0
      %v663 = vadd.f32 0.0, %v662
      %v664 = vpop.f32.mrb[0].mxu0
      %665 = vmatprep.mubr.f32.mxu0 0.0
      %666 = vmatmul.mubr.f32.gmra.mrb[0].mxu0 %v462
      %v667 = vpop.f32.mrb[0].mxu0
      %v668 = vadd.f32 0.0, %v667
      %v669 = vpop.f32.mrb[0].mxu0
      %670 = vmatprep.mubr.f32.mxu0 0.0
      %671 = vmatmul.mubr.f32.gmra.mrb[0].mxu0 %v465
      %v672 = vpop.f32.mrb[0].mxu0
      %v673 = vadd.f32 0.0, %v672
      %v674 = vpop.f32.mrb[0].mxu0
      %675 = vmatprep.mubr.f32.mxu0 0.0
      %676 = vmatmul.mubr.f32.gmra.mrb[0].mxu0 %v468
      %v677 = vpop.f32.mrb[0].mxu0
      %v678 = vadd.f32 0.0, %v677
      %v679 = vpop.f32.mrb[0].mxu0
      %680 = vmatprep.mubr.f32.mxu0 0.0
      %681 = vmatmul.mubr.f32.gmra.mrb[0].mxu0 %v471
      %v682 = vpop.f32.mrb[0].mxu0
      %v683 = vadd.f32 0.0, %v682
      %v684 = vpop.f32.mrb[0].mxu0
      %685 = vmatprep.mubr.f32.mxu0 0.0
      %686 = vmatmul.mubr.f32.gmra.mrb[0].mxu0 %v474
      %v687 = vpop.f32.mrb[0].mxu0
      %v688 = vadd.f32 0.0, %v687
      %v689 = vpop.f32.mrb[0].mxu0
      %690 = vmatprep.mubr.f32.mxu0 0.0
      %691 = vmatmul.mubr.f32.gmra.mrb[0].mxu0 %v477
      %v692 = vpop.f32.mrb[0].mxu0
      %v693 = vadd.f32 0.0, %v692
      %v694 = vpop.f32.mrb[0].mxu0
      %695 = vmatprep.mubr.f32.mxu0 0.0
      %696 = vmatmul.mubr.f32.gmra.mrb[0].mxu0 %v480
      %v697 = vpop.f32.mrb[0].mxu0
      %v698 = vadd.f32 0.0, %v697
      %v699 = vpop.f32.mrb[0].mxu0
      %700 = vmatprep.mubr.f32.mxu0 0.0
      %701 = vmatmul.mubr.f32.gmra.mrb[0].mxu0 %v483
      %v702 = vpop.f32.mrb[0].mxu0
      %v703 = vadd.f32 0.0, %v702
      %v704 = vpop.f32.mrb[0].mxu0
      %705 = vmatprep.mubr.f32.mxu0 0.0
      %706 = vmatmul.mubr.f32.gmra.mrb[0].mxu0 %v486
      %v707 = vpop.f32.mrb[0].mxu0
      %v708 = vadd.f32 0.0, %v707
      %v709 = vpop.f32.mrb[0].mxu0
      %710 = vmatprep.mubr.f32.mxu0 0.0
      %711 = vmatmul.mubr.f32.gmra.mrb[0].mxu0 %v489
      %v712 = vpop.f32.mrb[0].mxu0
      %v713 = vadd.f32 0.0, %v712
      %v714 = vpop.f32.mrb[0].mxu0
      %715 = vdwg.mxu0
      %v716 = vld [vmem:[%s2] sm:$0x1]
      %v718 = vlaneseq
      %v719 = vshrl.u32 %v718, 7
      %v720 = vsub.s32 0, %v719
      %v721 = vrot.slane %v716, %v720
      %v723 = vmul.f32 %v558, %v721
      %v724 = vmul.f32 %v563, %v721
      %v725 = vmul.f32 %v568, %v721
      %v726 = vmul.f32 %v573, %v721
      %v727 = vmul.f32 %v578, %v721
      %v728 = vmul.f32 %v583, %v721
      %v729 = vmul.f32 %v588, %v721
      %v730 = vmul.f32 %v593, %v721
      %v731 = vmul.f32 %v598, %v721
      %v732 = vmul.f32 %v603, %v721
      %v733 = vmul.f32 %v608, %v721
      %v734 = vmul.f32 %v613, %v721
      %v735 = vmul.f32 %v618, %v721
      %v736 = vmul.f32 %v623, %v721
      %v737 = vmul.f32 %v628, %v721
      %v738 = vmul.f32 %v633, %v721
      %v739 = vmul.f32 %v638, %v721
      %v740 = vmul.f32 %v643, %v721
      %v741 = vmul.f32 %v648, %v721
      %v742 = vmul.f32 %v653, %v721
      %v743 = vmul.f32 %v658, %v721
      %v744 = vmul.f32 %v663, %v721
      %v745 = vmul.f32 %v668, %v721
      %v746 = vmul.f32 %v673, %v721
      %v747 = vmul.f32 %v678, %v721
      %v748 = vmul.f32 %v683, %v721
      %v749 = vmul.f32 %v688, %v721
      %v750 = vmul.f32 %v693, %v721
      %v751 = vmul.f32 %v698, %v721
      %v752 = vmul.f32 %v703, %v721
      %v753 = vmul.f32 %v708, %v721
      %v754 = vmul.f32 %v713, %v721
      %v755 = vld [vmem:[%s3] sm:$0x1]
      %v757 = vlaneseq
      %v758 = vshrl.u32 %v757, 7
      %v759 = vsub.s32 0, %v758
      %v760 = vrot.slane %v755, %v759
      %v762 = vadd.f32 %v723, %v760
      %v763 = vadd.f32 %v724, %v760
      %v764 = vadd.f32 %v725, %v760
      %v765 = vadd.f32 %v726, %v760
      %v766 = vadd.f32 %v727, %v760
      %v767 = vadd.f32 %v728, %v760
      %v768 = vadd.f32 %v729, %v760
      %v769 = vadd.f32 %v730, %v760
      %v770 = vadd.f32 %v731, %v760
      %v771 = vadd.f32 %v732, %v760
      %v772 = vadd.f32 %v733, %v760
      %v773 = vadd.f32 %v734, %v760
      %v774 = vadd.f32 %v735, %v760
      %v775 = vadd.f32 %v736, %v760
      %v776 = vadd.f32 %v737, %v760
      %v777 = vadd.f32 %v738, %v760
      %v778 = vadd.f32 %v739, %v760
      %v779 = vadd.f32 %v740, %v760
      %v780 = vadd.f32 %v741, %v760
      %v781 = vadd.f32 %v742, %v760
      %v782 = vadd.f32 %v743, %v760
      %v783 = vadd.f32 %v744, %v760
      %v784 = vadd.f32 %v745, %v760
      %v785 = vadd.f32 %v746, %v760
      %v786 = vadd.f32 %v747, %v760
      %v787 = vadd.f32 %v748, %v760
      %v788 = vadd.f32 %v749, %v760
      %v789 = vadd.f32 %v750, %v760
      %v790 = vadd.f32 %v751, %v760
      %v791 = vadd.f32 %v752, %v760
      %v792 = vadd.f32 %v753, %v760
      %v793 = vadd.f32 %v754, %v760
      %vm794 = vcmask 15360
      %795 = vst.msk [vmem:[#allocation2] sm:$0xff] %vm794, 0.0
      %796 = vst.msk [vmem:[#allocation2 + $0x8] sm:$0xff] %vm794, 0.0
      %797 = vst.msk [vmem:[#allocation2 + $0x10] sm:$0xff] %vm794, 0.0
      %vm798 = vcmask 9216
      %799 = vst.msk [vmem:[#allocation2 + $0x18] sm:$0x3] %vm798, 0.0
      %800 = vst.msk [vmem:[#allocation2 + $0x20] sm:$0xff] %vm794, 0.0
      %801 = vst.msk [vmem:[#allocation2 + $0x28] sm:$0xff] %vm794, 0.0
      %802 = vst.msk [vmem:[#allocation2 + $0x30] sm:$0xff] %vm794, 0.0
      %803 = vst.msk [vmem:[#allocation2 + $0x38] sm:$0x3] %vm798, 0.0
      %804 = vst.msk [vmem:[#allocation2 + $0x40] sm:$0xff] %vm794, 0.0
      %805 = vst.msk [vmem:[#allocation2 + $0x48] sm:$0xff] %vm794, 0.0
      %806 = vst.msk [vmem:[#allocation2 + $0x50] sm:$0xff] %vm794, 0.0
      %807 = vst.msk [vmem:[#allocation2 + $0x58] sm:$0x3] %vm798, 0.0
      %808 = vst.msk [vmem:[#allocation2 + $0x60] sm:$0xff] %vm794, 0.0
      %809 = vst.msk [vmem:[#allocation2 + $0x68] sm:$0xff] %vm794, 0.0
      %810 = vst.msk [vmem:[#allocation2 + $0x70] sm:$0xff] %vm794, 0.0
      %811 = vst.msk [vmem:[#allocation2 + $0x78] sm:$0x3] %vm798, 0.0
      %812 = vst.msk [vmem:[#allocation2 + $0x80] sm:$0xff] %vm794, 0.0
      %813 = vst.msk [vmem:[#allocation2 + $0x88] sm:$0xff] %vm794, 0.0
      %814 = vst.msk [vmem:[#allocation2 + $0x90] sm:$0xff] %vm794, 0.0
      %815 = vst.msk [vmem:[#allocation2 + $0x98] sm:$0x3] %vm798, 0.0
      %816 = vst.msk [vmem:[#allocation2 + $0xa0] sm:$0xff] %vm794, 0.0
      %817 = vst.msk [vmem:[#allocation2 + $0xa8] sm:$0xff] %vm794, 0.0
      %818 = vst.msk [vmem:[#allocation2 + $0xb0] sm:$0xff] %vm794, 0.0
      %819 = vst.msk [vmem:[#allocation2 + $0xb8] sm:$0x3] %vm798, 0.0
      %820 = vst.msk [vmem:[#allocation2 + $0xc0] sm:$0xff] %vm794, 0.0
      %821 = vst.msk [vmem:[#allocation2 + $0xc8] sm:$0xff] %vm794, 0.0
      %822 = vst.msk [vmem:[#allocation2 + $0xd0] sm:$0xff] %vm794, 0.0
      %823 = vst.msk [vmem:[#allocation2 + $0xd8] sm:$0x3] %vm798, 0.0
      %824 = vst.msk [vmem:[#allocation2 + $0xe0] sm:$0xff] %vm794, 0.0
      %825 = vst.msk [vmem:[#allocation2 + $0xe8] sm:$0xff] %vm794, 0.0
      %826 = vst.msk [vmem:[#allocation2 + $0xf0] sm:$0xff] %vm794, 0.0
      %827 = vst.msk [vmem:[#allocation2 + $0xf8] sm:$0x3] %vm798, 0.0
      %828 = vst.msk [vmem:[#allocation2 + $0x100] sm:$0xff] %vm794, 0.0
      %829 = vst.msk [vmem:[#allocation2 + $0x108] sm:$0xff] %vm794, 0.0
      %830 = vst.msk [vmem:[#allocation2 + $0x110] sm:$0xff] %vm794, 0.0
      %831 = vst.msk [vmem:[#allocation2 + $0x118] sm:$0x3] %vm798, 0.0
      %832 = vst.msk [vmem:[#allocation2 + $0x120] sm:$0xff] %vm794, 0.0
      %833 = vst.msk [vmem:[#allocation2 + $0x128] sm:$0xff] %vm794, 0.0
      %834 = vst.msk [vmem:[#allocation2 + $0x130] sm:$0xff] %vm794, 0.0
      %835 = vst.msk [vmem:[#allocation2 + $0x138] sm:$0x3] %vm798, 0.0
      %836 = vst.msk [vmem:[#allocation2 + $0x140] sm:$0xff] %vm794, 0.0
      %837 = vst.msk [vmem:[#allocation2 + $0x148] sm:$0xff] %vm794, 0.0
      %838 = vst.msk [vmem:[#allocation2 + $0x150] sm:$0xff] %vm794, 0.0
      %839 = vst.msk [vmem:[#allocation2 + $0x158] sm:$0x3] %vm798, 0.0
      %840 = vst.msk [vmem:[#allocation2 + $0x160] sm:$0xff] %vm794, 0.0
      %841 = vst.msk [vmem:[#allocation2 + $0x168] sm:$0xff] %vm794, 0.0
      %842 = vst.msk [vmem:[#allocation2 + $0x170] sm:$0xff] %vm794, 0.0
      %843 = vst.msk [vmem:[#allocation2 + $0x178] sm:$0x3] %vm798, 0.0
      %844 = vst.msk [vmem:[#allocation2 + $0x180] sm:$0xff] %vm794, 0.0
      %845 = vst.msk [vmem:[#allocation2 + $0x188] sm:$0xff] %vm794, 0.0
      %846 = vst.msk [vmem:[#allocation2 + $0x190] sm:$0xff] %vm794, 0.0
      %847 = vst.msk [vmem:[#allocation2 + $0x198] sm:$0x3] %vm798, 0.0
      %848 = vst.msk [vmem:[#allocation2 + $0x1a0] sm:$0xff] %vm794, 0.0
      %849 = vst.msk [vmem:[#allocation2 + $0x1a8] sm:$0xff] %vm794, 0.0
      %850 = vst.msk [vmem:[#allocation2 + $0x1b0] sm:$0xff] %vm794, 0.0
      %851 = vst.msk [vmem:[#allocation2 + $0x1b8] sm:$0x3] %vm798, 0.0
      %852 = vst.msk [vmem:[#allocation2 + $0x1c0] sm:$0xff] %vm794, 0.0
      %853 = vst.msk [vmem:[#allocation2 + $0x1c8] sm:$0xff] %vm794, 0.0
      %854 = vst.msk [vmem:[#allocation2 + $0x1d0] sm:$0xff] %vm794, 0.0
      %855 = vst.msk [vmem:[#allocation2 + $0x1d8] sm:$0x3] %vm798, 0.0
      %856 = vst.msk [vmem:[#allocation2 + $0x1e0] sm:$0xff] %vm794, 0.0
      %857 = vst.msk [vmem:[#allocation2 + $0x1e8] sm:$0xff] %vm794, 0.0
      %858 = vst.msk [vmem:[#allocation2 + $0x1f0] sm:$0xff] %vm794, 0.0
      %859 = vst.msk [vmem:[#allocation2 + $0x1f8] sm:$0x3] %vm798, 0.0
      %860 = vst.msk [vmem:[#allocation2 + $0x200] sm:$0xff] %vm794, 0.0
      %861 = vst.msk [vmem:[#allocation2 + $0x208] sm:$0xff] %vm794, 0.0
      %862 = vst.msk [vmem:[#allocation2 + $0x210] sm:$0xff] %vm794, 0.0
      %863 = vst.msk [vmem:[#allocation2 + $0x218] sm:$0x3] %vm798, 0.0
      %864 = vst.msk [vmem:[#allocation2 + $0x220] sm:$0xff] %vm794, 0.0
      %865 = vst.msk [vmem:[#allocation2 + $0x228] sm:$0xff] %vm794, 0.0
      %866 = vst.msk [vmem:[#allocation2 + $0x230] sm:$0xff] %vm794, 0.0
      %867 = vst.msk [vmem:[#allocation2 + $0x238] sm:$0x3] %vm798, 0.0
      %868 = vst.msk [vmem:[#allocation2 + $0x240] sm:$0xff] %vm794, 0.0
      %869 = vst.msk [vmem:[#allocation2 + $0x248] sm:$0xff] %vm794, 0.0
      %870 = vst.msk [vmem:[#allocation2 + $0x250] sm:$0xff] %vm794, 0.0
      %871 = vst.msk [vmem:[#allocation2 + $0x258] sm:$0x3] %vm798, 0.0
      %872 = vst.msk [vmem:[#allocation2 + $0x260] sm:$0xff] %vm794, 0.0
      %873 = vst.msk [vmem:[#allocation2 + $0x268] sm:$0xff] %vm794, 0.0
      %874 = vst.msk [vmem:[#allocation2 + $0x270] sm:$0xff] %vm794, 0.0
      %875 = vst.msk [vmem:[#allocation2 + $0x278] sm:$0x3] %vm798, 0.0
      %876 = vst.msk [vmem:[#allocation2 + $0x280] sm:$0xff] %vm794, 0.0
      %877 = vst.msk [vmem:[#allocation2 + $0x288] sm:$0xff] %vm794, 0.0
      %878 = vst.msk [vmem:[#allocation2 + $0x290] sm:$0xff] %vm794, 0.0
      %879 = vst.msk [vmem:[#allocation2 + $0x298] sm:$0x3] %vm798, 0.0
      %880 = vst.msk [vmem:[#allocation2 + $0x2a0] sm:$0xff] %vm794, 0.0
      %881 = vst.msk [vmem:[#allocation2 + $0x2a8] sm:$0xff] %vm794, 0.0
      %882 = vst.msk [vmem:[#allocation2 + $0x2b0] sm:$0xff] %vm794, 0.0
      %883 = vst.msk [vmem:[#allocation2 + $0x2b8] sm:$0x3] %vm798, 0.0
      %884 = vst.msk [vmem:[#allocation2 + $0x2c0] sm:$0xff] %vm794, 0.0
      %885 = vst.msk [vmem:[#allocation2 + $0x2c8] sm:$0xff] %vm794, 0.0
      %886 = vst.msk [vmem:[#allocation2 + $0x2d0] sm:$0xff] %vm794, 0.0
      %887 = vst.msk [vmem:[#allocation2 + $0x2d8] sm:$0x3] %vm798, 0.0
      %888 = vst.msk [vmem:[#allocation2 + $0x2e0] sm:$0xff] %vm794, 0.0
      %889 = vst.msk [vmem:[#allocation2 + $0x2e8] sm:$0xff] %vm794, 0.0
      %890 = vst.msk [vmem:[#allocation2 + $0x2f0] sm:$0xff] %vm794, 0.0
      %891 = vst.msk [vmem:[#allocation2 + $0x2f8] sm:$0x3] %vm798, 0.0
      %892 = vst.msk [vmem:[#allocation2 + $0x300] sm:$0xff] %vm794, 0.0
      %893 = vst.msk [vmem:[#allocation2 + $0x308] sm:$0xff] %vm794, 0.0
      %894 = vst.msk [vmem:[#allocation2 + $0x310] sm:$0xff] %vm794, 0.0
      %895 = vst.msk [vmem:[#allocation2 + $0x318] sm:$0x3] %vm798, 0.0
      %896 = vst.msk [vmem:[#allocation2 + $0x320] sm:$0xff] %vm794, 0.0
      %897 = vst.msk [vmem:[#allocation2 + $0x328] sm:$0xff] %vm794, 0.0
      %898 = vst.msk [vmem:[#allocation2 + $0x330] sm:$0xff] %vm794, 0.0
      %899 = vst.msk [vmem:[#allocation2 + $0x338] sm:$0x3] %vm798, 0.0
      %900 = vst.msk [vmem:[#allocation2 + $0x340] sm:$0xff] %vm794, 0.0
      %901 = vst.msk [vmem:[#allocation2 + $0x348] sm:$0xff] %vm794, 0.0
      %902 = vst.msk [vmem:[#allocation2 + $0x350] sm:$0xff] %vm794, 0.0
      %903 = vst.msk [vmem:[#allocation2 + $0x358] sm:$0x3] %vm798, 0.0
      %904 = vst.msk [vmem:[#allocation2 + $0x360] sm:$0xff] %vm794, 0.0
      %905 = vst.msk [vmem:[#allocation2 + $0x368] sm:$0xff] %vm794, 0.0
      %906 = vst.msk [vmem:[#allocation2 + $0x370] sm:$0xff] %vm794, 0.0
      %907 = vst.msk [vmem:[#allocation2 + $0x378] sm:$0x3] %vm798, 0.0
      %908 = vst.msk [vmem:[#allocation2 + $0x380] sm:$0xff] %vm794, 0.0
      %909 = vst.msk [vmem:[#allocation2 + $0x388] sm:$0xff] %vm794, 0.0
      %910 = vst.msk [vmem:[#allocation2 + $0x390] sm:$0xff] %vm794, 0.0
      %911 = vst.msk [vmem:[#allocation2 + $0x398] sm:$0x3] %vm798, 0.0
      %912 = vst.msk [vmem:[#allocation2 + $0x3a0] sm:$0xff] %vm794, 0.0
      %913 = vst.msk [vmem:[#allocation2 + $0x3a8] sm:$0xff] %vm794, 0.0
      %914 = vst.msk [vmem:[#allocation2 + $0x3b0] sm:$0xff] %vm794, 0.0
      %915 = vst.msk [vmem:[#allocation2 + $0x3b8] sm:$0x3] %vm798, 0.0
      %916 = vst.msk [vmem:[#allocation2 + $0x3c0] sm:$0xff] %vm794, 0.0
      %917 = vst.msk [vmem:[#allocation2 + $0x3c8] sm:$0xff] %vm794, 0.0
      %918 = vst.msk [vmem:[#allocation2 + $0x3d0] sm:$0xff] %vm794, 0.0
      %919 = vst.msk [vmem:[#allocation2 + $0x3d8] sm:$0x3] %vm798, 0.0
      %920 = vst.msk [vmem:[#allocation2 + $0x3e0] sm:$0xff] %vm794, 0.0
      %921 = vst.msk [vmem:[#allocation2 + $0x3e8] sm:$0xff] %vm794, 0.0
      %922 = vst.msk [vmem:[#allocation2 + $0x3f0] sm:$0xff] %vm794, 0.0
      %923 = vst.msk [vmem:[#allocation2 + $0x3f8] sm:$0x3] %vm798, 0.0
      %924 = vst.msk [vmem:[#allocation2 + $0x400] sm:$0xff] %vm794, 0.0
      %925 = vst.msk [vmem:[#allocation2 + $0x408] sm:$0xff] %vm794, 0.0
      %926 = vst.msk [vmem:[#allocation2 + $0x410] sm:$0xff] %vm794, 0.0
      %927 = vst.msk [vmem:[#allocation2 + $0x418] sm:$0x3] %vm798, 0.0
      %928 = vst.msk [vmem:[#allocation2 + $0x420] sm:$0xff] %vm794, 0.0
      %929 = vst.msk [vmem:[#allocation2 + $0x428] sm:$0xff] %vm794, 0.0
      %930 = vst.msk [vmem:[#allocation2 + $0x430] sm:$0xff] %vm794, 0.0
      %931 = vst.msk [vmem:[#allocation2 + $0x438] sm:$0x3] %vm798, 0.0
      %932 = vst.msk [vmem:[#allocation2 + $0x440] sm:$0xff] %vm794, 0.0
      %933 = vst.msk [vmem:[#allocation2 + $0x448] sm:$0xff] %vm794, 0.0
      %934 = vst.msk [vmem:[#allocation2 + $0x450] sm:$0xff] %vm794, 0.0
      %935 = vst.msk [vmem:[#allocation2 + $0x458] sm:$0x3] %vm798, 0.0
      %936 = vst.msk [vmem:[#allocation2 + $0x460] sm:$0xff] %vm794, 0.0
      %937 = vst.msk [vmem:[#allocation2 + $0x468] sm:$0xff] %vm794, 0.0
      %938 = vst.msk [vmem:[#allocation2 + $0x470] sm:$0xff] %vm794, 0.0
      %939 = vst.msk [vmem:[#allocation2 + $0x478] sm:$0x3] %vm798, 0.0
      %940 = vst.msk [vmem:[#allocation2 + $0x480] sm:$0xff] %vm794, 0.0
      %941 = vst.msk [vmem:[#allocation2 + $0x488] sm:$0xff] %vm794, 0.0
      %942 = vst.msk [vmem:[#allocation2 + $0x490] sm:$0xff] %vm794, 0.0
      %943 = vst.msk [vmem:[#allocation2 + $0x498] sm:$0x3] %vm798, 0.0
      %944 = vst.msk [vmem:[#allocation2 + $0x4a0] sm:$0xff] %vm794, 0.0
      %945 = vst.msk [vmem:[#allocation2 + $0x4a8] sm:$0xff] %vm794, 0.0
      %946 = vst.msk [vmem:[#allocation2 + $0x4b0] sm:$0xff] %vm794, 0.0
      %947 = vst.msk [vmem:[#allocation2 + $0x4b8] sm:$0x3] %vm798, 0.0
      %948 = vst.msk [vmem:[#allocation2 + $0x4c0] sm:$0xff] %vm794, 0.0
      %949 = vst.msk [vmem:[#allocation2 + $0x4c8] sm:$0xff] %vm794, 0.0
      %950 = vst.msk [vmem:[#allocation2 + $0x4d0] sm:$0xff] %vm794, 0.0
      %951 = vst.msk [vmem:[#allocation2 + $0x4d8] sm:$0x3] %vm798, 0.0
      %952 = vst.msk [vmem:[#allocation2 + $0x4e0] sm:$0xff] %vm794, 0.0
      %953 = vst.msk [vmem:[#allocation2 + $0x4e8] sm:$0xff] %vm794, 0.0
      %954 = vst.msk [vmem:[#allocation2 + $0x4f0] sm:$0xff] %vm794, 0.0
      %955 = vst.msk [vmem:[#allocation2 + $0x4f8] sm:$0x3] %vm798, 0.0
      %956 = vst.msk [vmem:[#allocation2 + $0x500] sm:$0xff] %vm794, 0.0
      %957 = vst.msk [vmem:[#allocation2 + $0x508] sm:$0xff] %vm794, 0.0
      %958 = vst.msk [vmem:[#allocation2 + $0x510] sm:$0xff] %vm794, 0.0
      %959 = vst.msk [vmem:[#allocation2 + $0x518] sm:$0x3] %vm798, 0.0
      %960 = vst.msk [vmem:[#allocation2 + $0x520] sm:$0xff] %vm794, 0.0
      %961 = vst.msk [vmem:[#allocation2 + $0x528] sm:$0xff] %vm794, 0.0
      %962 = vst.msk [vmem:[#allocation2 + $0x530] sm:$0xff] %vm794, 0.0
      %963 = vst.msk [vmem:[#allocation2 + $0x538] sm:$0x3] %vm798, 0.0
      %964 = vst.msk [vmem:[#allocation2 + $0x540] sm:$0xff] %vm794, 0.0
      %965 = vst.msk [vmem:[#allocation2 + $0x548] sm:$0xff] %vm794, 0.0
      %966 = vst.msk [vmem:[#allocation2 + $0x550] sm:$0xff] %vm794, 0.0
      %967 = vst.msk [vmem:[#allocation2 + $0x558] sm:$0x3] %vm798, 0.0
      %968 = vst.msk [vmem:[#allocation2 + $0x560] sm:$0xff] %vm794, 0.0
      %969 = vst.msk [vmem:[#allocation2 + $0x568] sm:$0xff] %vm794, 0.0
      %970 = vst.msk [vmem:[#allocation2 + $0x570] sm:$0xff] %vm794, 0.0
      %971 = vst.msk [vmem:[#allocation2 + $0x578] sm:$0x3] %vm798, 0.0
      %972 = vst.msk [vmem:[#allocation2 + $0x580] sm:$0xff] %vm794, 0.0
      %973 = vst.msk [vmem:[#allocation2 + $0x588] sm:$0xff] %vm794, 0.0
      %974 = vst.msk [vmem:[#allocation2 + $0x590] sm:$0xff] %vm794, 0.0
      %975 = vst.msk [vmem:[#allocation2 + $0x598] sm:$0x3] %vm798, 0.0
      %976 = vst.msk [vmem:[#allocation2 + $0x5a0] sm:$0xff] %vm794, 0.0
      %977 = vst.msk [vmem:[#allocation2 + $0x5a8] sm:$0xff] %vm794, 0.0
      %978 = vst.msk [vmem:[#allocation2 + $0x5b0] sm:$0xff] %vm794, 0.0
      %979 = vst.msk [vmem:[#allocation2 + $0x5b8] sm:$0x3] %vm798, 0.0
      %980 = vst.msk [vmem:[#allocation2 + $0x5c0] sm:$0xff] %vm794, 0.0
      %981 = vst.msk [vmem:[#allocation2 + $0x5c8] sm:$0xff] %vm794, 0.0
      %982 = vst.msk [vmem:[#allocation2 + $0x5d0] sm:$0xff] %vm794, 0.0
      %983 = vst.msk [vmem:[#allocation2 + $0x5d8] sm:$0x3] %vm798, 0.0
      %984 = vst.msk [vmem:[#allocation2 + $0x5e0] sm:$0xff] %vm794, 0.0
      %985 = vst.msk [vmem:[#allocation2 + $0x5e8] sm:$0xff] %vm794, 0.0
      %986 = vst.msk [vmem:[#allocation2 + $0x5f0] sm:$0xff] %vm794, 0.0
      %987 = vst.msk [vmem:[#allocation2 + $0x5f8] sm:$0x3] %vm798, 0.0
      %988 = vst.msk [vmem:[#allocation2 + $0x600] sm:$0xff] %vm794, 0.0
      %989 = vst.msk [vmem:[#allocation2 + $0x608] sm:$0xff] %vm794, 0.0
      %990 = vst.msk [vmem:[#allocation2 + $0x610] sm:$0xff] %vm794, 0.0
      %991 = vst.msk [vmem:[#allocation2 + $0x618] sm:$0x3] %vm798, 0.0
      %992 = vst.msk [vmem:[#allocation2 + $0x620] sm:$0xff] %vm794, 0.0
      %993 = vst.msk [vmem:[#allocation2 + $0x628] sm:$0xff] %vm794, 0.0
      %994 = vst.msk [vmem:[#allocation2 + $0x630] sm:$0xff] %vm794, 0.0
      %995 = vst.msk [vmem:[#allocation2 + $0x638] sm:$0x3] %vm798, 0.0
      %996 = vst.msk [vmem:[#allocation2 + $0x640] sm:$0xff] %vm794, 0.0
      %997 = vst.msk [vmem:[#allocation2 + $0x648] sm:$0xff] %vm794, 0.0
      %998 = vst.msk [vmem:[#allocation2 + $0x650] sm:$0xff] %vm794, 0.0
      %999 = vst.msk [vmem:[#allocation2 + $0x658] sm:$0x3] %vm798, 0.0
      %1000 = vst.msk [vmem:[#allocation2 + $0x660] sm:$0xff] %vm794, 0.0
      %1001 = vst.msk [vmem:[#allocation2 + $0x668] sm:$0xff] %vm794, 0.0
      %1002 = vst.msk [vmem:[#allocation2 + $0x670] sm:$0xff] %vm794, 0.0
      %1003 = vst.msk [vmem:[#allocation2 + $0x678] sm:$0x3] %vm798, 0.0
      %1004 = vst.msk [vmem:[#allocation2 + $0x680] sm:$0xff] %vm794, 0.0
      %1005 = vst.msk [vmem:[#allocation2 + $0x688] sm:$0xff] %vm794, 0.0
      %1006 = vst.msk [vmem:[#allocation2 + $0x690] sm:$0xff] %vm794, 0.0
      %1007 = vst.msk [vmem:[#allocation2 + $0x698] sm:$0x3] %vm798, 0.0
      %1008 = vst.msk [vmem:[#allocation2 + $0x6a0] sm:$0xff] %vm794, 0.0
      %1009 = vst.msk [vmem:[#allocation2 + $0x6a8] sm:$0xff] %vm794, 0.0
      %1010 = vst.msk [vmem:[#allocation2 + $0x6b0] sm:$0xff] %vm794, 0.0
      %1011 = vst.msk [vmem:[#allocation2 + $0x6b8] sm:$0x3] %vm798, 0.0
      %1012 = vst.msk [vmem:[#allocation2 + $0x6c0] sm:$0xff] %vm794, 0.0
      %1013 = vst.msk [vmem:[#allocation2 + $0x6c8] sm:$0xff] %vm794, 0.0
      %1014 = vst.msk [vmem:[#allocation2 + $0x6d0] sm:$0xff] %vm794, 0.0
      %1015 = vst.msk [vmem:[#allocation2 + $0x6d8] sm:$0x3] %vm798, 0.0
      %1016 = vst.msk [vmem:[#allocation2 + $0x6e0] sm:$0xff] %vm794, 0.0
      %1017 = vst.msk [vmem:[#allocation2 + $0x6e8] sm:$0xff] %vm794, 0.0
      %1018 = vst.msk [vmem:[#allocation2 + $0x6f0] sm:$0xff] %vm794, 0.0
      %1019 = vst.msk [vmem:[#allocation2 + $0x6f8] sm:$0x3] %vm798, 0.0
      %1020 = vst.msk [vmem:[#allocation2 + $0x700] sm:$0xff] %vm794, 0.0
      %1021 = vst.msk [vmem:[#allocation2 + $0x708] sm:$0xff] %vm794, 0.0
      %1022 = vst.msk [vmem:[#allocation2 + $0x710] sm:$0xff] %vm794, 0.0
      %1023 = vst.msk [vmem:[#allocation2 + $0x718] sm:$0x3] %vm798, 0.0
      %1024 = vst.msk [vmem:[#allocation2 + $0x720] sm:$0xff] %vm794, 0.0
      %1025 = vst.msk [vmem:[#allocation2 + $0x728] sm:$0xff] %vm794, 0.0
      %1026 = vst.msk [vmem:[#allocation2 + $0x730] sm:$0xff] %vm794, 0.0
      %1027 = vst.msk [vmem:[#allocation2 + $0x738] sm:$0x3] %vm798, 0.0
      %1028 = vst.msk [vmem:[#allocation2 + $0x740] sm:$0xff] %vm794, 0.0
      %1029 = vst.msk [vmem:[#allocation2 + $0x748] sm:$0xff] %vm794, 0.0
      %1030 = vst.msk [vmem:[#allocation2 + $0x750] sm:$0xff] %vm794, 0.0
      %1031 = vst.msk [vmem:[#allocation2 + $0x758] sm:$0x3] %vm798, 0.0
      %1032 = vst.msk [vmem:[#allocation2 + $0x760] sm:$0xff] %vm794, 0.0
      %1033 = vst.msk [vmem:[#allocation2 + $0x768] sm:$0xff] %vm794, 0.0
      %1034 = vst.msk [vmem:[#allocation2 + $0x770] sm:$0xff] %vm794, 0.0
      %1035 = vst.msk [vmem:[#allocation2 + $0x778] sm:$0x3] %vm798, 0.0
      %1036 = vst.msk [vmem:[#allocation2 + $0x780] sm:$0xff] %vm794, 0.0
      %1037 = vst.msk [vmem:[#allocation2 + $0x788] sm:$0xff] %vm794, 0.0
      %1038 = vst.msk [vmem:[#allocation2 + $0x790] sm:$0xff] %vm794, 0.0
      %1039 = vst.msk [vmem:[#allocation2 + $0x798] sm:$0x3] %vm798, 0.0
      %1040 = vst.msk [vmem:[#allocation2 + $0x7a0] sm:$0xff] %vm794, 0.0
      %1041 = vst.msk [vmem:[#allocation2 + $0x7a8] sm:$0xff] %vm794, 0.0
      %1042 = vst.msk [vmem:[#allocation2 + $0x7b0] sm:$0xff] %vm794, 0.0
      %1043 = vst.msk [vmem:[#allocation2 + $0x7b8] sm:$0x3] %vm798, 0.0
      %1044 = vst.msk [vmem:[#allocation2 + $0x7c0] sm:$0xff] %vm794, 0.0
      %1045 = vst.msk [vmem:[#allocation2 + $0x7c8] sm:$0xff] %vm794, 0.0
      %1046 = vst.msk [vmem:[#allocation2 + $0x7d0] sm:$0xff] %vm794, 0.0
      %1047 = vst.msk [vmem:[#allocation2 + $0x7d8] sm:$0x3] %vm798, 0.0
      %1048 = vst.msk [vmem:[#allocation2 + $0x7e0] sm:$0xff] %vm794, 0.0
      %1049 = vst.msk [vmem:[#allocation2 + $0x7e8] sm:$0xff] %vm794, 0.0
      %1050 = vst.msk [vmem:[#allocation2 + $0x7f0] sm:$0xff] %vm794, 0.0
      %1051 = vst.msk [vmem:[#allocation2 + $0x7f8] sm:$0x3] %vm798, 0.0
      %1052 = vst.msk [vmem:[#allocation2 + $0x800] sm:$0xff] %vm794, 0.0
      %1053 = vst.msk [vmem:[#allocation2 + $0x808] sm:$0xff] %vm794, 0.0
      %1054 = vst.msk [vmem:[#allocation2 + $0x810] sm:$0xff] %vm794, 0.0
      %1055 = vst.msk [vmem:[#allocation2 + $0x818] sm:$0x3] %vm798, 0.0
      %1056 = vst.msk [vmem:[#allocation2 + $0x820] sm:$0xff] %vm794, 0.0
      %1057 = vst.msk [vmem:[#allocation2 + $0x828] sm:$0xff] %vm794, 0.0
      %1058 = vst.msk [vmem:[#allocation2 + $0x830] sm:$0xff] %vm794, 0.0
      %1059 = vst.msk [vmem:[#allocation2 + $0x838] sm:$0x3] %vm798, 0.0
      %1060 = vst.msk [vmem:[#allocation2 + $0x840] sm:$0xff] %vm794, 0.0
      %1061 = vst.msk [vmem:[#allocation2 + $0x848] sm:$0xff] %vm794, 0.0
      %1062 = vst.msk [vmem:[#allocation2 + $0x850] sm:$0xff] %vm794, 0.0
      %1063 = vst.msk [vmem:[#allocation2 + $0x858] sm:$0x3] %vm798, 0.0
      %1064 = vst.msk [vmem:[#allocation2 + $0x860] sm:$0xff] %vm794, 0.0
      %1065 = vst.msk [vmem:[#allocation2 + $0x868] sm:$0xff] %vm794, 0.0
      %1066 = vst.msk [vmem:[#allocation2 + $0x870] sm:$0xff] %vm794, 0.0
      %1067 = vst.msk [vmem:[#allocation2 + $0x878] sm:$0x3] %vm798, 0.0
      %1068 = vst.msk [vmem:[#allocation2 + $0x880] sm:$0xff] %vm794, 0.0
      %1069 = vst.msk [vmem:[#allocation2 + $0x888] sm:$0xff] %vm794, 0.0
      %1070 = vst.msk [vmem:[#allocation2 + $0x890] sm:$0xff] %vm794, 0.0
      %1071 = vst.msk [vmem:[#allocation2 + $0x898] sm:$0x3] %vm798, 0.0
      %1072 = vst.msk [vmem:[#allocation2 + $0x8a0] sm:$0xff] %vm794, 0.0
      %1073 = vst.msk [vmem:[#allocation2 + $0x8a8] sm:$0xff] %vm794, 0.0
      %1074 = vst.msk [vmem:[#allocation2 + $0x8b0] sm:$0xff] %vm794, 0.0
      %1075 = vst.msk [vmem:[#allocation2 + $0x8b8] sm:$0x3] %vm798, 0.0
      %1076 = vst.msk [vmem:[#allocation2 + $0x8c0] sm:$0xff] %vm794, 0.0
      %1077 = vst.msk [vmem:[#allocation2 + $0x8c8] sm:$0xff] %vm794, 0.0
      %1078 = vst.msk [vmem:[#allocation2 + $0x8d0] sm:$0xff] %vm794, 0.0
      %1079 = vst.msk [vmem:[#allocation2 + $0x8d8] sm:$0x3] %vm798, 0.0
      %1080 = vst.msk [vmem:[#allocation2 + $0x8e0] sm:$0xff] %vm794, 0.0
      %1081 = vst.msk [vmem:[#allocation2 + $0x8e8] sm:$0xff] %vm794, 0.0
      %1082 = vst.msk [vmem:[#allocation2 + $0x8f0] sm:$0xff] %vm794, 0.0
      %1083 = vst.msk [vmem:[#allocation2 + $0x8f8] sm:$0x3] %vm798, 0.0
      %1084 = vst.msk [vmem:[#allocation2 + $0x900] sm:$0xff] %vm794, 0.0
      %1085 = vst.msk [vmem:[#allocation2 + $0x908] sm:$0xff] %vm794, 0.0
      %1086 = vst.msk [vmem:[#allocation2 + $0x910] sm:$0xff] %vm794, 0.0
      %1087 = vst.msk [vmem:[#allocation2 + $0x918] sm:$0x3] %vm798, 0.0
      %1088 = vst.msk [vmem:[#allocation2 + $0x920] sm:$0xff] %vm794, 0.0
      %1089 = vst.msk [vmem:[#allocation2 + $0x928] sm:$0xff] %vm794, 0.0
      %1090 = vst.msk [vmem:[#allocation2 + $0x930] sm:$0xff] %vm794, 0.0
      %1091 = vst.msk [vmem:[#allocation2 + $0x938] sm:$0x3] %vm798, 0.0
      %1092 = vst.msk [vmem:[#allocation2 + $0x940] sm:$0xff] %vm794, 0.0
      %1093 = vst.msk [vmem:[#allocation2 + $0x948] sm:$0xff] %vm794, 0.0
      %1094 = vst.msk [vmem:[#allocation2 + $0x950] sm:$0xff] %vm794, 0.0
      %1095 = vst.msk [vmem:[#allocation2 + $0x958] sm:$0x3] %vm798, 0.0
      %1096 = vst.msk [vmem:[#allocation2 + $0x960] sm:$0xff] %vm794, 0.0
      %1097 = vst.msk [vmem:[#allocation2 + $0x968] sm:$0xff] %vm794, 0.0
      %1098 = vst.msk [vmem:[#allocation2 + $0x970] sm:$0xff] %vm794, 0.0
      %1099 = vst.msk [vmem:[#allocation2 + $0x978] sm:$0x3] %vm798, 0.0
      %1100 = vst.msk [vmem:[#allocation2 + $0x980] sm:$0xff] %vm794, 0.0
      %1101 = vst.msk [vmem:[#allocation2 + $0x988] sm:$0xff] %vm794, 0.0
      %1102 = vst.msk [vmem:[#allocation2 + $0x990] sm:$0xff] %vm794, 0.0
      %1103 = vst.msk [vmem:[#allocation2 + $0x998] sm:$0x3] %vm798, 0.0
      %1104 = vst.msk [vmem:[#allocation2 + $0x9a0] sm:$0xff] %vm794, 0.0
      %1105 = vst.msk [vmem:[#allocation2 + $0x9a8] sm:$0xff] %vm794, 0.0
      %1106 = vst.msk [vmem:[#allocation2 + $0x9b0] sm:$0xff] %vm794, 0.0
      %1107 = vst.msk [vmem:[#allocation2 + $0x9b8] sm:$0x3] %vm798, 0.0
      %1108 = vst.msk [vmem:[#allocation2 + $0x9c0] sm:$0xff] %vm794, 0.0
      %1109 = vst.msk [vmem:[#allocation2 + $0x9c8] sm:$0xff] %vm794, 0.0
      %1110 = vst.msk [vmem:[#allocation2 + $0x9d0] sm:$0xff] %vm794, 0.0
      %1111 = vst.msk [vmem:[#allocation2 + $0x9d8] sm:$0x3] %vm798, 0.0
      %1112 = vst.msk [vmem:[#allocation2 + $0x9e0] sm:$0xff] %vm794, 0.0
      %1113 = vst.msk [vmem:[#allocation2 + $0x9e8] sm:$0xff] %vm794, 0.0
      %1114 = vst.msk [vmem:[#allocation2 + $0x9f0] sm:$0xff] %vm794, 0.0
      %1115 = vst.msk [vmem:[#allocation2 + $0x9f8] sm:$0x3] %vm798, 0.0
      %1116 = vst.msk [vmem:[#allocation2 + $0xa00] sm:$0xff] %vm794, 0.0
      %1117 = vst.msk [vmem:[#allocation2 + $0xa08] sm:$0xff] %vm794, 0.0
      %1118 = vst.msk [vmem:[#allocation2 + $0xa10] sm:$0xff] %vm794, 0.0
      %1119 = vst.msk [vmem:[#allocation2 + $0xa18] sm:$0x3] %vm798, 0.0
      %1120 = vst.msk [vmem:[#allocation2 + $0xa20] sm:$0xff] %vm794, 0.0
      %1121 = vst.msk [vmem:[#allocation2 + $0xa28] sm:$0xff] %vm794, 0.0
      %1122 = vst.msk [vmem:[#allocation2 + $0xa30] sm:$0xff] %vm794, 0.0
      %1123 = vst.msk [vmem:[#allocation2 + $0xa38] sm:$0x3] %vm798, 0.0
      %1124 = vst.msk [vmem:[#allocation2 + $0xa40] sm:$0xff] %vm794, 0.0
      %1125 = vst.msk [vmem:[#allocation2 + $0xa48] sm:$0xff] %vm794, 0.0
      %1126 = vst.msk [vmem:[#allocation2 + $0xa50] sm:$0xff] %vm794, 0.0
      %1127 = vst.msk [vmem:[#allocation2 + $0xa58] sm:$0x3] %vm798, 0.0
      %1128 = vst.msk [vmem:[#allocation2 + $0xa60] sm:$0xff] %vm794, 0.0
      %1129 = vst.msk [vmem:[#allocation2 + $0xa68] sm:$0xff] %vm794, 0.0
      %1130 = vst.msk [vmem:[#allocation2 + $0xa70] sm:$0xff] %vm794, 0.0
      %1131 = vst.msk [vmem:[#allocation2 + $0xa78] sm:$0x3] %vm798, 0.0
      %1132 = vst.msk [vmem:[#allocation2 + $0xa80] sm:$0xff] %vm794, 0.0
      %1133 = vst.msk [vmem:[#allocation2 + $0xa88] sm:$0xff] %vm794, 0.0
      %1134 = vst.msk [vmem:[#allocation2 + $0xa90] sm:$0xff] %vm794, 0.0
      %1135 = vst.msk [vmem:[#allocation2 + $0xa98] sm:$0x3] %vm798, 0.0
      %1136 = vst.msk [vmem:[#allocation2 + $0xaa0] sm:$0xff] %vm794, 0.0
      %1137 = vst.msk [vmem:[#allocation2 + $0xaa8] sm:$0xff] %vm794, 0.0
      %1138 = vst.msk [vmem:[#allocation2 + $0xab0] sm:$0xff] %vm794, 0.0
      %1139 = vst.msk [vmem:[#allocation2 + $0xab8] sm:$0x3] %vm798, 0.0
      %1140 = vst.msk [vmem:[#allocation2 + $0xac0] sm:$0xff] %vm794, 0.0
      %1141 = vst.msk [vmem:[#allocation2 + $0xac8] sm:$0xff] %vm794, 0.0
      %1142 = vst.msk [vmem:[#allocation2 + $0xad0] sm:$0xff] %vm794, 0.0
      %1143 = vst.msk [vmem:[#allocation2 + $0xad8] sm:$0x3] %vm798, 0.0
      %1144 = vst.msk [vmem:[#allocation2 + $0xae0] sm:$0xff] %vm794, 0.0
      %1145 = vst.msk [vmem:[#allocation2 + $0xae8] sm:$0xff] %vm794, 0.0
      %1146 = vst.msk [vmem:[#allocation2 + $0xaf0] sm:$0xff] %vm794, 0.0
      %1147 = vst.msk [vmem:[#allocation2 + $0xaf8] sm:$0x3] %vm798, 0.0
      %1148 = vst.msk [vmem:[#allocation2 + $0xb00] sm:$0xff] %vm794, 0.0
      %1149 = vst.msk [vmem:[#allocation2 + $0xb08] sm:$0xff] %vm794, 0.0
      %1150 = vst.msk [vmem:[#allocation2 + $0xb10] sm:$0xff] %vm794, 0.0
      %1151 = vst.msk [vmem:[#allocation2 + $0xb18] sm:$0x3] %vm798, 0.0
      %1152 = vst.msk [vmem:[#allocation2 + $0xb20] sm:$0xff] %vm794, 0.0
      %1153 = vst.msk [vmem:[#allocation2 + $0xb28] sm:$0xff] %vm794, 0.0
      %1154 = vst.msk [vmem:[#allocation2 + $0xb30] sm:$0xff] %vm794, 0.0
      %1155 = vst.msk [vmem:[#allocation2 + $0xb38] sm:$0x3] %vm798, 0.0
      %1156 = vst.msk [vmem:[#allocation2 + $0xb40] sm:$0xff] %vm794, 0.0
      %1157 = vst.msk [vmem:[#allocation2 + $0xb48] sm:$0xff] %vm794, 0.0
      %1158 = vst.msk [vmem:[#allocation2 + $0xb50] sm:$0xff] %vm794, 0.0
      %1159 = vst.msk [vmem:[#allocation2 + $0xb58] sm:$0x3] %vm798, 0.0
      %1160 = vst.msk [vmem:[#allocation2 + $0xb60] sm:$0xff] %vm794, 0.0
      %1161 = vst.msk [vmem:[#allocation2 + $0xb68] sm:$0xff] %vm794, 0.0
      %1162 = vst.msk [vmem:[#allocation2 + $0xb70] sm:$0xff] %vm794, 0.0
      %1163 = vst.msk [vmem:[#allocation2 + $0xb78] sm:$0x3] %vm798, 0.0
      %1164 = vst.msk [vmem:[#allocation2 + $0xb80] sm:$0xff] %vm794, 0.0
      %1165 = vst.msk [vmem:[#allocation2 + $0xb88] sm:$0xff] %vm794, 0.0
      %1166 = vst.msk [vmem:[#allocation2 + $0xb90] sm:$0xff] %vm794, 0.0
      %1167 = vst.msk [vmem:[#allocation2 + $0xb98] sm:$0x3] %vm798, 0.0
      %1168 = vst.msk [vmem:[#allocation2 + $0xba0] sm:$0xff] %vm794, 0.0
      %1169 = vst.msk [vmem:[#allocation2 + $0xba8] sm:$0xff] %vm794, 0.0
      %1170 = vst.msk [vmem:[#allocation2 + $0xbb0] sm:$0xff] %vm794, 0.0
      %1171 = vst.msk [vmem:[#allocation2 + $0xbb8] sm:$0x3] %vm798, 0.0
      %1172 = vst.msk [vmem:[#allocation2 + $0xbc0] sm:$0xff] %vm794, 0.0
      %1173 = vst.msk [vmem:[#allocation2 + $0xbc8] sm:$0xff] %vm794, 0.0
      %1174 = vst.msk [vmem:[#allocation2 + $0xbd0] sm:$0xff] %vm794, 0.0
      %1175 = vst.msk [vmem:[#allocation2 + $0xbd8] sm:$0x3] %vm798, 0.0
      %1176 = vst.msk [vmem:[#allocation2 + $0xbe0] sm:$0xff] %vm794, 0.0
      %1177 = vst.msk [vmem:[#allocation2 + $0xbe8] sm:$0xff] %vm794, 0.0
      %1178 = vst.msk [vmem:[#allocation2 + $0xbf0] sm:$0xff] %vm794, 0.0
      %1179 = vst.msk [vmem:[#allocation2 + $0xbf8] sm:$0x3] %vm798, 0.0
      %1180 = vst.msk [vmem:[#allocation2 + $0xc00] sm:$0xff] %vm794, 0.0
      %1181 = vst.msk [vmem:[#allocation2 + $0xc08] sm:$0xff] %vm794, 0.0
      %1182 = vst.msk [vmem:[#allocation2 + $0xc10] sm:$0xff] %vm794, 0.0
      %1183 = vst.msk [vmem:[#allocation2 + $0xc18] sm:$0x3] %vm798, 0.0
      %1184 = vst.msk [vmem:[#allocation2 + $0xc20] sm:$0xff] %vm794, 0.0
      %1185 = vst.msk [vmem:[#allocation2 + $0xc28] sm:$0xff] %vm794, 0.0
      %1186 = vst.msk [vmem:[#allocation2 + $0xc30] sm:$0xff] %vm794, 0.0
      %1187 = vst.msk [vmem:[#allocation2 + $0xc38] sm:$0x3] %vm798, 0.0
      %1188 = vst.msk [vmem:[#allocation2 + $0xc40] sm:$0xff] %vm794, 0.0
      %1189 = vst.msk [vmem:[#allocation2 + $0xc48] sm:$0xff] %vm794, 0.0
      %1190 = vst.msk [vmem:[#allocation2 + $0xc50] sm:$0xff] %vm794, 0.0
      %1191 = vst.msk [vmem:[#allocation2 + $0xc58] sm:$0x3] %vm798, 0.0
      %1192 = vst.msk [vmem:[#allocation2 + $0xc60] sm:$0xff] %vm794, 0.0
      %1193 = vst.msk [vmem:[#allocation2 + $0xc68] sm:$0xff] %vm794, 0.0
      %1194 = vst.msk [vmem:[#allocation2 + $0xc70] sm:$0xff] %vm794, 0.0
      %1195 = vst.msk [vmem:[#allocation2 + $0xc78] sm:$0x3] %vm798, 0.0
      %1196 = vst.msk [vmem:[#allocation2 + $0xc80] sm:$0xff] %vm794, 0.0
      %1197 = vst.msk [vmem:[#allocation2 + $0xc88] sm:$0xff] %vm794, 0.0
      %1198 = vst.msk [vmem:[#allocation2 + $0xc90] sm:$0xff] %vm794, 0.0
      %1199 = vst.msk [vmem:[#allocation2 + $0xc98] sm:$0x3] %vm798, 0.0
      %1200 = vst.msk [vmem:[#allocation2 + $0xca0] sm:$0xff] %vm794, 0.0
      %1201 = vst.msk [vmem:[#allocation2 + $0xca8] sm:$0xff] %vm794, 0.0
      %1202 = vst.msk [vmem:[#allocation2 + $0xcb0] sm:$0xff] %vm794, 0.0
      %1203 = vst.msk [vmem:[#allocation2 + $0xcb8] sm:$0x3] %vm798, 0.0
      %1204 = vst.msk [vmem:[#allocation2 + $0xcc0] sm:$0xff] %vm794, 0.0
      %1205 = vst.msk [vmem:[#allocation2 + $0xcc8] sm:$0xff] %vm794, 0.0
      %1206 = vst.msk [vmem:[#allocation2 + $0xcd0] sm:$0xff] %vm794, 0.0
      %1207 = vst.msk [vmem:[#allocation2 + $0xcd8] sm:$0x3] %vm798, 0.0
      %1208 = vst.msk [vmem:[#allocation2 + $0xce0] sm:$0xff] %vm794, 0.0
      %1209 = vst.msk [vmem:[#allocation2 + $0xce8] sm:$0xff] %vm794, 0.0
      %1210 = vst.msk [vmem:[#allocation2 + $0xcf0] sm:$0xff] %vm794, 0.0
      %1211 = vst.msk [vmem:[#allocation2 + $0xcf8] sm:$0x3] %vm798, 0.0
      %s1212 = scalar_lea.vmem [#allocation2], 160
      %1213 = vst.msk [vmem:[%s1212 + $0x5] sm:$0xff] %vm794, %v762
      %1214 = vst.msk [vmem:[%s1212 + $0xd] sm:$0xff] %vm794, %v763
      %1215 = vst.msk [vmem:[%s1212 + $0x25] sm:$0xff] %vm794, %v764
      %1216 = vst.msk [vmem:[%s1212 + $0x2d] sm:$0xff] %vm794, %v765
      %1217 = vst.msk [vmem:[%s1212 + $0x45] sm:$0xff] %vm794, %v766
      %1218 = vst.msk [vmem:[%s1212 + $0x4d] sm:$0xff] %vm794, %v767
      %1219 = vst.msk [vmem:[%s1212 + $0x65] sm:$0xff] %vm794, %v768
      %1220 = vst.msk [vmem:[%s1212 + $0x6d] sm:$0xff] %vm794, %v769
      %1221 = vst.msk [vmem:[%s1212 + $0x85] sm:$0xff] %vm794, %v770
      %1222 = vst.msk [vmem:[%s1212 + $0x8d] sm:$0xff] %vm794, %v771
      %1223 = vst.msk [vmem:[%s1212 + $0xa5] sm:$0xff] %vm794, %v772
      %1224 = vst.msk [vmem:[%s1212 + $0xad] sm:$0xff] %vm794, %v773
      %1225 = vst.msk [vmem:[%s1212 + $0xc5] sm:$0xff] %vm794, %v774
      %1226 = vst.msk [vmem:[%s1212 + $0xcd] sm:$0xff] %vm794, %v775
      %1227 = vst.msk [vmem:[%s1212 + $0xe5] sm:$0xff] %vm794, %v776
      %1228 = vst.msk [vmem:[%s1212 + $0xed] sm:$0xff] %vm794, %v777
      %1229 = vst.msk [vmem:[%s1212 + $0x105] sm:$0xff] %vm794, %v778
      %1230 = vst.msk [vmem:[%s1212 + $0x10d] sm:$0xff] %vm794, %v779
      %1231 = vst.msk [vmem:[%s1212 + $0x125] sm:$0xff] %vm794, %v780
      %1232 = vst.msk [vmem:[%s1212 + $0x12d] sm:$0xff] %vm794, %v781
      %1233 = vst.msk [vmem:[%s1212 + $0x145] sm:$0xff] %vm794, %v782
      %1234 = vst.msk [vmem:[%s1212 + $0x14d] sm:$0xff] %vm794, %v783
      %1235 = vst.msk [vmem:[%s1212 + $0x165] sm:$0xff] %vm794, %v784
      %1236 = vst.msk [vmem:[%s1212 + $0x16d] sm:$0xff] %vm794, %v785
      %1237 = vst.msk [vmem:[%s1212 + $0x185] sm:$0xff] %vm794, %v786
      %1238 = vst.msk [vmem:[%s1212 + $0x18d] sm:$0xff] %vm794, %v787
      %1239 = vst.msk [vmem:[%s1212 + $0x1a5] sm:$0xff] %vm794, %v788
      %1240 = vst.msk [vmem:[%s1212 + $0x1ad] sm:$0xff] %vm794, %v789
      %1241 = vst.msk [vmem:[%s1212 + $0x1c5] sm:$0xff] %vm794, %v790
      %1242 = vst.msk [vmem:[%s1212 + $0x1cd] sm:$0xff] %vm794, %v791
      %1243 = vst.msk [vmem:[%s1212 + $0x1e5] sm:$0xff] %vm794, %v792
      %1244 = vst.msk [vmem:[%s1212 + $0x1ed] sm:$0xff] %vm794, %v793
      %1277 = vrot.lane.b32.xlu0 %v762, 126
      %v1278 = vpop.permute.xlu0 %1277
      %1279 = vrot.lane.b32.xlu0 %v763, 126
      %v1280 = vpop.permute.xlu0 %1279
      %1281 = vrot.lane.b32.xlu0 %v764, 126
      %v1282 = vpop.permute.xlu0 %1281
      %1283 = vrot.lane.b32.xlu0 %v765, 126
      %v1284 = vpop.permute.xlu0 %1283
      %1285 = vrot.lane.b32.xlu0 %v766, 126
      %v1286 = vpop.permute.xlu0 %1285
      %1287 = vrot.lane.b32.xlu0 %v767, 126
      %v1288 = vpop.permute.xlu0 %1287
      %1289 = vrot.lane.b32.xlu0 %v768, 126
      %v1290 = vpop.permute.xlu0 %1289
      %1291 = vrot.lane.b32.xlu0 %v769, 126
      %v1292 = vpop.permute.xlu0 %1291
      %1293 = vrot.lane.b32.xlu0 %v770, 126
      %v1294 = vpop.permute.xlu0 %1293
      %1295 = vrot.lane.b32.xlu0 %v771, 126
      %v1296 = vpop.permute.xlu0 %1295
      %1297 = vrot.lane.b32.xlu0 %v772, 126
      %v1298 = vpop.permute.xlu0 %1297
      %1299 = vrot.lane.b32.xlu0 %v773, 126
      %v1300 = vpop.permute.xlu0 %1299
      %1301 = vrot.lane.b32.xlu0 %v774, 126
      %v1302 = vpop.permute.xlu0 %1301
      %1303 = vrot.lane.b32.xlu0 %v775, 126
      %v1304 = vpop.permute.xlu0 %1303
      %1305 = vrot.lane.b32.xlu0 %v776, 126
      %v1306 = vpop.permute.xlu0 %1305
      %1307 = vrot.lane.b32.xlu0 %v777, 126
      %v1308 = vpop.permute.xlu0 %1307
      %1309 = vrot.lane.b32.xlu0 %v778, 126
      %v1310 = vpop.permute.xlu0 %1309
      %1311 = vrot.lane.b32.xlu0 %v779, 126
      %v1312 = vpop.permute.xlu0 %1311
      %1313 = vrot.lane.b32.xlu0 %v780, 126
      %v1314 = vpop.permute.xlu0 %1313
      %1315 = vrot.lane.b32.xlu0 %v781, 126
      %v1316 = vpop.permute.xlu0 %1315
      %1317 = vrot.lane.b32.xlu0 %v782, 126
      %v1318 = vpop.permute.xlu0 %1317
      %1319 = vrot.lane.b32.xlu0 %v783, 126
      %v1320 = vpop.permute.xlu0 %1319
      %1321 = vrot.lane.b32.xlu0 %v784, 126
      %v1322 = vpop.permute.xlu0 %1321
      %1323 = vrot.lane.b32.xlu0 %v785, 126
      %v1324 = vpop.permute.xlu0 %1323
      %1325 = vrot.lane.b32.xlu0 %v786, 126
      %v1326 = vpop.permute.xlu0 %1325
      %1327 = vrot.lane.b32.xlu0 %v787, 126
      %v1328 = vpop.permute.xlu0 %1327
      %1329 = vrot.lane.b32.xlu0 %v788, 126
      %v1330 = vpop.permute.xlu0 %1329
      %1331 = vrot.lane.b32.xlu0 %v789, 126
      %v1332 = vpop.permute.xlu0 %1331
      %1333 = vrot.lane.b32.xlu0 %v790, 126
      %v1334 = vpop.permute.xlu0 %1333
      %1335 = vrot.lane.b32.xlu0 %v791, 126
      %v1336 = vpop.permute.xlu0 %1335
      %1337 = vrot.lane.b32.xlu0 %v792, 126
      %v1338 = vpop.permute.xlu0 %1337
      %1339 = vrot.lane.b32.xlu0 %v793, 126
      %v1340 = vpop.permute.xlu0 %1339
      %s1373 = scalar_lea.vmem [#allocation2], 992
      %1374 = vst.msk [vmem:[%s1373 + $0x5] sm:$0xff] %vm794, %v1278
      %1375 = vst.msk [vmem:[%s1373 + $0xd] sm:$0xff] %vm794, %v1280
      %1376 = vst.msk [vmem:[%s1373 + $0x25] sm:$0xff] %vm794, %v1282
      %1377 = vst.msk [vmem:[%s1373 + $0x2d] sm:$0xff] %vm794, %v1284
      %1378 = vst.msk [vmem:[%s1373 + $0x45] sm:$0xff] %vm794, %v1286
      %1379 = vst.msk [vmem:[%s1373 + $0x4d] sm:$0xff] %vm794, %v1288
      %1380 = vst.msk [vmem:[%s1373 + $0x65] sm:$0xff] %vm794, %v1290
      %1381 = vst.msk [vmem:[%s1373 + $0x6d] sm:$0xff] %vm794, %v1292
      %1382 = vst.msk [vmem:[%s1373 + $0x85] sm:$0xff] %vm794, %v1294
      %1383 = vst.msk [vmem:[%s1373 + $0x8d] sm:$0xff] %vm794, %v1296
      %1384 = vst.msk [vmem:[%s1373 + $0xa5] sm:$0xff] %vm794, %v1298
      %1385 = vst.msk [vmem:[%s1373 + $0xad] sm:$0xff] %vm794, %v1300
      %1386 = vst.msk [vmem:[%s1373 + $0xc5] sm:$0xff] %vm794, %v1302
      %1387 = vst.msk [vmem:[%s1373 + $0xcd] sm:$0xff] %vm794, %v1304
      %1388 = vst.msk [vmem:[%s1373 + $0xe5] sm:$0xff] %vm794, %v1306
      %1389 = vst.msk [vmem:[%s1373 + $0xed] sm:$0xff] %vm794, %v1308
      %1390 = vst.msk [vmem:[%s1373 + $0x105] sm:$0xff] %vm794, %v1310
      %1391 = vst.msk [vmem:[%s1373 + $0x10d] sm:$0xff] %vm794, %v1312
      %1392 = vst.msk [vmem:[%s1373 + $0x125] sm:$0xff] %vm794, %v1314
      %1393 = vst.msk [vmem:[%s1373 + $0x12d] sm:$0xff] %vm794, %v1316
      %1394 = vst.msk [vmem:[%s1373 + $0x145] sm:$0xff] %vm794, %v1318
      %1395 = vst.msk [vmem:[%s1373 + $0x14d] sm:$0xff] %vm794, %v1320
      %1396 = vst.msk [vmem:[%s1373 + $0x165] sm:$0xff] %vm794, %v1322
      %1397 = vst.msk [vmem:[%s1373 + $0x16d] sm:$0xff] %vm794, %v1324
      %1398 = vst.msk [vmem:[%s1373 + $0x185] sm:$0xff] %vm794, %v1326
      %1399 = vst.msk [vmem:[%s1373 + $0x18d] sm:$0xff] %vm794, %v1328
      %1400 = vst.msk [vmem:[%s1373 + $0x1a5] sm:$0xff] %vm794, %v1330
      %1401 = vst.msk [vmem:[%s1373 + $0x1ad] sm:$0xff] %vm794, %v1332
      %1402 = vst.msk [vmem:[%s1373 + $0x1c5] sm:$0xff] %vm794, %v1334
      %1403 = vst.msk [vmem:[%s1373 + $0x1cd] sm:$0xff] %vm794, %v1336
      %1404 = vst.msk [vmem:[%s1373 + $0x1e5] sm:$0xff] %vm794, %v1338
      %1405 = vst.msk [vmem:[%s1373 + $0x1ed] sm:$0xff] %vm794, %v1340
      %1406 = vrot.lane.b32.xlu0 %v762, 124
      %v1407 = vpop.permute.xlu0 %1406
      %1408 = vrot.lane.b32.xlu0 %v763, 124
      %v1409 = vpop.permute.xlu0 %1408
      %1410 = vrot.lane.b32.xlu0 %v764, 124
      %v1411 = vpop.permute.xlu0 %1410
      %1412 = vrot.lane.b32.xlu0 %v765, 124
      %v1413 = vpop.permute.xlu0 %1412
      %1414 = vrot.lane.b32.xlu0 %v766, 124
      %v1415 = vpop.permute.xlu0 %1414
      %1416 = vrot.lane.b32.xlu0 %v767, 124
      %v1417 = vpop.permute.xlu0 %1416
      %1418 = vrot.lane.b32.xlu0 %v768, 124
      %v1419 = vpop.permute.xlu0 %1418
      %1420 = vrot.lane.b32.xlu0 %v769, 124
      %v1421 = vpop.permute.xlu0 %1420
      %1422 = vrot.lane.b32.xlu0 %v770, 124
      %v1423 = vpop.permute.xlu0 %1422
      %1424 = vrot.lane.b32.xlu0 %v771, 124
      %v1425 = vpop.permute.xlu0 %1424
      %1426 = vrot.lane.b32.xlu0 %v772, 124
      %v1427 = vpop.permute.xlu0 %1426
      %1428 = vrot.lane.b32.xlu0 %v773, 124
      %v1429 = vpop.permute.xlu0 %1428
      %1430 = vrot.lane.b32.xlu0 %v774, 124
      %v1431 = vpop.permute.xlu0 %1430
      %1432 = vrot.lane.b32.xlu0 %v775, 124
      %v1433 = vpop.permute.xlu0 %1432
      %1434 = vrot.lane.b32.xlu0 %v776, 124
      %v1435 = vpop.permute.xlu0 %1434
      %1436 = vrot.lane.b32.xlu0 %v777, 124
      %v1437 = vpop.permute.xlu0 %1436
      %1438 = vrot.lane.b32.xlu0 %v778, 124
      %v1439 = vpop.permute.xlu0 %1438
      %1440 = vrot.lane.b32.xlu0 %v779, 124
      %v1441 = vpop.permute.xlu0 %1440
      %1442 = vrot.lane.b32.xlu0 %v780, 124
      %v1443 = vpop.permute.xlu0 %1442
      %1444 = vrot.lane.b32.xlu0 %v781, 124
      %v1445 = vpop.permute.xlu0 %1444
      %1446 = vrot.lane.b32.xlu0 %v782, 124
      %v1447 = vpop.permute.xlu0 %1446
      %1448 = vrot.lane.b32.xlu0 %v783, 124
      %v1449 = vpop.permute.xlu0 %1448
      %1450 = vrot.lane.b32.xlu0 %v784, 124
      %v1451 = vpop.permute.xlu0 %1450
      %1452 = vrot.lane.b32.xlu0 %v785, 124
      %v1453 = vpop.permute.xlu0 %1452
      %1454 = vrot.lane.b32.xlu0 %v786, 124
      %v1455 = vpop.permute.xlu0 %1454
      %1456 = vrot.lane.b32.xlu0 %v787, 124
      %v1457 = vpop.permute.xlu0 %1456
      %1458 = vrot.lane.b32.xlu0 %v788, 124
      %v1459 = vpop.permute.xlu0 %1458
      %1460 = vrot.lane.b32.xlu0 %v789, 124
      %v1461 = vpop.permute.xlu0 %1460
      %1462 = vrot.lane.b32.xlu0 %v790, 124
      %v1463 = vpop.permute.xlu0 %1462
      %1464 = vrot.lane.b32.xlu0 %v791, 124
      %v1465 = vpop.permute.xlu0 %1464
      %1466 = vrot.lane.b32.xlu0 %v792, 124
      %v1467 = vpop.permute.xlu0 %1466
      %1468 = vrot.lane.b32.xlu0 %v793, 124
      %v1469 = vpop.permute.xlu0 %1468
      %s1502 = scalar_lea.vmem [#allocation2], 1824
      %1503 = vst.msk [vmem:[%s1502 + $0x5] sm:$0xff] %vm794, %v1407
      %1504 = vst.msk [vmem:[%s1502 + $0xd] sm:$0xff] %vm794, %v1409
      %1505 = vst.msk [vmem:[%s1502 + $0x25] sm:$0xff] %vm794, %v1411
      %1506 = vst.msk [vmem:[%s1502 + $0x2d] sm:$0xff] %vm794, %v1413
      %1507 = vst.msk [vmem:[%s1502 + $0x45] sm:$0xff] %vm794, %v1415
      %1508 = vst.msk [vmem:[%s1502 + $0x4d] sm:$0xff] %vm794, %v1417
      %1509 = vst.msk [vmem:[%s1502 + $0x65] sm:$0xff] %vm794, %v1419
      %1510 = vst.msk [vmem:[%s1502 + $0x6d] sm:$0xff] %vm794, %v1421
      %1511 = vst.msk [vmem:[%s1502 + $0x85] sm:$0xff] %vm794, %v1423
      %1512 = vst.msk [vmem:[%s1502 + $0x8d] sm:$0xff] %vm794, %v1425
      %1513 = vst.msk [vmem:[%s1502 + $0xa5] sm:$0xff] %vm794, %v1427
      %1514 = vst.msk [vmem:[%s1502 + $0xad] sm:$0xff] %vm794, %v1429
      %1515 = vst.msk [vmem:[%s1502 + $0xc5] sm:$0xff] %vm794, %v1431
      %1516 = vst.msk [vmem:[%s1502 + $0xcd] sm:$0xff] %vm794, %v1433
      %1517 = vst.msk [vmem:[%s1502 + $0xe5] sm:$0xff] %vm794, %v1435
      %1518 = vst.msk [vmem:[%s1502 + $0xed] sm:$0xff] %vm794, %v1437
      %1519 = vst.msk [vmem:[%s1502 + $0x105] sm:$0xff] %vm794, %v1439
      %1520 = vst.msk [vmem:[%s1502 + $0x10d] sm:$0xff] %vm794, %v1441
      %1521 = vst.msk [vmem:[%s1502 + $0x125] sm:$0xff] %vm794, %v1443
      %1522 = vst.msk [vmem:[%s1502 + $0x12d] sm:$0xff] %vm794, %v1445
      %1523 = vst.msk [vmem:[%s1502 + $0x145] sm:$0xff] %vm794, %v1447
      %1524 = vst.msk [vmem:[%s1502 + $0x14d] sm:$0xff] %vm794, %v1449
      %1525 = vst.msk [vmem:[%s1502 + $0x165] sm:$0xff] %vm794, %v1451
      %1526 = vst.msk [vmem:[%s1502 + $0x16d] sm:$0xff] %vm794, %v1453
      %1527 = vst.msk [vmem:[%s1502 + $0x185] sm:$0xff] %vm794, %v1455
      %1528 = vst.msk [vmem:[%s1502 + $0x18d] sm:$0xff] %vm794, %v1457
      %1529 = vst.msk [vmem:[%s1502 + $0x1a5] sm:$0xff] %vm794, %v1459
      %1530 = vst.msk [vmem:[%s1502 + $0x1ad] sm:$0xff] %vm794, %v1461
      %1531 = vst.msk [vmem:[%s1502 + $0x1c5] sm:$0xff] %vm794, %v1463
      %1532 = vst.msk [vmem:[%s1502 + $0x1cd] sm:$0xff] %vm794, %v1465
      %1533 = vst.msk [vmem:[%s1502 + $0x1e5] sm:$0xff] %vm794, %v1467
      %1534 = vst.msk [vmem:[%s1502 + $0x1ed] sm:$0xff] %vm794, %v1469
      %1535 = vrot.lane.b32.xlu0 %v762, 122
      %v1536 = vpop.permute.xlu0 %1535
      %1537 = vrot.lane.b32.xlu0 %v763, 122
      %v1538 = vpop.permute.xlu0 %1537
      %1539 = vrot.lane.b32.xlu0 %v764, 122
      %v1540 = vpop.permute.xlu0 %1539
      %1541 = vrot.lane.b32.xlu0 %v765, 122
      %v1542 = vpop.permute.xlu0 %1541
      %1543 = vrot.lane.b32.xlu0 %v766, 122
      %v1544 = vpop.permute.xlu0 %1543
      %1545 = vrot.lane.b32.xlu0 %v767, 122
      %v1546 = vpop.permute.xlu0 %1545
      %1547 = vrot.lane.b32.xlu0 %v768, 122
      %v1548 = vpop.permute.xlu0 %1547
      %1549 = vrot.lane.b32.xlu0 %v769, 122
      %v1550 = vpop.permute.xlu0 %1549
      %1551 = vrot.lane.b32.xlu0 %v770, 122
      %v1552 = vpop.permute.xlu0 %1551
      %1553 = vrot.lane.b32.xlu0 %v771, 122
      %v1554 = vpop.permute.xlu0 %1553
      %1555 = vrot.lane.b32.xlu0 %v772, 122
      %v1556 = vpop.permute.xlu0 %1555
      %1557 = vrot.lane.b32.xlu0 %v773, 122
      %v1558 = vpop.permute.xlu0 %1557
      %1559 = vrot.lane.b32.xlu0 %v774, 122
      %v1560 = vpop.permute.xlu0 %1559
      %1561 = vrot.lane.b32.xlu0 %v775, 122
      %v1562 = vpop.permute.xlu0 %1561
      %1563 = vrot.lane.b32.xlu0 %v776, 122
      %v1564 = vpop.permute.xlu0 %1563
      %1565 = vrot.lane.b32.xlu0 %v777, 122
      %v1566 = vpop.permute.xlu0 %1565
      %1567 = vrot.lane.b32.xlu0 %v778, 122
      %v1568 = vpop.permute.xlu0 %1567
      %1569 = vrot.lane.b32.xlu0 %v779, 122
      %v1570 = vpop.permute.xlu0 %1569
      %1571 = vrot.lane.b32.xlu0 %v780, 122
      %v1572 = vpop.permute.xlu0 %1571
      %1573 = vrot.lane.b32.xlu0 %v781, 122
      %v1574 = vpop.permute.xlu0 %1573
      %1575 = vrot.lane.b32.xlu0 %v782, 122
      %v1576 = vpop.permute.xlu0 %1575
      %1577 = vrot.lane.b32.xlu0 %v783, 122
      %v1578 = vpop.permute.xlu0 %1577
      %1579 = vrot.lane.b32.xlu0 %v784, 122
      %v1580 = vpop.permute.xlu0 %1579
      %1581 = vrot.lane.b32.xlu0 %v785, 122
      %v1582 = vpop.permute.xlu0 %1581
      %1583 = vrot.lane.b32.xlu0 %v786, 122
      %v1584 = vpop.permute.xlu0 %1583
      %1585 = vrot.lane.b32.xlu0 %v787, 122
      %v1586 = vpop.permute.xlu0 %1585
      %1587 = vrot.lane.b32.xlu0 %v788, 122
      %v1588 = vpop.permute.xlu0 %1587
      %1589 = vrot.lane.b32.xlu0 %v789, 122
      %v1590 = vpop.permute.xlu0 %1589
      %1591 = vrot.lane.b32.xlu0 %v790, 122
      %v1592 = vpop.permute.xlu0 %1591
      %1593 = vrot.lane.b32.xlu0 %v791, 122
      %v1594 = vpop.permute.xlu0 %1593
      %1595 = vrot.lane.b32.xlu0 %v792, 122
      %v1596 = vpop.permute.xlu0 %1595
      %1597 = vrot.lane.b32.xlu0 %v793, 122
      %v1598 = vpop.permute.xlu0 %1597
      %s1631 = scalar_lea.vmem [#allocation2], 2656
      %1632 = vst.msk [vmem:[%s1631 + $0x5] sm:$0xff] %vm794, %v1536
      %1633 = vst.msk [vmem:[%s1631 + $0xd] sm:$0xff] %vm794, %v1538
      %1634 = vst.msk [vmem:[%s1631 + $0x25] sm:$0xff] %vm794, %v1540
      %1635 = vst.msk [vmem:[%s1631 + $0x2d] sm:$0xff] %vm794, %v1542
      %1636 = vst.msk [vmem:[%s1631 + $0x45] sm:$0xff] %vm794, %v1544
      %1637 = vst.msk [vmem:[%s1631 + $0x4d] sm:$0xff] %vm794, %v1546
      %1638 = vst.msk [vmem:[%s1631 + $0x65] sm:$0xff] %vm794, %v1548
      %1639 = vst.msk [vmem:[%s1631 + $0x6d] sm:$0xff] %vm794, %v1550
      %1640 = vst.msk [vmem:[%s1631 + $0x85] sm:$0xff] %vm794, %v1552
      %1641 = vst.msk [vmem:[%s1631 + $0x8d] sm:$0xff] %vm794, %v1554
      %1642 = vst.msk [vmem:[%s1631 + $0xa5] sm:$0xff] %vm794, %v1556
      %1643 = vst.msk [vmem:[%s1631 + $0xad] sm:$0xff] %vm794, %v1558
      %1644 = vst.msk [vmem:[%s1631 + $0xc5] sm:$0xff] %vm794, %v1560
      %1645 = vst.msk [vmem:[%s1631 + $0xcd] sm:$0xff] %vm794, %v1562
      %1646 = vst.msk [vmem:[%s1631 + $0xe5] sm:$0xff] %vm794, %v1564
      %1647 = vst.msk [vmem:[%s1631 + $0xed] sm:$0xff] %vm794, %v1566
      %1648 = vst.msk [vmem:[%s1631 + $0x105] sm:$0xff] %vm794, %v1568
      %1649 = vst.msk [vmem:[%s1631 + $0x10d] sm:$0xff] %vm794, %v1570
      %1650 = vst.msk [vmem:[%s1631 + $0x125] sm:$0xff] %vm794, %v1572
      %1651 = vst.msk [vmem:[%s1631 + $0x12d] sm:$0xff] %vm794, %v1574
      %1652 = vst.msk [vmem:[%s1631 + $0x145] sm:$0xff] %vm794, %v1576
      %1653 = vst.msk [vmem:[%s1631 + $0x14d] sm:$0xff] %vm794, %v1578
      %1654 = vst.msk [vmem:[%s1631 + $0x165] sm:$0xff] %vm794, %v1580
      %1655 = vst.msk [vmem:[%s1631 + $0x16d] sm:$0xff] %vm794, %v1582
      %1656 = vst.msk [vmem:[%s1631 + $0x185] sm:$0xff] %vm794, %v1584
      %1657 = vst.msk [vmem:[%s1631 + $0x18d] sm:$0xff] %vm794, %v1586
      %1658 = vst.msk [vmem:[%s1631 + $0x1a5] sm:$0xff] %vm794, %v1588
      %1659 = vst.msk [vmem:[%s1631 + $0x1ad] sm:$0xff] %vm794, %v1590
      %1660 = vst.msk [vmem:[%s1631 + $0x1c5] sm:$0xff] %vm794, %v1592
      %1661 = vst.msk [vmem:[%s1631 + $0x1cd] sm:$0xff] %vm794, %v1594
      %1662 = vst.msk [vmem:[%s1631 + $0x1e5] sm:$0xff] %vm794, %v1596
      %1663 = vst.msk [vmem:[%s1631 + $0x1ed] sm:$0xff] %vm794, %v1598
      %s1664 = scalar_lea.vmem [#allocation2], 128
      %v1665 = vld [vmem:[%s1664 + $0x4] sm:$0xff]
      %v1666 = vld [vmem:[%s1664 + $0xc] sm:$0xff]
      %v1667 = vld [vmem:[%s1664 + $0x24] sm:$0xff]
      %v1668 = vld [vmem:[%s1664 + $0x2c] sm:$0xff]
      %v1669 = vld [vmem:[%s1664 + $0x44] sm:$0xff]
      %v1670 = vld [vmem:[%s1664 + $0x4c] sm:$0xff]
      %v1671 = vld [vmem:[%s1664 + $0x64] sm:$0xff]
      %v1672 = vld [vmem:[%s1664 + $0x6c] sm:$0xff]
      %v1673 = vld [vmem:[%s1664 + $0x84] sm:$0xff]
      %v1674 = vld [vmem:[%s1664 + $0x8c] sm:$0xff]
      %v1675 = vld [vmem:[%s1664 + $0xa4] sm:$0xff]
      %v1676 = vld [vmem:[%s1664 + $0xac] sm:$0xff]
      %v1677 = vld [vmem:[%s1664 + $0xc4] sm:$0xff]
      %v1678 = vld [vmem:[%s1664 + $0xcc] sm:$0xff]
      %v1679 = vld [vmem:[%s1664 + $0xe4] sm:$0xff]
      %v1680 = vld [vmem:[%s1664 + $0xec] sm:$0xff]
      %v1681 = vld [vmem:[%s1664 + $0x104] sm:$0xff]
      %v1682 = vld [vmem:[%s1664 + $0x10c] sm:$0xff]
      %v1683 = vld [vmem:[%s1664 + $0x124] sm:$0xff]
      %v1684 = vld [vmem:[%s1664 + $0x12c] sm:$0xff]
      %v1685 = vld [vmem:[%s1664 + $0x144] sm:$0xff]
      %v1686 = vld [vmem:[%s1664 + $0x14c] sm:$0xff]
      %v1687 = vld [vmem:[%s1664 + $0x164] sm:$0xff]
      %v1688 = vld [vmem:[%s1664 + $0x16c] sm:$0xff]
      %v1689 = vld [vmem:[%s1664 + $0x184] sm:$0xff]
      %v1690 = vld [vmem:[%s1664 + $0x18c] sm:$0xff]
      %v1691 = vld [vmem:[%s1664 + $0x1a4] sm:$0xff]
      %v1692 = vld [vmem:[%s1664 + $0x1ac] sm:$0xff]
      %v1693 = vld [vmem:[%s1664 + $0x1c4] sm:$0xff]
      %v1694 = vld [vmem:[%s1664 + $0x1cc] sm:$0xff]
      %v1695 = vld [vmem:[%s1664 + $0x1e4] sm:$0xff]
      %v1696 = vld [vmem:[%s1664 + $0x1ec] sm:$0xff]
      %v1697 = vld [vmem:[%s1664 + $0x5] sm:$0xff]
      %v1698 = vld [vmem:[%s1664 + $0xd] sm:$0xff]
      %v1699 = vld [vmem:[%s1664 + $0x25] sm:$0xff]
      %v1700 = vld [vmem:[%s1664 + $0x2d] sm:$0xff]
      %v1701 = vld [vmem:[%s1664 + $0x45] sm:$0xff]
      %v1702 = vld [vmem:[%s1664 + $0x4d] sm:$0xff]
      %v1703 = vld [vmem:[%s1664 + $0x65] sm:$0xff]
      %v1704 = vld [vmem:[%s1664 + $0x6d] sm:$0xff]
      %v1705 = vld [vmem:[%s1664 + $0x85] sm:$0xff]
      %v1706 = vld [vmem:[%s1664 + $0x8d] sm:$0xff]
      %v1707 = vld [vmem:[%s1664 + $0xa5] sm:$0xff]
      %v1708 = vld [vmem:[%s1664 + $0xad] sm:$0xff]
      %v1709 = vld [vmem:[%s1664 + $0xc5] sm:$0xff]
      %v1710 = vld [vmem:[%s1664 + $0xcd] sm:$0xff]
      %v1711 = vld [vmem:[%s1664 + $0xe5] sm:$0xff]
      %v1712 = vld [vmem:[%s1664 + $0xed] sm:$0xff]
      %v1713 = vld [vmem:[%s1664 + $0x105] sm:$0xff]
      %v1714 = vld [vmem:[%s1664 + $0x10d] sm:$0xff]
      %v1715 = vld [vmem:[%s1664 + $0x125] sm:$0xff]
      %v1716 = vld [vmem:[%s1664 + $0x12d] sm:$0xff]
      %v1717 = vld [vmem:[%s1664 + $0x145] sm:$0xff]
      %v1718 = vld [vmem:[%s1664 + $0x14d] sm:$0xff]
      %v1719 = vld [vmem:[%s1664 + $0x165] sm:$0xff]
      %v1720 = vld [vmem:[%s1664 + $0x16d] sm:$0xff]
      %v1721 = vld [vmem:[%s1664 + $0x185] sm:$0xff]
      %v1722 = vld [vmem:[%s1664 + $0x18d] sm:$0xff]
      %v1723 = vld [vmem:[%s1664 + $0x1a5] sm:$0xff]
      %v1724 = vld [vmem:[%s1664 + $0x1ad] sm:$0xff]
      %v1725 = vld [vmem:[%s1664 + $0x1c5] sm:$0xff]
      %v1726 = vld [vmem:[%s1664 + $0x1cd] sm:$0xff]
      %v1727 = vld [vmem:[%s1664 + $0x1e5] sm:$0xff]
      %v1728 = vld [vmem:[%s1664 + $0x1ed] sm:$0xff]
      %v1729 = vld [vmem:[%s1664 + $0x6] sm:$0xff]
      %v1730 = vld [vmem:[%s1664 + $0xe] sm:$0xff]
      %v1731 = vld [vmem:[%s1664 + $0x26] sm:$0xff]
      %v1732 = vld [vmem:[%s1664 + $0x2e] sm:$0xff]
      %v1733 = vld [vmem:[%s1664 + $0x46] sm:$0xff]
      %v1734 = vld [vmem:[%s1664 + $0x4e] sm:$0xff]
      %v1735 = vld [vmem:[%s1664 + $0x66] sm:$0xff]
      %v1736 = vld [vmem:[%s1664 + $0x6e] sm:$0xff]
      %v1737 = vld [vmem:[%s1664 + $0x86] sm:$0xff]
      %v1738 = vld [vmem:[%s1664 + $0x8e] sm:$0xff]
      %v1739 = vld [vmem:[%s1664 + $0xa6] sm:$0xff]
      %v1740 = vld [vmem:[%s1664 + $0xae] sm:$0xff]
      %v1741 = vld [vmem:[%s1664 + $0xc6] sm:$0xff]
      %v1742 = vld [vmem:[%s1664 + $0xce] sm:$0xff]
      %v1743 = vld [vmem:[%s1664 + $0xe6] sm:$0xff]
      %v1744 = vld [vmem:[%s1664 + $0xee] sm:$0xff]
      %v1745 = vld [vmem:[%s1664 + $0x106] sm:$0xff]
      %v1746 = vld [vmem:[%s1664 + $0x10e] sm:$0xff]
      %v1747 = vld [vmem:[%s1664 + $0x126] sm:$0xff]
      %v1748 = vld [vmem:[%s1664 + $0x12e] sm:$0xff]
      %v1749 = vld [vmem:[%s1664 + $0x146] sm:$0xff]
      %v1750 = vld [vmem:[%s1664 + $0x14e] sm:$0xff]
      %v1751 = vld [vmem:[%s1664 + $0x166] sm:$0xff]
      %v1752 = vld [vmem:[%s1664 + $0x16e] sm:$0xff]
      %v1753 = vld [vmem:[%s1664 + $0x186] sm:$0xff]
      %v1754 = vld [vmem:[%s1664 + $0x18e] sm:$0xff]
      %v1755 = vld [vmem:[%s1664 + $0x1a6] sm:$0xff]
      %v1756 = vld [vmem:[%s1664 + $0x1ae] sm:$0xff]
      %v1757 = vld [vmem:[%s1664 + $0x1c6] sm:$0xff]
      %v1758 = vld [vmem:[%s1664 + $0x1ce] sm:$0xff]
      %v1759 = vld [vmem:[%s1664 + $0x1e6] sm:$0xff]
      %v1760 = vld [vmem:[%s1664 + $0x1ee] sm:$0xff]
      %v1761 = vld [vmem:[%s1212 + $0x4] sm:$0xff]
      %v1762 = vld [vmem:[%s1212 + $0xc] sm:$0xff]
      %v1763 = vld [vmem:[%s1212 + $0x24] sm:$0xff]
      %v1764 = vld [vmem:[%s1212 + $0x2c] sm:$0xff]
      %v1765 = vld [vmem:[%s1212 + $0x44] sm:$0xff]
      %v1766 = vld [vmem:[%s1212 + $0x4c] sm:$0xff]
      %v1767 = vld [vmem:[%s1212 + $0x64] sm:$0xff]
      %v1768 = vld [vmem:[%s1212 + $0x6c] sm:$0xff]
      %v1769 = vld [vmem:[%s1212 + $0x84] sm:$0xff]
      %v1770 = vld [vmem:[%s1212 + $0x8c] sm:$0xff]
      %v1771 = vld [vmem:[%s1212 + $0xa4] sm:$0xff]
      %v1772 = vld [vmem:[%s1212 + $0xac] sm:$0xff]
      %v1773 = vld [vmem:[%s1212 + $0xc4] sm:$0xff]
      %v1774 = vld [vmem:[%s1212 + $0xcc] sm:$0xff]
      %v1775 = vld [vmem:[%s1212 + $0xe4] sm:$0xff]
      %v1776 = vld [vmem:[%s1212 + $0xec] sm:$0xff]
      %v1777 = vld [vmem:[%s1212 + $0x104] sm:$0xff]
      %v1778 = vld [vmem:[%s1212 + $0x10c] sm:$0xff]
      %v1779 = vld [vmem:[%s1212 + $0x124] sm:$0xff]
      %v1780 = vld [vmem:[%s1212 + $0x12c] sm:$0xff]
      %v1781 = vld [vmem:[%s1212 + $0x144] sm:$0xff]
      %v1782 = vld [vmem:[%s1212 + $0x14c] sm:$0xff]
      %v1783 = vld [vmem:[%s1212 + $0x164] sm:$0xff]
      %v1784 = vld [vmem:[%s1212 + $0x16c] sm:$0xff]
      %v1785 = vld [vmem:[%s1212 + $0x184] sm:$0xff]
      %v1786 = vld [vmem:[%s1212 + $0x18c] sm:$0xff]
      %v1787 = vld [vmem:[%s1212 + $0x1a4] sm:$0xff]
      %v1788 = vld [vmem:[%s1212 + $0x1ac] sm:$0xff]
      %v1789 = vld [vmem:[%s1212 + $0x1c4] sm:$0xff]
      %v1790 = vld [vmem:[%s1212 + $0x1cc] sm:$0xff]
      %v1791 = vld [vmem:[%s1212 + $0x1e4] sm:$0xff]
      %v1792 = vld [vmem:[%s1212 + $0x1ec] sm:$0xff]
      %v1793 = vld [vmem:[%s1212 + $0x5] sm:$0xff]
      %v1794 = vld [vmem:[%s1212 + $0xd] sm:$0xff]
      %v1795 = vld [vmem:[%s1212 + $0x25] sm:$0xff]
      %v1796 = vld [vmem:[%s1212 + $0x2d] sm:$0xff]
      %v1797 = vld [vmem:[%s1212 + $0x45] sm:$0xff]
      %v1798 = vld [vmem:[%s1212 + $0x4d] sm:$0xff]
      %v1799 = vld [vmem:[%s1212 + $0x65] sm:$0xff]
      %v1800 = vld [vmem:[%s1212 + $0x6d] sm:$0xff]
      %v1801 = vld [vmem:[%s1212 + $0x85] sm:$0xff]
      %v1802 = vld [vmem:[%s1212 + $0x8d] sm:$0xff]
      %v1803 = vld [vmem:[%s1212 + $0xa5] sm:$0xff]
      %v1804 = vld [vmem:[%s1212 + $0xad] sm:$0xff]
      %v1805 = vld [vmem:[%s1212 + $0xc5] sm:$0xff]
      %v1806 = vld [vmem:[%s1212 + $0xcd] sm:$0xff]
      %v1807 = vld [vmem:[%s1212 + $0xe5] sm:$0xff]
      %v1808 = vld [vmem:[%s1212 + $0xed] sm:$0xff]
      %v1809 = vld [vmem:[%s1212 + $0x105] sm:$0xff]
      %v1810 = vld [vmem:[%s1212 + $0x10d] sm:$0xff]
      %v1811 = vld [vmem:[%s1212 + $0x125] sm:$0xff]
      %v1812 = vld [vmem:[%s1212 + $0x12d] sm:$0xff]
      %v1813 = vld [vmem:[%s1212 + $0x145] sm:$0xff]
      %v1814 = vld [vmem:[%s1212 + $0x14d] sm:$0xff]
      %v1815 = vld [vmem:[%s1212 + $0x165] sm:$0xff]
      %v1816 = vld [vmem:[%s1212 + $0x16d] sm:$0xff]
      %v1817 = vld [vmem:[%s1212 + $0x185] sm:$0xff]
      %v1818 = vld [vmem:[%s1212 + $0x18d] sm:$0xff]
      %v1819 = vld [vmem:[%s1212 + $0x1a5] sm:$0xff]
      %v1820 = vld [vmem:[%s1212 + $0x1ad] sm:$0xff]
      %v1821 = vld [vmem:[%s1212 + $0x1c5] sm:$0xff]
      %v1822 = vld [vmem:[%s1212 + $0x1cd] sm:$0xff]
      %v1823 = vld [vmem:[%s1212 + $0x1e5] sm:$0xff]
      %v1824 = vld [vmem:[%s1212 + $0x1ed] sm:$0xff]
      %v1825 = vld [vmem:[%s1212 + $0x6] sm:$0xff]
      %v1826 = vld [vmem:[%s1212 + $0xe] sm:$0xff]
      %v1827 = vld [vmem:[%s1212 + $0x26] sm:$0xff]
      %v1828 = vld [vmem:[%s1212 + $0x2e] sm:$0xff]
      %v1829 = vld [vmem:[%s1212 + $0x46] sm:$0xff]
      %v1830 = vld [vmem:[%s1212 + $0x4e] sm:$0xff]
      %v1831 = vld [vmem:[%s1212 + $0x66] sm:$0xff]
      %v1832 = vld [vmem:[%s1212 + $0x6e] sm:$0xff]
      %v1833 = vld [vmem:[%s1212 + $0x86] sm:$0xff]
      %v1834 = vld [vmem:[%s1212 + $0x8e] sm:$0xff]
      %v1835 = vld [vmem:[%s1212 + $0xa6] sm:$0xff]
      %v1836 = vld [vmem:[%s1212 + $0xae] sm:$0xff]
      %v1837 = vld [vmem:[%s1212 + $0xc6] sm:$0xff]
      %v1838 = vld [vmem:[%s1212 + $0xce] sm:$0xff]
      %v1839 = vld [vmem:[%s1212 + $0xe6] sm:$0xff]
      %v1840 = vld [vmem:[%s1212 + $0xee] sm:$0xff]
      %v1841 = vld [vmem:[%s1212 + $0x106] sm:$0xff]
      %v1842 = vld [vmem:[%s1212 + $0x10e] sm:$0xff]
      %v1843 = vld [vmem:[%s1212 + $0x126] sm:$0xff]
      %v1844 = vld [vmem:[%s1212 + $0x12e] sm:$0xff]
      %v1845 = vld [vmem:[%s1212 + $0x146] sm:$0xff]
      %v1846 = vld [vmem:[%s1212 + $0x14e] sm:$0xff]
      %v1847 = vld [vmem:[%s1212 + $0x166] sm:$0xff]
      %v1848 = vld [vmem:[%s1212 + $0x16e] sm:$0xff]
      %v1849 = vld [vmem:[%s1212 + $0x186] sm:$0xff]
      %v1850 = vld [vmem:[%s1212 + $0x18e] sm:$0xff]
      %v1851 = vld [vmem:[%s1212 + $0x1a6] sm:$0xff]
      %v1852 = vld [vmem:[%s1212 + $0x1ae] sm:$0xff]
      %v1853 = vld [vmem:[%s1212 + $0x1c6] sm:$0xff]
      %v1854 = vld [vmem:[%s1212 + $0x1ce] sm:$0xff]
      %v1855 = vld [vmem:[%s1212 + $0x1e6] sm:$0xff]
      %v1856 = vld [vmem:[%s1212 + $0x1ee] sm:$0xff]
      %s1857 = scalar_lea.vmem [#allocation2], 192
      %v1858 = vld [vmem:[%s1857 + $0x4] sm:$0xff]
      %v1859 = vld [vmem:[%s1857 + $0xc] sm:$0xff]
      %v1860 = vld [vmem:[%s1857 + $0x24] sm:$0xff]
      %v1861 = vld [vmem:[%s1857 + $0x2c] sm:$0xff]
      %v1862 = vld [vmem:[%s1857 + $0x44] sm:$0xff]
      %v1863 = vld [vmem:[%s1857 + $0x4c] sm:$0xff]
      %v1864 = vld [vmem:[%s1857 + $0x64] sm:$0xff]
      %v1865 = vld [vmem:[%s1857 + $0x6c] sm:$0xff]
      %v1866 = vld [vmem:[%s1857 + $0x84] sm:$0xff]
      %v1867 = vld [vmem:[%s1857 + $0x8c] sm:$0xff]
      %v1868 = vld [vmem:[%s1857 + $0xa4] sm:$0xff]
      %v1869 = vld [vmem:[%s1857 + $0xac] sm:$0xff]
      %v1870 = vld [vmem:[%s1857 + $0xc4] sm:$0xff]
      %v1871 = vld [vmem:[%s1857 + $0xcc] sm:$0xff]
      %v1872 = vld [vmem:[%s1857 + $0xe4] sm:$0xff]
      %v1873 = vld [vmem:[%s1857 + $0xec] sm:$0xff]
      %v1874 = vld [vmem:[%s1857 + $0x104] sm:$0xff]
      %v1875 = vld [vmem:[%s1857 + $0x10c] sm:$0xff]
      %v1876 = vld [vmem:[%s1857 + $0x124] sm:$0xff]
      %v1877 = vld [vmem:[%s1857 + $0x12c] sm:$0xff]
      %v1878 = vld [vmem:[%s1857 + $0x144] sm:$0xff]
      %v1879 = vld [vmem:[%s1857 + $0x14c] sm:$0xff]
      %v1880 = vld [vmem:[%s1857 + $0x164] sm:$0xff]
      %v1881 = vld [vmem:[%s1857 + $0x16c] sm:$0xff]
      %v1882 = vld [vmem:[%s1857 + $0x184] sm:$0xff]
      %v1883 = vld [vmem:[%s1857 + $0x18c] sm:$0xff]
      %v1884 = vld [vmem:[%s1857 + $0x1a4] sm:$0xff]
      %v1885 = vld [vmem:[%s1857 + $0x1ac] sm:$0xff]
      %v1886 = vld [vmem:[%s1857 + $0x1c4] sm:$0xff]
      %v1887 = vld [vmem:[%s1857 + $0x1cc] sm:$0xff]
      %v1888 = vld [vmem:[%s1857 + $0x1e4] sm:$0xff]
      %v1889 = vld [vmem:[%s1857 + $0x1ec] sm:$0xff]
      %v1890 = vld [vmem:[%s1857 + $0x5] sm:$0xff]
      %v1891 = vld [vmem:[%s1857 + $0xd] sm:$0xff]
      %v1892 = vld [vmem:[%s1857 + $0x25] sm:$0xff]
      %v1893 = vld [vmem:[%s1857 + $0x2d] sm:$0xff]
      %v1894 = vld [vmem:[%s1857 + $0x45] sm:$0xff]
      %v1895 = vld [vmem:[%s1857 + $0x4d] sm:$0xff]
      %v1896 = vld [vmem:[%s1857 + $0x65] sm:$0xff]
      %v1897 = vld [vmem:[%s1857 + $0x6d] sm:$0xff]
      %v1898 = vld [vmem:[%s1857 + $0x85] sm:$0xff]
      %v1899 = vld [vmem:[%s1857 + $0x8d] sm:$0xff]
      %v1900 = vld [vmem:[%s1857 + $0xa5] sm:$0xff]
      %v1901 = vld [vmem:[%s1857 + $0xad] sm:$0xff]
      %v1902 = vld [vmem:[%s1857 + $0xc5] sm:$0xff]
      %v1903 = vld [vmem:[%s1857 + $0xcd] sm:$0xff]
      %v1904 = vld [vmem:[%s1857 + $0xe5] sm:$0xff]
      %v1905 = vld [vmem:[%s1857 + $0xed] sm:$0xff]
      %v1906 = vld [vmem:[%s1857 + $0x105] sm:$0xff]
      %v1907 = vld [vmem:[%s1857 + $0x10d] sm:$0xff]
      %v1908 = vld [vmem:[%s1857 + $0x125] sm:$0xff]
      %v1909 = vld [vmem:[%s1857 + $0x12d] sm:$0xff]
      %v1910 = vld [vmem:[%s1857 + $0x145] sm:$0xff]
      %v1911 = vld [vmem:[%s1857 + $0x14d] sm:$0xff]
      %v1912 = vld [vmem:[%s1857 + $0x165] sm:$0xff]
      %v1913 = vld [vmem:[%s1857 + $0x16d] sm:$0xff]
      %v1914 = vld [vmem:[%s1857 + $0x185] sm:$0xff]
      %v1915 = vld [vmem:[%s1857 + $0x18d] sm:$0xff]
      %v1916 = vld [vmem:[%s1857 + $0x1a5] sm:$0xff]
      %v1917 = vld [vmem:[%s1857 + $0x1ad] sm:$0xff]
      %v1918 = vld [vmem:[%s1857 + $0x1c5] sm:$0xff]
      %v1919 = vld [vmem:[%s1857 + $0x1cd] sm:$0xff]
      %v1920 = vld [vmem:[%s1857 + $0x1e5] sm:$0xff]
      %v1921 = vld [vmem:[%s1857 + $0x1ed] sm:$0xff]
      %v1922 = vld [vmem:[%s1857 + $0x6] sm:$0xff]
      %v1923 = vld [vmem:[%s1857 + $0xe] sm:$0xff]
      %v1924 = vld [vmem:[%s1857 + $0x26] sm:$0xff]
      %v1925 = vld [vmem:[%s1857 + $0x2e] sm:$0xff]
      %v1926 = vld [vmem:[%s1857 + $0x46] sm:$0xff]
      %v1927 = vld [vmem:[%s1857 + $0x4e] sm:$0xff]
      %v1928 = vld [vmem:[%s1857 + $0x66] sm:$0xff]
      %v1929 = vld [vmem:[%s1857 + $0x6e] sm:$0xff]
      %v1930 = vld [vmem:[%s1857 + $0x86] sm:$0xff]
      %v1931 = vld [vmem:[%s1857 + $0x8e] sm:$0xff]
      %v1932 = vld [vmem:[%s1857 + $0xa6] sm:$0xff]
      %v1933 = vld [vmem:[%s1857 + $0xae] sm:$0xff]
      %v1934 = vld [vmem:[%s1857 + $0xc6] sm:$0xff]
      %v1935 = vld [vmem:[%s1857 + $0xce] sm:$0xff]
      %v1936 = vld [vmem:[%s1857 + $0xe6] sm:$0xff]
      %v1937 = vld [vmem:[%s1857 + $0xee] sm:$0xff]
      %v1938 = vld [vmem:[%s1857 + $0x106] sm:$0xff]
      %v1939 = vld [vmem:[%s1857 + $0x10e] sm:$0xff]
      %v1940 = vld [vmem:[%s1857 + $0x126] sm:$0xff]
      %v1941 = vld [vmem:[%s1857 + $0x12e] sm:$0xff]
      %v1942 = vld [vmem:[%s1857 + $0x146] sm:$0xff]
      %v1943 = vld [vmem:[%s1857 + $0x14e] sm:$0xff]
      %v1944 = vld [vmem:[%s1857 + $0x166] sm:$0xff]
      %v1945 = vld [vmem:[%s1857 + $0x16e] sm:$0xff]
      %v1946 = vld [vmem:[%s1857 + $0x186] sm:$0xff]
      %v1947 = vld [vmem:[%s1857 + $0x18e] sm:$0xff]
      %v1948 = vld [vmem:[%s1857 + $0x1a6] sm:$0xff]
      %v1949 = vld [vmem:[%s1857 + $0x1ae] sm:$0xff]
      %v1950 = vld [vmem:[%s1857 + $0x1c6] sm:$0xff]
      %v1951 = vld [vmem:[%s1857 + $0x1ce] sm:$0xff]
      %v1952 = vld [vmem:[%s1857 + $0x1e6] sm:$0xff]
      %v1953 = vld [vmem:[%s1857 + $0x1ee] sm:$0xff]
      %1986 = vrot.lane.b32.xlu0 %v1697, 2
      %v1987 = vpop.permute.xlu0 %1986
      %1988 = vrot.lane.b32.xlu0 %v1698, 2
      %v1989 = vpop.permute.xlu0 %1988
      %1990 = vrot.lane.b32.xlu0 %v1699, 2
      %v1991 = vpop.permute.xlu0 %1990
      %1992 = vrot.lane.b32.xlu0 %v1700, 2
      %v1993 = vpop.permute.xlu0 %1992
      %1994 = vrot.lane.b32.xlu0 %v1701, 2
      %v1995 = vpop.permute.xlu0 %1994
      %1996 = vrot.lane.b32.xlu0 %v1702, 2
      %v1997 = vpop.permute.xlu0 %1996
      %1998 = vrot.lane.b32.xlu0 %v1703, 2
      %v1999 = vpop.permute.xlu0 %1998
      %2000 = vrot.lane.b32.xlu0 %v1704, 2
      %v2001 = vpop.permute.xlu0 %2000
      %2002 = vrot.lane.b32.xlu0 %v1705, 2
      %v2003 = vpop.permute.xlu0 %2002
      %2004 = vrot.lane.b32.xlu0 %v1706, 2
      %v2005 = vpop.permute.xlu0 %2004
      %2006 = vrot.lane.b32.xlu0 %v1707, 2
      %v2007 = vpop.permute.xlu0 %2006
      %2008 = vrot.lane.b32.xlu0 %v1708, 2
      %v2009 = vpop.permute.xlu0 %2008
      %2010 = vrot.lane.b32.xlu0 %v1709, 2
      %v2011 = vpop.permute.xlu0 %2010
      %2012 = vrot.lane.b32.xlu0 %v1710, 2
      %v2013 = vpop.permute.xlu0 %2012
      %2014 = vrot.lane.b32.xlu0 %v1711, 2
      %v2015 = vpop.permute.xlu0 %2014
      %2016 = vrot.lane.b32.xlu0 %v1712, 2
      %v2017 = vpop.permute.xlu0 %2016
      %2018 = vrot.lane.b32.xlu0 %v1713, 2
      %v2019 = vpop.permute.xlu0 %2018
      %2020 = vrot.lane.b32.xlu0 %v1714, 2
      %v2021 = vpop.permute.xlu0 %2020
      %2022 = vrot.lane.b32.xlu0 %v1715, 2
      %v2023 = vpop.permute.xlu0 %2022
      %2024 = vrot.lane.b32.xlu0 %v1716, 2
      %v2025 = vpop.permute.xlu0 %2024
      %2026 = vrot.lane.b32.xlu0 %v1717, 2
      %v2027 = vpop.permute.xlu0 %2026
      %2028 = vrot.lane.b32.xlu0 %v1718, 2
      %v2029 = vpop.permute.xlu0 %2028
      %2030 = vrot.lane.b32.xlu0 %v1719, 2
      %v2031 = vpop.permute.xlu0 %2030
      %2032 = vrot.lane.b32.xlu0 %v1720, 2
      %v2033 = vpop.permute.xlu0 %2032
      %2034 = vrot.lane.b32.xlu0 %v1721, 2
      %v2035 = vpop.permute.xlu0 %2034
      %2036 = vrot.lane.b32.xlu0 %v1722, 2
      %v2037 = vpop.permute.xlu0 %2036
      %2038 = vrot.lane.b32.xlu0 %v1723, 2
      %v2039 = vpop.permute.xlu0 %2038
      %2040 = vrot.lane.b32.xlu0 %v1724, 2
      %v2041 = vpop.permute.xlu0 %2040
      %2042 = vrot.lane.b32.xlu0 %v1725, 2
      %v2043 = vpop.permute.xlu0 %2042
      %2044 = vrot.lane.b32.xlu0 %v1726, 2
      %v2045 = vpop.permute.xlu0 %2044
      %2046 = vrot.lane.b32.xlu0 %v1727, 2
      %v2047 = vpop.permute.xlu0 %2046
      %2048 = vrot.lane.b32.xlu0 %v1728, 2
      %v2049 = vpop.permute.xlu0 %2048
      %2114 = vrot.lane.b32.xlu0 %v1729, 4
      %v2115 = vpop.permute.xlu0 %2114
      %2116 = vrot.lane.b32.xlu0 %v1730, 4
      %v2117 = vpop.permute.xlu0 %2116
      %2118 = vrot.lane.b32.xlu0 %v1731, 4
      %v2119 = vpop.permute.xlu0 %2118
      %2120 = vrot.lane.b32.xlu0 %v1732, 4
      %v2121 = vpop.permute.xlu0 %2120
      %2122 = vrot.lane.b32.xlu0 %v1733, 4
      %v2123 = vpop.permute.xlu0 %2122
      %2124 = vrot.lane.b32.xlu0 %v1734, 4
      %v2125 = vpop.permute.xlu0 %2124
      %2126 = vrot.lane.b32.xlu0 %v1735, 4
      %v2127 = vpop.permute.xlu0 %2126
      %2128 = vrot.lane.b32.xlu0 %v1736, 4
      %v2129 = vpop.permute.xlu0 %2128
      %2130 = vrot.lane.b32.xlu0 %v1737, 4
      %v2131 = vpop.permute.xlu0 %2130
      %2132 = vrot.lane.b32.xlu0 %v1738, 4
      %v2133 = vpop.permute.xlu0 %2132
      %2134 = vrot.lane.b32.xlu0 %v1739, 4
      %v2135 = vpop.permute.xlu0 %2134
      %2136 = vrot.lane.b32.xlu0 %v1740, 4
      %v2137 = vpop.permute.xlu0 %2136
      %2138 = vrot.lane.b32.xlu0 %v1741, 4
      %v2139 = vpop.permute.xlu0 %2138
      %2140 = vrot.lane.b32.xlu0 %v1742, 4
      %v2141 = vpop.permute.xlu0 %2140
      %2142 = vrot.lane.b32.xlu0 %v1743, 4
      %v2143 = vpop.permute.xlu0 %2142
      %2144 = vrot.lane.b32.xlu0 %v1744, 4
      %v2145 = vpop.permute.xlu0 %2144
      %2146 = vrot.lane.b32.xlu0 %v1745, 4
      %v2147 = vpop.permute.xlu0 %2146
      %2148 = vrot.lane.b32.xlu0 %v1746, 4
      %v2149 = vpop.permute.xlu0 %2148
      %2150 = vrot.lane.b32.xlu0 %v1747, 4
      %v2151 = vpop.permute.xlu0 %2150
      %2152 = vrot.lane.b32.xlu0 %v1748, 4
      %v2153 = vpop.permute.xlu0 %2152
      %2154 = vrot.lane.b32.xlu0 %v1749, 4
      %v2155 = vpop.permute.xlu0 %2154
      %2156 = vrot.lane.b32.xlu0 %v1750, 4
      %v2157 = vpop.permute.xlu0 %2156
      %2158 = vrot.lane.b32.xlu0 %v1751, 4
      %v2159 = vpop.permute.xlu0 %2158
      %2160 = vrot.lane.b32.xlu0 %v1752, 4
      %v2161 = vpop.permute.xlu0 %2160
      %2162 = vrot.lane.b32.xlu0 %v1753, 4
      %v2163 = vpop.permute.xlu0 %2162
      %2164 = vrot.lane.b32.xlu0 %v1754, 4
      %v2165 = vpop.permute.xlu0 %2164
      %2166 = vrot.lane.b32.xlu0 %v1755, 4
      %v2167 = vpop.permute.xlu0 %2166
      %2168 = vrot.lane.b32.xlu0 %v1756, 4
      %v2169 = vpop.permute.xlu0 %2168
      %2170 = vrot.lane.b32.xlu0 %v1757, 4
      %v2171 = vpop.permute.xlu0 %2170
      %2172 = vrot.lane.b32.xlu0 %v1758, 4
      %v2173 = vpop.permute.xlu0 %2172
      %2174 = vrot.lane.b32.xlu0 %v1759, 4
      %v2175 = vpop.permute.xlu0 %2174
      %2176 = vrot.lane.b32.xlu0 %v1760, 4
      %v2177 = vpop.permute.xlu0 %2176
      %2242 = vrot.lane.b32.xlu0 %v1761, 6
      %v2243 = vpop.permute.xlu0 %2242
      %2244 = vrot.lane.b32.xlu0 %v1762, 6
      %v2245 = vpop.permute.xlu0 %2244
      %2246 = vrot.lane.b32.xlu0 %v1763, 6
      %v2247 = vpop.permute.xlu0 %2246
      %2248 = vrot.lane.b32.xlu0 %v1764, 6
      %v2249 = vpop.permute.xlu0 %2248
      %2250 = vrot.lane.b32.xlu0 %v1765, 6
      %v2251 = vpop.permute.xlu0 %2250
      %2252 = vrot.lane.b32.xlu0 %v1766, 6
      %v2253 = vpop.permute.xlu0 %2252
      %2254 = vrot.lane.b32.xlu0 %v1767, 6
      %v2255 = vpop.permute.xlu0 %2254
      %2256 = vrot.lane.b32.xlu0 %v1768, 6
      %v2257 = vpop.permute.xlu0 %2256
      %2258 = vrot.lane.b32.xlu0 %v1769, 6
      %v2259 = vpop.permute.xlu0 %2258
      %2260 = vrot.lane.b32.xlu0 %v1770, 6
      %v2261 = vpop.permute.xlu0 %2260
      %2262 = vrot.lane.b32.xlu0 %v1771, 6
      %v2263 = vpop.permute.xlu0 %2262
      %2264 = vrot.lane.b32.xlu0 %v1772, 6
      %v2265 = vpop.permute.xlu0 %2264
      %2266 = vrot.lane.b32.xlu0 %v1773, 6
      %v2267 = vpop.permute.xlu0 %2266
      %2268 = vrot.lane.b32.xlu0 %v1774, 6
      %v2269 = vpop.permute.xlu0 %2268
      %2270 = vrot.lane.b32.xlu0 %v1775, 6
      %v2271 = vpop.permute.xlu0 %2270
      %2272 = vrot.lane.b32.xlu0 %v1776, 6
      %v2273 = vpop.permute.xlu0 %2272
      %2274 = vrot.lane.b32.xlu0 %v1777, 6
      %v2275 = vpop.permute.xlu0 %2274
      %2276 = vrot.lane.b32.xlu0 %v1778, 6
      %v2277 = vpop.permute.xlu0 %2276
      %2278 = vrot.lane.b32.xlu0 %v1779, 6
      %v2279 = vpop.permute.xlu0 %2278
      %2280 = vrot.lane.b32.xlu0 %v1780, 6
      %v2281 = vpop.permute.xlu0 %2280
      %2282 = vrot.lane.b32.xlu0 %v1781, 6
      %v2283 = vpop.permute.xlu0 %2282
      %2284 = vrot.lane.b32.xlu0 %v1782, 6
      %v2285 = vpop.permute.xlu0 %2284
      %2286 = vrot.lane.b32.xlu0 %v1783, 6
      %v2287 = vpop.permute.xlu0 %2286
      %2288 = vrot.lane.b32.xlu0 %v1784, 6
      %v2289 = vpop.permute.xlu0 %2288
      %2290 = vrot.lane.b32.xlu0 %v1785, 6
      %v2291 = vpop.permute.xlu0 %2290
      %2292 = vrot.lane.b32.xlu0 %v1786, 6
      %v2293 = vpop.permute.xlu0 %2292
      %2294 = vrot.lane.b32.xlu0 %v1787, 6
      %v2295 = vpop.permute.xlu0 %2294
      %2296 = vrot.lane.b32.xlu0 %v1788, 6
      %v2297 = vpop.permute.xlu0 %2296
      %2298 = vrot.lane.b32.xlu0 %v1789, 6
      %v2299 = vpop.permute.xlu0 %2298
      %2300 = vrot.lane.b32.xlu0 %v1790, 6
      %v2301 = vpop.permute.xlu0 %2300
      %2302 = vrot.lane.b32.xlu0 %v1791, 6
      %v2303 = vpop.permute.xlu0 %2302
      %2304 = vrot.lane.b32.xlu0 %v1792, 6
      %v2305 = vpop.permute.xlu0 %2304
      %2370 = vrot.lane.b32.xlu0 %v1793, 8
      %v2371 = vpop.permute.xlu0 %2370
      %2372 = vrot.lane.b32.xlu0 %v1794, 8
      %v2373 = vpop.permute.xlu0 %2372
      %2374 = vrot.lane.b32.xlu0 %v1795, 8
      %v2375 = vpop.permute.xlu0 %2374
      %2376 = vrot.lane.b32.xlu0 %v1796, 8
      %v2377 = vpop.permute.xlu0 %2376
      %2378 = vrot.lane.b32.xlu0 %v1797, 8
      %v2379 = vpop.permute.xlu0 %2378
      %2380 = vrot.lane.b32.xlu0 %v1798, 8
      %v2381 = vpop.permute.xlu0 %2380
      %2382 = vrot.lane.b32.xlu0 %v1799, 8
      %v2383 = vpop.permute.xlu0 %2382
      %2384 = vrot.lane.b32.xlu0 %v1800, 8
      %v2385 = vpop.permute.xlu0 %2384
      %2386 = vrot.lane.b32.xlu0 %v1801, 8
      %v2387 = vpop.permute.xlu0 %2386
      %2388 = vrot.lane.b32.xlu0 %v1802, 8
      %v2389 = vpop.permute.xlu0 %2388
      %2390 = vrot.lane.b32.xlu0 %v1803, 8
      %v2391 = vpop.permute.xlu0 %2390
      %2392 = vrot.lane.b32.xlu0 %v1804, 8
      %v2393 = vpop.permute.xlu0 %2392
      %2394 = vrot.lane.b32.xlu0 %v1805, 8
      %v2395 = vpop.permute.xlu0 %2394
      %2396 = vrot.lane.b32.xlu0 %v1806, 8
      %v2397 = vpop.permute.xlu0 %2396
      %2398 = vrot.lane.b32.xlu0 %v1807, 8
      %v2399 = vpop.permute.xlu0 %2398
      %2400 = vrot.lane.b32.xlu0 %v1808, 8
      %v2401 = vpop.permute.xlu0 %2400
      %2402 = vrot.lane.b32.xlu0 %v1809, 8
      %v2403 = vpop.permute.xlu0 %2402
      %2404 = vrot.lane.b32.xlu0 %v1810, 8
      %v2405 = vpop.permute.xlu0 %2404
      %2406 = vrot.lane.b32.xlu0 %v1811, 8
      %v2407 = vpop.permute.xlu0 %2406
      %2408 = vrot.lane.b32.xlu0 %v1812, 8
      %v2409 = vpop.permute.xlu0 %2408
      %2410 = vrot.lane.b32.xlu0 %v1813, 8
      %v2411 = vpop.permute.xlu0 %2410
      %2412 = vrot.lane.b32.xlu0 %v1814, 8
      %v2413 = vpop.permute.xlu0 %2412
      %2414 = vrot.lane.b32.xlu0 %v1815, 8
      %v2415 = vpop.permute.xlu0 %2414
      %2416 = vrot.lane.b32.xlu0 %v1816, 8
      %v2417 = vpop.permute.xlu0 %2416
      %2418 = vrot.lane.b32.xlu0 %v1817, 8
      %v2419 = vpop.permute.xlu0 %2418
      %2420 = vrot.lane.b32.xlu0 %v1818, 8
      %v2421 = vpop.permute.xlu0 %2420
      %2422 = vrot.lane.b32.xlu0 %v1819, 8
      %v2423 = vpop.permute.xlu0 %2422
      %2424 = vrot.lane.b32.xlu0 %v1820, 8
      %v2425 = vpop.permute.xlu0 %2424
      %2426 = vrot.lane.b32.xlu0 %v1821, 8
      %v2427 = vpop.permute.xlu0 %2426
      %2428 = vrot.lane.b32.xlu0 %v1822, 8
      %v2429 = vpop.permute.xlu0 %2428
      %2430 = vrot.lane.b32.xlu0 %v1823, 8
      %v2431 = vpop.permute.xlu0 %2430
      %2432 = vrot.lane.b32.xlu0 %v1824, 8
      %v2433 = vpop.permute.xlu0 %2432
      %2498 = vrot.lane.b32.xlu0 %v1825, 10
      %v2499 = vpop.permute.xlu0 %2498
      %2500 = vrot.lane.b32.xlu0 %v1826, 10
      %v2501 = vpop.permute.xlu0 %2500
      %2502 = vrot.lane.b32.xlu0 %v1827, 10
      %v2503 = vpop.permute.xlu0 %2502
      %2504 = vrot.lane.b32.xlu0 %v1828, 10
      %v2505 = vpop.permute.xlu0 %2504
      %2506 = vrot.lane.b32.xlu0 %v1829, 10
      %v2507 = vpop.permute.xlu0 %2506
      %2508 = vrot.lane.b32.xlu0 %v1830, 10
      %v2509 = vpop.permute.xlu0 %2508
      %2510 = vrot.lane.b32.xlu0 %v1831, 10
      %v2511 = vpop.permute.xlu0 %2510
      %2512 = vrot.lane.b32.xlu0 %v1832, 10
      %v2513 = vpop.permute.xlu0 %2512
      %2514 = vrot.lane.b32.xlu0 %v1833, 10
      %v2515 = vpop.permute.xlu0 %2514
      %2516 = vrot.lane.b32.xlu0 %v1834, 10
      %v2517 = vpop.permute.xlu0 %2516
      %2518 = vrot.lane.b32.xlu0 %v1835, 10
      %v2519 = vpop.permute.xlu0 %2518
      %2520 = vrot.lane.b32.xlu0 %v1836, 10
      %v2521 = vpop.permute.xlu0 %2520
      %2522 = vrot.lane.b32.xlu0 %v1837, 10
      %v2523 = vpop.permute.xlu0 %2522
      %2524 = vrot.lane.b32.xlu0 %v1838, 10
      %v2525 = vpop.permute.xlu0 %2524
      %2526 = vrot.lane.b32.xlu0 %v1839, 10
      %v2527 = vpop.permute.xlu0 %2526
      %2528 = vrot.lane.b32.xlu0 %v1840, 10
      %v2529 = vpop.permute.xlu0 %2528
      %2530 = vrot.lane.b32.xlu0 %v1841, 10
      %v2531 = vpop.permute.xlu0 %2530
      %2532 = vrot.lane.b32.xlu0 %v1842, 10
      %v2533 = vpop.permute.xlu0 %2532
      %2534 = vrot.lane.b32.xlu0 %v1843, 10
      %v2535 = vpop.permute.xlu0 %2534
      %2536 = vrot.lane.b32.xlu0 %v1844, 10
      %v2537 = vpop.permute.xlu0 %2536
      %2538 = vrot.lane.b32.xlu0 %v1845, 10
      %v2539 = vpop.permute.xlu0 %2538
      %2540 = vrot.lane.b32.xlu0 %v1846, 10
      %v2541 = vpop.permute.xlu0 %2540
      %2542 = vrot.lane.b32.xlu0 %v1847, 10
      %v2543 = vpop.permute.xlu0 %2542
      %2544 = vrot.lane.b32.xlu0 %v1848, 10
      %v2545 = vpop.permute.xlu0 %2544
      %2546 = vrot.lane.b32.xlu0 %v1849, 10
      %v2547 = vpop.permute.xlu0 %2546
      %2548 = vrot.lane.b32.xlu0 %v1850, 10
      %v2549 = vpop.permute.xlu0 %2548
      %2550 = vrot.lane.b32.xlu0 %v1851, 10
      %v2551 = vpop.permute.xlu0 %2550
      %2552 = vrot.lane.b32.xlu0 %v1852, 10
      %v2553 = vpop.permute.xlu0 %2552
      %2554 = vrot.lane.b32.xlu0 %v1853, 10
      %v2555 = vpop.permute.xlu0 %2554
      %2556 = vrot.lane.b32.xlu0 %v1854, 10
      %v2557 = vpop.permute.xlu0 %2556
      %2558 = vrot.lane.b32.xlu0 %v1855, 10
      %v2559 = vpop.permute.xlu0 %2558
      %2560 = vrot.lane.b32.xlu0 %v1856, 10
      %v2561 = vpop.permute.xlu0 %2560
      %2626 = vrot.lane.b32.xlu0 %v1858, 12
      %v2627 = vpop.permute.xlu0 %2626
      %2628 = vrot.lane.b32.xlu0 %v1859, 12
      %v2629 = vpop.permute.xlu0 %2628
      %2630 = vrot.lane.b32.xlu0 %v1860, 12
      %v2631 = vpop.permute.xlu0 %2630
      %2632 = vrot.lane.b32.xlu0 %v1861, 12
      %v2633 = vpop.permute.xlu0 %2632
      %2634 = vrot.lane.b32.xlu0 %v1862, 12
      %v2635 = vpop.permute.xlu0 %2634
      %2636 = vrot.lane.b32.xlu0 %v1863, 12
      %v2637 = vpop.permute.xlu0 %2636
      %2638 = vrot.lane.b32.xlu0 %v1864, 12
      %v2639 = vpop.permute.xlu0 %2638
      %2640 = vrot.lane.b32.xlu0 %v1865, 12
      %v2641 = vpop.permute.xlu0 %2640
      %2642 = vrot.lane.b32.xlu0 %v1866, 12
      %v2643 = vpop.permute.xlu0 %2642
      %2644 = vrot.lane.b32.xlu0 %v1867, 12
      %v2645 = vpop.permute.xlu0 %2644
      %2646 = vrot.lane.b32.xlu0 %v1868, 12
      %v2647 = vpop.permute.xlu0 %2646
      %2648 = vrot.lane.b32.xlu0 %v1869, 12
      %v2649 = vpop.permute.xlu0 %2648
      %2650 = vrot.lane.b32.xlu0 %v1870, 12
      %v2651 = vpop.permute.xlu0 %2650
      %2652 = vrot.lane.b32.xlu0 %v1871, 12
      %v2653 = vpop.permute.xlu0 %2652
      %2654 = vrot.lane.b32.xlu0 %v1872, 12
      %v2655 = vpop.permute.xlu0 %2654
      %2656 = vrot.lane.b32.xlu0 %v1873, 12
      %v2657 = vpop.permute.xlu0 %2656
      %2658 = vrot.lane.b32.xlu0 %v1874, 12
      %v2659 = vpop.permute.xlu0 %2658
      %2660 = vrot.lane.b32.xlu0 %v1875, 12
      %v2661 = vpop.permute.xlu0 %2660
      %2662 = vrot.lane.b32.xlu0 %v1876, 12
      %v2663 = vpop.permute.xlu0 %2662
      %2664 = vrot.lane.b32.xlu0 %v1877, 12
      %v2665 = vpop.permute.xlu0 %2664
      %2666 = vrot.lane.b32.xlu0 %v1878, 12
      %v2667 = vpop.permute.xlu0 %2666
      %2668 = vrot.lane.b32.xlu0 %v1879, 12
      %v2669 = vpop.permute.xlu0 %2668
      %2670 = vrot.lane.b32.xlu0 %v1880, 12
      %v2671 = vpop.permute.xlu0 %2670
      %2672 = vrot.lane.b32.xlu0 %v1881, 12
      %v2673 = vpop.permute.xlu0 %2672
      %2674 = vrot.lane.b32.xlu0 %v1882, 12
      %v2675 = vpop.permute.xlu0 %2674
      %2676 = vrot.lane.b32.xlu0 %v1883, 12
      %v2677 = vpop.permute.xlu0 %2676
      %2678 = vrot.lane.b32.xlu0 %v1884, 12
      %v2679 = vpop.permute.xlu0 %2678
      %2680 = vrot.lane.b32.xlu0 %v1885, 12
      %v2681 = vpop.permute.xlu0 %2680
      %2682 = vrot.lane.b32.xlu0 %v1886, 12
      %v2683 = vpop.permute.xlu0 %2682
      %2684 = vrot.lane.b32.xlu0 %v1887, 12
      %v2685 = vpop.permute.xlu0 %2684
      %2686 = vrot.lane.b32.xlu0 %v1888, 12
      %v2687 = vpop.permute.xlu0 %2686
      %2688 = vrot.lane.b32.xlu0 %v1889, 12
      %v2689 = vpop.permute.xlu0 %2688
      %2754 = vrot.lane.b32.xlu0 %v1890, 14
      %v2755 = vpop.permute.xlu0 %2754
      %2756 = vrot.lane.b32.xlu0 %v1891, 14
      %v2757 = vpop.permute.xlu0 %2756
      %2758 = vrot.lane.b32.xlu0 %v1892, 14
      %v2759 = vpop.permute.xlu0 %2758
      %2760 = vrot.lane.b32.xlu0 %v1893, 14
      %v2761 = vpop.permute.xlu0 %2760
      %2762 = vrot.lane.b32.xlu0 %v1894, 14
      %v2763 = vpop.permute.xlu0 %2762
      %2764 = vrot.lane.b32.xlu0 %v1895, 14
      %v2765 = vpop.permute.xlu0 %2764
      %2766 = vrot.lane.b32.xlu0 %v1896, 14
      %v2767 = vpop.permute.xlu0 %2766
      %2768 = vrot.lane.b32.xlu0 %v1897, 14
      %v2769 = vpop.permute.xlu0 %2768
      %2770 = vrot.lane.b32.xlu0 %v1898, 14
      %v2771 = vpop.permute.xlu0 %2770
      %2772 = vrot.lane.b32.xlu0 %v1899, 14
      %v2773 = vpop.permute.xlu0 %2772
      %2774 = vrot.lane.b32.xlu0 %v1900, 14
      %v2775 = vpop.permute.xlu0 %2774
      %2776 = vrot.lane.b32.xlu0 %v1901, 14
      %v2777 = vpop.permute.xlu0 %2776
      %2778 = vrot.lane.b32.xlu0 %v1902, 14
      %v2779 = vpop.permute.xlu0 %2778
      %2780 = vrot.lane.b32.xlu0 %v1903, 14
      %v2781 = vpop.permute.xlu0 %2780
      %2782 = vrot.lane.b32.xlu0 %v1904, 14
      %v2783 = vpop.permute.xlu0 %2782
      %2784 = vrot.lane.b32.xlu0 %v1905, 14
      %v2785 = vpop.permute.xlu0 %2784
      %2786 = vrot.lane.b32.xlu0 %v1906, 14
      %v2787 = vpop.permute.xlu0 %2786
      %2788 = vrot.lane.b32.xlu0 %v1907, 14
      %v2789 = vpop.permute.xlu0 %2788
      %2790 = vrot.lane.b32.xlu0 %v1908, 14
      %v2791 = vpop.permute.xlu0 %2790
      %2792 = vrot.lane.b32.xlu0 %v1909, 14
      %v2793 = vpop.permute.xlu0 %2792
      %2794 = vrot.lane.b32.xlu0 %v1910, 14
      %v2795 = vpop.permute.xlu0 %2794
      %2796 = vrot.lane.b32.xlu0 %v1911, 14
      %v2797 = vpop.permute.xlu0 %2796
      %2798 = vrot.lane.b32.xlu0 %v1912, 14
      %v2799 = vpop.permute.xlu0 %2798
      %2800 = vrot.lane.b32.xlu0 %v1913, 14
      %v2801 = vpop.permute.xlu0 %2800
      %2802 = vrot.lane.b32.xlu0 %v1914, 14
      %v2803 = vpop.permute.xlu0 %2802
      %2804 = vrot.lane.b32.xlu0 %v1915, 14
      %v2805 = vpop.permute.xlu0 %2804
      %2806 = vrot.lane.b32.xlu0 %v1916, 14
      %v2807 = vpop.permute.xlu0 %2806
      %2808 = vrot.lane.b32.xlu0 %v1917, 14
      %v2809 = vpop.permute.xlu0 %2808
      %2810 = vrot.lane.b32.xlu0 %v1918, 14
      %v2811 = vpop.permute.xlu0 %2810
      %2812 = vrot.lane.b32.xlu0 %v1919, 14
      %v2813 = vpop.permute.xlu0 %2812
      %2814 = vrot.lane.b32.xlu0 %v1920, 14
      %v2815 = vpop.permute.xlu0 %2814
      %2816 = vrot.lane.b32.xlu0 %v1921, 14
      %v2817 = vpop.permute.xlu0 %2816
      %2882 = vrot.lane.b32.xlu0 %v1922, 16
      %v2883 = vpop.permute.xlu0 %2882
      %2884 = vrot.lane.b32.xlu0 %v1923, 16
      %v2885 = vpop.permute.xlu0 %2884
      %2886 = vrot.lane.b32.xlu0 %v1924, 16
      %v2887 = vpop.permute.xlu0 %2886
      %2888 = vrot.lane.b32.xlu0 %v1925, 16
      %v2889 = vpop.permute.xlu0 %2888
      %2890 = vrot.lane.b32.xlu0 %v1926, 16
      %v2891 = vpop.permute.xlu0 %2890
      %2892 = vrot.lane.b32.xlu0 %v1927, 16
      %v2893 = vpop.permute.xlu0 %2892
      %2894 = vrot.lane.b32.xlu0 %v1928, 16
      %v2895 = vpop.permute.xlu0 %2894
      %2896 = vrot.lane.b32.xlu0 %v1929, 16
      %v2897 = vpop.permute.xlu0 %2896
      %2898 = vrot.lane.b32.xlu0 %v1930, 16
      %v2899 = vpop.permute.xlu0 %2898
      %2900 = vrot.lane.b32.xlu0 %v1931, 16
      %v2901 = vpop.permute.xlu0 %2900
      %2902 = vrot.lane.b32.xlu0 %v1932, 16
      %v2903 = vpop.permute.xlu0 %2902
      %2904 = vrot.lane.b32.xlu0 %v1933, 16
      %v2905 = vpop.permute.xlu0 %2904
      %2906 = vrot.lane.b32.xlu0 %v1934, 16
      %v2907 = vpop.permute.xlu0 %2906
      %2908 = vrot.lane.b32.xlu0 %v1935, 16
      %v2909 = vpop.permute.xlu0 %2908
      %2910 = vrot.lane.b32.xlu0 %v1936, 16
      %v2911 = vpop.permute.xlu0 %2910
      %2912 = vrot.lane.b32.xlu0 %v1937, 16
      %v2913 = vpop.permute.xlu0 %2912
      %2914 = vrot.lane.b32.xlu0 %v1938, 16
      %v2915 = vpop.permute.xlu0 %2914
      %2916 = vrot.lane.b32.xlu0 %v1939, 16
      %v2917 = vpop.permute.xlu0 %2916
      %2918 = vrot.lane.b32.xlu0 %v1940, 16
      %v2919 = vpop.permute.xlu0 %2918
      %2920 = vrot.lane.b32.xlu0 %v1941, 16
      %v2921 = vpop.permute.xlu0 %2920
      %2922 = vrot.lane.b32.xlu0 %v1942, 16
      %v2923 = vpop.permute.xlu0 %2922
      %2924 = vrot.lane.b32.xlu0 %v1943, 16
      %v2925 = vpop.permute.xlu0 %2924
      %2926 = vrot.lane.b32.xlu0 %v1944, 16
      %v2927 = vpop.permute.xlu0 %2926
      %2928 = vrot.lane.b32.xlu0 %v1945, 16
      %v2929 = vpop.permute.xlu0 %2928
      %2930 = vrot.lane.b32.xlu0 %v1946, 16
      %v2931 = vpop.permute.xlu0 %2930
      %2932 = vrot.lane.b32.xlu0 %v1947, 16
      %v2933 = vpop.permute.xlu0 %2932
      %2934 = vrot.lane.b32.xlu0 %v1948, 16
      %v2935 = vpop.permute.xlu0 %2934
      %2936 = vrot.lane.b32.xlu0 %v1949, 16
      %v2937 = vpop.permute.xlu0 %2936
      %2938 = vrot.lane.b32.xlu0 %v1950, 16
      %v2939 = vpop.permute.xlu0 %2938
      %2940 = vrot.lane.b32.xlu0 %v1951, 16
      %v2941 = vpop.permute.xlu0 %2940
      %2942 = vrot.lane.b32.xlu0 %v1952, 16
      %v2943 = vpop.permute.xlu0 %2942
      %2944 = vrot.lane.b32.xlu0 %v1953, 16
      %v2945 = vpop.permute.xlu0 %2944
      %v2978 = vsel %vm794, %v1665, %v1987
      %v2979 = vsel %vm794, %v1666, %v1989
      %v2980 = vsel %vm794, %v1667, %v1991
      %v2981 = vsel %vm794, %v1668, %v1993
      %v2982 = vsel %vm794, %v1669, %v1995
      %v2983 = vsel %vm794, %v1670, %v1997
      %v2984 = vsel %vm794, %v1671, %v1999
      %v2985 = vsel %vm794, %v1672, %v2001
      %v2986 = vsel %vm794, %v1673, %v2003
      %v2987 = vsel %vm794, %v1674, %v2005
      %v2988 = vsel %vm794, %v1675, %v2007
      %v2989 = vsel %vm794, %v1676, %v2009
      %v2990 = vsel %vm794, %v1677, %v2011
      %v2991 = vsel %vm794, %v1678, %v2013
      %v2992 = vsel %vm794, %v1679, %v2015
      %v2993 = vsel %vm794, %v1680, %v2017
      %v2994 = vsel %vm794, %v1681, %v2019
      %v2995 = vsel %vm794, %v1682, %v2021
      %v2996 = vsel %vm794, %v1683, %v2023
      %v2997 = vsel %vm794, %v1684, %v2025
      %v2998 = vsel %vm794, %v1685, %v2027
      %v2999 = vsel %vm794, %v1686, %v2029
      %v3000 = vsel %vm794, %v1687, %v2031
      %v3001 = vsel %vm794, %v1688, %v2033
      %v3002 = vsel %vm794, %v1689, %v2035
      %v3003 = vsel %vm794, %v1690, %v2037
      %v3004 = vsel %vm794, %v1691, %v2039
      %v3005 = vsel %vm794, %v1692, %v2041
      %v3006 = vsel %vm794, %v1693, %v2043
      %v3007 = vsel %vm794, %v1694, %v2045
      %v3008 = vsel %vm794, %v1695, %v2047
      %v3009 = vsel %vm794, %v1696, %v2049
      %vm3010 = vcmask 31744
      %v3011 = vsel %vm3010, %v2978, %v2115
      %v3012 = vsel %vm3010, %v2979, %v2117
      %v3013 = vsel %vm3010, %v2980, %v2119
      %v3014 = vsel %vm3010, %v2981, %v2121
      %v3015 = vsel %vm3010, %v2982, %v2123
      %v3016 = vsel %vm3010, %v2983, %v2125
      %v3017 = vsel %vm3010, %v2984, %v2127
      %v3018 = vsel %vm3010, %v2985, %v2129
      %v3019 = vsel %vm3010, %v2986, %v2131
      %v3020 = vsel %vm3010, %v2987, %v2133
      %v3021 = vsel %vm3010, %v2988, %v2135
      %v3022 = vsel %vm3010, %v2989, %v2137
      %v3023 = vsel %vm3010, %v2990, %v2139
      %v3024 = vsel %vm3010, %v2991, %v2141
      %v3025 = vsel %vm3010, %v2992, %v2143
      %v3026 = vsel %vm3010, %v2993, %v2145
      %v3027 = vsel %vm3010, %v2994, %v2147
      %v3028 = vsel %vm3010, %v2995, %v2149
      %v3029 = vsel %vm3010, %v2996, %v2151
      %v3030 = vsel %vm3010, %v2997, %v2153
      %v3031 = vsel %vm3010, %v2998, %v2155
      %v3032 = vsel %vm3010, %v2999, %v2157
      %v3033 = vsel %vm3010, %v3000, %v2159
      %v3034 = vsel %vm3010, %v3001, %v2161
      %v3035 = vsel %vm3010, %v3002, %v2163
      %v3036 = vsel %vm3010, %v3003, %v2165
      %v3037 = vsel %vm3010, %v3004, %v2167
      %v3038 = vsel %vm3010, %v3005, %v2169
      %v3039 = vsel %vm3010, %v3006, %v2171
      %v3040 = vsel %vm3010, %v3007, %v2173
      %v3041 = vsel %vm3010, %v3008, %v2175
      %v3042 = vsel %vm3010, %v3009, %v2177
      %vm3043 = vcmask 48128
      %v3044 = vsel %vm3043, %v3011, %v2243
      %v3045 = vsel %vm3043, %v3012, %v2245
      %v3046 = vsel %vm3043, %v3013, %v2247
      %v3047 = vsel %vm3043, %v3014, %v2249
      %v3048 = vsel %vm3043, %v3015, %v2251
      %v3049 = vsel %vm3043, %v3016, %v2253
      %v3050 = vsel %vm3043, %v3017, %v2255
      %v3051 = vsel %vm3043, %v3018, %v2257
      %v3052 = vsel %vm3043, %v3019, %v2259
      %v3053 = vsel %vm3043, %v3020, %v2261
      %v3054 = vsel %vm3043, %v3021, %v2263
      %v3055 = vsel %vm3043, %v3022, %v2265
      %v3056 = vsel %vm3043, %v3023, %v2267
      %v3057 = vsel %vm3043, %v3024, %v2269
      %v3058 = vsel %vm3043, %v3025, %v2271
      %v3059 = vsel %vm3043, %v3026, %v2273
      %v3060 = vsel %vm3043, %v3027, %v2275
      %v3061 = vsel %vm3043, %v3028, %v2277
      %v3062 = vsel %vm3043, %v3029, %v2279
      %v3063 = vsel %vm3043, %v3030, %v2281
      %v3064 = vsel %vm3043, %v3031, %v2283
      %v3065 = vsel %vm3043, %v3032, %v2285
      %v3066 = vsel %vm3043, %v3033, %v2287
      %v3067 = vsel %vm3043, %v3034, %v2289
      %v3068 = vsel %vm3043, %v3035, %v2291
      %v3069 = vsel %vm3043, %v3036, %v2293
      %v3070 = vsel %vm3043, %v3037, %v2295
      %v3071 = vsel %vm3043, %v3038, %v2297
      %v3072 = vsel %vm3043, %v3039, %v2299
      %v3073 = vsel %vm3043, %v3040, %v2301
      %v3074 = vsel %vm3043, %v3041, %v2303
      %v3075 = vsel %vm3043, %v3042, %v2305
      %vm3076 = vcmask 64512
      %v3077 = vsel %vm3076, %v3044, %v2371
      %v3078 = vsel %vm3076, %v3045, %v2373
      %v3079 = vsel %vm3076, %v3046, %v2375
      %v3080 = vsel %vm3076, %v3047, %v2377
      %v3081 = vsel %vm3076, %v3048, %v2379
      %v3082 = vsel %vm3076, %v3049, %v2381
      %v3083 = vsel %vm3076, %v3050, %v2383
      %v3084 = vsel %vm3076, %v3051, %v2385
      %v3085 = vsel %vm3076, %v3052, %v2387
      %v3086 = vsel %vm3076, %v3053, %v2389
      %v3087 = vsel %vm3076, %v3054, %v2391
      %v3088 = vsel %vm3076, %v3055, %v2393
      %v3089 = vsel %vm3076, %v3056, %v2395
      %v3090 = vsel %vm3076, %v3057, %v2397
      %v3091 = vsel %vm3076, %v3058, %v2399
      %v3092 = vsel %vm3076, %v3059, %v2401
      %v3093 = vsel %vm3076, %v3060, %v2403
      %v3094 = vsel %vm3076, %v3061, %v2405
      %v3095 = vsel %vm3076, %v3062, %v2407
      %v3096 = vsel %vm3076, %v3063, %v2409
      %v3097 = vsel %vm3076, %v3064, %v2411
      %v3098 = vsel %vm3076, %v3065, %v2413
      %v3099 = vsel %vm3076, %v3066, %v2415
      %v3100 = vsel %vm3076, %v3067, %v2417
      %v3101 = vsel %vm3076, %v3068, %v2419
      %v3102 = vsel %vm3076, %v3069, %v2421
      %v3103 = vsel %vm3076, %v3070, %v2423
      %v3104 = vsel %vm3076, %v3071, %v2425
      %v3105 = vsel %vm3076, %v3072, %v2427
      %v3106 = vsel %vm3076, %v3073, %v2429
      %v3107 = vsel %vm3076, %v3074, %v2431
      %v3108 = vsel %vm3076, %v3075, %v2433
      %vm3109 = vcmask 80896
      %v3110 = vsel %vm3109, %v3077, %v2499
      %v3111 = vsel %vm3109, %v3078, %v2501
      %v3112 = vsel %vm3109, %v3079, %v2503
      %v3113 = vsel %vm3109, %v3080, %v2505
      %v3114 = vsel %vm3109, %v3081, %v2507
      %v3115 = vsel %vm3109, %v3082, %v2509
      %v3116 = vsel %vm3109, %v3083, %v2511
      %v3117 = vsel %vm3109, %v3084, %v2513
      %v3118 = vsel %vm3109, %v3085, %v2515
      %v3119 = vsel %vm3109, %v3086, %v2517
      %v3120 = vsel %vm3109, %v3087, %v2519
      %v3121 = vsel %vm3109, %v3088, %v2521
      %v3122 = vsel %vm3109, %v3089, %v2523
      %v3123 = vsel %vm3109, %v3090, %v2525
      %v3124 = vsel %vm3109, %v3091, %v2527
      %v3125 = vsel %vm3109, %v3092, %v2529
      %v3126 = vsel %vm3109, %v3093, %v2531
      %v3127 = vsel %vm3109, %v3094, %v2533
      %v3128 = vsel %vm3109, %v3095, %v2535
      %v3129 = vsel %vm3109, %v3096, %v2537
      %v3130 = vsel %vm3109, %v3097, %v2539
      %v3131 = vsel %vm3109, %v3098, %v2541
      %v3132 = vsel %vm3109, %v3099, %v2543
      %v3133 = vsel %vm3109, %v3100, %v2545
      %v3134 = vsel %vm3109, %v3101, %v2547
      %v3135 = vsel %vm3109, %v3102, %v2549
      %v3136 = vsel %vm3109, %v3103, %v2551
      %v3137 = vsel %vm3109, %v3104, %v2553
      %v3138 = vsel %vm3109, %v3105, %v2555
      %v3139 = vsel %vm3109, %v3106, %v2557
      %v3140 = vsel %vm3109, %v3107, %v2559
      %v3141 = vsel %vm3109, %v3108, %v2561
      %vm3142 = vcmask 97280
      %v3143 = vsel %vm3142, %v3110, %v2627
      %v3144 = vsel %vm3142, %v3111, %v2629
      %v3145 = vsel %vm3142, %v3112, %v2631
      %v3146 = vsel %vm3142, %v3113, %v2633
      %v3147 = vsel %vm3142, %v3114, %v2635
      %v3148 = vsel %vm3142, %v3115, %v2637
      %v3149 = vsel %vm3142, %v3116, %v2639
      %v3150 = vsel %vm3142, %v3117, %v2641
      %v3151 = vsel %vm3142, %v3118, %v2643
      %v3152 = vsel %vm3142, %v3119, %v2645
      %v3153 = vsel %vm3142, %v3120, %v2647
      %v3154 = vsel %vm3142, %v3121, %v2649
      %v3155 = vsel %vm3142, %v3122, %v2651
      %v3156 = vsel %vm3142, %v3123, %v2653
      %v3157 = vsel %vm3142, %v3124, %v2655
      %v3158 = vsel %vm3142, %v3125, %v2657
      %v3159 = vsel %vm3142, %v3126, %v2659
      %v3160 = vsel %vm3142, %v3127, %v2661
      %v3161 = vsel %vm3142, %v3128, %v2663
      %v3162 = vsel %vm3142, %v3129, %v2665
      %v3163 = vsel %vm3142, %v3130, %v2667
      %v3164 = vsel %vm3142, %v3131, %v2669
      %v3165 = vsel %vm3142, %v3132, %v2671
      %v3166 = vsel %vm3142, %v3133, %v2673
      %v3167 = vsel %vm3142, %v3134, %v2675
      %v3168 = vsel %vm3142, %v3135, %v2677
      %v3169 = vsel %vm3142, %v3136, %v2679
      %v3170 = vsel %vm3142, %v3137, %v2681
      %v3171 = vsel %vm3142, %v3138, %v2683
      %v3172 = vsel %vm3142, %v3139, %v2685
      %v3173 = vsel %vm3142, %v3140, %v2687
      %v3174 = vsel %vm3142, %v3141, %v2689
      %vm3175 = vcmask 113664
      %v3176 = vsel %vm3175, %v3143, %v2755
      %v3177 = vsel %vm3175, %v3144, %v2757
      %v3178 = vsel %vm3175, %v3145, %v2759
      %v3179 = vsel %vm3175, %v3146, %v2761
      %v3180 = vsel %vm3175, %v3147, %v2763
      %v3181 = vsel %vm3175, %v3148, %v2765
      %v3182 = vsel %vm3175, %v3149, %v2767
      %v3183 = vsel %vm3175, %v3150, %v2769
      %v3184 = vsel %vm3175, %v3151, %v2771
      %v3185 = vsel %vm3175, %v3152, %v2773
      %v3186 = vsel %vm3175, %v3153, %v2775
      %v3187 = vsel %vm3175, %v3154, %v2777
      %v3188 = vsel %vm3175, %v3155, %v2779
      %v3189 = vsel %vm3175, %v3156, %v2781
      %v3190 = vsel %vm3175, %v3157, %v2783
      %v3191 = vsel %vm3175, %v3158, %v2785
      %v3192 = vsel %vm3175, %v3159, %v2787
      %v3193 = vsel %vm3175, %v3160, %v2789
      %v3194 = vsel %vm3175, %v3161, %v2791
      %v3195 = vsel %vm3175, %v3162, %v2793
      %v3196 = vsel %vm3175, %v3163, %v2795
      %v3197 = vsel %vm3175, %v3164, %v2797
      %v3198 = vsel %vm3175, %v3165, %v2799
      %v3199 = vsel %vm3175, %v3166, %v2801
      %v3200 = vsel %vm3175, %v3167, %v2803
      %v3201 = vsel %vm3175, %v3168, %v2805
      %v3202 = vsel %vm3175, %v3169, %v2807
      %v3203 = vsel %vm3175, %v3170, %v2809
      %v3204 = vsel %vm3175, %v3171, %v2811
      %v3205 = vsel %vm3175, %v3172, %v2813
      %v3206 = vsel %vm3175, %v3173, %v2815
      %v3207 = vsel %vm3175, %v3174, %v2817
      %v3208 = vsel %vm394, %v3176, %v2883
      %v3209 = vsel %vm394, %v3177, %v2885
      %v3210 = vsel %vm394, %v3178, %v2887
      %v3211 = vsel %vm394, %v3179, %v2889
      %v3212 = vsel %vm394, %v3180, %v2891
      %v3213 = vsel %vm394, %v3181, %v2893
      %v3214 = vsel %vm394, %v3182, %v2895
      %v3215 = vsel %vm394, %v3183, %v2897
      %v3216 = vsel %vm394, %v3184, %v2899
      %v3217 = vsel %vm394, %v3185, %v2901
      %v3218 = vsel %vm394, %v3186, %v2903
      %v3219 = vsel %vm394, %v3187, %v2905
      %v3220 = vsel %vm394, %v3188, %v2907
      %v3221 = vsel %vm394, %v3189, %v2909
      %v3222 = vsel %vm394, %v3190, %v2911
      %v3223 = vsel %vm394, %v3191, %v2913
      %v3224 = vsel %vm394, %v3192, %v2915
      %v3225 = vsel %vm394, %v3193, %v2917
      %v3226 = vsel %vm394, %v3194, %v2919
      %v3227 = vsel %vm394, %v3195, %v2921
      %v3228 = vsel %vm394, %v3196, %v2923
      %v3229 = vsel %vm394, %v3197, %v2925
      %v3230 = vsel %vm394, %v3198, %v2927
      %v3231 = vsel %vm394, %v3199, %v2929
      %v3232 = vsel %vm394, %v3200, %v2931
      %v3233 = vsel %vm394, %v3201, %v2933
      %v3234 = vsel %vm394, %v3202, %v2935
      %v3235 = vsel %vm394, %v3203, %v2937
      %v3236 = vsel %vm394, %v3204, %v2939
      %v3237 = vsel %vm394, %v3205, %v2941
      %v3238 = vsel %vm394, %v3206, %v2943
      %v3239 = vsel %vm394, %v3207, %v2945
      %v3240 = vld [vmem:[%s4] sm:$0xff]
      %v3241 = vld [vmem:[%s4 + $0x8] sm:$0xff]
      %v3242 = vld [vmem:[%s4 + $0x10] sm:$0x3]
      %vm3243 = vcmask 146432
      %v3245 = vsel %vm3243, %v3208, 0
      %v3248 = vsel %vm3243, %v3209, 0
      %v3251 = vsel %vm3243, %v3210, 0
      %v3254 = vsel %vm3243, %v3211, 0
      %v3257 = vsel %vm3243, %v3212, 0
      %v3260 = vsel %vm3243, %v3213, 0
      %v3263 = vsel %vm3243, %v3214, 0
      %v3266 = vsel %vm3243, %v3215, 0
      %v3269 = vsel %vm3243, %v3216, 0
      %v3272 = vsel %vm3243, %v3217, 0
      %v3275 = vsel %vm3243, %v3218, 0
      %v3278 = vsel %vm3243, %v3219, 0
      %v3281 = vsel %vm3243, %v3220, 0
      %v3284 = vsel %vm3243, %v3221, 0
      %v3287 = vsel %vm3243, %v3222, 0
      %v3290 = vsel %vm3243, %v3223, 0
      %v3293 = vsel %vm3243, %v3224, 0
      %v3296 = vsel %vm3243, %v3225, 0
      %v3299 = vsel %vm3243, %v3226, 0
      %v3302 = vsel %vm3243, %v3227, 0
      %v3305 = vsel %vm3243, %v3228, 0
      %v3308 = vsel %vm3243, %v3229, 0
      %v3311 = vsel %vm3243, %v3230, 0
      %v3314 = vsel %vm3243, %v3231, 0
      %v3317 = vsel %vm3243, %v3232, 0
      %v3320 = vsel %vm3243, %v3233, 0
      %v3323 = vsel %vm3243, %v3234, 0
      %v3326 = vsel %vm3243, %v3235, 0
      %v3329 = vsel %vm3243, %v3236, 0
      %v3332 = vsel %vm3243, %v3237, 0
      %v3335 = vsel %vm3243, %v3238, 0
      %v3338 = vsel %vm3243, %v3239, 0
      %vm3340 = vcmask 1041408
      %v3342 = vsel %vm3340, %v3242, 0
      %3344 = vmatprep.subr.mxu0 0.0
      %3345 = vmatpush1.msra.mxu0 %v3240
      %3346 = vmatprep.subr.mxu0 0.0
      %3347 = vmatpush1.msra.mxu0 %v3241
      %3348 = vmatprep.subr.mxu0 0.0
      %3349 = vmatpush1.msra.mxu0 %v3342
      %3350 = vmatprep.subr.mxu0 0.0
      %3351 = vmatpush1.msra.mxu0 0.0
      %3352 = vmatprep.subr.mxu0 0.0
      %3353 = vmatpush1.msra.mxu0 0.0
      %3354 = vmatprep.subr.mxu0 0.0
      %3355 = vmatpush1.msra.mxu0 0.0
      %3356 = vmatprep.subr.mxu0 0.0
      %3357 = vmatpush1.msra.mxu0 0.0
      %3358 = vmatprep.subr.mxu0 0.0
      %3359 = vmatpush1.msra.mxu0 0.0
      %3360 = vmatprep.subr.mxu0 0.0
      %3361 = vmatpush1.msra.mxu0 0.0
      %3362 = vmatprep.subr.mxu0 0.0
      %3363 = vmatpush1.msra.mxu0 0.0
      %3364 = vmatprep.subr.mxu0 0.0
      %3365 = vmatpush1.msra.mxu0 0.0
      %3366 = vmatprep.subr.mxu0 0.0
      %3367 = vmatpush1.msra.mxu0 0.0
      %3368 = vmatprep.subr.mxu0 0.0
      %3369 = vmatpush1.msra.mxu0 0.0
      %3370 = vmatprep.subr.mxu0 0.0
      %3371 = vmatpush1.msra.mxu0 0.0
      %3372 = vmatprep.subr.mxu0 0.0
      %3373 = vmatpush1.msra.mxu0 0.0
      %3374 = vmatprep.subr.mxu0 0.0
      %3375 = vmatpush1.msra.mxu0 0.0
      %3376 = vmatprep.subr.mxu0 0.0
      %3377 = vmatpush1.msra.mxu0 0.0
      %3378 = vmatprep.subr.mxu0 0.0
      %3379 = vmatpush1.msra.mxu0 0.0
      %3380 = vmatprep.subr.mxu0 0.0
      %3381 = vmatpush1.msra.mxu0 0.0
      %3382 = vmatprep.subr.mxu0 0.0
      %3383 = vmatpush1.msra.mxu0 0.0
      %3384 = vmatprep.subr.mxu0 0.0
      %3385 = vmatpush1.msra.mxu0 0.0
      %3386 = vmatprep.subr.mxu0 0.0
      %3387 = vmatpush1.msra.mxu0 0.0
      %3388 = vmatprep.subr.mxu0 0.0
      %3389 = vmatpush1.msra.mxu0 0.0
      %3390 = vmatprep.subr.mxu0 0.0
      %3391 = vmatpush1.msra.mxu0 0.0
      %3392 = vmatprep.subr.mxu0 0.0
      %3393 = vmatpush1.msra.mxu0 0.0
      %3394 = vmatprep.subr.mxu0 0.0
      %3395 = vmatpush1.msra.mxu0 0.0
      %3396 = vmatprep.subr.mxu0 0.0
      %3397 = vmatpush1.msra.mxu0 0.0
      %3398 = vmatprep.subr.mxu0 0.0
      %3399 = vmatpush1.msra.mxu0 0.0
      %3400 = vmatprep.subr.mxu0 0.0
      %3401 = vmatpush1.msra.mxu0 0.0
      %3402 = vmatprep.subr.mxu0 0.0
      %3403 = vmatpush1.msra.mxu0 0.0
      %3404 = vmatprep.subr.mxu0 0.0
      %3405 = vmatpush1.msra.mxu0 0.0
      %3406 = vmatprep.subr.mxu0 0.0
      %3407 = vmatpush1.msra.mxu0 0.0
      %3408 = vmatprep.mubr.f32.mxu0 0.0
      %3409 = vmatmul.mubr.f32.gmra.mrb[0].mxu0 %v3245
      %v3410 = vpop.f32.mrb[0].mxu0
      %v3411 = vadd.f32 0.0, %v3410
      %v3412 = vpop.f32.mrb[0].mxu0
      %3413 = vmatprep.mubr.f32.mxu0 0.0
      %3414 = vmatmul.mubr.f32.gmra.mrb[0].mxu0 %v3248
      %v3415 = vpop.f32.mrb[0].mxu0
      %v3416 = vadd.f32 0.0, %v3415
      %v3417 = vpop.f32.mrb[0].mxu0
      %3418 = vmatprep.mubr.f32.mxu0 0.0
      %3419 = vmatmul.mubr.f32.gmra.mrb[0].mxu0 %v3251
      %v3420 = vpop.f32.mrb[0].mxu0
      %v3421 = vadd.f32 0.0, %v3420
      %v3422 = vpop.f32.mrb[0].mxu0
      %3423 = vmatprep.mubr.f32.mxu0 0.0
      %3424 = vmatmul.mubr.f32.gmra.mrb[0].mxu0 %v3254
      %v3425 = vpop.f32.mrb[0].mxu0
      %v3426 = vadd.f32 0.0, %v3425
      %v3427 = vpop.f32.mrb[0].mxu0
      %3428 = vmatprep.mubr.f32.mxu0 0.0
      %3429 = vmatmul.mubr.f32.gmra.mrb[0].mxu0 %v3257
      %v3430 = vpop.f32.mrb[0].mxu0
      %v3431 = vadd.f32 0.0, %v3430
      %v3432 = vpop.f32.mrb[0].mxu0
      %3433 = vmatprep.mubr.f32.mxu0 0.0
      %3434 = vmatmul.mubr.f32.gmra.mrb[0].mxu0 %v3260
      %v3435 = vpop.f32.mrb[0].mxu0
      %v3436 = vadd.f32 0.0, %v3435
      %v3437 = vpop.f32.mrb[0].mxu0
      %3438 = vmatprep.mubr.f32.mxu0 0.0
      %3439 = vmatmul.mubr.f32.gmra.mrb[0].mxu0 %v3263
      %v3440 = vpop.f32.mrb[0].mxu0
      %v3441 = vadd.f32 0.0, %v3440
      %v3442 = vpop.f32.mrb[0].mxu0
      %3443 = vmatprep.mubr.f32.mxu0 0.0
      %3444 = vmatmul.mubr.f32.gmra.mrb[0].mxu0 %v3266
      %v3445 = vpop.f32.mrb[0].mxu0
      %v3446 = vadd.f32 0.0, %v3445
      %v3447 = vpop.f32.mrb[0].mxu0
      %3448 = vmatprep.mubr.f32.mxu0 0.0
      %3449 = vmatmul.mubr.f32.gmra.mrb[0].mxu0 %v3269
      %v3450 = vpop.f32.mrb[0].mxu0
      %v3451 = vadd.f32 0.0, %v3450
      %v3452 = vpop.f32.mrb[0].mxu0
      %3453 = vmatprep.mubr.f32.mxu0 0.0
      %3454 = vmatmul.mubr.f32.gmra.mrb[0].mxu0 %v3272
      %v3455 = vpop.f32.mrb[0].mxu0
      %v3456 = vadd.f32 0.0, %v3455
      %v3457 = vpop.f32.mrb[0].mxu0
      %3458 = vmatprep.mubr.f32.mxu0 0.0
      %3459 = vmatmul.mubr.f32.gmra.mrb[0].mxu0 %v3275
      %v3460 = vpop.f32.mrb[0].mxu0
      %v3461 = vadd.f32 0.0, %v3460
      %v3462 = vpop.f32.mrb[0].mxu0
      %3463 = vmatprep.mubr.f32.mxu0 0.0
      %3464 = vmatmul.mubr.f32.gmra.mrb[0].mxu0 %v3278
      %v3465 = vpop.f32.mrb[0].mxu0
      %v3466 = vadd.f32 0.0, %v3465
      %v3467 = vpop.f32.mrb[0].mxu0
      %3468 = vmatprep.mubr.f32.mxu0 0.0
      %3469 = vmatmul.mubr.f32.gmra.mrb[0].mxu0 %v3281
      %v3470 = vpop.f32.mrb[0].mxu0
      %v3471 = vadd.f32 0.0, %v3470
      %v3472 = vpop.f32.mrb[0].mxu0
      %3473 = vmatprep.mubr.f32.mxu0 0.0
      %3474 = vmatmul.mubr.f32.gmra.mrb[0].mxu0 %v3284
      %v3475 = vpop.f32.mrb[0].mxu0
      %v3476 = vadd.f32 0.0, %v3475
      %v3477 = vpop.f32.mrb[0].mxu0
      %3478 = vmatprep.mubr.f32.mxu0 0.0
      %3479 = vmatmul.mubr.f32.gmra.mrb[0].mxu0 %v3287
      %v3480 = vpop.f32.mrb[0].mxu0
      %v3481 = vadd.f32 0.0, %v3480
      %v3482 = vpop.f32.mrb[0].mxu0
      %3483 = vmatprep.mubr.f32.mxu0 0.0
      %3484 = vmatmul.mubr.f32.gmra.mrb[0].mxu0 %v3290
      %v3485 = vpop.f32.mrb[0].mxu0
      %v3486 = vadd.f32 0.0, %v3485
      %v3487 = vpop.f32.mrb[0].mxu0
      %3488 = vmatprep.mubr.f32.mxu0 0.0
      %3489 = vmatmul.mubr.f32.gmra.mrb[0].mxu0 %v3293
      %v3490 = vpop.f32.mrb[0].mxu0
      %v3491 = vadd.f32 0.0, %v3490
      %v3492 = vpop.f32.mrb[0].mxu0
      %3493 = vmatprep.mubr.f32.mxu0 0.0
      %3494 = vmatmul.mubr.f32.gmra.mrb[0].mxu0 %v3296
      %v3495 = vpop.f32.mrb[0].mxu0
      %v3496 = vadd.f32 0.0, %v3495
      %v3497 = vpop.f32.mrb[0].mxu0
      %3498 = vmatprep.mubr.f32.mxu0 0.0
      %3499 = vmatmul.mubr.f32.gmra.mrb[0].mxu0 %v3299
      %v3500 = vpop.f32.mrb[0].mxu0
      %v3501 = vadd.f32 0.0, %v3500
      %v3502 = vpop.f32.mrb[0].mxu0
      %3503 = vmatprep.mubr.f32.mxu0 0.0
      %3504 = vmatmul.mubr.f32.gmra.mrb[0].mxu0 %v3302
      %v3505 = vpop.f32.mrb[0].mxu0
      %v3506 = vadd.f32 0.0, %v3505
      %v3507 = vpop.f32.mrb[0].mxu0
      %3508 = vmatprep.mubr.f32.mxu0 0.0
      %3509 = vmatmul.mubr.f32.gmra.mrb[0].mxu0 %v3305
      %v3510 = vpop.f32.mrb[0].mxu0
      %v3511 = vadd.f32 0.0, %v3510
      %v3512 = vpop.f32.mrb[0].mxu0
      %3513 = vmatprep.mubr.f32.mxu0 0.0
      %3514 = vmatmul.mubr.f32.gmra.mrb[0].mxu0 %v3308
      %v3515 = vpop.f32.mrb[0].mxu0
      %v3516 = vadd.f32 0.0, %v3515
      %v3517 = vpop.f32.mrb[0].mxu0
      %3518 = vmatprep.mubr.f32.mxu0 0.0
      %3519 = vmatmul.mubr.f32.gmra.mrb[0].mxu0 %v3311
      %v3520 = vpop.f32.mrb[0].mxu0
      %v3521 = vadd.f32 0.0, %v3520
      %v3522 = vpop.f32.mrb[0].mxu0
      %3523 = vmatprep.mubr.f32.mxu0 0.0
      %3524 = vmatmul.mubr.f32.gmra.mrb[0].mxu0 %v3314
      %v3525 = vpop.f32.mrb[0].mxu0
      %v3526 = vadd.f32 0.0, %v3525
      %v3527 = vpop.f32.mrb[0].mxu0
      %3528 = vmatprep.mubr.f32.mxu0 0.0
      %3529 = vmatmul.mubr.f32.gmra.mrb[0].mxu0 %v3317
      %v3530 = vpop.f32.mrb[0].mxu0
      %v3531 = vadd.f32 0.0, %v3530
      %v3532 = vpop.f32.mrb[0].mxu0
      %3533 = vmatprep.mubr.f32.mxu0 0.0
      %3534 = vmatmul.mubr.f32.gmra.mrb[0].mxu0 %v3320
      %v3535 = vpop.f32.mrb[0].mxu0
      %v3536 = vadd.f32 0.0, %v3535
      %v3537 = vpop.f32.mrb[0].mxu0
      %3538 = vmatprep.mubr.f32.mxu0 0.0
      %3539 = vmatmul.mubr.f32.gmra.mrb[0].mxu0 %v3323
      %v3540 = vpop.f32.mrb[0].mxu0
      %v3541 = vadd.f32 0.0, %v3540
      %v3542 = vpop.f32.mrb[0].mxu0
      %3543 = vmatprep.mubr.f32.mxu0 0.0
      %3544 = vmatmul.mubr.f32.gmra.mrb[0].mxu0 %v3326
      %v3545 = vpop.f32.mrb[0].mxu0
      %v3546 = vadd.f32 0.0, %v3545
      %v3547 = vpop.f32.mrb[0].mxu0
      %3548 = vmatprep.mubr.f32.mxu0 0.0
      %3549 = vmatmul.mubr.f32.gmra.mrb[0].mxu0 %v3329
      %v3550 = vpop.f32.mrb[0].mxu0
      %v3551 = vadd.f32 0.0, %v3550
      %v3552 = vpop.f32.mrb[0].mxu0
      %3553 = vmatprep.mubr.f32.mxu0 0.0
      %3554 = vmatmul.mubr.f32.gmra.mrb[0].mxu0 %v3332
      %v3555 = vpop.f32.mrb[0].mxu0
      %v3556 = vadd.f32 0.0, %v3555
      %v3557 = vpop.f32.mrb[0].mxu0
      %3558 = vmatprep.mubr.f32.mxu0 0.0
      %3559 = vmatmul.mubr.f32.gmra.mrb[0].mxu0 %v3335
      %v3560 = vpop.f32.mrb[0].mxu0
      %v3561 = vadd.f32 0.0, %v3560
      %v3562 = vpop.f32.mrb[0].mxu0
      %3563 = vmatprep.mubr.f32.mxu0 0.0
      %3564 = vmatmul.mubr.f32.gmra.mrb[0].mxu0 %v3338
      %v3565 = vpop.f32.mrb[0].mxu0
      %v3566 = vadd.f32 0.0, %v3565
      %v3567 = vpop.f32.mrb[0].mxu0
      %3568 = vdwg.mxu0
      %v3569 = vld [vmem:[%s5] sm:$0x1]
      %v3571 = vlaneseq
      %v3572 = vshrl.u32 %v3571, 7
      %v3573 = vsub.s32 0, %v3572
      %v3574 = vrot.slane %v3569, %v3573
      %v3576 = vmul.f32 %v3411, %v3574
      %v3577 = vmul.f32 %v3416, %v3574
      %v3578 = vmul.f32 %v3421, %v3574
      %v3579 = vmul.f32 %v3426, %v3574
      %v3580 = vmul.f32 %v3431, %v3574
      %v3581 = vmul.f32 %v3436, %v3574
      %v3582 = vmul.f32 %v3441, %v3574
      %v3583 = vmul.f32 %v3446, %v3574
      %v3584 = vmul.f32 %v3451, %v3574
      %v3585 = vmul.f32 %v3456, %v3574
      %v3586 = vmul.f32 %v3461, %v3574
      %v3587 = vmul.f32 %v3466, %v3574
      %v3588 = vmul.f32 %v3471, %v3574
      %v3589 = vmul.f32 %v3476, %v3574
      %v3590 = vmul.f32 %v3481, %v3574
      %v3591 = vmul.f32 %v3486, %v3574
      %v3592 = vmul.f32 %v3491, %v3574
      %v3593 = vmul.f32 %v3496, %v3574
      %v3594 = vmul.f32 %v3501, %v3574
      %v3595 = vmul.f32 %v3506, %v3574
      %v3596 = vmul.f32 %v3511, %v3574
      %v3597 = vmul.f32 %v3516, %v3574
      %v3598 = vmul.f32 %v3521, %v3574
      %v3599 = vmul.f32 %v3526, %v3574
      %v3600 = vmul.f32 %v3531, %v3574
      %v3601 = vmul.f32 %v3536, %v3574
      %v3602 = vmul.f32 %v3541, %v3574
      %v3603 = vmul.f32 %v3546, %v3574
      %v3604 = vmul.f32 %v3551, %v3574
      %v3605 = vmul.f32 %v3556, %v3574
      %v3606 = vmul.f32 %v3561, %v3574
      %v3607 = vmul.f32 %v3566, %v3574
      %v3608 = vld [vmem:[%s6] sm:$0x1]
      %v3610 = vlaneseq
      %v3611 = vshrl.u32 %v3610, 7
      %v3612 = vsub.s32 0, %v3611
      %v3613 = vrot.slane %v3608, %v3612
      %v3615 = vadd.f32 %v3576, %v3613
      %v3616 = vadd.f32 %v3577, %v3613
      %v3617 = vadd.f32 %v3578, %v3613
      %v3618 = vadd.f32 %v3579, %v3613
      %v3619 = vadd.f32 %v3580, %v3613
      %v3620 = vadd.f32 %v3581, %v3613
      %v3621 = vadd.f32 %v3582, %v3613
      %v3622 = vadd.f32 %v3583, %v3613
      %v3623 = vadd.f32 %v3584, %v3613
      %v3624 = vadd.f32 %v3585, %v3613
      %v3625 = vadd.f32 %v3586, %v3613
      %v3626 = vadd.f32 %v3587, %v3613
      %v3627 = vadd.f32 %v3588, %v3613
      %v3628 = vadd.f32 %v3589, %v3613
      %v3629 = vadd.f32 %v3590, %v3613
      %v3630 = vadd.f32 %v3591, %v3613
      %v3631 = vadd.f32 %v3592, %v3613
      %v3632 = vadd.f32 %v3593, %v3613
      %v3633 = vadd.f32 %v3594, %v3613
      %v3634 = vadd.f32 %v3595, %v3613
      %v3635 = vadd.f32 %v3596, %v3613
      %v3636 = vadd.f32 %v3597, %v3613
      %v3637 = vadd.f32 %v3598, %v3613
      %v3638 = vadd.f32 %v3599, %v3613
      %v3639 = vadd.f32 %v3600, %v3613
      %v3640 = vadd.f32 %v3601, %v3613
      %v3641 = vadd.f32 %v3602, %v3613
      %v3642 = vadd.f32 %v3603, %v3613
      %v3643 = vadd.f32 %v3604, %v3613
      %v3644 = vadd.f32 %v3605, %v3613
      %v3645 = vadd.f32 %v3606, %v3613
      %v3646 = vadd.f32 %v3607, %v3613
      %v3647 = vmax.f32 %v3615, 0.0
      %v3648 = vmax.f32 %v3616, 0.0
      %v3649 = vmax.f32 %v3617, 0.0
      %v3650 = vmax.f32 %v3618, 0.0
      %v3651 = vmax.f32 %v3619, 0.0
      %v3652 = vmax.f32 %v3620, 0.0
      %v3653 = vmax.f32 %v3621, 0.0
      %v3654 = vmax.f32 %v3622, 0.0
      %v3655 = vmax.f32 %v3623, 0.0
      %v3656 = vmax.f32 %v3624, 0.0
      %v3657 = vmax.f32 %v3625, 0.0
      %v3658 = vmax.f32 %v3626, 0.0
      %v3659 = vmax.f32 %v3627, 0.0
      %v3660 = vmax.f32 %v3628, 0.0
      %v3661 = vmax.f32 %v3629, 0.0
      %v3662 = vmax.f32 %v3630, 0.0
      %v3663 = vmax.f32 %v3631, 0.0
      %v3664 = vmax.f32 %v3632, 0.0
      %v3665 = vmax.f32 %v3633, 0.0
      %v3666 = vmax.f32 %v3634, 0.0
      %v3667 = vmax.f32 %v3635, 0.0
      %v3668 = vmax.f32 %v3636, 0.0
      %v3669 = vmax.f32 %v3637, 0.0
      %v3670 = vmax.f32 %v3638, 0.0
      %v3671 = vmax.f32 %v3639, 0.0
      %v3672 = vmax.f32 %v3640, 0.0
      %v3673 = vmax.f32 %v3641, 0.0
      %v3674 = vmax.f32 %v3642, 0.0
      %v3675 = vmax.f32 %v3643, 0.0
      %v3676 = vmax.f32 %v3644, 0.0
      %v3677 = vmax.f32 %v3645, 0.0
      %v3678 = vmax.f32 %v3646, 0.0
      %s3679 = scalar_lea.vmem [#allocation2], 928
      %v3680 = vld [vmem:[%s3679 + $0x3] sm:$0xff]
      %v3681 = vld [vmem:[%s3679 + $0xb] sm:$0xff]
      %v3682 = vld [vmem:[%s3679 + $0x23] sm:$0xff]
      %v3683 = vld [vmem:[%s3679 + $0x2b] sm:$0xff]
      %v3684 = vld [vmem:[%s3679 + $0x43] sm:$0xff]
      %v3685 = vld [vmem:[%s3679 + $0x4b] sm:$0xff]
      %v3686 = vld [vmem:[%s3679 + $0x63] sm:$0xff]
      %v3687 = vld [vmem:[%s3679 + $0x6b] sm:$0xff]
      %v3688 = vld [vmem:[%s3679 + $0x83] sm:$0xff]
      %v3689 = vld [vmem:[%s3679 + $0x8b] sm:$0xff]
      %v3690 = vld [vmem:[%s3679 + $0xa3] sm:$0xff]
      %v3691 = vld [vmem:[%s3679 + $0xab] sm:$0xff]
      %v3692 = vld [vmem:[%s3679 + $0xc3] sm:$0xff]
      %v3693 = vld [vmem:[%s3679 + $0xcb] sm:$0xff]
      %v3694 = vld [vmem:[%s3679 + $0xe3] sm:$0xff]
      %v3695 = vld [vmem:[%s3679 + $0xeb] sm:$0xff]
      %v3696 = vld [vmem:[%s3679 + $0x103] sm:$0xff]
      %v3697 = vld [vmem:[%s3679 + $0x10b] sm:$0xff]
      %v3698 = vld [vmem:[%s3679 + $0x123] sm:$0xff]
      %v3699 = vld [vmem:[%s3679 + $0x12b] sm:$0xff]
      %v3700 = vld [vmem:[%s3679 + $0x143] sm:$0xff]
      %v3701 = vld [vmem:[%s3679 + $0x14b] sm:$0xff]
      %v3702 = vld [vmem:[%s3679 + $0x163] sm:$0xff]
      %v3703 = vld [vmem:[%s3679 + $0x16b] sm:$0xff]
      %v3704 = vld [vmem:[%s3679 + $0x183] sm:$0xff]
      %v3705 = vld [vmem:[%s3679 + $0x18b] sm:$0xff]
      %v3706 = vld [vmem:[%s3679 + $0x1a3] sm:$0xff]
      %v3707 = vld [vmem:[%s3679 + $0x1ab] sm:$0xff]
      %v3708 = vld [vmem:[%s3679 + $0x1c3] sm:$0xff]
      %v3709 = vld [vmem:[%s3679 + $0x1cb] sm:$0xff]
      %v3710 = vld [vmem:[%s3679 + $0x1e3] sm:$0xff]
      %v3711 = vld [vmem:[%s3679 + $0x1eb] sm:$0xff]
      %v3712 = vld [vmem:[%s3679 + $0x5] sm:$0xff]
      %v3713 = vld [vmem:[%s3679 + $0xd] sm:$0xff]
      %v3714 = vld [vmem:[%s3679 + $0x25] sm:$0xff]
      %v3715 = vld [vmem:[%s3679 + $0x2d] sm:$0xff]
      %v3716 = vld [vmem:[%s3679 + $0x45] sm:$0xff]
      %v3717 = vld [vmem:[%s3679 + $0x4d] sm:$0xff]
      %v3718 = vld [vmem:[%s3679 + $0x65] sm:$0xff]
      %v3719 = vld [vmem:[%s3679 + $0x6d] sm:$0xff]
      %v3720 = vld [vmem:[%s3679 + $0x85] sm:$0xff]
      %v3721 = vld [vmem:[%s3679 + $0x8d] sm:$0xff]
      %v3722 = vld [vmem:[%s3679 + $0xa5] sm:$0xff]
      %v3723 = vld [vmem:[%s3679 + $0xad] sm:$0xff]
      %v3724 = vld [vmem:[%s3679 + $0xc5] sm:$0xff]
      %v3725 = vld [vmem:[%s3679 + $0xcd] sm:$0xff]
      %v3726 = vld [vmem:[%s3679 + $0xe5] sm:$0xff]
      %v3727 = vld [vmem:[%s3679 + $0xed] sm:$0xff]
      %v3728 = vld [vmem:[%s3679 + $0x105] sm:$0xff]
      %v3729 = vld [vmem:[%s3679 + $0x10d] sm:$0xff]
      %v3730 = vld [vmem:[%s3679 + $0x125] sm:$0xff]
      %v3731 = vld [vmem:[%s3679 + $0x12d] sm:$0xff]
      %v3732 = vld [vmem:[%s3679 + $0x145] sm:$0xff]
      %v3733 = vld [vmem:[%s3679 + $0x14d] sm:$0xff]
      %v3734 = vld [vmem:[%s3679 + $0x165] sm:$0xff]
      %v3735 = vld [vmem:[%s3679 + $0x16d] sm:$0xff]
      %v3736 = vld [vmem:[%s3679 + $0x185] sm:$0xff]
      %v3737 = vld [vmem:[%s3679 + $0x18d] sm:$0xff]
      %v3738 = vld [vmem:[%s3679 + $0x1a5] sm:$0xff]
      %v3739 = vld [vmem:[%s3679 + $0x1ad] sm:$0xff]
      %v3740 = vld [vmem:[%s3679 + $0x1c5] sm:$0xff]
      %v3741 = vld [vmem:[%s3679 + $0x1cd] sm:$0xff]
      %v3742 = vld [vmem:[%s3679 + $0x1e5] sm:$0xff]
      %v3743 = vld [vmem:[%s3679 + $0x1ed] sm:$0xff]
      %v3744 = vld [vmem:[%s3679 + $0x7] sm:$0xff]
      %v3745 = vld [vmem:[%s3679 + $0xf] sm:$0xff]
      %v3746 = vld [vmem:[%s3679 + $0x27] sm:$0xff]
      %v3747 = vld [vmem:[%s3679 + $0x2f] sm:$0xff]
      %v3748 = vld [vmem:[%s3679 + $0x47] sm:$0xff]
      %v3749 = vld [vmem:[%s3679 + $0x4f] sm:$0xff]
      %v3750 = vld [vmem:[%s3679 + $0x67] sm:$0xff]
      %v3751 = vld [vmem:[%s3679 + $0x6f] sm:$0xff]
      %v3752 = vld [vmem:[%s3679 + $0x87] sm:$0xff]
      %v3753 = vld [vmem:[%s3679 + $0x8f] sm:$0xff]
      %v3754 = vld [vmem:[%s3679 + $0xa7] sm:$0xff]
      %v3755 = vld [vmem:[%s3679 + $0xaf] sm:$0xff]
      %v3756 = vld [vmem:[%s3679 + $0xc7] sm:$0xff]
      %v3757 = vld [vmem:[%s3679 + $0xcf] sm:$0xff]
      %v3758 = vld [vmem:[%s3679 + $0xe7] sm:$0xff]
      %v3759 = vld [vmem:[%s3679 + $0xef] sm:$0xff]
      %v3760 = vld [vmem:[%s3679 + $0x107] sm:$0xff]
      %v3761 = vld [vmem:[%s3679 + $0x10f] sm:$0xff]
      %v3762 = vld [vmem:[%s3679 + $0x127] sm:$0xff]
      %v3763 = vld [vmem:[%s3679 + $0x12f] sm:$0xff]
      %v3764 = vld [vmem:[%s3679 + $0x147] sm:$0xff]
      %v3765 = vld [vmem:[%s3679 + $0x14f] sm:$0xff]
      %v3766 = vld [vmem:[%s3679 + $0x167] sm:$0xff]
      %v3767 = vld [vmem:[%s3679 + $0x16f] sm:$0xff]
      %v3768 = vld [vmem:[%s3679 + $0x187] sm:$0xff]
      %v3769 = vld [vmem:[%s3679 + $0x18f] sm:$0xff]
      %v3770 = vld [vmem:[%s3679 + $0x1a7] sm:$0xff]
      %v3771 = vld [vmem:[%s3679 + $0x1af] sm:$0xff]
      %v3772 = vld [vmem:[%s3679 + $0x1c7] sm:$0xff]
      %v3773 = vld [vmem:[%s3679 + $0x1cf] sm:$0xff]
      %v3774 = vld [vmem:[%s3679 + $0x1e7] sm:$0xff]
      %v3775 = vld [vmem:[%s3679 + $0x1ef] sm:$0xff]
      %v3776 = vld [vmem:[%s1373 + $0x3] sm:$0xff]
      %v3777 = vld [vmem:[%s1373 + $0xb] sm:$0xff]
      %v3778 = vld [vmem:[%s1373 + $0x23] sm:$0xff]
      %v3779 = vld [vmem:[%s1373 + $0x2b] sm:$0xff]
      %v3780 = vld [vmem:[%s1373 + $0x43] sm:$0xff]
      %v3781 = vld [vmem:[%s1373 + $0x4b] sm:$0xff]
      %v3782 = vld [vmem:[%s1373 + $0x63] sm:$0xff]
      %v3783 = vld [vmem:[%s1373 + $0x6b] sm:$0xff]
      %v3784 = vld [vmem:[%s1373 + $0x83] sm:$0xff]
      %v3785 = vld [vmem:[%s1373 + $0x8b] sm:$0xff]
      %v3786 = vld [vmem:[%s1373 + $0xa3] sm:$0xff]
      %v3787 = vld [vmem:[%s1373 + $0xab] sm:$0xff]
      %v3788 = vld [vmem:[%s1373 + $0xc3] sm:$0xff]
      %v3789 = vld [vmem:[%s1373 + $0xcb] sm:$0xff]
      %v3790 = vld [vmem:[%s1373 + $0xe3] sm:$0xff]
      %v3791 = vld [vmem:[%s1373 + $0xeb] sm:$0xff]
      %v3792 = vld [vmem:[%s1373 + $0x103] sm:$0xff]
      %v3793 = vld [vmem:[%s1373 + $0x10b] sm:$0xff]
      %v3794 = vld [vmem:[%s1373 + $0x123] sm:$0xff]
      %v3795 = vld [vmem:[%s1373 + $0x12b] sm:$0xff]
      %v3796 = vld [vmem:[%s1373 + $0x143] sm:$0xff]
      %v3797 = vld [vmem:[%s1373 + $0x14b] sm:$0xff]
      %v3798 = vld [vmem:[%s1373 + $0x163] sm:$0xff]
      %v3799 = vld [vmem:[%s1373 + $0x16b] sm:$0xff]
      %v3800 = vld [vmem:[%s1373 + $0x183] sm:$0xff]
      %v3801 = vld [vmem:[%s1373 + $0x18b] sm:$0xff]
      %v3802 = vld [vmem:[%s1373 + $0x1a3] sm:$0xff]
      %v3803 = vld [vmem:[%s1373 + $0x1ab] sm:$0xff]
      %v3804 = vld [vmem:[%s1373 + $0x1c3] sm:$0xff]
      %v3805 = vld [vmem:[%s1373 + $0x1cb] sm:$0xff]
      %v3806 = vld [vmem:[%s1373 + $0x1e3] sm:$0xff]
      %v3807 = vld [vmem:[%s1373 + $0x1eb] sm:$0xff]
      %v3808 = vld [vmem:[%s1373 + $0x5] sm:$0xff]
      %v3809 = vld [vmem:[%s1373 + $0xd] sm:$0xff]
      %v3810 = vld [vmem:[%s1373 + $0x25] sm:$0xff]
      %v3811 = vld [vmem:[%s1373 + $0x2d] sm:$0xff]
      %v3812 = vld [vmem:[%s1373 + $0x45] sm:$0xff]
      %v3813 = vld [vmem:[%s1373 + $0x4d] sm:$0xff]
      %v3814 = vld [vmem:[%s1373 + $0x65] sm:$0xff]
      %v3815 = vld [vmem:[%s1373 + $0x6d] sm:$0xff]
      %v3816 = vld [vmem:[%s1373 + $0x85] sm:$0xff]
      %v3817 = vld [vmem:[%s1373 + $0x8d] sm:$0xff]
      %v3818 = vld [vmem:[%s1373 + $0xa5] sm:$0xff]
      %v3819 = vld [vmem:[%s1373 + $0xad] sm:$0xff]
      %v3820 = vld [vmem:[%s1373 + $0xc5] sm:$0xff]
      %v3821 = vld [vmem:[%s1373 + $0xcd] sm:$0xff]
      %v3822 = vld [vmem:[%s1373 + $0xe5] sm:$0xff]
      %v3823 = vld [vmem:[%s1373 + $0xed] sm:$0xff]
      %v3824 = vld [vmem:[%s1373 + $0x105] sm:$0xff]
      %v3825 = vld [vmem:[%s1373 + $0x10d] sm:$0xff]
      %v3826 = vld [vmem:[%s1373 + $0x125] sm:$0xff]
      %v3827 = vld [vmem:[%s1373 + $0x12d] sm:$0xff]
      %v3828 = vld [vmem:[%s1373 + $0x145] sm:$0xff]
      %v3829 = vld [vmem:[%s1373 + $0x14d] sm:$0xff]
      %v3830 = vld [vmem:[%s1373 + $0x165] sm:$0xff]
      %v3831 = vld [vmem:[%s1373 + $0x16d] sm:$0xff]
      %v3832 = vld [vmem:[%s1373 + $0x185] sm:$0xff]
      %v3833 = vld [vmem:[%s1373 + $0x18d] sm:$0xff]
      %v3834 = vld [vmem:[%s1373 + $0x1a5] sm:$0xff]
      %v3835 = vld [vmem:[%s1373 + $0x1ad] sm:$0xff]
      %v3836 = vld [vmem:[%s1373 + $0x1c5] sm:$0xff]
      %v3837 = vld [vmem:[%s1373 + $0x1cd] sm:$0xff]
      %v3838 = vld [vmem:[%s1373 + $0x1e5] sm:$0xff]
      %v3839 = vld [vmem:[%s1373 + $0x1ed] sm:$0xff]
      %v3840 = vld [vmem:[%s1373 + $0x7] sm:$0xff]
      %v3841 = vld [vmem:[%s1373 + $0xf] sm:$0xff]
      %v3842 = vld [vmem:[%s1373 + $0x27] sm:$0xff]
      %v3843 = vld [vmem:[%s1373 + $0x2f] sm:$0xff]
      %v3844 = vld [vmem:[%s1373 + $0x47] sm:$0xff]
      %v3845 = vld [vmem:[%s1373 + $0x4f] sm:$0xff]
      %v3846 = vld [vmem:[%s1373 + $0x67] sm:$0xff]
      %v3847 = vld [vmem:[%s1373 + $0x6f] sm:$0xff]
      %v3848 = vld [vmem:[%s1373 + $0x87] sm:$0xff]
      %v3849 = vld [vmem:[%s1373 + $0x8f] sm:$0xff]
      %v3850 = vld [vmem:[%s1373 + $0xa7] sm:$0xff]
      %v3851 = vld [vmem:[%s1373 + $0xaf] sm:$0xff]
      %v3852 = vld [vmem:[%s1373 + $0xc7] sm:$0xff]
      %v3853 = vld [vmem:[%s1373 + $0xcf] sm:$0xff]
      %v3854 = vld [vmem:[%s1373 + $0xe7] sm:$0xff]
      %v3855 = vld [vmem:[%s1373 + $0xef] sm:$0xff]
      %v3856 = vld [vmem:[%s1373 + $0x107] sm:$0xff]
      %v3857 = vld [vmem:[%s1373 + $0x10f] sm:$0xff]
      %v3858 = vld [vmem:[%s1373 + $0x127] sm:$0xff]
      %v3859 = vld [vmem:[%s1373 + $0x12f] sm:$0xff]
      %v3860 = vld [vmem:[%s1373 + $0x147] sm:$0xff]
      %v3861 = vld [vmem:[%s1373 + $0x14f] sm:$0xff]
      %v3862 = vld [vmem:[%s1373 + $0x167] sm:$0xff]
      %v3863 = vld [vmem:[%s1373 + $0x16f] sm:$0xff]
      %v3864 = vld [vmem:[%s1373 + $0x187] sm:$0xff]
      %v3865 = vld [vmem:[%s1373 + $0x18f] sm:$0xff]
      %v3866 = vld [vmem:[%s1373 + $0x1a7] sm:$0xff]
      %v3867 = vld [vmem:[%s1373 + $0x1af] sm:$0xff]
      %v3868 = vld [vmem:[%s1373 + $0x1c7] sm:$0xff]
      %v3869 = vld [vmem:[%s1373 + $0x1cf] sm:$0xff]
      %v3870 = vld [vmem:[%s1373 + $0x1e7] sm:$0xff]
      %v3871 = vld [vmem:[%s1373 + $0x1ef] sm:$0xff]
      %s3872 = scalar_lea.vmem [#allocation2], 1056
      %v3873 = vld [vmem:[%s3872 + $0x3] sm:$0xff]
      %v3874 = vld [vmem:[%s3872 + $0xb] sm:$0xff]
      %v3875 = vld [vmem:[%s3872 + $0x23] sm:$0xff]
      %v3876 = vld [vmem:[%s3872 + $0x2b] sm:$0xff]
      %v3877 = vld [vmem:[%s3872 + $0x43] sm:$0xff]
      %v3878 = vld [vmem:[%s3872 + $0x4b] sm:$0xff]
      %v3879 = vld [vmem:[%s3872 + $0x63] sm:$0xff]
      %v3880 = vld [vmem:[%s3872 + $0x6b] sm:$0xff]
      %v3881 = vld [vmem:[%s3872 + $0x83] sm:$0xff]
      %v3882 = vld [vmem:[%s3872 + $0x8b] sm:$0xff]
      %v3883 = vld [vmem:[%s3872 + $0xa3] sm:$0xff]
      %v3884 = vld [vmem:[%s3872 + $0xab] sm:$0xff]
      %v3885 = vld [vmem:[%s3872 + $0xc3] sm:$0xff]
      %v3886 = vld [vmem:[%s3872 + $0xcb] sm:$0xff]
      %v3887 = vld [vmem:[%s3872 + $0xe3] sm:$0xff]
      %v3888 = vld [vmem:[%s3872 + $0xeb] sm:$0xff]
      %v3889 = vld [vmem:[%s3872 + $0x103] sm:$0xff]
      %v3890 = vld [vmem:[%s3872 + $0x10b] sm:$0xff]
      %v3891 = vld [vmem:[%s3872 + $0x123] sm:$0xff]
      %v3892 = vld [vmem:[%s3872 + $0x12b] sm:$0xff]
      %v3893 = vld [vmem:[%s3872 + $0x143] sm:$0xff]
      %v3894 = vld [vmem:[%s3872 + $0x14b] sm:$0xff]
      %v3895 = vld [vmem:[%s3872 + $0x163] sm:$0xff]
      %v3896 = vld [vmem:[%s3872 + $0x16b] sm:$0xff]
      %v3897 = vld [vmem:[%s3872 + $0x183] sm:$0xff]
      %v3898 = vld [vmem:[%s3872 + $0x18b] sm:$0xff]
      %v3899 = vld [vmem:[%s3872 + $0x1a3] sm:$0xff]
      %v3900 = vld [vmem:[%s3872 + $0x1ab] sm:$0xff]
      %v3901 = vld [vmem:[%s3872 + $0x1c3] sm:$0xff]
      %v3902 = vld [vmem:[%s3872 + $0x1cb] sm:$0xff]
      %v3903 = vld [vmem:[%s3872 + $0x1e3] sm:$0xff]
      %v3904 = vld [vmem:[%s3872 + $0x1eb] sm:$0xff]
      %v3905 = vld [vmem:[%s3872 + $0x5] sm:$0xff]
      %v3906 = vld [vmem:[%s3872 + $0xd] sm:$0xff]
      %v3907 = vld [vmem:[%s3872 + $0x25] sm:$0xff]
      %v3908 = vld [vmem:[%s3872 + $0x2d] sm:$0xff]
      %v3909 = vld [vmem:[%s3872 + $0x45] sm:$0xff]
      %v3910 = vld [vmem:[%s3872 + $0x4d] sm:$0xff]
      %v3911 = vld [vmem:[%s3872 + $0x65] sm:$0xff]
      %v3912 = vld [vmem:[%s3872 + $0x6d] sm:$0xff]
      %v3913 = vld [vmem:[%s3872 + $0x85] sm:$0xff]
      %v3914 = vld [vmem:[%s3872 + $0x8d] sm:$0xff]
      %v3915 = vld [vmem:[%s3872 + $0xa5] sm:$0xff]
      %v3916 = vld [vmem:[%s3872 + $0xad] sm:$0xff]
      %v3917 = vld [vmem:[%s3872 + $0xc5] sm:$0xff]
      %v3918 = vld [vmem:[%s3872 + $0xcd] sm:$0xff]
      %v3919 = vld [vmem:[%s3872 + $0xe5] sm:$0xff]
      %v3920 = vld [vmem:[%s3872 + $0xed] sm:$0xff]
      %v3921 = vld [vmem:[%s3872 + $0x105] sm:$0xff]
      %v3922 = vld [vmem:[%s3872 + $0x10d] sm:$0xff]
      %v3923 = vld [vmem:[%s3872 + $0x125] sm:$0xff]
      %v3924 = vld [vmem:[%s3872 + $0x12d] sm:$0xff]
      %v3925 = vld [vmem:[%s3872 + $0x145] sm:$0xff]
      %v3926 = vld [vmem:[%s3872 + $0x14d] sm:$0xff]
      %v3927 = vld [vmem:[%s3872 + $0x165] sm:$0xff]
      %v3928 = vld [vmem:[%s3872 + $0x16d] sm:$0xff]
      %v3929 = vld [vmem:[%s3872 + $0x185] sm:$0xff]
      %v3930 = vld [vmem:[%s3872 + $0x18d] sm:$0xff]
      %v3931 = vld [vmem:[%s3872 + $0x1a5] sm:$0xff]
      %v3932 = vld [vmem:[%s3872 + $0x1ad] sm:$0xff]
      %v3933 = vld [vmem:[%s3872 + $0x1c5] sm:$0xff]
      %v3934 = vld [vmem:[%s3872 + $0x1cd] sm:$0xff]
      %v3935 = vld [vmem:[%s3872 + $0x1e5] sm:$0xff]
      %v3936 = vld [vmem:[%s3872 + $0x1ed] sm:$0xff]
      %v3937 = vld [vmem:[%s3872 + $0x7] sm:$0xff]
      %v3938 = vld [vmem:[%s3872 + $0xf] sm:$0xff]
      %v3939 = vld [vmem:[%s3872 + $0x27] sm:$0xff]
      %v3940 = vld [vmem:[%s3872 + $0x2f] sm:$0xff]
      %v3941 = vld [vmem:[%s3872 + $0x47] sm:$0xff]
      %v3942 = vld [vmem:[%s3872 + $0x4f] sm:$0xff]
      %v3943 = vld [vmem:[%s3872 + $0x67] sm:$0xff]
      %v3944 = vld [vmem:[%s3872 + $0x6f] sm:$0xff]
      %v3945 = vld [vmem:[%s3872 + $0x87] sm:$0xff]
      %v3946 = vld [vmem:[%s3872 + $0x8f] sm:$0xff]
      %v3947 = vld [vmem:[%s3872 + $0xa7] sm:$0xff]
      %v3948 = vld [vmem:[%s3872 + $0xaf] sm:$0xff]
      %v3949 = vld [vmem:[%s3872 + $0xc7] sm:$0xff]
      %v3950 = vld [vmem:[%s3872 + $0xcf] sm:$0xff]
      %v3951 = vld [vmem:[%s3872 + $0xe7] sm:$0xff]
      %v3952 = vld [vmem:[%s3872 + $0xef] sm:$0xff]
      %v3953 = vld [vmem:[%s3872 + $0x107] sm:$0xff]
      %v3954 = vld [vmem:[%s3872 + $0x10f] sm:$0xff]
      %v3955 = vld [vmem:[%s3872 + $0x127] sm:$0xff]
      %v3956 = vld [vmem:[%s3872 + $0x12f] sm:$0xff]
      %v3957 = vld [vmem:[%s3872 + $0x147] sm:$0xff]
      %v3958 = vld [vmem:[%s3872 + $0x14f] sm:$0xff]
      %v3959 = vld [vmem:[%s3872 + $0x167] sm:$0xff]
      %v3960 = vld [vmem:[%s3872 + $0x16f] sm:$0xff]
      %v3961 = vld [vmem:[%s3872 + $0x187] sm:$0xff]
      %v3962 = vld [vmem:[%s3872 + $0x18f] sm:$0xff]
      %v3963 = vld [vmem:[%s3872 + $0x1a7] sm:$0xff]
      %v3964 = vld [vmem:[%s3872 + $0x1af] sm:$0xff]
      %v3965 = vld [vmem:[%s3872 + $0x1c7] sm:$0xff]
      %v3966 = vld [vmem:[%s3872 + $0x1cf] sm:$0xff]
      %v3967 = vld [vmem:[%s3872 + $0x1e7] sm:$0xff]
      %v3968 = vld [vmem:[%s3872 + $0x1ef] sm:$0xff]
      %4001 = vrot.lane.b32.xlu0 %v3712, 2
      %v4002 = vpop.permute.xlu0 %4001
      %4003 = vrot.lane.b32.xlu0 %v3713, 2
      %v4004 = vpop.permute.xlu0 %4003
      %4005 = vrot.lane.b32.xlu0 %v3714, 2
      %v4006 = vpop.permute.xlu0 %4005
      %4007 = vrot.lane.b32.xlu0 %v3715, 2
      %v4008 = vpop.permute.xlu0 %4007
      %4009 = vrot.lane.b32.xlu0 %v3716, 2
      %v4010 = vpop.permute.xlu0 %4009
      %4011 = vrot.lane.b32.xlu0 %v3717, 2
      %v4012 = vpop.permute.xlu0 %4011
      %4013 = vrot.lane.b32.xlu0 %v3718, 2
      %v4014 = vpop.permute.xlu0 %4013
      %4015 = vrot.lane.b32.xlu0 %v3719, 2
      %v4016 = vpop.permute.xlu0 %4015
      %4017 = vrot.lane.b32.xlu0 %v3720, 2
      %v4018 = vpop.permute.xlu0 %4017
      %4019 = vrot.lane.b32.xlu0 %v3721, 2
      %v4020 = vpop.permute.xlu0 %4019
      %4021 = vrot.lane.b32.xlu0 %v3722, 2
      %v4022 = vpop.permute.xlu0 %4021
      %4023 = vrot.lane.b32.xlu0 %v3723, 2
      %v4024 = vpop.permute.xlu0 %4023
      %4025 = vrot.lane.b32.xlu0 %v3724, 2
      %v4026 = vpop.permute.xlu0 %4025
      %4027 = vrot.lane.b32.xlu0 %v3725, 2
      %v4028 = vpop.permute.xlu0 %4027
      %4029 = vrot.lane.b32.xlu0 %v3726, 2
      %v4030 = vpop.permute.xlu0 %4029
      %4031 = vrot.lane.b32.xlu0 %v3727, 2
      %v4032 = vpop.permute.xlu0 %4031
      %4033 = vrot.lane.b32.xlu0 %v3728, 2
      %v4034 = vpop.permute.xlu0 %4033
      %4035 = vrot.lane.b32.xlu0 %v3729, 2
      %v4036 = vpop.permute.xlu0 %4035
      %4037 = vrot.lane.b32.xlu0 %v3730, 2
      %v4038 = vpop.permute.xlu0 %4037
      %4039 = vrot.lane.b32.xlu0 %v3731, 2
      %v4040 = vpop.permute.xlu0 %4039
      %4041 = vrot.lane.b32.xlu0 %v3732, 2
      %v4042 = vpop.permute.xlu0 %4041
      %4043 = vrot.lane.b32.xlu0 %v3733, 2
      %v4044 = vpop.permute.xlu0 %4043
      %4045 = vrot.lane.b32.xlu0 %v3734, 2
      %v4046 = vpop.permute.xlu0 %4045
      %4047 = vrot.lane.b32.xlu0 %v3735, 2
      %v4048 = vpop.permute.xlu0 %4047
      %4049 = vrot.lane.b32.xlu0 %v3736, 2
      %v4050 = vpop.permute.xlu0 %4049
      %4051 = vrot.lane.b32.xlu0 %v3737, 2
      %v4052 = vpop.permute.xlu0 %4051
      %4053 = vrot.lane.b32.xlu0 %v3738, 2
      %v4054 = vpop.permute.xlu0 %4053
      %4055 = vrot.lane.b32.xlu0 %v3739, 2
      %v4056 = vpop.permute.xlu0 %4055
      %4057 = vrot.lane.b32.xlu0 %v3740, 2
      %v4058 = vpop.permute.xlu0 %4057
      %4059 = vrot.lane.b32.xlu0 %v3741, 2
      %v4060 = vpop.permute.xlu0 %4059
      %4061 = vrot.lane.b32.xlu0 %v3742, 2
      %v4062 = vpop.permute.xlu0 %4061
      %4063 = vrot.lane.b32.xlu0 %v3743, 2
      %v4064 = vpop.permute.xlu0 %4063
      %4129 = vrot.lane.b32.xlu0 %v3744, 4
      %v4130 = vpop.permute.xlu0 %4129
      %4131 = vrot.lane.b32.xlu0 %v3745, 4
      %v4132 = vpop.permute.xlu0 %4131
      %4133 = vrot.lane.b32.xlu0 %v3746, 4
      %v4134 = vpop.permute.xlu0 %4133
      %4135 = vrot.lane.b32.xlu0 %v3747, 4
      %v4136 = vpop.permute.xlu0 %4135
      %4137 = vrot.lane.b32.xlu0 %v3748, 4
      %v4138 = vpop.permute.xlu0 %4137
      %4139 = vrot.lane.b32.xlu0 %v3749, 4
      %v4140 = vpop.permute.xlu0 %4139
      %4141 = vrot.lane.b32.xlu0 %v3750, 4
      %v4142 = vpop.permute.xlu0 %4141
      %4143 = vrot.lane.b32.xlu0 %v3751, 4
      %v4144 = vpop.permute.xlu0 %4143
      %4145 = vrot.lane.b32.xlu0 %v3752, 4
      %v4146 = vpop.permute.xlu0 %4145
      %4147 = vrot.lane.b32.xlu0 %v3753, 4
      %v4148 = vpop.permute.xlu0 %4147
      %4149 = vrot.lane.b32.xlu0 %v3754, 4
      %v4150 = vpop.permute.xlu0 %4149
      %4151 = vrot.lane.b32.xlu0 %v3755, 4
      %v4152 = vpop.permute.xlu0 %4151
      %4153 = vrot.lane.b32.xlu0 %v3756, 4
      %v4154 = vpop.permute.xlu0 %4153
      %4155 = vrot.lane.b32.xlu0 %v3757, 4
      %v4156 = vpop.permute.xlu0 %4155
      %4157 = vrot.lane.b32.xlu0 %v3758, 4
      %v4158 = vpop.permute.xlu0 %4157
      %4159 = vrot.lane.b32.xlu0 %v3759, 4
      %v4160 = vpop.permute.xlu0 %4159
      %4161 = vrot.lane.b32.xlu0 %v3760, 4
      %v4162 = vpop.permute.xlu0 %4161
      %4163 = vrot.lane.b32.xlu0 %v3761, 4
      %v4164 = vpop.permute.xlu0 %4163
      %4165 = vrot.lane.b32.xlu0 %v3762, 4
      %v4166 = vpop.permute.xlu0 %4165
      %4167 = vrot.lane.b32.xlu0 %v3763, 4
      %v4168 = vpop.permute.xlu0 %4167
      %4169 = vrot.lane.b32.xlu0 %v3764, 4
      %v4170 = vpop.permute.xlu0 %4169
      %4171 = vrot.lane.b32.xlu0 %v3765, 4
      %v4172 = vpop.permute.xlu0 %4171
      %4173 = vrot.lane.b32.xlu0 %v3766, 4
      %v4174 = vpop.permute.xlu0 %4173
      %4175 = vrot.lane.b32.xlu0 %v3767, 4
      %v4176 = vpop.permute.xlu0 %4175
      %4177 = vrot.lane.b32.xlu0 %v3768, 4
      %v4178 = vpop.permute.xlu0 %4177
      %4179 = vrot.lane.b32.xlu0 %v3769, 4
      %v4180 = vpop.permute.xlu0 %4179
      %4181 = vrot.lane.b32.xlu0 %v3770, 4
      %v4182 = vpop.permute.xlu0 %4181
      %4183 = vrot.lane.b32.xlu0 %v3771, 4
      %v4184 = vpop.permute.xlu0 %4183
      %4185 = vrot.lane.b32.xlu0 %v3772, 4
      %v4186 = vpop.permute.xlu0 %4185
      %4187 = vrot.lane.b32.xlu0 %v3773, 4
      %v4188 = vpop.permute.xlu0 %4187
      %4189 = vrot.lane.b32.xlu0 %v3774, 4
      %v4190 = vpop.permute.xlu0 %4189
      %4191 = vrot.lane.b32.xlu0 %v3775, 4
      %v4192 = vpop.permute.xlu0 %4191
      %4257 = vrot.lane.b32.xlu0 %v3776, 6
      %v4258 = vpop.permute.xlu0 %4257
      %4259 = vrot.lane.b32.xlu0 %v3777, 6
      %v4260 = vpop.permute.xlu0 %4259
      %4261 = vrot.lane.b32.xlu0 %v3778, 6
      %v4262 = vpop.permute.xlu0 %4261
      %4263 = vrot.lane.b32.xlu0 %v3779, 6
      %v4264 = vpop.permute.xlu0 %4263
      %4265 = vrot.lane.b32.xlu0 %v3780, 6
      %v4266 = vpop.permute.xlu0 %4265
      %4267 = vrot.lane.b32.xlu0 %v3781, 6
      %v4268 = vpop.permute.xlu0 %4267
      %4269 = vrot.lane.b32.xlu0 %v3782, 6
      %v4270 = vpop.permute.xlu0 %4269
      %4271 = vrot.lane.b32.xlu0 %v3783, 6
      %v4272 = vpop.permute.xlu0 %4271
      %4273 = vrot.lane.b32.xlu0 %v3784, 6
      %v4274 = vpop.permute.xlu0 %4273
      %4275 = vrot.lane.b32.xlu0 %v3785, 6
      %v4276 = vpop.permute.xlu0 %4275
      %4277 = vrot.lane.b32.xlu0 %v3786, 6
      %v4278 = vpop.permute.xlu0 %4277
      %4279 = vrot.lane.b32.xlu0 %v3787, 6
      %v4280 = vpop.permute.xlu0 %4279
      %4281 = vrot.lane.b32.xlu0 %v3788, 6
      %v4282 = vpop.permute.xlu0 %4281
      %4283 = vrot.lane.b32.xlu0 %v3789, 6
      %v4284 = vpop.permute.xlu0 %4283
      %4285 = vrot.lane.b32.xlu0 %v3790, 6
      %v4286 = vpop.permute.xlu0 %4285
      %4287 = vrot.lane.b32.xlu0 %v3791, 6
      %v4288 = vpop.permute.xlu0 %4287
      %4289 = vrot.lane.b32.xlu0 %v3792, 6
      %v4290 = vpop.permute.xlu0 %4289
      %4291 = vrot.lane.b32.xlu0 %v3793, 6
      %v4292 = vpop.permute.xlu0 %4291
      %4293 = vrot.lane.b32.xlu0 %v3794, 6
      %v4294 = vpop.permute.xlu0 %4293
      %4295 = vrot.lane.b32.xlu0 %v3795, 6
      %v4296 = vpop.permute.xlu0 %4295
      %4297 = vrot.lane.b32.xlu0 %v3796, 6
      %v4298 = vpop.permute.xlu0 %4297
      %4299 = vrot.lane.b32.xlu0 %v3797, 6
      %v4300 = vpop.permute.xlu0 %4299
      %4301 = vrot.lane.b32.xlu0 %v3798, 6
      %v4302 = vpop.permute.xlu0 %4301
      %4303 = vrot.lane.b32.xlu0 %v3799, 6
      %v4304 = vpop.permute.xlu0 %4303
      %4305 = vrot.lane.b32.xlu0 %v3800, 6
      %v4306 = vpop.permute.xlu0 %4305
      %4307 = vrot.lane.b32.xlu0 %v3801, 6
      %v4308 = vpop.permute.xlu0 %4307
      %4309 = vrot.lane.b32.xlu0 %v3802, 6
      %v4310 = vpop.permute.xlu0 %4309
      %4311 = vrot.lane.b32.xlu0 %v3803, 6
      %v4312 = vpop.permute.xlu0 %4311
      %4313 = vrot.lane.b32.xlu0 %v3804, 6
      %v4314 = vpop.permute.xlu0 %4313
      %4315 = vrot.lane.b32.xlu0 %v3805, 6
      %v4316 = vpop.permute.xlu0 %4315
      %4317 = vrot.lane.b32.xlu0 %v3806, 6
      %v4318 = vpop.permute.xlu0 %4317
      %4319 = vrot.lane.b32.xlu0 %v3807, 6
      %v4320 = vpop.permute.xlu0 %4319
      %4385 = vrot.lane.b32.xlu0 %v3808, 8
      %v4386 = vpop.permute.xlu0 %4385
      %4387 = vrot.lane.b32.xlu0 %v3809, 8
      %v4388 = vpop.permute.xlu0 %4387
      %4389 = vrot.lane.b32.xlu0 %v3810, 8
      %v4390 = vpop.permute.xlu0 %4389
      %4391 = vrot.lane.b32.xlu0 %v3811, 8
      %v4392 = vpop.permute.xlu0 %4391
      %4393 = vrot.lane.b32.xlu0 %v3812, 8
      %v4394 = vpop.permute.xlu0 %4393
      %4395 = vrot.lane.b32.xlu0 %v3813, 8
      %v4396 = vpop.permute.xlu0 %4395
      %4397 = vrot.lane.b32.xlu0 %v3814, 8
      %v4398 = vpop.permute.xlu0 %4397
      %4399 = vrot.lane.b32.xlu0 %v3815, 8
      %v4400 = vpop.permute.xlu0 %4399
      %4401 = vrot.lane.b32.xlu0 %v3816, 8
      %v4402 = vpop.permute.xlu0 %4401
      %4403 = vrot.lane.b32.xlu0 %v3817, 8
      %v4404 = vpop.permute.xlu0 %4403
      %4405 = vrot.lane.b32.xlu0 %v3818, 8
      %v4406 = vpop.permute.xlu0 %4405
      %4407 = vrot.lane.b32.xlu0 %v3819, 8
      %v4408 = vpop.permute.xlu0 %4407
      %4409 = vrot.lane.b32.xlu0 %v3820, 8
      %v4410 = vpop.permute.xlu0 %4409
      %4411 = vrot.lane.b32.xlu0 %v3821, 8
      %v4412 = vpop.permute.xlu0 %4411
      %4413 = vrot.lane.b32.xlu0 %v3822, 8
      %v4414 = vpop.permute.xlu0 %4413
      %4415 = vrot.lane.b32.xlu0 %v3823, 8
      %v4416 = vpop.permute.xlu0 %4415
      %4417 = vrot.lane.b32.xlu0 %v3824, 8
      %v4418 = vpop.permute.xlu0 %4417
      %4419 = vrot.lane.b32.xlu0 %v3825, 8
      %v4420 = vpop.permute.xlu0 %4419
      %4421 = vrot.lane.b32.xlu0 %v3826, 8
      %v4422 = vpop.permute.xlu0 %4421
      %4423 = vrot.lane.b32.xlu0 %v3827, 8
      %v4424 = vpop.permute.xlu0 %4423
      %4425 = vrot.lane.b32.xlu0 %v3828, 8
      %v4426 = vpop.permute.xlu0 %4425
      %4427 = vrot.lane.b32.xlu0 %v3829, 8
      %v4428 = vpop.permute.xlu0 %4427
      %4429 = vrot.lane.b32.xlu0 %v3830, 8
      %v4430 = vpop.permute.xlu0 %4429
      %4431 = vrot.lane.b32.xlu0 %v3831, 8
      %v4432 = vpop.permute.xlu0 %4431
      %4433 = vrot.lane.b32.xlu0 %v3832, 8
      %v4434 = vpop.permute.xlu0 %4433
      %4435 = vrot.lane.b32.xlu0 %v3833, 8
      %v4436 = vpop.permute.xlu0 %4435
      %4437 = vrot.lane.b32.xlu0 %v3834, 8
      %v4438 = vpop.permute.xlu0 %4437
      %4439 = vrot.lane.b32.xlu0 %v3835, 8
      %v4440 = vpop.permute.xlu0 %4439
      %4441 = vrot.lane.b32.xlu0 %v3836, 8
      %v4442 = vpop.permute.xlu0 %4441
      %4443 = vrot.lane.b32.xlu0 %v3837, 8
      %v4444 = vpop.permute.xlu0 %4443
      %4445 = vrot.lane.b32.xlu0 %v3838, 8
      %v4446 = vpop.permute.xlu0 %4445
      %4447 = vrot.lane.b32.xlu0 %v3839, 8
      %v4448 = vpop.permute.xlu0 %4447
      %4513 = vrot.lane.b32.xlu0 %v3840, 10
      %v4514 = vpop.permute.xlu0 %4513
      %4515 = vrot.lane.b32.xlu0 %v3841, 10
      %v4516 = vpop.permute.xlu0 %4515
      %4517 = vrot.lane.b32.xlu0 %v3842, 10
      %v4518 = vpop.permute.xlu0 %4517
      %4519 = vrot.lane.b32.xlu0 %v3843, 10
      %v4520 = vpop.permute.xlu0 %4519
      %4521 = vrot.lane.b32.xlu0 %v3844, 10
      %v4522 = vpop.permute.xlu0 %4521
      %4523 = vrot.lane.b32.xlu0 %v3845, 10
      %v4524 = vpop.permute.xlu0 %4523
      %4525 = vrot.lane.b32.xlu0 %v3846, 10
      %v4526 = vpop.permute.xlu0 %4525
      %4527 = vrot.lane.b32.xlu0 %v3847, 10
      %v4528 = vpop.permute.xlu0 %4527
      %4529 = vrot.lane.b32.xlu0 %v3848, 10
      %v4530 = vpop.permute.xlu0 %4529
      %4531 = vrot.lane.b32.xlu0 %v3849, 10
      %v4532 = vpop.permute.xlu0 %4531
      %4533 = vrot.lane.b32.xlu0 %v3850, 10
      %v4534 = vpop.permute.xlu0 %4533
      %4535 = vrot.lane.b32.xlu0 %v3851, 10
      %v4536 = vpop.permute.xlu0 %4535
      %4537 = vrot.lane.b32.xlu0 %v3852, 10
      %v4538 = vpop.permute.xlu0 %4537
      %4539 = vrot.lane.b32.xlu0 %v3853, 10
      %v4540 = vpop.permute.xlu0 %4539
      %4541 = vrot.lane.b32.xlu0 %v3854, 10
      %v4542 = vpop.permute.xlu0 %4541
      %4543 = vrot.lane.b32.xlu0 %v3855, 10
      %v4544 = vpop.permute.xlu0 %4543
      %4545 = vrot.lane.b32.xlu0 %v3856, 10
      %v4546 = vpop.permute.xlu0 %4545
      %4547 = vrot.lane.b32.xlu0 %v3857, 10
      %v4548 = vpop.permute.xlu0 %4547
      %4549 = vrot.lane.b32.xlu0 %v3858, 10
      %v4550 = vpop.permute.xlu0 %4549
      %4551 = vrot.lane.b32.xlu0 %v3859, 10
      %v4552 = vpop.permute.xlu0 %4551
      %4553 = vrot.lane.b32.xlu0 %v3860, 10
      %v4554 = vpop.permute.xlu0 %4553
      %4555 = vrot.lane.b32.xlu0 %v3861, 10
      %v4556 = vpop.permute.xlu0 %4555
      %4557 = vrot.lane.b32.xlu0 %v3862, 10
      %v4558 = vpop.permute.xlu0 %4557
      %4559 = vrot.lane.b32.xlu0 %v3863, 10
      %v4560 = vpop.permute.xlu0 %4559
      %4561 = vrot.lane.b32.xlu0 %v3864, 10
      %v4562 = vpop.permute.xlu0 %4561
      %4563 = vrot.lane.b32.xlu0 %v3865, 10
      %v4564 = vpop.permute.xlu0 %4563
      %4565 = vrot.lane.b32.xlu0 %v3866, 10
      %v4566 = vpop.permute.xlu0 %4565
      %4567 = vrot.lane.b32.xlu0 %v3867, 10
      %v4568 = vpop.permute.xlu0 %4567
      %4569 = vrot.lane.b32.xlu0 %v3868, 10
      %v4570 = vpop.permute.xlu0 %4569
      %4571 = vrot.lane.b32.xlu0 %v3869, 10
      %v4572 = vpop.permute.xlu0 %4571
      %4573 = vrot.lane.b32.xlu0 %v3870, 10
      %v4574 = vpop.permute.xlu0 %4573
      %4575 = vrot.lane.b32.xlu0 %v3871, 10
      %v4576 = vpop.permute.xlu0 %4575
      %4641 = vrot.lane.b32.xlu0 %v3873, 12
      %v4642 = vpop.permute.xlu0 %4641
      %4643 = vrot.lane.b32.xlu0 %v3874, 12
      %v4644 = vpop.permute.xlu0 %4643
      %4645 = vrot.lane.b32.xlu0 %v3875, 12
      %v4646 = vpop.permute.xlu0 %4645
      %4647 = vrot.lane.b32.xlu0 %v3876, 12
      %v4648 = vpop.permute.xlu0 %4647
      %4649 = vrot.lane.b32.xlu0 %v3877, 12
      %v4650 = vpop.permute.xlu0 %4649
      %4651 = vrot.lane.b32.xlu0 %v3878, 12
      %v4652 = vpop.permute.xlu0 %4651
      %4653 = vrot.lane.b32.xlu0 %v3879, 12
      %v4654 = vpop.permute.xlu0 %4653
      %4655 = vrot.lane.b32.xlu0 %v3880, 12
      %v4656 = vpop.permute.xlu0 %4655
      %4657 = vrot.lane.b32.xlu0 %v3881, 12
      %v4658 = vpop.permute.xlu0 %4657
      %4659 = vrot.lane.b32.xlu0 %v3882, 12
      %v4660 = vpop.permute.xlu0 %4659
      %4661 = vrot.lane.b32.xlu0 %v3883, 12
      %v4662 = vpop.permute.xlu0 %4661
      %4663 = vrot.lane.b32.xlu0 %v3884, 12
      %v4664 = vpop.permute.xlu0 %4663
      %4665 = vrot.lane.b32.xlu0 %v3885, 12
      %v4666 = vpop.permute.xlu0 %4665
      %4667 = vrot.lane.b32.xlu0 %v3886, 12
      %v4668 = vpop.permute.xlu0 %4667
      %4669 = vrot.lane.b32.xlu0 %v3887, 12
      %v4670 = vpop.permute.xlu0 %4669
      %4671 = vrot.lane.b32.xlu0 %v3888, 12
      %v4672 = vpop.permute.xlu0 %4671
      %4673 = vrot.lane.b32.xlu0 %v3889, 12
      %v4674 = vpop.permute.xlu0 %4673
      %4675 = vrot.lane.b32.xlu0 %v3890, 12
      %v4676 = vpop.permute.xlu0 %4675
      %4677 = vrot.lane.b32.xlu0 %v3891, 12
      %v4678 = vpop.permute.xlu0 %4677
      %4679 = vrot.lane.b32.xlu0 %v3892, 12
      %v4680 = vpop.permute.xlu0 %4679
      %4681 = vrot.lane.b32.xlu0 %v3893, 12
      %v4682 = vpop.permute.xlu0 %4681
      %4683 = vrot.lane.b32.xlu0 %v3894, 12
      %v4684 = vpop.permute.xlu0 %4683
      %4685 = vrot.lane.b32.xlu0 %v3895, 12
      %v4686 = vpop.permute.xlu0 %4685
      %4687 = vrot.lane.b32.xlu0 %v3896, 12
      %v4688 = vpop.permute.xlu0 %4687
      %4689 = vrot.lane.b32.xlu0 %v3897, 12
      %v4690 = vpop.permute.xlu0 %4689
      %4691 = vrot.lane.b32.xlu0 %v3898, 12
      %v4692 = vpop.permute.xlu0 %4691
      %4693 = vrot.lane.b32.xlu0 %v3899, 12
      %v4694 = vpop.permute.xlu0 %4693
      %4695 = vrot.lane.b32.xlu0 %v3900, 12
      %v4696 = vpop.permute.xlu0 %4695
      %4697 = vrot.lane.b32.xlu0 %v3901, 12
      %v4698 = vpop.permute.xlu0 %4697
      %4699 = vrot.lane.b32.xlu0 %v3902, 12
      %v4700 = vpop.permute.xlu0 %4699
      %4701 = vrot.lane.b32.xlu0 %v3903, 12
      %v4702 = vpop.permute.xlu0 %4701
      %4703 = vrot.lane.b32.xlu0 %v3904, 12
      %v4704 = vpop.permute.xlu0 %4703
      %4769 = vrot.lane.b32.xlu0 %v3905, 14
      %v4770 = vpop.permute.xlu0 %4769
      %4771 = vrot.lane.b32.xlu0 %v3906, 14
      %v4772 = vpop.permute.xlu0 %4771
      %4773 = vrot.lane.b32.xlu0 %v3907, 14
      %v4774 = vpop.permute.xlu0 %4773
      %4775 = vrot.lane.b32.xlu0 %v3908, 14
      %v4776 = vpop.permute.xlu0 %4775
      %4777 = vrot.lane.b32.xlu0 %v3909, 14
      %v4778 = vpop.permute.xlu0 %4777
      %4779 = vrot.lane.b32.xlu0 %v3910, 14
      %v4780 = vpop.permute.xlu0 %4779
      %4781 = vrot.lane.b32.xlu0 %v3911, 14
      %v4782 = vpop.permute.xlu0 %4781
      %4783 = vrot.lane.b32.xlu0 %v3912, 14
      %v4784 = vpop.permute.xlu0 %4783
      %4785 = vrot.lane.b32.xlu0 %v3913, 14
      %v4786 = vpop.permute.xlu0 %4785
      %4787 = vrot.lane.b32.xlu0 %v3914, 14
      %v4788 = vpop.permute.xlu0 %4787
      %4789 = vrot.lane.b32.xlu0 %v3915, 14
      %v4790 = vpop.permute.xlu0 %4789
      %4791 = vrot.lane.b32.xlu0 %v3916, 14
      %v4792 = vpop.permute.xlu0 %4791
      %4793 = vrot.lane.b32.xlu0 %v3917, 14
      %v4794 = vpop.permute.xlu0 %4793
      %4795 = vrot.lane.b32.xlu0 %v3918, 14
      %v4796 = vpop.permute.xlu0 %4795
      %4797 = vrot.lane.b32.xlu0 %v3919, 14
      %v4798 = vpop.permute.xlu0 %4797
      %4799 = vrot.lane.b32.xlu0 %v3920, 14
      %v4800 = vpop.permute.xlu0 %4799
      %4801 = vrot.lane.b32.xlu0 %v3921, 14
      %v4802 = vpop.permute.xlu0 %4801
      %4803 = vrot.lane.b32.xlu0 %v3922, 14
      %v4804 = vpop.permute.xlu0 %4803
      %4805 = vrot.lane.b32.xlu0 %v3923, 14
      %v4806 = vpop.permute.xlu0 %4805
      %4807 = vrot.lane.b32.xlu0 %v3924, 14
      %v4808 = vpop.permute.xlu0 %4807
      %4809 = vrot.lane.b32.xlu0 %v3925, 14
      %v4810 = vpop.permute.xlu0 %4809
      %4811 = vrot.lane.b32.xlu0 %v3926, 14
      %v4812 = vpop.permute.xlu0 %4811
      %4813 = vrot.lane.b32.xlu0 %v3927, 14
      %v4814 = vpop.permute.xlu0 %4813
      %4815 = vrot.lane.b32.xlu0 %v3928, 14
      %v4816 = vpop.permute.xlu0 %4815
      %4817 = vrot.lane.b32.xlu0 %v3929, 14
      %v4818 = vpop.permute.xlu0 %4817
      %4819 = vrot.lane.b32.xlu0 %v3930, 14
      %v4820 = vpop.permute.xlu0 %4819
      %4821 = vrot.lane.b32.xlu0 %v3931, 14
      %v4822 = vpop.permute.xlu0 %4821
      %4823 = vrot.lane.b32.xlu0 %v3932, 14
      %v4824 = vpop.permute.xlu0 %4823
      %4825 = vrot.lane.b32.xlu0 %v3933, 14
      %v4826 = vpop.permute.xlu0 %4825
      %4827 = vrot.lane.b32.xlu0 %v3934, 14
      %v4828 = vpop.permute.xlu0 %4827
      %4829 = vrot.lane.b32.xlu0 %v3935, 14
      %v4830 = vpop.permute.xlu0 %4829
      %4831 = vrot.lane.b32.xlu0 %v3936, 14
      %v4832 = vpop.permute.xlu0 %4831
      %4897 = vrot.lane.b32.xlu0 %v3937, 16
      %v4898 = vpop.permute.xlu0 %4897
      %4899 = vrot.lane.b32.xlu0 %v3938, 16
      %v4900 = vpop.permute.xlu0 %4899
      %4901 = vrot.lane.b32.xlu0 %v3939, 16
      %v4902 = vpop.permute.xlu0 %4901
      %4903 = vrot.lane.b32.xlu0 %v3940, 16
      %v4904 = vpop.permute.xlu0 %4903
      %4905 = vrot.lane.b32.xlu0 %v3941, 16
      %v4906 = vpop.permute.xlu0 %4905
      %4907 = vrot.lane.b32.xlu0 %v3942, 16
      %v4908 = vpop.permute.xlu0 %4907
      %4909 = vrot.lane.b32.xlu0 %v3943, 16
      %v4910 = vpop.permute.xlu0 %4909
      %4911 = vrot.lane.b32.xlu0 %v3944, 16
      %v4912 = vpop.permute.xlu0 %4911
      %4913 = vrot.lane.b32.xlu0 %v3945, 16
      %v4914 = vpop.permute.xlu0 %4913
      %4915 = vrot.lane.b32.xlu0 %v3946, 16
      %v4916 = vpop.permute.xlu0 %4915
      %4917 = vrot.lane.b32.xlu0 %v3947, 16
      %v4918 = vpop.permute.xlu0 %4917
      %4919 = vrot.lane.b32.xlu0 %v3948, 16
      %v4920 = vpop.permute.xlu0 %4919
      %4921 = vrot.lane.b32.xlu0 %v3949, 16
      %v4922 = vpop.permute.xlu0 %4921
      %4923 = vrot.lane.b32.xlu0 %v3950, 16
      %v4924 = vpop.permute.xlu0 %4923
      %4925 = vrot.lane.b32.xlu0 %v3951, 16
      %v4926 = vpop.permute.xlu0 %4925
      %4927 = vrot.lane.b32.xlu0 %v3952, 16
      %v4928 = vpop.permute.xlu0 %4927
      %4929 = vrot.lane.b32.xlu0 %v3953, 16
      %v4930 = vpop.permute.xlu0 %4929
      %4931 = vrot.lane.b32.xlu0 %v3954, 16
      %v4932 = vpop.permute.xlu0 %4931
      %4933 = vrot.lane.b32.xlu0 %v3955, 16
      %v4934 = vpop.permute.xlu0 %4933
      %4935 = vrot.lane.b32.xlu0 %v3956, 16
      %v4936 = vpop.permute.xlu0 %4935
      %4937 = vrot.lane.b32.xlu0 %v3957, 16
      %v4938 = vpop.permute.xlu0 %4937
      %4939 = vrot.lane.b32.xlu0 %v3958, 16
      %v4940 = vpop.permute.xlu0 %4939
      %4941 = vrot.lane.b32.xlu0 %v3959, 16
      %v4942 = vpop.permute.xlu0 %4941
      %4943 = vrot.lane.b32.xlu0 %v3960, 16
      %v4944 = vpop.permute.xlu0 %4943
      %4945 = vrot.lane.b32.xlu0 %v3961, 16
      %v4946 = vpop.permute.xlu0 %4945
      %4947 = vrot.lane.b32.xlu0 %v3962, 16
      %v4948 = vpop.permute.xlu0 %4947
      %4949 = vrot.lane.b32.xlu0 %v3963, 16
      %v4950 = vpop.permute.xlu0 %4949
      %4951 = vrot.lane.b32.xlu0 %v3964, 16
      %v4952 = vpop.permute.xlu0 %4951
      %4953 = vrot.lane.b32.xlu0 %v3965, 16
      %v4954 = vpop.permute.xlu0 %4953
      %4955 = vrot.lane.b32.xlu0 %v3966, 16
      %v4956 = vpop.permute.xlu0 %4955
      %4957 = vrot.lane.b32.xlu0 %v3967, 16
      %v4958 = vpop.permute.xlu0 %4957
      %4959 = vrot.lane.b32.xlu0 %v3968, 16
      %v4960 = vpop.permute.xlu0 %4959
      %v4993 = vsel %vm794, %v3680, %v4002
      %v4994 = vsel %vm794, %v3681, %v4004
      %v4995 = vsel %vm794, %v3682, %v4006
      %v4996 = vsel %vm794, %v3683, %v4008
      %v4997 = vsel %vm794, %v3684, %v4010
      %v4998 = vsel %vm794, %v3685, %v4012
      %v4999 = vsel %vm794, %v3686, %v4014
      %v5000 = vsel %vm794, %v3687, %v4016
      %v5001 = vsel %vm794, %v3688, %v4018
      %v5002 = vsel %vm794, %v3689, %v4020
      %v5003 = vsel %vm794, %v3690, %v4022
      %v5004 = vsel %vm794, %v3691, %v4024
      %v5005 = vsel %vm794, %v3692, %v4026
      %v5006 = vsel %vm794, %v3693, %v4028
      %v5007 = vsel %vm794, %v3694, %v4030
      %v5008 = vsel %vm794, %v3695, %v4032
      %v5009 = vsel %vm794, %v3696, %v4034
      %v5010 = vsel %vm794, %v3697, %v4036
      %v5011 = vsel %vm794, %v3698, %v4038
      %v5012 = vsel %vm794, %v3699, %v4040
      %v5013 = vsel %vm794, %v3700, %v4042
      %v5014 = vsel %vm794, %v3701, %v4044
      %v5015 = vsel %vm794, %v3702, %v4046
      %v5016 = vsel %vm794, %v3703, %v4048
      %v5017 = vsel %vm794, %v3704, %v4050
      %v5018 = vsel %vm794, %v3705, %v4052
      %v5019 = vsel %vm794, %v3706, %v4054
      %v5020 = vsel %vm794, %v3707, %v4056
      %v5021 = vsel %vm794, %v3708, %v4058
      %v5022 = vsel %vm794, %v3709, %v4060
      %v5023 = vsel %vm794, %v3710, %v4062
      %v5024 = vsel %vm794, %v3711, %v4064
      %v5025 = vsel %vm3010, %v4993, %v4130
      %v5026 = vsel %vm3010, %v4994, %v4132
      %v5027 = vsel %vm3010, %v4995, %v4134
      %v5028 = vsel %vm3010, %v4996, %v4136
      %v5029 = vsel %vm3010, %v4997, %v4138
      %v5030 = vsel %vm3010, %v4998, %v4140
      %v5031 = vsel %vm3010, %v4999, %v4142
      %v5032 = vsel %vm3010, %v5000, %v4144
      %v5033 = vsel %vm3010, %v5001, %v4146
      %v5034 = vsel %vm3010, %v5002, %v4148
      %v5035 = vsel %vm3010, %v5003, %v4150
      %v5036 = vsel %vm3010, %v5004, %v4152
      %v5037 = vsel %vm3010, %v5005, %v4154
      %v5038 = vsel %vm3010, %v5006, %v4156
      %v5039 = vsel %vm3010, %v5007, %v4158
      %v5040 = vsel %vm3010, %v5008, %v4160
      %v5041 = vsel %vm3010, %v5009, %v4162
      %v5042 = vsel %vm3010, %v5010, %v4164
      %v5043 = vsel %vm3010, %v5011, %v4166
      %v5044 = vsel %vm3010, %v5012, %v4168
      %v5045 = vsel %vm3010, %v5013, %v4170
      %v5046 = vsel %vm3010, %v5014, %v4172
      %v5047 = vsel %vm3010, %v5015, %v4174
      %v5048 = vsel %vm3010, %v5016, %v4176
      %v5049 = vsel %vm3010, %v5017, %v4178
      %v5050 = vsel %vm3010, %v5018, %v4180
      %v5051 = vsel %vm3010, %v5019, %v4182
      %v5052 = vsel %vm3010, %v5020, %v4184
      %v5053 = vsel %vm3010, %v5021, %v4186
      %v5054 = vsel %vm3010, %v5022, %v4188
      %v5055 = vsel %vm3010, %v5023, %v4190
      %v5056 = vsel %vm3010, %v5024, %v4192
      %v5057 = vsel %vm3043, %v5025, %v4258
      %v5058 = vsel %vm3043, %v5026, %v4260
      %v5059 = vsel %vm3043, %v5027, %v4262
      %v5060 = vsel %vm3043, %v5028, %v4264
      %v5061 = vsel %vm3043, %v5029, %v4266
      %v5062 = vsel %vm3043, %v5030, %v4268
      %v5063 = vsel %vm3043, %v5031, %v4270
      %v5064 = vsel %vm3043, %v5032, %v4272
      %v5065 = vsel %vm3043, %v5033, %v4274
      %v5066 = vsel %vm3043, %v5034, %v4276
      %v5067 = vsel %vm3043, %v5035, %v4278
      %v5068 = vsel %vm3043, %v5036, %v4280
      %v5069 = vsel %vm3043, %v5037, %v4282
      %v5070 = vsel %vm3043, %v5038, %v4284
      %v5071 = vsel %vm3043, %v5039, %v4286
      %v5072 = vsel %vm3043, %v5040, %v4288
      %v5073 = vsel %vm3043, %v5041, %v4290
      %v5074 = vsel %vm3043, %v5042, %v4292
      %v5075 = vsel %vm3043, %v5043, %v4294
      %v5076 = vsel %vm3043, %v5044, %v4296
      %v5077 = vsel %vm3043, %v5045, %v4298
      %v5078 = vsel %vm3043, %v5046, %v4300
      %v5079 = vsel %vm3043, %v5047, %v4302
      %v5080 = vsel %vm3043, %v5048, %v4304
      %v5081 = vsel %vm3043, %v5049, %v4306
      %v5082 = vsel %vm3043, %v5050, %v4308
      %v5083 = vsel %vm3043, %v5051, %v4310
      %v5084 = vsel %vm3043, %v5052, %v4312
      %v5085 = vsel %vm3043, %v5053, %v4314
      %v5086 = vsel %vm3043, %v5054, %v4316
      %v5087 = vsel %vm3043, %v5055, %v4318
      %v5088 = vsel %vm3043, %v5056, %v4320
      %v5089 = vsel %vm3076, %v5057, %v4386
      %v5090 = vsel %vm3076, %v5058, %v4388
      %v5091 = vsel %vm3076, %v5059, %v4390
      %v5092 = vsel %vm3076, %v5060, %v4392
      %v5093 = vsel %vm3076, %v5061, %v4394
      %v5094 = vsel %vm3076, %v5062, %v4396
      %v5095 = vsel %vm3076, %v5063, %v4398
      %v5096 = vsel %vm3076, %v5064, %v4400
      %v5097 = vsel %vm3076, %v5065, %v4402
      %v5098 = vsel %vm3076, %v5066, %v4404
      %v5099 = vsel %vm3076, %v5067, %v4406
      %v5100 = vsel %vm3076, %v5068, %v4408
      %v5101 = vsel %vm3076, %v5069, %v4410
      %v5102 = vsel %vm3076, %v5070, %v4412
      %v5103 = vsel %vm3076, %v5071, %v4414
      %v5104 = vsel %vm3076, %v5072, %v4416
      %v5105 = vsel %vm3076, %v5073, %v4418
      %v5106 = vsel %vm3076, %v5074, %v4420
      %v5107 = vsel %vm3076, %v5075, %v4422
      %v5108 = vsel %vm3076, %v5076, %v4424
      %v5109 = vsel %vm3076, %v5077, %v4426
      %v5110 = vsel %vm3076, %v5078, %v4428
      %v5111 = vsel %vm3076, %v5079, %v4430
      %v5112 = vsel %vm3076, %v5080, %v4432
      %v5113 = vsel %vm3076, %v5081, %v4434
      %v5114 = vsel %vm3076, %v5082, %v4436
      %v5115 = vsel %vm3076, %v5083, %v4438
      %v5116 = vsel %vm3076, %v5084, %v4440
      %v5117 = vsel %vm3076, %v5085, %v4442
      %v5118 = vsel %vm3076, %v5086, %v4444
      %v5119 = vsel %vm3076, %v5087, %v4446
      %v5120 = vsel %vm3076, %v5088, %v4448
      %v5121 = vsel %vm3109, %v5089, %v4514
      %v5122 = vsel %vm3109, %v5090, %v4516
      %v5123 = vsel %vm3109, %v5091, %v4518
      %v5124 = vsel %vm3109, %v5092, %v4520
      %v5125 = vsel %vm3109, %v5093, %v4522
      %v5126 = vsel %vm3109, %v5094, %v4524
      %v5127 = vsel %vm3109, %v5095, %v4526
      %v5128 = vsel %vm3109, %v5096, %v4528
      %v5129 = vsel %vm3109, %v5097, %v4530
      %v5130 = vsel %vm3109, %v5098, %v4532
      %v5131 = vsel %vm3109, %v5099, %v4534
      %v5132 = vsel %vm3109, %v5100, %v4536
      %v5133 = vsel %vm3109, %v5101, %v4538
      %v5134 = vsel %vm3109, %v5102, %v4540
      %v5135 = vsel %vm3109, %v5103, %v4542
      %v5136 = vsel %vm3109, %v5104, %v4544
      %v5137 = vsel %vm3109, %v5105, %v4546
      %v5138 = vsel %vm3109, %v5106, %v4548
      %v5139 = vsel %vm3109, %v5107, %v4550
      %v5140 = vsel %vm3109, %v5108, %v4552
      %v5141 = vsel %vm3109, %v5109, %v4554
      %v5142 = vsel %vm3109, %v5110, %v4556
      %v5143 = vsel %vm3109, %v5111, %v4558
      %v5144 = vsel %vm3109, %v5112, %v4560
      %v5145 = vsel %vm3109, %v5113, %v4562
      %v5146 = vsel %vm3109, %v5114, %v4564
      %v5147 = vsel %vm3109, %v5115, %v4566
      %v5148 = vsel %vm3109, %v5116, %v4568
      %v5149 = vsel %vm3109, %v5117, %v4570
      %v5150 = vsel %vm3109, %v5118, %v4572
      %v5151 = vsel %vm3109, %v5119, %v4574
      %v5152 = vsel %vm3109, %v5120, %v4576
      %v5153 = vsel %vm3142, %v5121, %v4642
      %v5154 = vsel %vm3142, %v5122, %v4644
      %v5155 = vsel %vm3142, %v5123, %v4646
      %v5156 = vsel %vm3142, %v5124, %v4648
      %v5157 = vsel %vm3142, %v5125, %v4650
      %v5158 = vsel %vm3142, %v5126, %v4652
      %v5159 = vsel %vm3142, %v5127, %v4654
      %v5160 = vsel %vm3142, %v5128, %v4656
      %v5161 = vsel %vm3142, %v5129, %v4658
      %v5162 = vsel %vm3142, %v5130, %v4660
      %v5163 = vsel %vm3142, %v5131, %v4662
      %v5164 = vsel %vm3142, %v5132, %v4664
      %v5165 = vsel %vm3142, %v5133, %v4666
      %v5166 = vsel %vm3142, %v5134, %v4668
      %v5167 = vsel %vm3142, %v5135, %v4670
      %v5168 = vsel %vm3142, %v5136, %v4672
      %v5169 = vsel %vm3142, %v5137, %v4674
      %v5170 = vsel %vm3142, %v5138, %v4676
      %v5171 = vsel %vm3142, %v5139, %v4678
      %v5172 = vsel %vm3142, %v5140, %v4680
      %v5173 = vsel %vm3142, %v5141, %v4682
      %v5174 = vsel %vm3142, %v5142, %v4684
      %v5175 = vsel %vm3142, %v5143, %v4686
      %v5176 = vsel %vm3142, %v5144, %v4688
      %v5177 = vsel %vm3142, %v5145, %v4690
      %v5178 = vsel %vm3142, %v5146, %v4692
      %v5179 = vsel %vm3142, %v5147, %v4694
      %v5180 = vsel %vm3142, %v5148, %v4696
      %v5181 = vsel %vm3142, %v5149, %v4698
      %v5182 = vsel %vm3142, %v5150, %v4700
      %v5183 = vsel %vm3142, %v5151, %v4702
      %v5184 = vsel %vm3142, %v5152, %v4704
      %v5185 = vsel %vm3175, %v5153, %v4770
      %v5186 = vsel %vm3175, %v5154, %v4772
      %v5187 = vsel %vm3175, %v5155, %v4774
      %v5188 = vsel %vm3175, %v5156, %v4776
      %v5189 = vsel %vm3175, %v5157, %v4778
      %v5190 = vsel %vm3175, %v5158, %v4780
      %v5191 = vsel %vm3175, %v5159, %v4782
      %v5192 = vsel %vm3175, %v5160, %v4784
      %v5193 = vsel %vm3175, %v5161, %v4786
      %v5194 = vsel %vm3175, %v5162, %v4788
      %v5195 = vsel %vm3175, %v5163, %v4790
      %v5196 = vsel %vm3175, %v5164, %v4792
      %v5197 = vsel %vm3175, %v5165, %v4794
      %v5198 = vsel %vm3175, %v5166, %v4796
      %v5199 = vsel %vm3175, %v5167, %v4798
      %v5200 = vsel %vm3175, %v5168, %v4800
      %v5201 = vsel %vm3175, %v5169, %v4802
      %v5202 = vsel %vm3175, %v5170, %v4804
      %v5203 = vsel %vm3175, %v5171, %v4806
      %v5204 = vsel %vm3175, %v5172, %v4808
      %v5205 = vsel %vm3175, %v5173, %v4810
      %v5206 = vsel %vm3175, %v5174, %v4812
      %v5207 = vsel %vm3175, %v5175, %v4814
      %v5208 = vsel %vm3175, %v5176, %v4816
      %v5209 = vsel %vm3175, %v5177, %v4818
      %v5210 = vsel %vm3175, %v5178, %v4820
      %v5211 = vsel %vm3175, %v5179, %v4822
      %v5212 = vsel %vm3175, %v5180, %v4824
      %v5213 = vsel %vm3175, %v5181, %v4826
      %v5214 = vsel %vm3175, %v5182, %v4828
      %v5215 = vsel %vm3175, %v5183, %v4830
      %v5216 = vsel %vm3175, %v5184, %v4832
      %v5217 = vsel %vm394, %v5185, %v4898
      %v5218 = vsel %vm394, %v5186, %v4900
      %v5219 = vsel %vm394, %v5187, %v4902
      %v5220 = vsel %vm394, %v5188, %v4904
      %v5221 = vsel %vm394, %v5189, %v4906
      %v5222 = vsel %vm394, %v5190, %v4908
      %v5223 = vsel %vm394, %v5191, %v4910
      %v5224 = vsel %vm394, %v5192, %v4912
      %v5225 = vsel %vm394, %v5193, %v4914
      %v5226 = vsel %vm394, %v5194, %v4916
      %v5227 = vsel %vm394, %v5195, %v4918
      %v5228 = vsel %vm394, %v5196, %v4920
      %v5229 = vsel %vm394, %v5197, %v4922
      %v5230 = vsel %vm394, %v5198, %v4924
      %v5231 = vsel %vm394, %v5199, %v4926
      %v5232 = vsel %vm394, %v5200, %v4928
      %v5233 = vsel %vm394, %v5201, %v4930
      %v5234 = vsel %vm394, %v5202, %v4932
      %v5235 = vsel %vm394, %v5203, %v4934
      %v5236 = vsel %vm394, %v5204, %v4936
      %v5237 = vsel %vm394, %v5205, %v4938
      %v5238 = vsel %vm394, %v5206, %v4940
      %v5239 = vsel %vm394, %v5207, %v4942
      %v5240 = vsel %vm394, %v5208, %v4944
      %v5241 = vsel %vm394, %v5209, %v4946
      %v5242 = vsel %vm394, %v5210, %v4948
      %v5243 = vsel %vm394, %v5211, %v4950
      %v5244 = vsel %vm394, %v5212, %v4952
      %v5245 = vsel %vm394, %v5213, %v4954
      %v5246 = vsel %vm394, %v5214, %v4956
      %v5247 = vsel %vm394, %v5215, %v4958
      %v5248 = vsel %vm394, %v5216, %v4960
      %s5249 = scalar_lea.vmem %s4, 24
      %v5250 = vld [vmem:[%s5249] sm:$0xff]
      %v5251 = vld [vmem:[%s5249 + $0x8] sm:$0xff]
      %v5252 = vld [vmem:[%s5249 + $0x10] sm:$0x3]
      %v5254 = vsel %vm3243, %v5217, 0
      %v5257 = vsel %vm3243, %v5218, 0
      %v5260 = vsel %vm3243, %v5219, 0
      %v5263 = vsel %vm3243, %v5220, 0
      %v5266 = vsel %vm3243, %v5221, 0
      %v5269 = vsel %vm3243, %v5222, 0
      %v5272 = vsel %vm3243, %v5223, 0
      %v5275 = vsel %vm3243, %v5224, 0
      %v5278 = vsel %vm3243, %v5225, 0
      %v5281 = vsel %vm3243, %v5226, 0
      %v5284 = vsel %vm3243, %v5227, 0
      %v5287 = vsel %vm3243, %v5228, 0
      %v5290 = vsel %vm3243, %v5229, 0
      %v5293 = vsel %vm3243, %v5230, 0
      %v5296 = vsel %vm3243, %v5231, 0
      %v5299 = vsel %vm3243, %v5232, 0
      %v5302 = vsel %vm3243, %v5233, 0
      %v5305 = vsel %vm3243, %v5234, 0
      %v5308 = vsel %vm3243, %v5235, 0
      %v5311 = vsel %vm3243, %v5236, 0
      %v5314 = vsel %vm3243, %v5237, 0
      %v5317 = vsel %vm3243, %v5238, 0
      %v5320 = vsel %vm3243, %v5239, 0
      %v5323 = vsel %vm3243, %v5240, 0
      %v5326 = vsel %vm3243, %v5241, 0
      %v5329 = vsel %vm3243, %v5242, 0
      %v5332 = vsel %vm3243, %v5243, 0
      %v5335 = vsel %vm3243, %v5244, 0
      %v5338 = vsel %vm3243, %v5245, 0
      %v5341 = vsel %vm3243, %v5246, 0
      %v5344 = vsel %vm3243, %v5247, 0
      %v5347 = vsel %vm3243, %v5248, 0
      %v5350 = vsel %vm3340, %v5252, 0
      %5352 = vmatprep.subr.mxu0 0.0
      %5353 = vmatpush1.msra.mxu0 %v5250
      %5354 = vmatprep.subr.mxu0 0.0
      %5355 = vmatpush1.msra.mxu0 %v5251
      %5356 = vmatprep.subr.mxu0 0.0
      %5357 = vmatpush1.msra.mxu0 %v5350
      %5358 = vmatprep.subr.mxu0 0.0
      %5359 = vmatpush1.msra.mxu0 0.0
      %5360 = vmatprep.subr.mxu0 0.0
      %5361 = vmatpush1.msra.mxu0 0.0
      %5362 = vmatprep.subr.mxu0 0.0
      %5363 = vmatpush1.msra.mxu0 0.0
      %5364 = vmatprep.subr.mxu0 0.0
      %5365 = vmatpush1.msra.mxu0 0.0
      %5366 = vmatprep.subr.mxu0 0.0
      %5367 = vmatpush1.msra.mxu0 0.0
      %5368 = vmatprep.subr.mxu0 0.0
      %5369 = vmatpush1.msra.mxu0 0.0
      %5370 = vmatprep.subr.mxu0 0.0
      %5371 = vmatpush1.msra.mxu0 0.0
      %5372 = vmatprep.subr.mxu0 0.0
      %5373 = vmatpush1.msra.mxu0 0.0
      %5374 = vmatprep.subr.mxu0 0.0
      %5375 = vmatpush1.msra.mxu0 0.0
      %5376 = vmatprep.subr.mxu0 0.0
      %5377 = vmatpush1.msra.mxu0 0.0
      %5378 = vmatprep.subr.mxu0 0.0
      %5379 = vmatpush1.msra.mxu0 0.0
      %5380 = vmatprep.subr.mxu0 0.0
      %5381 = vmatpush1.msra.mxu0 0.0
      %5382 = vmatprep.subr.mxu0 0.0
      %5383 = vmatpush1.msra.mxu0 0.0
      %5384 = vmatprep.subr.mxu0 0.0
      %5385 = vmatpush1.msra.mxu0 0.0
      %5386 = vmatprep.subr.mxu0 0.0
      %5387 = vmatpush1.msra.mxu0 0.0
      %5388 = vmatprep.subr.mxu0 0.0
      %5389 = vmatpush1.msra.mxu0 0.0
      %5390 = vmatprep.subr.mxu0 0.0
      %5391 = vmatpush1.msra.mxu0 0.0
      %5392 = vmatprep.subr.mxu0 0.0
      %5393 = vmatpush1.msra.mxu0 0.0
      %5394 = vmatprep.subr.mxu0 0.0
      %5395 = vmatpush1.msra.mxu0 0.0
      %5396 = vmatprep.subr.mxu0 0.0
      %5397 = vmatpush1.msra.mxu0 0.0
      %5398 = vmatprep.subr.mxu0 0.0
      %5399 = vmatpush1.msra.mxu0 0.0
      %5400 = vmatprep.subr.mxu0 0.0
      %5401 = vmatpush1.msra.mxu0 0.0
      %5402 = vmatprep.subr.mxu0 0.0
      %5403 = vmatpush1.msra.mxu0 0.0
      %5404 = vmatprep.subr.mxu0 0.0
      %5405 = vmatpush1.msra.mxu0 0.0
      %5406 = vmatprep.subr.mxu0 0.0
      %5407 = vmatpush1.msra.mxu0 0.0
      %5408 = vmatprep.subr.mxu0 0.0
      %5409 = vmatpush1.msra.mxu0 0.0
      %5410 = vmatprep.subr.mxu0 0.0
      %5411 = vmatpush1.msra.mxu0 0.0
      %5412 = vmatprep.subr.mxu0 0.0
      %5413 = vmatpush1.msra.mxu0 0.0
      %5414 = vmatprep.subr.mxu0 0.0
      %5415 = vmatpush1.msra.mxu0 0.0
      %5416 = vmatprep.mubr.f32.mxu0 0.0
      %5417 = vmatmul.mubr.f32.gmra.mrb[0].mxu0 %v5254
      %v5418 = vpop.f32.mrb[0].mxu0
      %v5419 = vadd.f32 0.0, %v5418
      %v5420 = vpop.f32.mrb[0].mxu0
      %5421 = vmatprep.mubr.f32.mxu0 0.0
      %5422 = vmatmul.mubr.f32.gmra.mrb[0].mxu0 %v5257
      %v5423 = vpop.f32.mrb[0].mxu0
      %v5424 = vadd.f32 0.0, %v5423
      %v5425 = vpop.f32.mrb[0].mxu0
      %5426 = vmatprep.mubr.f32.mxu0 0.0
      %5427 = vmatmul.mubr.f32.gmra.mrb[0].mxu0 %v5260
      %v5428 = vpop.f32.mrb[0].mxu0
      %v5429 = vadd.f32 0.0, %v5428
      %v5430 = vpop.f32.mrb[0].mxu0
      %5431 = vmatprep.mubr.f32.mxu0 0.0
      %5432 = vmatmul.mubr.f32.gmra.mrb[0].mxu0 %v5263
      %v5433 = vpop.f32.mrb[0].mxu0
      %v5434 = vadd.f32 0.0, %v5433
      %v5435 = vpop.f32.mrb[0].mxu0
      %5436 = vmatprep.mubr.f32.mxu0 0.0
      %5437 = vmatmul.mubr.f32.gmra.mrb[0].mxu0 %v5266
      %v5438 = vpop.f32.mrb[0].mxu0
      %v5439 = vadd.f32 0.0, %v5438
      %v5440 = vpop.f32.mrb[0].mxu0
      %5441 = vmatprep.mubr.f32.mxu0 0.0
      %5442 = vmatmul.mubr.f32.gmra.mrb[0].mxu0 %v5269
      %v5443 = vpop.f32.mrb[0].mxu0
      %v5444 = vadd.f32 0.0, %v5443
      %v5445 = vpop.f32.mrb[0].mxu0
      %5446 = vmatprep.mubr.f32.mxu0 0.0
      %5447 = vmatmul.mubr.f32.gmra.mrb[0].mxu0 %v5272
      %v5448 = vpop.f32.mrb[0].mxu0
      %v5449 = vadd.f32 0.0, %v5448
      %v5450 = vpop.f32.mrb[0].mxu0
      %5451 = vmatprep.mubr.f32.mxu0 0.0
      %5452 = vmatmul.mubr.f32.gmra.mrb[0].mxu0 %v5275
      %v5453 = vpop.f32.mrb[0].mxu0
      %v5454 = vadd.f32 0.0, %v5453
      %v5455 = vpop.f32.mrb[0].mxu0
      %5456 = vmatprep.mubr.f32.mxu0 0.0
      %5457 = vmatmul.mubr.f32.gmra.mrb[0].mxu0 %v5278
      %v5458 = vpop.f32.mrb[0].mxu0
      %v5459 = vadd.f32 0.0, %v5458
      %v5460 = vpop.f32.mrb[0].mxu0
      %5461 = vmatprep.mubr.f32.mxu0 0.0
      %5462 = vmatmul.mubr.f32.gmra.mrb[0].mxu0 %v5281
      %v5463 = vpop.f32.mrb[0].mxu0
      %v5464 = vadd.f32 0.0, %v5463
      %v5465 = vpop.f32.mrb[0].mxu0
      %5466 = vmatprep.mubr.f32.mxu0 0.0
      %5467 = vmatmul.mubr.f32.gmra.mrb[0].mxu0 %v5284
      %v5468 = vpop.f32.mrb[0].mxu0
      %v5469 = vadd.f32 0.0, %v5468
      %v5470 = vpop.f32.mrb[0].mxu0
      %5471 = vmatprep.mubr.f32.mxu0 0.0
      %5472 = vmatmul.mubr.f32.gmra.mrb[0].mxu0 %v5287
      %v5473 = vpop.f32.mrb[0].mxu0
      %v5474 = vadd.f32 0.0, %v5473
      %v5475 = vpop.f32.mrb[0].mxu0
      %5476 = vmatprep.mubr.f32.mxu0 0.0
      %5477 = vmatmul.mubr.f32.gmra.mrb[0].mxu0 %v5290
      %v5478 = vpop.f32.mrb[0].mxu0
      %v5479 = vadd.f32 0.0, %v5478
      %v5480 = vpop.f32.mrb[0].mxu0
      %5481 = vmatprep.mubr.f32.mxu0 0.0
      %5482 = vmatmul.mubr.f32.gmra.mrb[0].mxu0 %v5293
      %v5483 = vpop.f32.mrb[0].mxu0
      %v5484 = vadd.f32 0.0, %v5483
      %v5485 = vpop.f32.mrb[0].mxu0
      %5486 = vmatprep.mubr.f32.mxu0 0.0
      %5487 = vmatmul.mubr.f32.gmra.mrb[0].mxu0 %v5296
      %v5488 = vpop.f32.mrb[0].mxu0
      %v5489 = vadd.f32 0.0, %v5488
      %v5490 = vpop.f32.mrb[0].mxu0
      %5491 = vmatprep.mubr.f32.mxu0 0.0
      %5492 = vmatmul.mubr.f32.gmra.mrb[0].mxu0 %v5299
      %v5493 = vpop.f32.mrb[0].mxu0
      %v5494 = vadd.f32 0.0, %v5493
      %v5495 = vpop.f32.mrb[0].mxu0
      %5496 = vmatprep.mubr.f32.mxu0 0.0
      %5497 = vmatmul.mubr.f32.gmra.mrb[0].mxu0 %v5302
      %v5498 = vpop.f32.mrb[0].mxu0
      %v5499 = vadd.f32 0.0, %v5498
      %v5500 = vpop.f32.mrb[0].mxu0
      %5501 = vmatprep.mubr.f32.mxu0 0.0
      %5502 = vmatmul.mubr.f32.gmra.mrb[0].mxu0 %v5305
      %v5503 = vpop.f32.mrb[0].mxu0
      %v5504 = vadd.f32 0.0, %v5503
      %v5505 = vpop.f32.mrb[0].mxu0
      %5506 = vmatprep.mubr.f32.mxu0 0.0
      %5507 = vmatmul.mubr.f32.gmra.mrb[0].mxu0 %v5308
      %v5508 = vpop.f32.mrb[0].mxu0
      %v5509 = vadd.f32 0.0, %v5508
      %v5510 = vpop.f32.mrb[0].mxu0
      %5511 = vmatprep.mubr.f32.mxu0 0.0
      %5512 = vmatmul.mubr.f32.gmra.mrb[0].mxu0 %v5311
      %v5513 = vpop.f32.mrb[0].mxu0
      %v5514 = vadd.f32 0.0, %v5513
      %v5515 = vpop.f32.mrb[0].mxu0
      %5516 = vmatprep.mubr.f32.mxu0 0.0
      %5517 = vmatmul.mubr.f32.gmra.mrb[0].mxu0 %v5314
      %v5518 = vpop.f32.mrb[0].mxu0
      %v5519 = vadd.f32 0.0, %v5518
      %v5520 = vpop.f32.mrb[0].mxu0
      %5521 = vmatprep.mubr.f32.mxu0 0.0
      %5522 = vmatmul.mubr.f32.gmra.mrb[0].mxu0 %v5317
      %v5523 = vpop.f32.mrb[0].mxu0
      %v5524 = vadd.f32 0.0, %v5523
      %v5525 = vpop.f32.mrb[0].mxu0
      %5526 = vmatprep.mubr.f32.mxu0 0.0
      %5527 = vmatmul.mubr.f32.gmra.mrb[0].mxu0 %v5320
      %v5528 = vpop.f32.mrb[0].mxu0
      %v5529 = vadd.f32 0.0, %v5528
      %v5530 = vpop.f32.mrb[0].mxu0
      %5531 = vmatprep.mubr.f32.mxu0 0.0
      %5532 = vmatmul.mubr.f32.gmra.mrb[0].mxu0 %v5323
      %v5533 = vpop.f32.mrb[0].mxu0
      %v5534 = vadd.f32 0.0, %v5533
      %v5535 = vpop.f32.mrb[0].mxu0
      %5536 = vmatprep.mubr.f32.mxu0 0.0
      %5537 = vmatmul.mubr.f32.gmra.mrb[0].mxu0 %v5326
      %v5538 = vpop.f32.mrb[0].mxu0
      %v5539 = vadd.f32 0.0, %v5538
      %v5540 = vpop.f32.mrb[0].mxu0
      %5541 = vmatprep.mubr.f32.mxu0 0.0
      %5542 = vmatmul.mubr.f32.gmra.mrb[0].mxu0 %v5329
      %v5543 = vpop.f32.mrb[0].mxu0
      %v5544 = vadd.f32 0.0, %v5543
      %v5545 = vpop.f32.mrb[0].mxu0
      %5546 = vmatprep.mubr.f32.mxu0 0.0
      %5547 = vmatmul.mubr.f32.gmra.mrb[0].mxu0 %v5332
      %v5548 = vpop.f32.mrb[0].mxu0
      %v5549 = vadd.f32 0.0, %v5548
      %v5550 = vpop.f32.mrb[0].mxu0
      %5551 = vmatprep.mubr.f32.mxu0 0.0
      %5552 = vmatmul.mubr.f32.gmra.mrb[0].mxu0 %v5335
      %v5553 = vpop.f32.mrb[0].mxu0
      %v5554 = vadd.f32 0.0, %v5553
      %v5555 = vpop.f32.mrb[0].mxu0
      %5556 = vmatprep.mubr.f32.mxu0 0.0
      %5557 = vmatmul.mubr.f32.gmra.mrb[0].mxu0 %v5338
      %v5558 = vpop.f32.mrb[0].mxu0
      %v5559 = vadd.f32 0.0, %v5558
      %v5560 = vpop.f32.mrb[0].mxu0
      %5561 = vmatprep.mubr.f32.mxu0 0.0
      %5562 = vmatmul.mubr.f32.gmra.mrb[0].mxu0 %v5341
      %v5563 = vpop.f32.mrb[0].mxu0
      %v5564 = vadd.f32 0.0, %v5563
      %v5565 = vpop.f32.mrb[0].mxu0
      %5566 = vmatprep.mubr.f32.mxu0 0.0
      %5567 = vmatmul.mubr.f32.gmra.mrb[0].mxu0 %v5344
      %v5568 = vpop.f32.mrb[0].mxu0
      %v5569 = vadd.f32 0.0, %v5568
      %v5570 = vpop.f32.mrb[0].mxu0
      %5571 = vmatprep.mubr.f32.mxu0 0.0
      %5572 = vmatmul.mubr.f32.gmra.mrb[0].mxu0 %v5347
      %v5573 = vpop.f32.mrb[0].mxu0
      %v5574 = vadd.f32 0.0, %v5573
      %v5575 = vpop.f32.mrb[0].mxu0
      %5576 = vdwg.mxu0
      %s5577 = scalar_lea.vmem %s5, 1
      %v5578 = vld [vmem:[%s5577] sm:$0x1]
      %v5580 = vlaneseq
      %v5581 = vshrl.u32 %v5580, 7
      %v5582 = vsub.s32 0, %v5581
      %v5583 = vrot.slane %v5578, %v5582
      %v5585 = vmul.f32 %v5419, %v5583
      %v5586 = vmul.f32 %v5424, %v5583
      %v5587 = vmul.f32 %v5429, %v5583
      %v5588 = vmul.f32 %v5434, %v5583
      %v5589 = vmul.f32 %v5439, %v5583
      %v5590 = vmul.f32 %v5444, %v5583
      %v5591 = vmul.f32 %v5449, %v5583
      %v5592 = vmul.f32 %v5454, %v5583
      %v5593 = vmul.f32 %v5459, %v5583
      %v5594 = vmul.f32 %v5464, %v5583
      %v5595 = vmul.f32 %v5469, %v5583
      %v5596 = vmul.f32 %v5474, %v5583
      %v5597 = vmul.f32 %v5479, %v5583
      %v5598 = vmul.f32 %v5484, %v5583
      %v5599 = vmul.f32 %v5489, %v5583
      %v5600 = vmul.f32 %v5494, %v5583
      %v5601 = vmul.f32 %v5499, %v5583
      %v5602 = vmul.f32 %v5504, %v5583
      %v5603 = vmul.f32 %v5509, %v5583
      %v5604 = vmul.f32 %v5514, %v5583
      %v5605 = vmul.f32 %v5519, %v5583
      %v5606 = vmul.f32 %v5524, %v5583
      %v5607 = vmul.f32 %v5529, %v5583
      %v5608 = vmul.f32 %v5534, %v5583
      %v5609 = vmul.f32 %v5539, %v5583
      %v5610 = vmul.f32 %v5544, %v5583
      %v5611 = vmul.f32 %v5549, %v5583
      %v5612 = vmul.f32 %v5554, %v5583
      %v5613 = vmul.f32 %v5559, %v5583
      %v5614 = vmul.f32 %v5564, %v5583
      %v5615 = vmul.f32 %v5569, %v5583
      %v5616 = vmul.f32 %v5574, %v5583
      %s5617 = scalar_lea.vmem %s6, 1
      %v5618 = vld [vmem:[%s5617] sm:$0x1]
      %v5620 = vlaneseq
      %v5621 = vshrl.u32 %v5620, 7
      %v5622 = vsub.s32 0, %v5621
      %v5623 = vrot.slane %v5618, %v5622
      %v5625 = vadd.f32 %v5585, %v5623
      %v5626 = vadd.f32 %v5586, %v5623
      %v5627 = vadd.f32 %v5587, %v5623
      %v5628 = vadd.f32 %v5588, %v5623
      %v5629 = vadd.f32 %v5589, %v5623
      %v5630 = vadd.f32 %v5590, %v5623
      %v5631 = vadd.f32 %v5591, %v5623
      %v5632 = vadd.f32 %v5592, %v5623
      %v5633 = vadd.f32 %v5593, %v5623
      %v5634 = vadd.f32 %v5594, %v5623
      %v5635 = vadd.f32 %v5595, %v5623
      %v5636 = vadd.f32 %v5596, %v5623
      %v5637 = vadd.f32 %v5597, %v5623
      %v5638 = vadd.f32 %v5598, %v5623
      %v5639 = vadd.f32 %v5599, %v5623
      %v5640 = vadd.f32 %v5600, %v5623
      %v5641 = vadd.f32 %v5601, %v5623
      %v5642 = vadd.f32 %v5602, %v5623
      %v5643 = vadd.f32 %v5603, %v5623
      %v5644 = vadd.f32 %v5604, %v5623
      %v5645 = vadd.f32 %v5605, %v5623
      %v5646 = vadd.f32 %v5606, %v5623
      %v5647 = vadd.f32 %v5607, %v5623
      %v5648 = vadd.f32 %v5608, %v5623
      %v5649 = vadd.f32 %v5609, %v5623
      %v5650 = vadd.f32 %v5610, %v5623
      %v5651 = vadd.f32 %v5611, %v5623
      %v5652 = vadd.f32 %v5612, %v5623
      %v5653 = vadd.f32 %v5613, %v5623
      %v5654 = vadd.f32 %v5614, %v5623
      %v5655 = vadd.f32 %v5615, %v5623
      %v5656 = vadd.f32 %v5616, %v5623
      %s5657 = scalar_lea.vmem [#allocation2], 1728
      %v5658 = vld [vmem:[%s5657 + $0x2] sm:$0xff]
      %v5659 = vld [vmem:[%s5657 + $0xa] sm:$0xff]
      %v5660 = vld [vmem:[%s5657 + $0x22] sm:$0xff]
      %v5661 = vld [vmem:[%s5657 + $0x2a] sm:$0xff]
      %v5662 = vld [vmem:[%s5657 + $0x42] sm:$0xff]
      %v5663 = vld [vmem:[%s5657 + $0x4a] sm:$0xff]
      %v5664 = vld [vmem:[%s5657 + $0x62] sm:$0xff]
      %v5665 = vld [vmem:[%s5657 + $0x6a] sm:$0xff]
      %v5666 = vld [vmem:[%s5657 + $0x82] sm:$0xff]
      %v5667 = vld [vmem:[%s5657 + $0x8a] sm:$0xff]
      %v5668 = vld [vmem:[%s5657 + $0xa2] sm:$0xff]
      %v5669 = vld [vmem:[%s5657 + $0xaa] sm:$0xff]
      %v5670 = vld [vmem:[%s5657 + $0xc2] sm:$0xff]
      %v5671 = vld [vmem:[%s5657 + $0xca] sm:$0xff]
      %v5672 = vld [vmem:[%s5657 + $0xe2] sm:$0xff]
      %v5673 = vld [vmem:[%s5657 + $0xea] sm:$0xff]
      %v5674 = vld [vmem:[%s5657 + $0x102] sm:$0xff]
      %v5675 = vld [vmem:[%s5657 + $0x10a] sm:$0xff]
      %v5676 = vld [vmem:[%s5657 + $0x122] sm:$0xff]
      %v5677 = vld [vmem:[%s5657 + $0x12a] sm:$0xff]
      %v5678 = vld [vmem:[%s5657 + $0x142] sm:$0xff]
      %v5679 = vld [vmem:[%s5657 + $0x14a] sm:$0xff]
      %v5680 = vld [vmem:[%s5657 + $0x162] sm:$0xff]
      %v5681 = vld [vmem:[%s5657 + $0x16a] sm:$0xff]
      %v5682 = vld [vmem:[%s5657 + $0x182] sm:$0xff]
      %v5683 = vld [vmem:[%s5657 + $0x18a] sm:$0xff]
      %v5684 = vld [vmem:[%s5657 + $0x1a2] sm:$0xff]
      %v5685 = vld [vmem:[%s5657 + $0x1aa] sm:$0xff]
      %v5686 = vld [vmem:[%s5657 + $0x1c2] sm:$0xff]
      %v5687 = vld [vmem:[%s5657 + $0x1ca] sm:$0xff]
      %v5688 = vld [vmem:[%s5657 + $0x1e2] sm:$0xff]
      %v5689 = vld [vmem:[%s5657 + $0x1ea] sm:$0xff]
      %v5690 = vld [vmem:[%s5657 + $0x5] sm:$0xff]
      %v5691 = vld [vmem:[%s5657 + $0xd] sm:$0xff]
      %v5692 = vld [vmem:[%s5657 + $0x25] sm:$0xff]
      %v5693 = vld [vmem:[%s5657 + $0x2d] sm:$0xff]
      %v5694 = vld [vmem:[%s5657 + $0x45] sm:$0xff]
      %v5695 = vld [vmem:[%s5657 + $0x4d] sm:$0xff]
      %v5696 = vld [vmem:[%s5657 + $0x65] sm:$0xff]
      %v5697 = vld [vmem:[%s5657 + $0x6d] sm:$0xff]
      %v5698 = vld [vmem:[%s5657 + $0x85] sm:$0xff]
      %v5699 = vld [vmem:[%s5657 + $0x8d] sm:$0xff]
      %v5700 = vld [vmem:[%s5657 + $0xa5] sm:$0xff]
      %v5701 = vld [vmem:[%s5657 + $0xad] sm:$0xff]
      %v5702 = vld [vmem:[%s5657 + $0xc5] sm:$0xff]
      %v5703 = vld [vmem:[%s5657 + $0xcd] sm:$0xff]
      %v5704 = vld [vmem:[%s5657 + $0xe5] sm:$0xff]
      %v5705 = vld [vmem:[%s5657 + $0xed] sm:$0xff]
      %v5706 = vld [vmem:[%s5657 + $0x105] sm:$0xff]
      %v5707 = vld [vmem:[%s5657 + $0x10d] sm:$0xff]
      %v5708 = vld [vmem:[%s5657 + $0x125] sm:$0xff]
      %v5709 = vld [vmem:[%s5657 + $0x12d] sm:$0xff]
      %v5710 = vld [vmem:[%s5657 + $0x145] sm:$0xff]
      %v5711 = vld [vmem:[%s5657 + $0x14d] sm:$0xff]
      %v5712 = vld [vmem:[%s5657 + $0x165] sm:$0xff]
      %v5713 = vld [vmem:[%s5657 + $0x16d] sm:$0xff]
      %v5714 = vld [vmem:[%s5657 + $0x185] sm:$0xff]
      %v5715 = vld [vmem:[%s5657 + $0x18d] sm:$0xff]
      %v5716 = vld [vmem:[%s5657 + $0x1a5] sm:$0xff]
      %v5717 = vld [vmem:[%s5657 + $0x1ad] sm:$0xff]
      %v5718 = vld [vmem:[%s5657 + $0x1c5] sm:$0xff]
      %v5719 = vld [vmem:[%s5657 + $0x1cd] sm:$0xff]
      %v5720 = vld [vmem:[%s5657 + $0x1e5] sm:$0xff]
      %v5721 = vld [vmem:[%s5657 + $0x1ed] sm:$0xff]
      %v5722 = vld [vmem:[%s5657 + $0x8] sm:$0xff]
      %v5723 = vld [vmem:[%s5657 + $0x10] sm:$0xff]
      %v5724 = vld [vmem:[%s5657 + $0x28] sm:$0xff]
      %v5725 = vld [vmem:[%s5657 + $0x30] sm:$0xff]
      %v5726 = vld [vmem:[%s5657 + $0x48] sm:$0xff]
      %v5727 = vld [vmem:[%s5657 + $0x50] sm:$0xff]
      %v5728 = vld [vmem:[%s5657 + $0x68] sm:$0xff]
      %v5729 = vld [vmem:[%s5657 + $0x70] sm:$0xff]
      %v5730 = vld [vmem:[%s5657 + $0x88] sm:$0xff]
      %v5731 = vld [vmem:[%s5657 + $0x90] sm:$0xff]
      %v5732 = vld [vmem:[%s5657 + $0xa8] sm:$0xff]
      %v5733 = vld [vmem:[%s5657 + $0xb0] sm:$0xff]
      %v5734 = vld [vmem:[%s5657 + $0xc8] sm:$0xff]
      %v5735 = vld [vmem:[%s5657 + $0xd0] sm:$0xff]
      %v5736 = vld [vmem:[%s5657 + $0xe8] sm:$0xff]
      %v5737 = vld [vmem:[%s5657 + $0xf0] sm:$0xff]
      %v5738 = vld [vmem:[%s5657 + $0x108] sm:$0xff]
      %v5739 = vld [vmem:[%s5657 + $0x110] sm:$0xff]
      %v5740 = vld [vmem:[%s5657 + $0x128] sm:$0xff]
      %v5741 = vld [vmem:[%s5657 + $0x130] sm:$0xff]
      %v5742 = vld [vmem:[%s5657 + $0x148] sm:$0xff]
      %v5743 = vld [vmem:[%s5657 + $0x150] sm:$0xff]
      %v5744 = vld [vmem:[%s5657 + $0x168] sm:$0xff]
      %v5745 = vld [vmem:[%s5657 + $0x170] sm:$0xff]
      %v5746 = vld [vmem:[%s5657 + $0x188] sm:$0xff]
      %v5747 = vld [vmem:[%s5657 + $0x190] sm:$0xff]
      %v5748 = vld [vmem:[%s5657 + $0x1a8] sm:$0xff]
      %v5749 = vld [vmem:[%s5657 + $0x1b0] sm:$0xff]
      %v5750 = vld [vmem:[%s5657 + $0x1c8] sm:$0xff]
      %v5751 = vld [vmem:[%s5657 + $0x1d0] sm:$0xff]
      %v5752 = vld [vmem:[%s5657 + $0x1e8] sm:$0xff]
      %v5753 = vld [vmem:[%s5657 + $0x1f0] sm:$0xff]
      %v5754 = vld [vmem:[%s1502 + $0x2] sm:$0xff]
      %v5755 = vld [vmem:[%s1502 + $0xa] sm:$0xff]
      %v5756 = vld [vmem:[%s1502 + $0x22] sm:$0xff]
      %v5757 = vld [vmem:[%s1502 + $0x2a] sm:$0xff]
      %v5758 = vld [vmem:[%s1502 + $0x42] sm:$0xff]
      %v5759 = vld [vmem:[%s1502 + $0x4a] sm:$0xff]
      %v5760 = vld [vmem:[%s1502 + $0x62] sm:$0xff]
      %v5761 = vld [vmem:[%s1502 + $0x6a] sm:$0xff]
      %v5762 = vld [vmem:[%s1502 + $0x82] sm:$0xff]
      %v5763 = vld [vmem:[%s1502 + $0x8a] sm:$0xff]
      %v5764 = vld [vmem:[%s1502 + $0xa2] sm:$0xff]
      %v5765 = vld [vmem:[%s1502 + $0xaa] sm:$0xff]
      %v5766 = vld [vmem:[%s1502 + $0xc2] sm:$0xff]
      %v5767 = vld [vmem:[%s1502 + $0xca] sm:$0xff]
      %v5768 = vld [vmem:[%s1502 + $0xe2] sm:$0xff]
      %v5769 = vld [vmem:[%s1502 + $0xea] sm:$0xff]
      %v5770 = vld [vmem:[%s1502 + $0x102] sm:$0xff]
      %v5771 = vld [vmem:[%s1502 + $0x10a] sm:$0xff]
      %v5772 = vld [vmem:[%s1502 + $0x122] sm:$0xff]
      %v5773 = vld [vmem:[%s1502 + $0x12a] sm:$0xff]
      %v5774 = vld [vmem:[%s1502 + $0x142] sm:$0xff]
      %v5775 = vld [vmem:[%s1502 + $0x14a] sm:$0xff]
      %v5776 = vld [vmem:[%s1502 + $0x162] sm:$0xff]
      %v5777 = vld [vmem:[%s1502 + $0x16a] sm:$0xff]
      %v5778 = vld [vmem:[%s1502 + $0x182] sm:$0xff]
      %v5779 = vld [vmem:[%s1502 + $0x18a] sm:$0xff]
      %v5780 = vld [vmem:[%s1502 + $0x1a2] sm:$0xff]
      %v5781 = vld [vmem:[%s1502 + $0x1aa] sm:$0xff]
      %v5782 = vld [vmem:[%s1502 + $0x1c2] sm:$0xff]
      %v5783 = vld [vmem:[%s1502 + $0x1ca] sm:$0xff]
      %v5784 = vld [vmem:[%s1502 + $0x1e2] sm:$0xff]
      %v5785 = vld [vmem:[%s1502 + $0x1ea] sm:$0xff]
      %v5786 = vld [vmem:[%s1502 + $0x5] sm:$0xff]
      %v5787 = vld [vmem:[%s1502 + $0xd] sm:$0xff]
      %v5788 = vld [vmem:[%s1502 + $0x25] sm:$0xff]
      %v5789 = vld [vmem:[%s1502 + $0x2d] sm:$0xff]
      %v5790 = vld [vmem:[%s1502 + $0x45] sm:$0xff]
      %v5791 = vld [vmem:[%s1502 + $0x4d] sm:$0xff]
      %v5792 = vld [vmem:[%s1502 + $0x65] sm:$0xff]
      %v5793 = vld [vmem:[%s1502 + $0x6d] sm:$0xff]
      %v5794 = vld [vmem:[%s1502 + $0x85] sm:$0xff]
      %v5795 = vld [vmem:[%s1502 + $0x8d] sm:$0xff]
      %v5796 = vld [vmem:[%s1502 + $0xa5] sm:$0xff]
      %v5797 = vld [vmem:[%s1502 + $0xad] sm:$0xff]
      %v5798 = vld [vmem:[%s1502 + $0xc5] sm:$0xff]
      %v5799 = vld [vmem:[%s1502 + $0xcd] sm:$0xff]
      %v5800 = vld [vmem:[%s1502 + $0xe5] sm:$0xff]
      %v5801 = vld [vmem:[%s1502 + $0xed] sm:$0xff]
      %v5802 = vld [vmem:[%s1502 + $0x105] sm:$0xff]
      %v5803 = vld [vmem:[%s1502 + $0x10d] sm:$0xff]
      %v5804 = vld [vmem:[%s1502 + $0x125] sm:$0xff]
      %v5805 = vld [vmem:[%s1502 + $0x12d] sm:$0xff]
      %v5806 = vld [vmem:[%s1502 + $0x145] sm:$0xff]
      %v5807 = vld [vmem:[%s1502 + $0x14d] sm:$0xff]
      %v5808 = vld [vmem:[%s1502 + $0x165] sm:$0xff]
      %v5809 = vld [vmem:[%s1502 + $0x16d] sm:$0xff]
      %v5810 = vld [vmem:[%s1502 + $0x185] sm:$0xff]
      %v5811 = vld [vmem:[%s1502 + $0x18d] sm:$0xff]
      %v5812 = vld [vmem:[%s1502 + $0x1a5] sm:$0xff]
      %v5813 = vld [vmem:[%s1502 + $0x1ad] sm:$0xff]
      %v5814 = vld [vmem:[%s1502 + $0x1c5] sm:$0xff]
      %v5815 = vld [vmem:[%s1502 + $0x1cd] sm:$0xff]
      %v5816 = vld [vmem:[%s1502 + $0x1e5] sm:$0xff]
      %v5817 = vld [vmem:[%s1502 + $0x1ed] sm:$0xff]
      %v5818 = vld [vmem:[%s1502 + $0x8] sm:$0xff]
      %v5819 = vld [vmem:[%s1502 + $0x10] sm:$0xff]
      %v5820 = vld [vmem:[%s1502 + $0x28] sm:$0xff]
      %v5821 = vld [vmem:[%s1502 + $0x30] sm:$0xff]
      %v5822 = vld [vmem:[%s1502 + $0x48] sm:$0xff]
      %v5823 = vld [vmem:[%s1502 + $0x50] sm:$0xff]
      %v5824 = vld [vmem:[%s1502 + $0x68] sm:$0xff]
      %v5825 = vld [vmem:[%s1502 + $0x70] sm:$0xff]
      %v5826 = vld [vmem:[%s1502 + $0x88] sm:$0xff]
      %v5827 = vld [vmem:[%s1502 + $0x90] sm:$0xff]
      %v5828 = vld [vmem:[%s1502 + $0xa8] sm:$0xff]
      %v5829 = vld [vmem:[%s1502 + $0xb0] sm:$0xff]
      %v5830 = vld [vmem:[%s1502 + $0xc8] sm:$0xff]
      %v5831 = vld [vmem:[%s1502 + $0xd0] sm:$0xff]
      %v5832 = vld [vmem:[%s1502 + $0xe8] sm:$0xff]
      %v5833 = vld [vmem:[%s1502 + $0xf0] sm:$0xff]
      %v5834 = vld [vmem:[%s1502 + $0x108] sm:$0xff]
      %v5835 = vld [vmem:[%s1502 + $0x110] sm:$0xff]
      %v5836 = vld [vmem:[%s1502 + $0x128] sm:$0xff]
      %v5837 = vld [vmem:[%s1502 + $0x130] sm:$0xff]
      %v5838 = vld [vmem:[%s1502 + $0x148] sm:$0xff]
      %v5839 = vld [vmem:[%s1502 + $0x150] sm:$0xff]
      %v5840 = vld [vmem:[%s1502 + $0x168] sm:$0xff]
      %v5841 = vld [vmem:[%s1502 + $0x170] sm:$0xff]
      %v5842 = vld [vmem:[%s1502 + $0x188] sm:$0xff]
      %v5843 = vld [vmem:[%s1502 + $0x190] sm:$0xff]
      %v5844 = vld [vmem:[%s1502 + $0x1a8] sm:$0xff]
      %v5845 = vld [vmem:[%s1502 + $0x1b0] sm:$0xff]
      %v5846 = vld [vmem:[%s1502 + $0x1c8] sm:$0xff]
      %v5847 = vld [vmem:[%s1502 + $0x1d0] sm:$0xff]
      %v5848 = vld [vmem:[%s1502 + $0x1e8] sm:$0xff]
      %v5849 = vld [vmem:[%s1502 + $0x1f0] sm:$0xff]
      %s5850 = scalar_lea.vmem [#allocation2], 1920
      %v5851 = vld [vmem:[%s5850 + $0x2] sm:$0xff]
      %v5852 = vld [vmem:[%s5850 + $0xa] sm:$0xff]
      %v5853 = vld [vmem:[%s5850 + $0x22] sm:$0xff]
      %v5854 = vld [vmem:[%s5850 + $0x2a] sm:$0xff]
      %v5855 = vld [vmem:[%s5850 + $0x42] sm:$0xff]
      %v5856 = vld [vmem:[%s5850 + $0x4a] sm:$0xff]
      %v5857 = vld [vmem:[%s5850 + $0x62] sm:$0xff]
      %v5858 = vld [vmem:[%s5850 + $0x6a] sm:$0xff]
      %v5859 = vld [vmem:[%s5850 + $0x82] sm:$0xff]
      %v5860 = vld [vmem:[%s5850 + $0x8a] sm:$0xff]
      %v5861 = vld [vmem:[%s5850 + $0xa2] sm:$0xff]
      %v5862 = vld [vmem:[%s5850 + $0xaa] sm:$0xff]
      %v5863 = vld [vmem:[%s5850 + $0xc2] sm:$0xff]
      %v5864 = vld [vmem:[%s5850 + $0xca] sm:$0xff]
      %v5865 = vld [vmem:[%s5850 + $0xe2] sm:$0xff]
      %v5866 = vld [vmem:[%s5850 + $0xea] sm:$0xff]
      %v5867 = vld [vmem:[%s5850 + $0x102] sm:$0xff]
      %v5868 = vld [vmem:[%s5850 + $0x10a] sm:$0xff]
      %v5869 = vld [vmem:[%s5850 + $0x122] sm:$0xff]
      %v5870 = vld [vmem:[%s5850 + $0x12a] sm:$0xff]
      %v5871 = vld [vmem:[%s5850 + $0x142] sm:$0xff]
      %v5872 = vld [vmem:[%s5850 + $0x14a] sm:$0xff]
      %v5873 = vld [vmem:[%s5850 + $0x162] sm:$0xff]
      %v5874 = vld [vmem:[%s5850 + $0x16a] sm:$0xff]
      %v5875 = vld [vmem:[%s5850 + $0x182] sm:$0xff]
      %v5876 = vld [vmem:[%s5850 + $0x18a] sm:$0xff]
      %v5877 = vld [vmem:[%s5850 + $0x1a2] sm:$0xff]
      %v5878 = vld [vmem:[%s5850 + $0x1aa] sm:$0xff]
      %v5879 = vld [vmem:[%s5850 + $0x1c2] sm:$0xff]
      %v5880 = vld [vmem:[%s5850 + $0x1ca] sm:$0xff]
      %v5881 = vld [vmem:[%s5850 + $0x1e2] sm:$0xff]
      %v5882 = vld [vmem:[%s5850 + $0x1ea] sm:$0xff]
      %v5883 = vld [vmem:[%s5850 + $0x5] sm:$0xff]
      %v5884 = vld [vmem:[%s5850 + $0xd] sm:$0xff]
      %v5885 = vld [vmem:[%s5850 + $0x25] sm:$0xff]
      %v5886 = vld [vmem:[%s5850 + $0x2d] sm:$0xff]
      %v5887 = vld [vmem:[%s5850 + $0x45] sm:$0xff]
      %v5888 = vld [vmem:[%s5850 + $0x4d] sm:$0xff]
      %v5889 = vld [vmem:[%s5850 + $0x65] sm:$0xff]
      %v5890 = vld [vmem:[%s5850 + $0x6d] sm:$0xff]
      %v5891 = vld [vmem:[%s5850 + $0x85] sm:$0xff]
      %v5892 = vld [vmem:[%s5850 + $0x8d] sm:$0xff]
      %v5893 = vld [vmem:[%s5850 + $0xa5] sm:$0xff]
      %v5894 = vld [vmem:[%s5850 + $0xad] sm:$0xff]
      %v5895 = vld [vmem:[%s5850 + $0xc5] sm:$0xff]
      %v5896 = vld [vmem:[%s5850 + $0xcd] sm:$0xff]
      %v5897 = vld [vmem:[%s5850 + $0xe5] sm:$0xff]
      %v5898 = vld [vmem:[%s5850 + $0xed] sm:$0xff]
      %v5899 = vld [vmem:[%s5850 + $0x105] sm:$0xff]
      %v5900 = vld [vmem:[%s5850 + $0x10d] sm:$0xff]
      %v5901 = vld [vmem:[%s5850 + $0x125] sm:$0xff]
      %v5902 = vld [vmem:[%s5850 + $0x12d] sm:$0xff]
      %v5903 = vld [vmem:[%s5850 + $0x145] sm:$0xff]
      %v5904 = vld [vmem:[%s5850 + $0x14d] sm:$0xff]
      %v5905 = vld [vmem:[%s5850 + $0x165] sm:$0xff]
      %v5906 = vld [vmem:[%s5850 + $0x16d] sm:$0xff]
      %v5907 = vld [vmem:[%s5850 + $0x185] sm:$0xff]
      %v5908 = vld [vmem:[%s5850 + $0x18d] sm:$0xff]
      %v5909 = vld [vmem:[%s5850 + $0x1a5] sm:$0xff]
      %v5910 = vld [vmem:[%s5850 + $0x1ad] sm:$0xff]
      %v5911 = vld [vmem:[%s5850 + $0x1c5] sm:$0xff]
      %v5912 = vld [vmem:[%s5850 + $0x1cd] sm:$0xff]
      %v5913 = vld [vmem:[%s5850 + $0x1e5] sm:$0xff]
      %v5914 = vld [vmem:[%s5850 + $0x1ed] sm:$0xff]
      %v5915 = vld [vmem:[%s5850 + $0x8] sm:$0xff]
      %v5916 = vld [vmem:[%s5850 + $0x10] sm:$0xff]
      %v5917 = vld [vmem:[%s5850 + $0x28] sm:$0xff]
      %v5918 = vld [vmem:[%s5850 + $0x30] sm:$0xff]
      %v5919 = vld [vmem:[%s5850 + $0x48] sm:$0xff]
      %v5920 = vld [vmem:[%s5850 + $0x50] sm:$0xff]
      %v5921 = vld [vmem:[%s5850 + $0x68] sm:$0xff]
      %v5922 = vld [vmem:[%s5850 + $0x70] sm:$0xff]
      %v5923 = vld [vmem:[%s5850 + $0x88] sm:$0xff]
      %v5924 = vld [vmem:[%s5850 + $0x90] sm:$0xff]
      %v5925 = vld [vmem:[%s5850 + $0xa8] sm:$0xff]
      %v5926 = vld [vmem:[%s5850 + $0xb0] sm:$0xff]
      %v5927 = vld [vmem:[%s5850 + $0xc8] sm:$0xff]
      %v5928 = vld [vmem:[%s5850 + $0xd0] sm:$0xff]
      %v5929 = vld [vmem:[%s5850 + $0xe8] sm:$0xff]
      %v5930 = vld [vmem:[%s5850 + $0xf0] sm:$0xff]
      %v5931 = vld [vmem:[%s5850 + $0x108] sm:$0xff]
      %v5932 = vld [vmem:[%s5850 + $0x110] sm:$0xff]
      %v5933 = vld [vmem:[%s5850 + $0x128] sm:$0xff]
      %v5934 = vld [vmem:[%s5850 + $0x130] sm:$0xff]
      %v5935 = vld [vmem:[%s5850 + $0x148] sm:$0xff]
      %v5936 = vld [vmem:[%s5850 + $0x150] sm:$0xff]
      %v5937 = vld [vmem:[%s5850 + $0x168] sm:$0xff]
      %v5938 = vld [vmem:[%s5850 + $0x170] sm:$0xff]
      %v5939 = vld [vmem:[%s5850 + $0x188] sm:$0xff]
      %v5940 = vld [vmem:[%s5850 + $0x190] sm:$0xff]
      %v5941 = vld [vmem:[%s5850 + $0x1a8] sm:$0xff]
      %v5942 = vld [vmem:[%s5850 + $0x1b0] sm:$0xff]
      %v5943 = vld [vmem:[%s5850 + $0x1c8] sm:$0xff]
      %v5944 = vld [vmem:[%s5850 + $0x1d0] sm:$0xff]
      %v5945 = vld [vmem:[%s5850 + $0x1e8] sm:$0xff]
      %v5946 = vld [vmem:[%s5850 + $0x1f0] sm:$0xff]
      %5979 = vrot.lane.b32.xlu0 %v5690, 2
      %v5980 = vpop.permute.xlu0 %5979
      %5981 = vrot.lane.b32.xlu0 %v5691, 2
      %v5982 = vpop.permute.xlu0 %5981
      %5983 = vrot.lane.b32.xlu0 %v5692, 2
      %v5984 = vpop.permute.xlu0 %5983
      %5985 = vrot.lane.b32.xlu0 %v5693, 2
      %v5986 = vpop.permute.xlu0 %5985
      %5987 = vrot.lane.b32.xlu0 %v5694, 2
      %v5988 = vpop.permute.xlu0 %5987
      %5989 = vrot.lane.b32.xlu0 %v5695, 2
      %v5990 = vpop.permute.xlu0 %5989
      %5991 = vrot.lane.b32.xlu0 %v5696, 2
      %v5992 = vpop.permute.xlu0 %5991
      %5993 = vrot.lane.b32.xlu0 %v5697, 2
      %v5994 = vpop.permute.xlu0 %5993
      %5995 = vrot.lane.b32.xlu0 %v5698, 2
      %v5996 = vpop.permute.xlu0 %5995
      %5997 = vrot.lane.b32.xlu0 %v5699, 2
      %v5998 = vpop.permute.xlu0 %5997
      %5999 = vrot.lane.b32.xlu0 %v5700, 2
      %v6000 = vpop.permute.xlu0 %5999
      %6001 = vrot.lane.b32.xlu0 %v5701, 2
      %v6002 = vpop.permute.xlu0 %6001
      %6003 = vrot.lane.b32.xlu0 %v5702, 2
      %v6004 = vpop.permute.xlu0 %6003
      %6005 = vrot.lane.b32.xlu0 %v5703, 2
      %v6006 = vpop.permute.xlu0 %6005
      %6007 = vrot.lane.b32.xlu0 %v5704, 2
      %v6008 = vpop.permute.xlu0 %6007
      %6009 = vrot.lane.b32.xlu0 %v5705, 2
      %v6010 = vpop.permute.xlu0 %6009
      %6011 = vrot.lane.b32.xlu0 %v5706, 2
      %v6012 = vpop.permute.xlu0 %6011
      %6013 = vrot.lane.b32.xlu0 %v5707, 2
      %v6014 = vpop.permute.xlu0 %6013
      %6015 = vrot.lane.b32.xlu0 %v5708, 2
      %v6016 = vpop.permute.xlu0 %6015
      %6017 = vrot.lane.b32.xlu0 %v5709, 2
      %v6018 = vpop.permute.xlu0 %6017
      %6019 = vrot.lane.b32.xlu0 %v5710, 2
      %v6020 = vpop.permute.xlu0 %6019
      %6021 = vrot.lane.b32.xlu0 %v5711, 2
      %v6022 = vpop.permute.xlu0 %6021
      %6023 = vrot.lane.b32.xlu0 %v5712, 2
      %v6024 = vpop.permute.xlu0 %6023
      %6025 = vrot.lane.b32.xlu0 %v5713, 2
      %v6026 = vpop.permute.xlu0 %6025
      %6027 = vrot.lane.b32.xlu0 %v5714, 2
      %v6028 = vpop.permute.xlu0 %6027
      %6029 = vrot.lane.b32.xlu0 %v5715, 2
      %v6030 = vpop.permute.xlu0 %6029
      %6031 = vrot.lane.b32.xlu0 %v5716, 2
      %v6032 = vpop.permute.xlu0 %6031
      %6033 = vrot.lane.b32.xlu0 %v5717, 2
      %v6034 = vpop.permute.xlu0 %6033
      %6035 = vrot.lane.b32.xlu0 %v5718, 2
      %v6036 = vpop.permute.xlu0 %6035
      %6037 = vrot.lane.b32.xlu0 %v5719, 2
      %v6038 = vpop.permute.xlu0 %6037
      %6039 = vrot.lane.b32.xlu0 %v5720, 2
      %v6040 = vpop.permute.xlu0 %6039
      %6041 = vrot.lane.b32.xlu0 %v5721, 2
      %v6042 = vpop.permute.xlu0 %6041
      %6107 = vrot.lane.b32.xlu0 %v5722, 4
      %v6108 = vpop.permute.xlu0 %6107
      %6109 = vrot.lane.b32.xlu0 %v5723, 4
      %v6110 = vpop.permute.xlu0 %6109
      %6111 = vrot.lane.b32.xlu0 %v5724, 4
      %v6112 = vpop.permute.xlu0 %6111
      %6113 = vrot.lane.b32.xlu0 %v5725, 4
      %v6114 = vpop.permute.xlu0 %6113
      %6115 = vrot.lane.b32.xlu0 %v5726, 4
      %v6116 = vpop.permute.xlu0 %6115
      %6117 = vrot.lane.b32.xlu0 %v5727, 4
      %v6118 = vpop.permute.xlu0 %6117
      %6119 = vrot.lane.b32.xlu0 %v5728, 4
      %v6120 = vpop.permute.xlu0 %6119
      %6121 = vrot.lane.b32.xlu0 %v5729, 4
      %v6122 = vpop.permute.xlu0 %6121
      %6123 = vrot.lane.b32.xlu0 %v5730, 4
      %v6124 = vpop.permute.xlu0 %6123
      %6125 = vrot.lane.b32.xlu0 %v5731, 4
      %v6126 = vpop.permute.xlu0 %6125
      %6127 = vrot.lane.b32.xlu0 %v5732, 4
      %v6128 = vpop.permute.xlu0 %6127
      %6129 = vrot.lane.b32.xlu0 %v5733, 4
      %v6130 = vpop.permute.xlu0 %6129
      %6131 = vrot.lane.b32.xlu0 %v5734, 4
      %v6132 = vpop.permute.xlu0 %6131
      %6133 = vrot.lane.b32.xlu0 %v5735, 4
      %v6134 = vpop.permute.xlu0 %6133
      %6135 = vrot.lane.b32.xlu0 %v5736, 4
      %v6136 = vpop.permute.xlu0 %6135
      %6137 = vrot.lane.b32.xlu0 %v5737, 4
      %v6138 = vpop.permute.xlu0 %6137
      %6139 = vrot.lane.b32.xlu0 %v5738, 4
      %v6140 = vpop.permute.xlu0 %6139
      %6141 = vrot.lane.b32.xlu0 %v5739, 4
      %v6142 = vpop.permute.xlu0 %6141
      %6143 = vrot.lane.b32.xlu0 %v5740, 4
      %v6144 = vpop.permute.xlu0 %6143
      %6145 = vrot.lane.b32.xlu0 %v5741, 4
      %v6146 = vpop.permute.xlu0 %6145
      %6147 = vrot.lane.b32.xlu0 %v5742, 4
      %v6148 = vpop.permute.xlu0 %6147
      %6149 = vrot.lane.b32.xlu0 %v5743, 4
      %v6150 = vpop.permute.xlu0 %6149
      %6151 = vrot.lane.b32.xlu0 %v5744, 4
      %v6152 = vpop.permute.xlu0 %6151
      %6153 = vrot.lane.b32.xlu0 %v5745, 4
      %v6154 = vpop.permute.xlu0 %6153
      %6155 = vrot.lane.b32.xlu0 %v5746, 4
      %v6156 = vpop.permute.xlu0 %6155
      %6157 = vrot.lane.b32.xlu0 %v5747, 4
      %v6158 = vpop.permute.xlu0 %6157
      %6159 = vrot.lane.b32.xlu0 %v5748, 4
      %v6160 = vpop.permute.xlu0 %6159
      %6161 = vrot.lane.b32.xlu0 %v5749, 4
      %v6162 = vpop.permute.xlu0 %6161
      %6163 = vrot.lane.b32.xlu0 %v5750, 4
      %v6164 = vpop.permute.xlu0 %6163
      %6165 = vrot.lane.b32.xlu0 %v5751, 4
      %v6166 = vpop.permute.xlu0 %6165
      %6167 = vrot.lane.b32.xlu0 %v5752, 4
      %v6168 = vpop.permute.xlu0 %6167
      %6169 = vrot.lane.b32.xlu0 %v5753, 4
      %v6170 = vpop.permute.xlu0 %6169
      %6235 = vrot.lane.b32.xlu0 %v5754, 6
      %v6236 = vpop.permute.xlu0 %6235
      %6237 = vrot.lane.b32.xlu0 %v5755, 6
      %v6238 = vpop.permute.xlu0 %6237
      %6239 = vrot.lane.b32.xlu0 %v5756, 6
      %v6240 = vpop.permute.xlu0 %6239
      %6241 = vrot.lane.b32.xlu0 %v5757, 6
      %v6242 = vpop.permute.xlu0 %6241
      %6243 = vrot.lane.b32.xlu0 %v5758, 6
      %v6244 = vpop.permute.xlu0 %6243
      %6245 = vrot.lane.b32.xlu0 %v5759, 6
      %v6246 = vpop.permute.xlu0 %6245
      %6247 = vrot.lane.b32.xlu0 %v5760, 6
      %v6248 = vpop.permute.xlu0 %6247
      %6249 = vrot.lane.b32.xlu0 %v5761, 6
      %v6250 = vpop.permute.xlu0 %6249
      %6251 = vrot.lane.b32.xlu0 %v5762, 6
      %v6252 = vpop.permute.xlu0 %6251
      %6253 = vrot.lane.b32.xlu0 %v5763, 6
      %v6254 = vpop.permute.xlu0 %6253
      %6255 = vrot.lane.b32.xlu0 %v5764, 6
      %v6256 = vpop.permute.xlu0 %6255
      %6257 = vrot.lane.b32.xlu0 %v5765, 6
      %v6258 = vpop.permute.xlu0 %6257
      %6259 = vrot.lane.b32.xlu0 %v5766, 6
      %v6260 = vpop.permute.xlu0 %6259
      %6261 = vrot.lane.b32.xlu0 %v5767, 6
      %v6262 = vpop.permute.xlu0 %6261
      %6263 = vrot.lane.b32.xlu0 %v5768, 6
      %v6264 = vpop.permute.xlu0 %6263
      %6265 = vrot.lane.b32.xlu0 %v5769, 6
      %v6266 = vpop.permute.xlu0 %6265
      %6267 = vrot.lane.b32.xlu0 %v5770, 6
      %v6268 = vpop.permute.xlu0 %6267
      %6269 = vrot.lane.b32.xlu0 %v5771, 6
      %v6270 = vpop.permute.xlu0 %6269
      %6271 = vrot.lane.b32.xlu0 %v5772, 6
      %v6272 = vpop.permute.xlu0 %6271
      %6273 = vrot.lane.b32.xlu0 %v5773, 6
      %v6274 = vpop.permute.xlu0 %6273
      %6275 = vrot.lane.b32.xlu0 %v5774, 6
      %v6276 = vpop.permute.xlu0 %6275
      %6277 = vrot.lane.b32.xlu0 %v5775, 6
      %v6278 = vpop.permute.xlu0 %6277
      %6279 = vrot.lane.b32.xlu0 %v5776, 6
      %v6280 = vpop.permute.xlu0 %6279
      %6281 = vrot.lane.b32.xlu0 %v5777, 6
      %v6282 = vpop.permute.xlu0 %6281
      %6283 = vrot.lane.b32.xlu0 %v5778, 6
      %v6284 = vpop.permute.xlu0 %6283
      %6285 = vrot.lane.b32.xlu0 %v5779, 6
      %v6286 = vpop.permute.xlu0 %6285
      %6287 = vrot.lane.b32.xlu0 %v5780, 6
      %v6288 = vpop.permute.xlu0 %6287
      %6289 = vrot.lane.b32.xlu0 %v5781, 6
      %v6290 = vpop.permute.xlu0 %6289
      %6291 = vrot.lane.b32.xlu0 %v5782, 6
      %v6292 = vpop.permute.xlu0 %6291
      %6293 = vrot.lane.b32.xlu0 %v5783, 6
      %v6294 = vpop.permute.xlu0 %6293
      %6295 = vrot.lane.b32.xlu0 %v5784, 6
      %v6296 = vpop.permute.xlu0 %6295
      %6297 = vrot.lane.b32.xlu0 %v5785, 6
      %v6298 = vpop.permute.xlu0 %6297
      %6363 = vrot.lane.b32.xlu0 %v5786, 8
      %v6364 = vpop.permute.xlu0 %6363
      %6365 = vrot.lane.b32.xlu0 %v5787, 8
      %v6366 = vpop.permute.xlu0 %6365
      %6367 = vrot.lane.b32.xlu0 %v5788, 8
      %v6368 = vpop.permute.xlu0 %6367
      %6369 = vrot.lane.b32.xlu0 %v5789, 8
      %v6370 = vpop.permute.xlu0 %6369
      %6371 = vrot.lane.b32.xlu0 %v5790, 8
      %v6372 = vpop.permute.xlu0 %6371
      %6373 = vrot.lane.b32.xlu0 %v5791, 8
      %v6374 = vpop.permute.xlu0 %6373
      %6375 = vrot.lane.b32.xlu0 %v5792, 8
      %v6376 = vpop.permute.xlu0 %6375
      %6377 = vrot.lane.b32.xlu0 %v5793, 8
      %v6378 = vpop.permute.xlu0 %6377
      %6379 = vrot.lane.b32.xlu0 %v5794, 8
      %v6380 = vpop.permute.xlu0 %6379
      %6381 = vrot.lane.b32.xlu0 %v5795, 8
      %v6382 = vpop.permute.xlu0 %6381
      %6383 = vrot.lane.b32.xlu0 %v5796, 8
      %v6384 = vpop.permute.xlu0 %6383
      %6385 = vrot.lane.b32.xlu0 %v5797, 8
      %v6386 = vpop.permute.xlu0 %6385
      %6387 = vrot.lane.b32.xlu0 %v5798, 8
      %v6388 = vpop.permute.xlu0 %6387
      %6389 = vrot.lane.b32.xlu0 %v5799, 8
      %v6390 = vpop.permute.xlu0 %6389
      %6391 = vrot.lane.b32.xlu0 %v5800, 8
      %v6392 = vpop.permute.xlu0 %6391
      %6393 = vrot.lane.b32.xlu0 %v5801, 8
      %v6394 = vpop.permute.xlu0 %6393
      %6395 = vrot.lane.b32.xlu0 %v5802, 8
      %v6396 = vpop.permute.xlu0 %6395
      %6397 = vrot.lane.b32.xlu0 %v5803, 8
      %v6398 = vpop.permute.xlu0 %6397
      %6399 = vrot.lane.b32.xlu0 %v5804, 8
      %v6400 = vpop.permute.xlu0 %6399
      %6401 = vrot.lane.b32.xlu0 %v5805, 8
      %v6402 = vpop.permute.xlu0 %6401
      %6403 = vrot.lane.b32.xlu0 %v5806, 8
      %v6404 = vpop.permute.xlu0 %6403
      %6405 = vrot.lane.b32.xlu0 %v5807, 8
      %v6406 = vpop.permute.xlu0 %6405
      %6407 = vrot.lane.b32.xlu0 %v5808, 8
      %v6408 = vpop.permute.xlu0 %6407
      %6409 = vrot.lane.b32.xlu0 %v5809, 8
      %v6410 = vpop.permute.xlu0 %6409
      %6411 = vrot.lane.b32.xlu0 %v5810, 8
      %v6412 = vpop.permute.xlu0 %6411
      %6413 = vrot.lane.b32.xlu0 %v5811, 8
      %v6414 = vpop.permute.xlu0 %6413
      %6415 = vrot.lane.b32.xlu0 %v5812, 8
      %v6416 = vpop.permute.xlu0 %6415
      %6417 = vrot.lane.b32.xlu0 %v5813, 8
      %v6418 = vpop.permute.xlu0 %6417
      %6419 = vrot.lane.b32.xlu0 %v5814, 8
      %v6420 = vpop.permute.xlu0 %6419
      %6421 = vrot.lane.b32.xlu0 %v5815, 8
      %v6422 = vpop.permute.xlu0 %6421
      %6423 = vrot.lane.b32.xlu0 %v5816, 8
      %v6424 = vpop.permute.xlu0 %6423
      %6425 = vrot.lane.b32.xlu0 %v5817, 8
      %v6426 = vpop.permute.xlu0 %6425
      %6491 = vrot.lane.b32.xlu0 %v5818, 10
      %v6492 = vpop.permute.xlu0 %6491
      %6493 = vrot.lane.b32.xlu0 %v5819, 10
      %v6494 = vpop.permute.xlu0 %6493
      %6495 = vrot.lane.b32.xlu0 %v5820, 10
      %v6496 = vpop.permute.xlu0 %6495
      %6497 = vrot.lane.b32.xlu0 %v5821, 10
      %v6498 = vpop.permute.xlu0 %6497
      %6499 = vrot.lane.b32.xlu0 %v5822, 10
      %v6500 = vpop.permute.xlu0 %6499
      %6501 = vrot.lane.b32.xlu0 %v5823, 10
      %v6502 = vpop.permute.xlu0 %6501
      %6503 = vrot.lane.b32.xlu0 %v5824, 10
      %v6504 = vpop.permute.xlu0 %6503
      %6505 = vrot.lane.b32.xlu0 %v5825, 10
      %v6506 = vpop.permute.xlu0 %6505
      %6507 = vrot.lane.b32.xlu0 %v5826, 10
      %v6508 = vpop.permute.xlu0 %6507
      %6509 = vrot.lane.b32.xlu0 %v5827, 10
      %v6510 = vpop.permute.xlu0 %6509
      %6511 = vrot.lane.b32.xlu0 %v5828, 10
      %v6512 = vpop.permute.xlu0 %6511
      %6513 = vrot.lane.b32.xlu0 %v5829, 10
      %v6514 = vpop.permute.xlu0 %6513
      %6515 = vrot.lane.b32.xlu0 %v5830, 10
      %v6516 = vpop.permute.xlu0 %6515
      %6517 = vrot.lane.b32.xlu0 %v5831, 10
      %v6518 = vpop.permute.xlu0 %6517
      %6519 = vrot.lane.b32.xlu0 %v5832, 10
      %v6520 = vpop.permute.xlu0 %6519
      %6521 = vrot.lane.b32.xlu0 %v5833, 10
      %v6522 = vpop.permute.xlu0 %6521
      %6523 = vrot.lane.b32.xlu0 %v5834, 10
      %v6524 = vpop.permute.xlu0 %6523
      %6525 = vrot.lane.b32.xlu0 %v5835, 10
      %v6526 = vpop.permute.xlu0 %6525
      %6527 = vrot.lane.b32.xlu0 %v5836, 10
      %v6528 = vpop.permute.xlu0 %6527
      %6529 = vrot.lane.b32.xlu0 %v5837, 10
      %v6530 = vpop.permute.xlu0 %6529
      %6531 = vrot.lane.b32.xlu0 %v5838, 10
      %v6532 = vpop.permute.xlu0 %6531
      %6533 = vrot.lane.b32.xlu0 %v5839, 10
      %v6534 = vpop.permute.xlu0 %6533
      %6535 = vrot.lane.b32.xlu0 %v5840, 10
      %v6536 = vpop.permute.xlu0 %6535
      %6537 = vrot.lane.b32.xlu0 %v5841, 10
      %v6538 = vpop.permute.xlu0 %6537
      %6539 = vrot.lane.b32.xlu0 %v5842, 10
      %v6540 = vpop.permute.xlu0 %6539
      %6541 = vrot.lane.b32.xlu0 %v5843, 10
      %v6542 = vpop.permute.xlu0 %6541
      %6543 = vrot.lane.b32.xlu0 %v5844, 10
      %v6544 = vpop.permute.xlu0 %6543
      %6545 = vrot.lane.b32.xlu0 %v5845, 10
      %v6546 = vpop.permute.xlu0 %6545
      %6547 = vrot.lane.b32.xlu0 %v5846, 10
      %v6548 = vpop.permute.xlu0 %6547
      %6549 = vrot.lane.b32.xlu0 %v5847, 10
      %v6550 = vpop.permute.xlu0 %6549
      %6551 = vrot.lane.b32.xlu0 %v5848, 10
      %v6552 = vpop.permute.xlu0 %6551
      %6553 = vrot.lane.b32.xlu0 %v5849, 10
      %v6554 = vpop.permute.xlu0 %6553
      %6619 = vrot.lane.b32.xlu0 %v5851, 12
      %v6620 = vpop.permute.xlu0 %6619
      %6621 = vrot.lane.b32.xlu0 %v5852, 12
      %v6622 = vpop.permute.xlu0 %6621
      %6623 = vrot.lane.b32.xlu0 %v5853, 12
      %v6624 = vpop.permute.xlu0 %6623
      %6625 = vrot.lane.b32.xlu0 %v5854, 12
      %v6626 = vpop.permute.xlu0 %6625
      %6627 = vrot.lane.b32.xlu0 %v5855, 12
      %v6628 = vpop.permute.xlu0 %6627
      %6629 = vrot.lane.b32.xlu0 %v5856, 12
      %v6630 = vpop.permute.xlu0 %6629
      %6631 = vrot.lane.b32.xlu0 %v5857, 12
      %v6632 = vpop.permute.xlu0 %6631
      %6633 = vrot.lane.b32.xlu0 %v5858, 12
      %v6634 = vpop.permute.xlu0 %6633
      %6635 = vrot.lane.b32.xlu0 %v5859, 12
      %v6636 = vpop.permute.xlu0 %6635
      %6637 = vrot.lane.b32.xlu0 %v5860, 12
      %v6638 = vpop.permute.xlu0 %6637
      %6639 = vrot.lane.b32.xlu0 %v5861, 12
      %v6640 = vpop.permute.xlu0 %6639
      %6641 = vrot.lane.b32.xlu0 %v5862, 12
      %v6642 = vpop.permute.xlu0 %6641
      %6643 = vrot.lane.b32.xlu0 %v5863, 12
      %v6644 = vpop.permute.xlu0 %6643
      %6645 = vrot.lane.b32.xlu0 %v5864, 12
      %v6646 = vpop.permute.xlu0 %6645
      %6647 = vrot.lane.b32.xlu0 %v5865, 12
      %v6648 = vpop.permute.xlu0 %6647
      %6649 = vrot.lane.b32.xlu0 %v5866, 12
      %v6650 = vpop.permute.xlu0 %6649
      %6651 = vrot.lane.b32.xlu0 %v5867, 12
      %v6652 = vpop.permute.xlu0 %6651
      %6653 = vrot.lane.b32.xlu0 %v5868, 12
      %v6654 = vpop.permute.xlu0 %6653
      %6655 = vrot.lane.b32.xlu0 %v5869, 12
      %v6656 = vpop.permute.xlu0 %6655
      %6657 = vrot.lane.b32.xlu0 %v5870, 12
      %v6658 = vpop.permute.xlu0 %6657
      %6659 = vrot.lane.b32.xlu0 %v5871, 12
      %v6660 = vpop.permute.xlu0 %6659
      %6661 = vrot.lane.b32.xlu0 %v5872, 12
      %v6662 = vpop.permute.xlu0 %6661
      %6663 = vrot.lane.b32.xlu0 %v5873, 12
      %v6664 = vpop.permute.xlu0 %6663
      %6665 = vrot.lane.b32.xlu0 %v5874, 12
      %v6666 = vpop.permute.xlu0 %6665
      %6667 = vrot.lane.b32.xlu0 %v5875, 12
      %v6668 = vpop.permute.xlu0 %6667
      %6669 = vrot.lane.b32.xlu0 %v5876, 12
      %v6670 = vpop.permute.xlu0 %6669
      %6671 = vrot.lane.b32.xlu0 %v5877, 12
      %v6672 = vpop.permute.xlu0 %6671
      %6673 = vrot.lane.b32.xlu0 %v5878, 12
      %v6674 = vpop.permute.xlu0 %6673
      %6675 = vrot.lane.b32.xlu0 %v5879, 12
      %v6676 = vpop.permute.xlu0 %6675
      %6677 = vrot.lane.b32.xlu0 %v5880, 12
      %v6678 = vpop.permute.xlu0 %6677
      %6679 = vrot.lane.b32.xlu0 %v5881, 12
      %v6680 = vpop.permute.xlu0 %6679
      %6681 = vrot.lane.b32.xlu0 %v5882, 12
      %v6682 = vpop.permute.xlu0 %6681
      %6747 = vrot.lane.b32.xlu0 %v5883, 14
      %v6748 = vpop.permute.xlu0 %6747
      %6749 = vrot.lane.b32.xlu0 %v5884, 14
      %v6750 = vpop.permute.xlu0 %6749
      %6751 = vrot.lane.b32.xlu0 %v5885, 14
      %v6752 = vpop.permute.xlu0 %6751
      %6753 = vrot.lane.b32.xlu0 %v5886, 14
      %v6754 = vpop.permute.xlu0 %6753
      %6755 = vrot.lane.b32.xlu0 %v5887, 14
      %v6756 = vpop.permute.xlu0 %6755
      %6757 = vrot.lane.b32.xlu0 %v5888, 14
      %v6758 = vpop.permute.xlu0 %6757
      %6759 = vrot.lane.b32.xlu0 %v5889, 14
      %v6760 = vpop.permute.xlu0 %6759
      %6761 = vrot.lane.b32.xlu0 %v5890, 14
      %v6762 = vpop.permute.xlu0 %6761
      %6763 = vrot.lane.b32.xlu0 %v5891, 14
      %v6764 = vpop.permute.xlu0 %6763
      %6765 = vrot.lane.b32.xlu0 %v5892, 14
      %v6766 = vpop.permute.xlu0 %6765
      %6767 = vrot.lane.b32.xlu0 %v5893, 14
      %v6768 = vpop.permute.xlu0 %6767
      %6769 = vrot.lane.b32.xlu0 %v5894, 14
      %v6770 = vpop.permute.xlu0 %6769
      %6771 = vrot.lane.b32.xlu0 %v5895, 14
      %v6772 = vpop.permute.xlu0 %6771
      %6773 = vrot.lane.b32.xlu0 %v5896, 14
      %v6774 = vpop.permute.xlu0 %6773
      %6775 = vrot.lane.b32.xlu0 %v5897, 14
      %v6776 = vpop.permute.xlu0 %6775
      %6777 = vrot.lane.b32.xlu0 %v5898, 14
      %v6778 = vpop.permute.xlu0 %6777
      %6779 = vrot.lane.b32.xlu0 %v5899, 14
      %v6780 = vpop.permute.xlu0 %6779
      %6781 = vrot.lane.b32.xlu0 %v5900, 14
      %v6782 = vpop.permute.xlu0 %6781
      %6783 = vrot.lane.b32.xlu0 %v5901, 14
      %v6784 = vpop.permute.xlu0 %6783
      %6785 = vrot.lane.b32.xlu0 %v5902, 14
      %v6786 = vpop.permute.xlu0 %6785
      %6787 = vrot.lane.b32.xlu0 %v5903, 14
      %v6788 = vpop.permute.xlu0 %6787
      %6789 = vrot.lane.b32.xlu0 %v5904, 14
      %v6790 = vpop.permute.xlu0 %6789
      %6791 = vrot.lane.b32.xlu0 %v5905, 14
      %v6792 = vpop.permute.xlu0 %6791
      %6793 = vrot.lane.b32.xlu0 %v5906, 14
      %v6794 = vpop.permute.xlu0 %6793
      %6795 = vrot.lane.b32.xlu0 %v5907, 14
      %v6796 = vpop.permute.xlu0 %6795
      %6797 = vrot.lane.b32.xlu0 %v5908, 14
      %v6798 = vpop.permute.xlu0 %6797
      %6799 = vrot.lane.b32.xlu0 %v5909, 14
      %v6800 = vpop.permute.xlu0 %6799
      %6801 = vrot.lane.b32.xlu0 %v5910, 14
      %v6802 = vpop.permute.xlu0 %6801
      %6803 = vrot.lane.b32.xlu0 %v5911, 14
      %v6804 = vpop.permute.xlu0 %6803
      %6805 = vrot.lane.b32.xlu0 %v5912, 14
      %v6806 = vpop.permute.xlu0 %6805
      %6807 = vrot.lane.b32.xlu0 %v5913, 14
      %v6808 = vpop.permute.xlu0 %6807
      %6809 = vrot.lane.b32.xlu0 %v5914, 14
      %v6810 = vpop.permute.xlu0 %6809
      %6875 = vrot.lane.b32.xlu0 %v5915, 16
      %v6876 = vpop.permute.xlu0 %6875
      %6877 = vrot.lane.b32.xlu0 %v5916, 16
      %v6878 = vpop.permute.xlu0 %6877
      %6879 = vrot.lane.b32.xlu0 %v5917, 16
      %v6880 = vpop.permute.xlu0 %6879
      %6881 = vrot.lane.b32.xlu0 %v5918, 16
      %v6882 = vpop.permute.xlu0 %6881
      %6883 = vrot.lane.b32.xlu0 %v5919, 16
      %v6884 = vpop.permute.xlu0 %6883
      %6885 = vrot.lane.b32.xlu0 %v5920, 16
      %v6886 = vpop.permute.xlu0 %6885
      %6887 = vrot.lane.b32.xlu0 %v5921, 16
      %v6888 = vpop.permute.xlu0 %6887
      %6889 = vrot.lane.b32.xlu0 %v5922, 16
      %v6890 = vpop.permute.xlu0 %6889
      %6891 = vrot.lane.b32.xlu0 %v5923, 16
      %v6892 = vpop.permute.xlu0 %6891
      %6893 = vrot.lane.b32.xlu0 %v5924, 16
      %v6894 = vpop.permute.xlu0 %6893
      %6895 = vrot.lane.b32.xlu0 %v5925, 16
      %v6896 = vpop.permute.xlu0 %6895
      %6897 = vrot.lane.b32.xlu0 %v5926, 16
      %v6898 = vpop.permute.xlu0 %6897
      %6899 = vrot.lane.b32.xlu0 %v5927, 16
      %v6900 = vpop.permute.xlu0 %6899
      %6901 = vrot.lane.b32.xlu0 %v5928, 16
      %v6902 = vpop.permute.xlu0 %6901
      %6903 = vrot.lane.b32.xlu0 %v5929, 16
      %v6904 = vpop.permute.xlu0 %6903
      %6905 = vrot.lane.b32.xlu0 %v5930, 16
      %v6906 = vpop.permute.xlu0 %6905
      %6907 = vrot.lane.b32.xlu0 %v5931, 16
      %v6908 = vpop.permute.xlu0 %6907
      %6909 = vrot.lane.b32.xlu0 %v5932, 16
      %v6910 = vpop.permute.xlu0 %6909
      %6911 = vrot.lane.b32.xlu0 %v5933, 16
      %v6912 = vpop.permute.xlu0 %6911
      %6913 = vrot.lane.b32.xlu0 %v5934, 16
      %v6914 = vpop.permute.xlu0 %6913
      %6915 = vrot.lane.b32.xlu0 %v5935, 16
      %v6916 = vpop.permute.xlu0 %6915
      %6917 = vrot.lane.b32.xlu0 %v5936, 16
      %v6918 = vpop.permute.xlu0 %6917
      %6919 = vrot.lane.b32.xlu0 %v5937, 16
      %v6920 = vpop.permute.xlu0 %6919
      %6921 = vrot.lane.b32.xlu0 %v5938, 16
      %v6922 = vpop.permute.xlu0 %6921
      %6923 = vrot.lane.b32.xlu0 %v5939, 16
      %v6924 = vpop.permute.xlu0 %6923
      %6925 = vrot.lane.b32.xlu0 %v5940, 16
      %v6926 = vpop.permute.xlu0 %6925
      %6927 = vrot.lane.b32.xlu0 %v5941, 16
      %v6928 = vpop.permute.xlu0 %6927
      %6929 = vrot.lane.b32.xlu0 %v5942, 16
      %v6930 = vpop.permute.xlu0 %6929
      %6931 = vrot.lane.b32.xlu0 %v5943, 16
      %v6932 = vpop.permute.xlu0 %6931
      %6933 = vrot.lane.b32.xlu0 %v5944, 16
      %v6934 = vpop.permute.xlu0 %6933
      %6935 = vrot.lane.b32.xlu0 %v5945, 16
      %v6936 = vpop.permute.xlu0 %6935
      %6937 = vrot.lane.b32.xlu0 %v5946, 16
      %v6938 = vpop.permute.xlu0 %6937
      %v6971 = vsel %vm794, %v5658, %v5980
      %v6972 = vsel %vm794, %v5659, %v5982
      %v6973 = vsel %vm794, %v5660, %v5984
      %v6974 = vsel %vm794, %v5661, %v5986
      %v6975 = vsel %vm794, %v5662, %v5988
      %v6976 = vsel %vm794, %v5663, %v5990
      %v6977 = vsel %vm794, %v5664, %v5992
      %v6978 = vsel %vm794, %v5665, %v5994
      %v6979 = vsel %vm794, %v5666, %v5996
      %v6980 = vsel %vm794, %v5667, %v5998
      %v6981 = vsel %vm794, %v5668, %v6000
      %v6982 = vsel %vm794, %v5669, %v6002
      %v6983 = vsel %vm794, %v5670, %v6004
      %v6984 = vsel %vm794, %v5671, %v6006
      %v6985 = vsel %vm794, %v5672, %v6008
      %v6986 = vsel %vm794, %v5673, %v6010
      %v6987 = vsel %vm794, %v5674, %v6012
      %v6988 = vsel %vm794, %v5675, %v6014
      %v6989 = vsel %vm794, %v5676, %v6016
      %v6990 = vsel %vm794, %v5677, %v6018
      %v6991 = vsel %vm794, %v5678, %v6020
      %v6992 = vsel %vm794, %v5679, %v6022
      %v6993 = vsel %vm794, %v5680, %v6024
      %v6994 = vsel %vm794, %v5681, %v6026
      %v6995 = vsel %vm794, %v5682, %v6028
      %v6996 = vsel %vm794, %v5683, %v6030
      %v6997 = vsel %vm794, %v5684, %v6032
      %v6998 = vsel %vm794, %v5685, %v6034
      %v6999 = vsel %vm794, %v5686, %v6036
      %v7000 = vsel %vm794, %v5687, %v6038
      %v7001 = vsel %vm794, %v5688, %v6040
      %v7002 = vsel %vm794, %v5689, %v6042
      %v7003 = vsel %vm3010, %v6971, %v6108
      %v7004 = vsel %vm3010, %v6972, %v6110
      %v7005 = vsel %vm3010, %v6973, %v6112
      %v7006 = vsel %vm3010, %v6974, %v6114
      %v7007 = vsel %vm3010, %v6975, %v6116
      %v7008 = vsel %vm3010, %v6976, %v6118
      %v7009 = vsel %vm3010, %v6977, %v6120
      %v7010 = vsel %vm3010, %v6978, %v6122
      %v7011 = vsel %vm3010, %v6979, %v6124
      %v7012 = vsel %vm3010, %v6980, %v6126
      %v7013 = vsel %vm3010, %v6981, %v6128
      %v7014 = vsel %vm3010, %v6982, %v6130
      %v7015 = vsel %vm3010, %v6983, %v6132
      %v7016 = vsel %vm3010, %v6984, %v6134
      %v7017 = vsel %vm3010, %v6985, %v6136
      %v7018 = vsel %vm3010, %v6986, %v6138
      %v7019 = vsel %vm3010, %v6987, %v6140
      %v7020 = vsel %vm3010, %v6988, %v6142
      %v7021 = vsel %vm3010, %v6989, %v6144
      %v7022 = vsel %vm3010, %v6990, %v6146
      %v7023 = vsel %vm3010, %v6991, %v6148
      %v7024 = vsel %vm3010, %v6992, %v6150
      %v7025 = vsel %vm3010, %v6993, %v6152
      %v7026 = vsel %vm3010, %v6994, %v6154
      %v7027 = vsel %vm3010, %v6995, %v6156
      %v7028 = vsel %vm3010, %v6996, %v6158
      %v7029 = vsel %vm3010, %v6997, %v6160
      %v7030 = vsel %vm3010, %v6998, %v6162
      %v7031 = vsel %vm3010, %v6999, %v6164
      %v7032 = vsel %vm3010, %v7000, %v6166
      %v7033 = vsel %vm3010, %v7001, %v6168
      %v7034 = vsel %vm3010, %v7002, %v6170
      %v7035 = vsel %vm3043, %v7003, %v6236
      %v7036 = vsel %vm3043, %v7004, %v6238
      %v7037 = vsel %vm3043, %v7005, %v6240
      %v7038 = vsel %vm3043, %v7006, %v6242
      %v7039 = vsel %vm3043, %v7007, %v6244
      %v7040 = vsel %vm3043, %v7008, %v6246
      %v7041 = vsel %vm3043, %v7009, %v6248
      %v7042 = vsel %vm3043, %v7010, %v6250
      %v7043 = vsel %vm3043, %v7011, %v6252
      %v7044 = vsel %vm3043, %v7012, %v6254
      %v7045 = vsel %vm3043, %v7013, %v6256
      %v7046 = vsel %vm3043, %v7014, %v6258
      %v7047 = vsel %vm3043, %v7015, %v6260
      %v7048 = vsel %vm3043, %v7016, %v6262
      %v7049 = vsel %vm3043, %v7017, %v6264
      %v7050 = vsel %vm3043, %v7018, %v6266
      %v7051 = vsel %vm3043, %v7019, %v6268
      %v7052 = vsel %vm3043, %v7020, %v6270
      %v7053 = vsel %vm3043, %v7021, %v6272
      %v7054 = vsel %vm3043, %v7022, %v6274
      %v7055 = vsel %vm3043, %v7023, %v6276
      %v7056 = vsel %vm3043, %v7024, %v6278
      %v7057 = vsel %vm3043, %v7025, %v6280
      %v7058 = vsel %vm3043, %v7026, %v6282
      %v7059 = vsel %vm3043, %v7027, %v6284
      %v7060 = vsel %vm3043, %v7028, %v6286
      %v7061 = vsel %vm3043, %v7029, %v6288
      %v7062 = vsel %vm3043, %v7030, %v6290
      %v7063 = vsel %vm3043, %v7031, %v6292
      %v7064 = vsel %vm3043, %v7032, %v6294
      %v7065 = vsel %vm3043, %v7033, %v6296
      %v7066 = vsel %vm3043, %v7034, %v6298
      %v7067 = vsel %vm3076, %v7035, %v6364
      %v7068 = vsel %vm3076, %v7036, %v6366
      %v7069 = vsel %vm3076, %v7037, %v6368
      %v7070 = vsel %vm3076, %v7038, %v6370
      %v7071 = vsel %vm3076, %v7039, %v6372
      %v7072 = vsel %vm3076, %v7040, %v6374
      %v7073 = vsel %vm3076, %v7041, %v6376
      %v7074 = vsel %vm3076, %v7042, %v6378
      %v7075 = vsel %vm3076, %v7043, %v6380
      %v7076 = vsel %vm3076, %v7044, %v6382
      %v7077 = vsel %vm3076, %v7045, %v6384
      %v7078 = vsel %vm3076, %v7046, %v6386
      %v7079 = vsel %vm3076, %v7047, %v6388
      %v7080 = vsel %vm3076, %v7048, %v6390
      %v7081 = vsel %vm3076, %v7049, %v6392
      %v7082 = vsel %vm3076, %v7050, %v6394
      %v7083 = vsel %vm3076, %v7051, %v6396
      %v7084 = vsel %vm3076, %v7052, %v6398
      %v7085 = vsel %vm3076, %v7053, %v6400
      %v7086 = vsel %vm3076, %v7054, %v6402
      %v7087 = vsel %vm3076, %v7055, %v6404
      %v7088 = vsel %vm3076, %v7056, %v6406
      %v7089 = vsel %vm3076, %v7057, %v6408
      %v7090 = vsel %vm3076, %v7058, %v6410
      %v7091 = vsel %vm3076, %v7059, %v6412
      %v7092 = vsel %vm3076, %v7060, %v6414
      %v7093 = vsel %vm3076, %v7061, %v6416
      %v7094 = vsel %vm3076, %v7062, %v6418
      %v7095 = vsel %vm3076, %v7063, %v6420
      %v7096 = vsel %vm3076, %v7064, %v6422
      %v7097 = vsel %vm3076, %v7065, %v6424
      %v7098 = vsel %vm3076, %v7066, %v6426
      %v7099 = vsel %vm3109, %v7067, %v6492
      %v7100 = vsel %vm3109, %v7068, %v6494
      %v7101 = vsel %vm3109, %v7069, %v6496
      %v7102 = vsel %vm3109, %v7070, %v6498
      %v7103 = vsel %vm3109, %v7071, %v6500
      %v7104 = vsel %vm3109, %v7072, %v6502
      %v7105 = vsel %vm3109, %v7073, %v6504
      %v7106 = vsel %vm3109, %v7074, %v6506
      %v7107 = vsel %vm3109, %v7075, %v6508
      %v7108 = vsel %vm3109, %v7076, %v6510
      %v7109 = vsel %vm3109, %v7077, %v6512
      %v7110 = vsel %vm3109, %v7078, %v6514
      %v7111 = vsel %vm3109, %v7079, %v6516
      %v7112 = vsel %vm3109, %v7080, %v6518
      %v7113 = vsel %vm3109, %v7081, %v6520
      %v7114 = vsel %vm3109, %v7082, %v6522
      %v7115 = vsel %vm3109, %v7083, %v6524
      %v7116 = vsel %vm3109, %v7084, %v6526
      %v7117 = vsel %vm3109, %v7085, %v6528
      %v7118 = vsel %vm3109, %v7086, %v6530
      %v7119 = vsel %vm3109, %v7087, %v6532
      %v7120 = vsel %vm3109, %v7088, %v6534
      %v7121 = vsel %vm3109, %v7089, %v6536
      %v7122 = vsel %vm3109, %v7090, %v6538
      %v7123 = vsel %vm3109, %v7091, %v6540
      %v7124 = vsel %vm3109, %v7092, %v6542
      %v7125 = vsel %vm3109, %v7093, %v6544
      %v7126 = vsel %vm3109, %v7094, %v6546
      %v7127 = vsel %vm3109, %v7095, %v6548
      %v7128 = vsel %vm3109, %v7096, %v6550
      %v7129 = vsel %vm3109, %v7097, %v6552
      %v7130 = vsel %vm3109, %v7098, %v6554
      %v7131 = vsel %vm3142, %v7099, %v6620
      %v7132 = vsel %vm3142, %v7100, %v6622
      %v7133 = vsel %vm3142, %v7101, %v6624
      %v7134 = vsel %vm3142, %v7102, %v6626
      %v7135 = vsel %vm3142, %v7103, %v6628
      %v7136 = vsel %vm3142, %v7104, %v6630
      %v7137 = vsel %vm3142, %v7105, %v6632
      %v7138 = vsel %vm3142, %v7106, %v6634
      %v7139 = vsel %vm3142, %v7107, %v6636
      %v7140 = vsel %vm3142, %v7108, %v6638
      %v7141 = vsel %vm3142, %v7109, %v6640
      %v7142 = vsel %vm3142, %v7110, %v6642
      %v7143 = vsel %vm3142, %v7111, %v6644
      %v7144 = vsel %vm3142, %v7112, %v6646
      %v7145 = vsel %vm3142, %v7113, %v6648
      %v7146 = vsel %vm3142, %v7114, %v6650
      %v7147 = vsel %vm3142, %v7115, %v6652
      %v7148 = vsel %vm3142, %v7116, %v6654
      %v7149 = vsel %vm3142, %v7117, %v6656
      %v7150 = vsel %vm3142, %v7118, %v6658
      %v7151 = vsel %vm3142, %v7119, %v6660
      %v7152 = vsel %vm3142, %v7120, %v6662
      %v7153 = vsel %vm3142, %v7121, %v6664
      %v7154 = vsel %vm3142, %v7122, %v6666
      %v7155 = vsel %vm3142, %v7123, %v6668
      %v7156 = vsel %vm3142, %v7124, %v6670
      %v7157 = vsel %vm3142, %v7125, %v6672
      %v7158 = vsel %vm3142, %v7126, %v6674
      %v7159 = vsel %vm3142, %v7127, %v6676
      %v7160 = vsel %vm3142, %v7128, %v6678
      %v7161 = vsel %vm3142, %v7129, %v6680
      %v7162 = vsel %vm3142, %v7130, %v6682
      %v7163 = vsel %vm3175, %v7131, %v6748
      %v7164 = vsel %vm3175, %v7132, %v6750
      %v7165 = vsel %vm3175, %v7133, %v6752
      %v7166 = vsel %vm3175, %v7134, %v6754
      %v7167 = vsel %vm3175, %v7135, %v6756
      %v7168 = vsel %vm3175, %v7136, %v6758
      %v7169 = vsel %vm3175, %v7137, %v6760
      %v7170 = vsel %vm3175, %v7138, %v6762
      %v7171 = vsel %vm3175, %v7139, %v6764
      %v7172 = vsel %vm3175, %v7140, %v6766
      %v7173 = vsel %vm3175, %v7141, %v6768
      %v7174 = vsel %vm3175, %v7142, %v6770
      %v7175 = vsel %vm3175, %v7143, %v6772
      %v7176 = vsel %vm3175, %v7144, %v6774
      %v7177 = vsel %vm3175, %v7145, %v6776
      %v7178 = vsel %vm3175, %v7146, %v6778
      %v7179 = vsel %vm3175, %v7147, %v6780
      %v7180 = vsel %vm3175, %v7148, %v6782
      %v7181 = vsel %vm3175, %v7149, %v6784
      %v7182 = vsel %vm3175, %v7150, %v6786
      %v7183 = vsel %vm3175, %v7151, %v6788
      %v7184 = vsel %vm3175, %v7152, %v6790
      %v7185 = vsel %vm3175, %v7153, %v6792
      %v7186 = vsel %vm3175, %v7154, %v6794
      %v7187 = vsel %vm3175, %v7155, %v6796
      %v7188 = vsel %vm3175, %v7156, %v6798
      %v7189 = vsel %vm3175, %v7157, %v6800
      %v7190 = vsel %vm3175, %v7158, %v6802
      %v7191 = vsel %vm3175, %v7159, %v6804
      %v7192 = vsel %vm3175, %v7160, %v6806
      %v7193 = vsel %vm3175, %v7161, %v6808
      %v7194 = vsel %vm3175, %v7162, %v6810
      %v7195 = vsel %vm394, %v7163, %v6876
      %v7196 = vsel %vm394, %v7164, %v6878
      %v7197 = vsel %vm394, %v7165, %v6880
      %v7198 = vsel %vm394, %v7166, %v6882
      %v7199 = vsel %vm394, %v7167, %v6884
      %v7200 = vsel %vm394, %v7168, %v6886
      %v7201 = vsel %vm394, %v7169, %v6888
      %v7202 = vsel %vm394, %v7170, %v6890
      %v7203 = vsel %vm394, %v7171, %v6892
      %v7204 = vsel %vm394, %v7172, %v6894
      %v7205 = vsel %vm394, %v7173, %v6896
      %v7206 = vsel %vm394, %v7174, %v6898
      %v7207 = vsel %vm394, %v7175, %v6900
      %v7208 = vsel %vm394, %v7176, %v6902
      %v7209 = vsel %vm394, %v7177, %v6904
      %v7210 = vsel %vm394, %v7178, %v6906
      %v7211 = vsel %vm394, %v7179, %v6908
      %v7212 = vsel %vm394, %v7180, %v6910
      %v7213 = vsel %vm394, %v7181, %v6912
      %v7214 = vsel %vm394, %v7182, %v6914
      %v7215 = vsel %vm394, %v7183, %v6916
      %v7216 = vsel %vm394, %v7184, %v6918
      %v7217 = vsel %vm394, %v7185, %v6920
      %v7218 = vsel %vm394, %v7186, %v6922
      %v7219 = vsel %vm394, %v7187, %v6924
      %v7220 = vsel %vm394, %v7188, %v6926
      %v7221 = vsel %vm394, %v7189, %v6928
      %v7222 = vsel %vm394, %v7190, %v6930
      %v7223 = vsel %vm394, %v7191, %v6932
      %v7224 = vsel %vm394, %v7192, %v6934
      %v7225 = vsel %vm394, %v7193, %v6936
      %v7226 = vsel %vm394, %v7194, %v6938
      %s7227 = scalar_lea.vmem %s4, 48
      %v7228 = vld [vmem:[%s7227] sm:$0xff]
      %v7229 = vld [vmem:[%s7227 + $0x8] sm:$0xff]
      %v7230 = vld [vmem:[%s7227 + $0x10] sm:$0x3]
      %v7232 = vsel %vm3243, %v7195, 0
      %v7235 = vsel %vm3243, %v7196, 0
      %v7238 = vsel %vm3243, %v7197, 0
      %v7241 = vsel %vm3243, %v7198, 0
      %v7244 = vsel %vm3243, %v7199, 0
      %v7247 = vsel %vm3243, %v7200, 0
      %v7250 = vsel %vm3243, %v7201, 0
      %v7253 = vsel %vm3243, %v7202, 0
      %v7256 = vsel %vm3243, %v7203, 0
      %v7259 = vsel %vm3243, %v7204, 0
      %v7262 = vsel %vm3243, %v7205, 0
      %v7265 = vsel %vm3243, %v7206, 0
      %v7268 = vsel %vm3243, %v7207, 0
      %v7271 = vsel %vm3243, %v7208, 0
      %v7274 = vsel %vm3243, %v7209, 0
      %v7277 = vsel %vm3243, %v7210, 0
      %v7280 = vsel %vm3243, %v7211, 0
      %v7283 = vsel %vm3243, %v7212, 0
      %v7286 = vsel %vm3243, %v7213, 0
      %v7289 = vsel %vm3243, %v7214, 0
      %v7292 = vsel %vm3243, %v7215, 0
      %v7295 = vsel %vm3243, %v7216, 0
      %v7298 = vsel %vm3243, %v7217, 0
      %v7301 = vsel %vm3243, %v7218, 0
      %v7304 = vsel %vm3243, %v7219, 0
      %v7307 = vsel %vm3243, %v7220, 0
      %v7310 = vsel %vm3243, %v7221, 0
      %v7313 = vsel %vm3243, %v7222, 0
      %v7316 = vsel %vm3243, %v7223, 0
      %v7319 = vsel %vm3243, %v7224, 0
      %v7322 = vsel %vm3243, %v7225, 0
      %v7325 = vsel %vm3243, %v7226, 0
      %v7328 = vsel %vm3340, %v7230, 0
      %7330 = vmatprep.subr.mxu0 0.0
      %7331 = vmatpush1.msra.mxu0 %v7228
      %7332 = vmatprep.subr.mxu0 0.0
      %7333 = vmatpush1.msra.mxu0 %v7229
      %7334 = vmatprep.subr.mxu0 0.0
      %7335 = vmatpush1.msra.mxu0 %v7328
      %7336 = vmatprep.subr.mxu0 0.0
      %7337 = vmatpush1.msra.mxu0 0.0
      %7338 = vmatprep.subr.mxu0 0.0
      %7339 = vmatpush1.msra.mxu0 0.0
      %7340 = vmatprep.subr.mxu0 0.0
      %7341 = vmatpush1.msra.mxu0 0.0
      %7342 = vmatprep.subr.mxu0 0.0
      %7343 = vmatpush1.msra.mxu0 0.0
      %7344 = vmatprep.subr.mxu0 0.0
      %7345 = vmatpush1.msra.mxu0 0.0
      %7346 = vmatprep.subr.mxu0 0.0
      %7347 = vmatpush1.msra.mxu0 0.0
      %7348 = vmatprep.subr.mxu0 0.0
      %7349 = vmatpush1.msra.mxu0 0.0
      %7350 = vmatprep.subr.mxu0 0.0
      %7351 = vmatpush1.msra.mxu0 0.0
      %7352 = vmatprep.subr.mxu0 0.0
      %7353 = vmatpush1.msra.mxu0 0.0
      %7354 = vmatprep.subr.mxu0 0.0
      %7355 = vmatpush1.msra.mxu0 0.0
      %7356 = vmatprep.subr.mxu0 0.0
      %7357 = vmatpush1.msra.mxu0 0.0
      %7358 = vmatprep.subr.mxu0 0.0
      %7359 = vmatpush1.msra.mxu0 0.0
      %7360 = vmatprep.subr.mxu0 0.0
      %7361 = vmatpush1.msra.mxu0 0.0
      %7362 = vmatprep.subr.mxu0 0.0
      %7363 = vmatpush1.msra.mxu0 0.0
      %7364 = vmatprep.subr.mxu0 0.0
      %7365 = vmatpush1.msra.mxu0 0.0
      %7366 = vmatprep.subr.mxu0 0.0
      %7367 = vmatpush1.msra.mxu0 0.0
      %7368 = vmatprep.subr.mxu0 0.0
      %7369 = vmatpush1.msra.mxu0 0.0
      %7370 = vmatprep.subr.mxu0 0.0
      %7371 = vmatpush1.msra.mxu0 0.0
      %7372 = vmatprep.subr.mxu0 0.0
      %7373 = vmatpush1.msra.mxu0 0.0
      %7374 = vmatprep.subr.mxu0 0.0
      %7375 = vmatpush1.msra.mxu0 0.0
      %7376 = vmatprep.subr.mxu0 0.0
      %7377 = vmatpush1.msra.mxu0 0.0
      %7378 = vmatprep.subr.mxu0 0.0
      %7379 = vmatpush1.msra.mxu0 0.0
      %7380 = vmatprep.subr.mxu0 0.0
      %7381 = vmatpush1.msra.mxu0 0.0
      %7382 = vmatprep.subr.mxu0 0.0
      %7383 = vmatpush1.msra.mxu0 0.0
      %7384 = vmatprep.subr.mxu0 0.0
      %7385 = vmatpush1.msra.mxu0 0.0
      %7386 = vmatprep.subr.mxu0 0.0
      %7387 = vmatpush1.msra.mxu0 0.0
      %7388 = vmatprep.subr.mxu0 0.0
      %7389 = vmatpush1.msra.mxu0 0.0
      %7390 = vmatprep.subr.mxu0 0.0
      %7391 = vmatpush1.msra.mxu0 0.0
      %7392 = vmatprep.subr.mxu0 0.0
      %7393 = vmatpush1.msra.mxu0 0.0
      %7394 = vmatprep.mubr.f32.mxu0 0.0
      %7395 = vmatmul.mubr.f32.gmra.mrb[0].mxu0 %v7232
      %v7396 = vpop.f32.mrb[0].mxu0
      %v7397 = vadd.f32 0.0, %v7396
      %v7398 = vpop.f32.mrb[0].mxu0
      %7399 = vmatprep.mubr.f32.mxu0 0.0
      %7400 = vmatmul.mubr.f32.gmra.mrb[0].mxu0 %v7235
      %v7401 = vpop.f32.mrb[0].mxu0
      %v7402 = vadd.f32 0.0, %v7401
      %v7403 = vpop.f32.mrb[0].mxu0
      %7404 = vmatprep.mubr.f32.mxu0 0.0
      %7405 = vmatmul.mubr.f32.gmra.mrb[0].mxu0 %v7238
      %v7406 = vpop.f32.mrb[0].mxu0
      %v7407 = vadd.f32 0.0, %v7406
      %v7408 = vpop.f32.mrb[0].mxu0
      %7409 = vmatprep.mubr.f32.mxu0 0.0
      %7410 = vmatmul.mubr.f32.gmra.mrb[0].mxu0 %v7241
      %v7411 = vpop.f32.mrb[0].mxu0
      %v7412 = vadd.f32 0.0, %v7411
      %v7413 = vpop.f32.mrb[0].mxu0
      %7414 = vmatprep.mubr.f32.mxu0 0.0
      %7415 = vmatmul.mubr.f32.gmra.mrb[0].mxu0 %v7244
      %v7416 = vpop.f32.mrb[0].mxu0
      %v7417 = vadd.f32 0.0, %v7416
      %v7418 = vpop.f32.mrb[0].mxu0
      %7419 = vmatprep.mubr.f32.mxu0 0.0
      %7420 = vmatmul.mubr.f32.gmra.mrb[0].mxu0 %v7247
      %v7421 = vpop.f32.mrb[0].mxu0
      %v7422 = vadd.f32 0.0, %v7421
      %v7423 = vpop.f32.mrb[0].mxu0
      %7424 = vmatprep.mubr.f32.mxu0 0.0
      %7425 = vmatmul.mubr.f32.gmra.mrb[0].mxu0 %v7250
      %v7426 = vpop.f32.mrb[0].mxu0
      %v7427 = vadd.f32 0.0, %v7426
      %v7428 = vpop.f32.mrb[0].mxu0
      %7429 = vmatprep.mubr.f32.mxu0 0.0
      %7430 = vmatmul.mubr.f32.gmra.mrb[0].mxu0 %v7253
      %v7431 = vpop.f32.mrb[0].mxu0
      %v7432 = vadd.f32 0.0, %v7431
      %v7433 = vpop.f32.mrb[0].mxu0
      %7434 = vmatprep.mubr.f32.mxu0 0.0
      %7435 = vmatmul.mubr.f32.gmra.mrb[0].mxu0 %v7256
      %v7436 = vpop.f32.mrb[0].mxu0
      %v7437 = vadd.f32 0.0, %v7436
      %v7438 = vpop.f32.mrb[0].mxu0
      %7439 = vmatprep.mubr.f32.mxu0 0.0
      %7440 = vmatmul.mubr.f32.gmra.mrb[0].mxu0 %v7259
      %v7441 = vpop.f32.mrb[0].mxu0
      %v7442 = vadd.f32 0.0, %v7441
      %v7443 = vpop.f32.mrb[0].mxu0
      %7444 = vmatprep.mubr.f32.mxu0 0.0
      %7445 = vmatmul.mubr.f32.gmra.mrb[0].mxu0 %v7262
      %v7446 = vpop.f32.mrb[0].mxu0
      %v7447 = vadd.f32 0.0, %v7446
      %v7448 = vpop.f32.mrb[0].mxu0
      %7449 = vmatprep.mubr.f32.mxu0 0.0
      %7450 = vmatmul.mubr.f32.gmra.mrb[0].mxu0 %v7265
      %v7451 = vpop.f32.mrb[0].mxu0
      %v7452 = vadd.f32 0.0, %v7451
      %v7453 = vpop.f32.mrb[0].mxu0
      %7454 = vmatprep.mubr.f32.mxu0 0.0
      %7455 = vmatmul.mubr.f32.gmra.mrb[0].mxu0 %v7268
      %v7456 = vpop.f32.mrb[0].mxu0
      %v7457 = vadd.f32 0.0, %v7456
      %v7458 = vpop.f32.mrb[0].mxu0
      %7459 = vmatprep.mubr.f32.mxu0 0.0
      %7460 = vmatmul.mubr.f32.gmra.mrb[0].mxu0 %v7271
      %v7461 = vpop.f32.mrb[0].mxu0
      %v7462 = vadd.f32 0.0, %v7461
      %v7463 = vpop.f32.mrb[0].mxu0
      %7464 = vmatprep.mubr.f32.mxu0 0.0
      %7465 = vmatmul.mubr.f32.gmra.mrb[0].mxu0 %v7274
      %v7466 = vpop.f32.mrb[0].mxu0
      %v7467 = vadd.f32 0.0, %v7466
      %v7468 = vpop.f32.mrb[0].mxu0
      %7469 = vmatprep.mubr.f32.mxu0 0.0
      %7470 = vmatmul.mubr.f32.gmra.mrb[0].mxu0 %v7277
      %v7471 = vpop.f32.mrb[0].mxu0
      %v7472 = vadd.f32 0.0, %v7471
      %v7473 = vpop.f32.mrb[0].mxu0
      %7474 = vmatprep.mubr.f32.mxu0 0.0
      %7475 = vmatmul.mubr.f32.gmra.mrb[0].mxu0 %v7280
      %v7476 = vpop.f32.mrb[0].mxu0
      %v7477 = vadd.f32 0.0, %v7476
      %v7478 = vpop.f32.mrb[0].mxu0
      %7479 = vmatprep.mubr.f32.mxu0 0.0
      %7480 = vmatmul.mubr.f32.gmra.mrb[0].mxu0 %v7283
      %v7481 = vpop.f32.mrb[0].mxu0
      %v7482 = vadd.f32 0.0, %v7481
      %v7483 = vpop.f32.mrb[0].mxu0
      %7484 = vmatprep.mubr.f32.mxu0 0.0
      %7485 = vmatmul.mubr.f32.gmra.mrb[0].mxu0 %v7286
      %v7486 = vpop.f32.mrb[0].mxu0
      %v7487 = vadd.f32 0.0, %v7486
      %v7488 = vpop.f32.mrb[0].mxu0
      %7489 = vmatprep.mubr.f32.mxu0 0.0
      %7490 = vmatmul.mubr.f32.gmra.mrb[0].mxu0 %v7289
      %v7491 = vpop.f32.mrb[0].mxu0
      %v7492 = vadd.f32 0.0, %v7491
      %v7493 = vpop.f32.mrb[0].mxu0
      %7494 = vmatprep.mubr.f32.mxu0 0.0
      %7495 = vmatmul.mubr.f32.gmra.mrb[0].mxu0 %v7292
      %v7496 = vpop.f32.mrb[0].mxu0
      %v7497 = vadd.f32 0.0, %v7496
      %v7498 = vpop.f32.mrb[0].mxu0
      %7499 = vmatprep.mubr.f32.mxu0 0.0
      %7500 = vmatmul.mubr.f32.gmra.mrb[0].mxu0 %v7295
      %v7501 = vpop.f32.mrb[0].mxu0
      %v7502 = vadd.f32 0.0, %v7501
      %v7503 = vpop.f32.mrb[0].mxu0
      %7504 = vmatprep.mubr.f32.mxu0 0.0
      %7505 = vmatmul.mubr.f32.gmra.mrb[0].mxu0 %v7298
      %v7506 = vpop.f32.mrb[0].mxu0
      %v7507 = vadd.f32 0.0, %v7506
      %v7508 = vpop.f32.mrb[0].mxu0
      %7509 = vmatprep.mubr.f32.mxu0 0.0
      %7510 = vmatmul.mubr.f32.gmra.mrb[0].mxu0 %v7301
      %v7511 = vpop.f32.mrb[0].mxu0
      %v7512 = vadd.f32 0.0, %v7511
      %v7513 = vpop.f32.mrb[0].mxu0
      %7514 = vmatprep.mubr.f32.mxu0 0.0
      %7515 = vmatmul.mubr.f32.gmra.mrb[0].mxu0 %v7304
      %v7516 = vpop.f32.mrb[0].mxu0
      %v7517 = vadd.f32 0.0, %v7516
      %v7518 = vpop.f32.mrb[0].mxu0
      %7519 = vmatprep.mubr.f32.mxu0 0.0
      %7520 = vmatmul.mubr.f32.gmra.mrb[0].mxu0 %v7307
      %v7521 = vpop.f32.mrb[0].mxu0
      %v7522 = vadd.f32 0.0, %v7521
      %v7523 = vpop.f32.mrb[0].mxu0
      %7524 = vmatprep.mubr.f32.mxu0 0.0
      %7525 = vmatmul.mubr.f32.gmra.mrb[0].mxu0 %v7310
      %v7526 = vpop.f32.mrb[0].mxu0
      %v7527 = vadd.f32 0.0, %v7526
      %v7528 = vpop.f32.mrb[0].mxu0
      %7529 = vmatprep.mubr.f32.mxu0 0.0
      %7530 = vmatmul.mubr.f32.gmra.mrb[0].mxu0 %v7313
      %v7531 = vpop.f32.mrb[0].mxu0
      %v7532 = vadd.f32 0.0, %v7531
      %v7533 = vpop.f32.mrb[0].mxu0
      %7534 = vmatprep.mubr.f32.mxu0 0.0
      %7535 = vmatmul.mubr.f32.gmra.mrb[0].mxu0 %v7316
      %v7536 = vpop.f32.mrb[0].mxu0
      %v7537 = vadd.f32 0.0, %v7536
      %v7538 = vpop.f32.mrb[0].mxu0
      %7539 = vmatprep.mubr.f32.mxu0 0.0
      %7540 = vmatmul.mubr.f32.gmra.mrb[0].mxu0 %v7319
      %v7541 = vpop.f32.mrb[0].mxu0
      %v7542 = vadd.f32 0.0, %v7541
      %v7543 = vpop.f32.mrb[0].mxu0
      %7544 = vmatprep.mubr.f32.mxu0 0.0
      %7545 = vmatmul.mubr.f32.gmra.mrb[0].mxu0 %v7322
      %v7546 = vpop.f32.mrb[0].mxu0
      %v7547 = vadd.f32 0.0, %v7546
      %v7548 = vpop.f32.mrb[0].mxu0
      %7549 = vmatprep.mubr.f32.mxu0 0.0
      %7550 = vmatmul.mubr.f32.gmra.mrb[0].mxu0 %v7325
      %v7551 = vpop.f32.mrb[0].mxu0
      %v7552 = vadd.f32 0.0, %v7551
      %v7553 = vpop.f32.mrb[0].mxu0
      %7554 = vdwg.mxu0
      %s7555 = scalar_lea.vmem %s5, 2
      %v7556 = vld [vmem:[%s7555] sm:$0x1]
      %v7558 = vlaneseq
      %v7559 = vshrl.u32 %v7558, 7
      %v7560 = vsub.s32 0, %v7559
      %v7561 = vrot.slane %v7556, %v7560
      %v7563 = vmul.f32 %v7397, %v7561
      %v7564 = vmul.f32 %v7402, %v7561
      %v7565 = vmul.f32 %v7407, %v7561
      %v7566 = vmul.f32 %v7412, %v7561
      %v7567 = vmul.f32 %v7417, %v7561
      %v7568 = vmul.f32 %v7422, %v7561
      %v7569 = vmul.f32 %v7427, %v7561
      %v7570 = vmul.f32 %v7432, %v7561
      %v7571 = vmul.f32 %v7437, %v7561
      %v7572 = vmul.f32 %v7442, %v7561
      %v7573 = vmul.f32 %v7447, %v7561
      %v7574 = vmul.f32 %v7452, %v7561
      %v7575 = vmul.f32 %v7457, %v7561
      %v7576 = vmul.f32 %v7462, %v7561
      %v7577 = vmul.f32 %v7467, %v7561
      %v7578 = vmul.f32 %v7472, %v7561
      %v7579 = vmul.f32 %v7477, %v7561
      %v7580 = vmul.f32 %v7482, %v7561
      %v7581 = vmul.f32 %v7487, %v7561
      %v7582 = vmul.f32 %v7492, %v7561
      %v7583 = vmul.f32 %v7497, %v7561
      %v7584 = vmul.f32 %v7502, %v7561
      %v7585 = vmul.f32 %v7507, %v7561
      %v7586 = vmul.f32 %v7512, %v7561
      %v7587 = vmul.f32 %v7517, %v7561
      %v7588 = vmul.f32 %v7522, %v7561
      %v7589 = vmul.f32 %v7527, %v7561
      %v7590 = vmul.f32 %v7532, %v7561
      %v7591 = vmul.f32 %v7537, %v7561
      %v7592 = vmul.f32 %v7542, %v7561
      %v7593 = vmul.f32 %v7547, %v7561
      %v7594 = vmul.f32 %v7552, %v7561
      %s7595 = scalar_lea.vmem %s6, 2
      %v7596 = vld [vmem:[%s7595] sm:$0x1]
      %v7598 = vlaneseq
      %v7599 = vshrl.u32 %v7598, 7
      %v7600 = vsub.s32 0, %v7599
      %v7601 = vrot.slane %v7596, %v7600
      %v7603 = vadd.f32 %v7563, %v7601
      %v7604 = vadd.f32 %v7564, %v7601
      %v7605 = vadd.f32 %v7565, %v7601
      %v7606 = vadd.f32 %v7566, %v7601
      %v7607 = vadd.f32 %v7567, %v7601
      %v7608 = vadd.f32 %v7568, %v7601
      %v7609 = vadd.f32 %v7569, %v7601
      %v7610 = vadd.f32 %v7570, %v7601
      %v7611 = vadd.f32 %v7571, %v7601
      %v7612 = vadd.f32 %v7572, %v7601
      %v7613 = vadd.f32 %v7573, %v7601
      %v7614 = vadd.f32 %v7574, %v7601
      %v7615 = vadd.f32 %v7575, %v7601
      %v7616 = vadd.f32 %v7576, %v7601
      %v7617 = vadd.f32 %v7577, %v7601
      %v7618 = vadd.f32 %v7578, %v7601
      %v7619 = vadd.f32 %v7579, %v7601
      %v7620 = vadd.f32 %v7580, %v7601
      %v7621 = vadd.f32 %v7581, %v7601
      %v7622 = vadd.f32 %v7582, %v7601
      %v7623 = vadd.f32 %v7583, %v7601
      %v7624 = vadd.f32 %v7584, %v7601
      %v7625 = vadd.f32 %v7585, %v7601
      %v7626 = vadd.f32 %v7586, %v7601
      %v7627 = vadd.f32 %v7587, %v7601
      %v7628 = vadd.f32 %v7588, %v7601
      %v7629 = vadd.f32 %v7589, %v7601
      %v7630 = vadd.f32 %v7590, %v7601
      %v7631 = vadd.f32 %v7591, %v7601
      %v7632 = vadd.f32 %v7592, %v7601
      %v7633 = vadd.f32 %v7593, %v7601
      %v7634 = vadd.f32 %v7594, %v7601
      %s7635 = scalar_lea.vmem [#allocation2], 2496
      %v7636 = vld [vmem:[%s7635] sm:$0xff]
      %v7637 = vld [vmem:[%s7635 + $0x8] sm:$0xff]
      %v7638 = vld [vmem:[%s7635 + $0x20] sm:$0xff]
      %v7639 = vld [vmem:[%s7635 + $0x28] sm:$0xff]
      %v7640 = vld [vmem:[%s7635 + $0x40] sm:$0xff]
      %v7641 = vld [vmem:[%s7635 + $0x48] sm:$0xff]
      %v7642 = vld [vmem:[%s7635 + $0x60] sm:$0xff]
      %v7643 = vld [vmem:[%s7635 + $0x68] sm:$0xff]
      %v7644 = vld [vmem:[%s7635 + $0x80] sm:$0xff]
      %v7645 = vld [vmem:[%s7635 + $0x88] sm:$0xff]
      %v7646 = vld [vmem:[%s7635 + $0xa0] sm:$0xff]
      %v7647 = vld [vmem:[%s7635 + $0xa8] sm:$0xff]
      %v7648 = vld [vmem:[%s7635 + $0xc0] sm:$0xff]
      %v7649 = vld [vmem:[%s7635 + $0xc8] sm:$0xff]
      %v7650 = vld [vmem:[%s7635 + $0xe0] sm:$0xff]
      %v7651 = vld [vmem:[%s7635 + $0xe8] sm:$0xff]
      %v7652 = vld [vmem:[%s7635 + $0x100] sm:$0xff]
      %v7653 = vld [vmem:[%s7635 + $0x108] sm:$0xff]
      %v7654 = vld [vmem:[%s7635 + $0x120] sm:$0xff]
      %v7655 = vld [vmem:[%s7635 + $0x128] sm:$0xff]
      %v7656 = vld [vmem:[%s7635 + $0x140] sm:$0xff]
      %v7657 = vld [vmem:[%s7635 + $0x148] sm:$0xff]
      %v7658 = vld [vmem:[%s7635 + $0x160] sm:$0xff]
      %v7659 = vld [vmem:[%s7635 + $0x168] sm:$0xff]
      %v7660 = vld [vmem:[%s7635 + $0x180] sm:$0xff]
      %v7661 = vld [vmem:[%s7635 + $0x188] sm:$0xff]
      %v7662 = vld [vmem:[%s7635 + $0x1a0] sm:$0xff]
      %v7663 = vld [vmem:[%s7635 + $0x1a8] sm:$0xff]
      %v7664 = vld [vmem:[%s7635 + $0x1c0] sm:$0xff]
      %v7665 = vld [vmem:[%s7635 + $0x1c8] sm:$0xff]
      %v7666 = vld [vmem:[%s7635 + $0x1e0] sm:$0xff]
      %v7667 = vld [vmem:[%s7635 + $0x1e8] sm:$0xff]
      %v7668 = vld [vmem:[%s7635 + $0x5] sm:$0xff]
      %v7669 = vld [vmem:[%s7635 + $0xd] sm:$0xff]
      %v7670 = vld [vmem:[%s7635 + $0x25] sm:$0xff]
      %v7671 = vld [vmem:[%s7635 + $0x2d] sm:$0xff]
      %v7672 = vld [vmem:[%s7635 + $0x45] sm:$0xff]
      %v7673 = vld [vmem:[%s7635 + $0x4d] sm:$0xff]
      %v7674 = vld [vmem:[%s7635 + $0x65] sm:$0xff]
      %v7675 = vld [vmem:[%s7635 + $0x6d] sm:$0xff]
      %v7676 = vld [vmem:[%s7635 + $0x85] sm:$0xff]
      %v7677 = vld [vmem:[%s7635 + $0x8d] sm:$0xff]
      %v7678 = vld [vmem:[%s7635 + $0xa5] sm:$0xff]
      %v7679 = vld [vmem:[%s7635 + $0xad] sm:$0xff]
      %v7680 = vld [vmem:[%s7635 + $0xc5] sm:$0xff]
      %v7681 = vld [vmem:[%s7635 + $0xcd] sm:$0xff]
      %v7682 = vld [vmem:[%s7635 + $0xe5] sm:$0xff]
      %v7683 = vld [vmem:[%s7635 + $0xed] sm:$0xff]
      %v7684 = vld [vmem:[%s7635 + $0x105] sm:$0xff]
      %v7685 = vld [vmem:[%s7635 + $0x10d] sm:$0xff]
      %v7686 = vld [vmem:[%s7635 + $0x125] sm:$0xff]
      %v7687 = vld [vmem:[%s7635 + $0x12d] sm:$0xff]
      %v7688 = vld [vmem:[%s7635 + $0x145] sm:$0xff]
      %v7689 = vld [vmem:[%s7635 + $0x14d] sm:$0xff]
      %v7690 = vld [vmem:[%s7635 + $0x165] sm:$0xff]
      %v7691 = vld [vmem:[%s7635 + $0x16d] sm:$0xff]
      %v7692 = vld [vmem:[%s7635 + $0x185] sm:$0xff]
      %v7693 = vld [vmem:[%s7635 + $0x18d] sm:$0xff]
      %v7694 = vld [vmem:[%s7635 + $0x1a5] sm:$0xff]
      %v7695 = vld [vmem:[%s7635 + $0x1ad] sm:$0xff]
      %v7696 = vld [vmem:[%s7635 + $0x1c5] sm:$0xff]
      %v7697 = vld [vmem:[%s7635 + $0x1cd] sm:$0xff]
      %v7698 = vld [vmem:[%s7635 + $0x1e5] sm:$0xff]
      %v7699 = vld [vmem:[%s7635 + $0x1ed] sm:$0xff]
      %v7700 = vld [vmem:[%s7635 + $0xa] sm:$0xff]
      %v7701 = vld [vmem:[%s7635 + $0x12] sm:$0xff]
      %v7702 = vld [vmem:[%s7635 + $0x2a] sm:$0xff]
      %v7703 = vld [vmem:[%s7635 + $0x32] sm:$0xff]
      %v7704 = vld [vmem:[%s7635 + $0x4a] sm:$0xff]
      %v7705 = vld [vmem:[%s7635 + $0x52] sm:$0xff]
      %v7706 = vld [vmem:[%s7635 + $0x6a] sm:$0xff]
      %v7707 = vld [vmem:[%s7635 + $0x72] sm:$0xff]
      %v7708 = vld [vmem:[%s7635 + $0x8a] sm:$0xff]
      %v7709 = vld [vmem:[%s7635 + $0x92] sm:$0xff]
      %v7710 = vld [vmem:[%s7635 + $0xaa] sm:$0xff]
      %v7711 = vld [vmem:[%s7635 + $0xb2] sm:$0xff]
      %v7712 = vld [vmem:[%s7635 + $0xca] sm:$0xff]
      %v7713 = vld [vmem:[%s7635 + $0xd2] sm:$0xff]
      %v7714 = vld [vmem:[%s7635 + $0xea] sm:$0xff]
      %v7715 = vld [vmem:[%s7635 + $0xf2] sm:$0xff]
      %v7716 = vld [vmem:[%s7635 + $0x10a] sm:$0xff]
      %v7717 = vld [vmem:[%s7635 + $0x112] sm:$0xff]
      %v7718 = vld [vmem:[%s7635 + $0x12a] sm:$0xff]
      %v7719 = vld [vmem:[%s7635 + $0x132] sm:$0xff]
      %v7720 = vld [vmem:[%s7635 + $0x14a] sm:$0xff]
      %v7721 = vld [vmem:[%s7635 + $0x152] sm:$0xff]
      %v7722 = vld [vmem:[%s7635 + $0x16a] sm:$0xff]
      %v7723 = vld [vmem:[%s7635 + $0x172] sm:$0xff]
      %v7724 = vld [vmem:[%s7635 + $0x18a] sm:$0xff]
      %v7725 = vld [vmem:[%s7635 + $0x192] sm:$0xff]
      %v7726 = vld [vmem:[%s7635 + $0x1aa] sm:$0xff]
      %v7727 = vld [vmem:[%s7635 + $0x1b2] sm:$0xff]
      %v7728 = vld [vmem:[%s7635 + $0x1ca] sm:$0xff]
      %v7729 = vld [vmem:[%s7635 + $0x1d2] sm:$0xff]
      %v7730 = vld [vmem:[%s7635 + $0x1ea] sm:$0xff]
      %v7731 = vld [vmem:[%s7635 + $0x1f2] sm:$0xff]
      %v7732 = vld [vmem:[%s1631] sm:$0xff]
      %v7733 = vld [vmem:[%s1631 + $0x8] sm:$0xff]
      %v7734 = vld [vmem:[%s1631 + $0x20] sm:$0xff]
      %v7735 = vld [vmem:[%s1631 + $0x28] sm:$0xff]
      %v7736 = vld [vmem:[%s1631 + $0x40] sm:$0xff]
      %v7737 = vld [vmem:[%s1631 + $0x48] sm:$0xff]
      %v7738 = vld [vmem:[%s1631 + $0x60] sm:$0xff]
      %v7739 = vld [vmem:[%s1631 + $0x68] sm:$0xff]
      %v7740 = vld [vmem:[%s1631 + $0x80] sm:$0xff]
      %v7741 = vld [vmem:[%s1631 + $0x88] sm:$0xff]
      %v7742 = vld [vmem:[%s1631 + $0xa0] sm:$0xff]
      %v7743 = vld [vmem:[%s1631 + $0xa8] sm:$0xff]
      %v7744 = vld [vmem:[%s1631 + $0xc0] sm:$0xff]
      %v7745 = vld [vmem:[%s1631 + $0xc8] sm:$0xff]
      %v7746 = vld [vmem:[%s1631 + $0xe0] sm:$0xff]
      %v7747 = vld [vmem:[%s1631 + $0xe8] sm:$0xff]
      %v7748 = vld [vmem:[%s1631 + $0x100] sm:$0xff]
      %v7749 = vld [vmem:[%s1631 + $0x108] sm:$0xff]
      %v7750 = vld [vmem:[%s1631 + $0x120] sm:$0xff]
      %v7751 = vld [vmem:[%s1631 + $0x128] sm:$0xff]
      %v7752 = vld [vmem:[%s1631 + $0x140] sm:$0xff]
      %v7753 = vld [vmem:[%s1631 + $0x148] sm:$0xff]
      %v7754 = vld [vmem:[%s1631 + $0x160] sm:$0xff]
      %v7755 = vld [vmem:[%s1631 + $0x168] sm:$0xff]
      %v7756 = vld [vmem:[%s1631 + $0x180] sm:$0xff]
      %v7757 = vld [vmem:[%s1631 + $0x188] sm:$0xff]
      %v7758 = vld [vmem:[%s1631 + $0x1a0] sm:$0xff]
      %v7759 = vld [vmem:[%s1631 + $0x1a8] sm:$0xff]
      %v7760 = vld [vmem:[%s1631 + $0x1c0] sm:$0xff]
      %v7761 = vld [vmem:[%s1631 + $0x1c8] sm:$0xff]
      %v7762 = vld [vmem:[%s1631 + $0x1e0] sm:$0xff]
      %v7763 = vld [vmem:[%s1631 + $0x1e8] sm:$0xff]
      %v7764 = vld [vmem:[%s1631 + $0x5] sm:$0xff]
      %v7765 = vld [vmem:[%s1631 + $0xd] sm:$0xff]
      %v7766 = vld [vmem:[%s1631 + $0x25] sm:$0xff]
      %v7767 = vld [vmem:[%s1631 + $0x2d] sm:$0xff]
      %v7768 = vld [vmem:[%s1631 + $0x45] sm:$0xff]
      %v7769 = vld [vmem:[%s1631 + $0x4d] sm:$0xff]
      %v7770 = vld [vmem:[%s1631 + $0x65] sm:$0xff]
      %v7771 = vld [vmem:[%s1631 + $0x6d] sm:$0xff]
      %v7772 = vld [vmem:[%s1631 + $0x85] sm:$0xff]
      %v7773 = vld [vmem:[%s1631 + $0x8d] sm:$0xff]
      %v7774 = vld [vmem:[%s1631 + $0xa5] sm:$0xff]
      %v7775 = vld [vmem:[%s1631 + $0xad] sm:$0xff]
      %v7776 = vld [vmem:[%s1631 + $0xc5] sm:$0xff]
      %v7777 = vld [vmem:[%s1631 + $0xcd] sm:$0xff]
      %v7778 = vld [vmem:[%s1631 + $0xe5] sm:$0xff]
      %v7779 = vld [vmem:[%s1631 + $0xed] sm:$0xff]
      %v7780 = vld [vmem:[%s1631 + $0x105] sm:$0xff]
      %v7781 = vld [vmem:[%s1631 + $0x10d] sm:$0xff]
      %v7782 = vld [vmem:[%s1631 + $0x125] sm:$0xff]
      %v7783 = vld [vmem:[%s1631 + $0x12d] sm:$0xff]
      %v7784 = vld [vmem:[%s1631 + $0x145] sm:$0xff]
      %v7785 = vld [vmem:[%s1631 + $0x14d] sm:$0xff]
      %v7786 = vld [vmem:[%s1631 + $0x165] sm:$0xff]
      %v7787 = vld [vmem:[%s1631 + $0x16d] sm:$0xff]
      %v7788 = vld [vmem:[%s1631 + $0x185] sm:$0xff]
      %v7789 = vld [vmem:[%s1631 + $0x18d] sm:$0xff]
      %v7790 = vld [vmem:[%s1631 + $0x1a5] sm:$0xff]
      %v7791 = vld [vmem:[%s1631 + $0x1ad] sm:$0xff]
      %v7792 = vld [vmem:[%s1631 + $0x1c5] sm:$0xff]
      %v7793 = vld [vmem:[%s1631 + $0x1cd] sm:$0xff]
      %v7794 = vld [vmem:[%s1631 + $0x1e5] sm:$0xff]
      %v7795 = vld [vmem:[%s1631 + $0x1ed] sm:$0xff]
      %v7796 = vld [vmem:[%s1631 + $0xa] sm:$0xff]
      %v7797 = vld [vmem:[%s1631 + $0x12] sm:$0xff]
      %v7798 = vld [vmem:[%s1631 + $0x2a] sm:$0xff]
      %v7799 = vld [vmem:[%s1631 + $0x32] sm:$0xff]
      %v7800 = vld [vmem:[%s1631 + $0x4a] sm:$0xff]
      %v7801 = vld [vmem:[%s1631 + $0x52] sm:$0xff]
      %v7802 = vld [vmem:[%s1631 + $0x6a] sm:$0xff]
      %v7803 = vld [vmem:[%s1631 + $0x72] sm:$0xff]
      %v7804 = vld [vmem:[%s1631 + $0x8a] sm:$0xff]
      %v7805 = vld [vmem:[%s1631 + $0x92] sm:$0xff]
      %v7806 = vld [vmem:[%s1631 + $0xaa] sm:$0xff]
      %v7807 = vld [vmem:[%s1631 + $0xb2] sm:$0xff]
      %v7808 = vld [vmem:[%s1631 + $0xca] sm:$0xff]
      %v7809 = vld [vmem:[%s1631 + $0xd2] sm:$0xff]
      %v7810 = vld [vmem:[%s1631 + $0xea] sm:$0xff]
      %v7811 = vld [vmem:[%s1631 + $0xf2] sm:$0xff]
      %v7812 = vld [vmem:[%s1631 + $0x10a] sm:$0xff]
      %v7813 = vld [vmem:[%s1631 + $0x112] sm:$0xff]
      %v7814 = vld [vmem:[%s1631 + $0x12a] sm:$0xff]
      %v7815 = vld [vmem:[%s1631 + $0x132] sm:$0xff]
      %v7816 = vld [vmem:[%s1631 + $0x14a] sm:$0xff]
      %v7817 = vld [vmem:[%s1631 + $0x152] sm:$0xff]
      %v7818 = vld [vmem:[%s1631 + $0x16a] sm:$0xff]
      %v7819 = vld [vmem:[%s1631 + $0x172] sm:$0xff]
      %v7820 = vld [vmem:[%s1631 + $0x18a] sm:$0xff]
      %v7821 = vld [vmem:[%s1631 + $0x192] sm:$0xff]
      %v7822 = vld [vmem:[%s1631 + $0x1aa] sm:$0xff]
      %v7823 = vld [vmem:[%s1631 + $0x1b2] sm:$0xff]
      %v7824 = vld [vmem:[%s1631 + $0x1ca] sm:$0xff]
      %v7825 = vld [vmem:[%s1631 + $0x1d2] sm:$0xff]
      %v7826 = vld [vmem:[%s1631 + $0x1ea] sm:$0xff]
      %v7827 = vld [vmem:[%s1631 + $0x1f2] sm:$0xff]
      %s7828 = scalar_lea.vmem [#allocation2], 2816
      %v7829 = vld [vmem:[%s7828] sm:$0xff]
      %v7830 = vld [vmem:[%s7828 + $0x8] sm:$0xff]
      %v7831 = vld [vmem:[%s7828 + $0x20] sm:$0xff]
      %v7832 = vld [vmem:[%s7828 + $0x28] sm:$0xff]
      %v7833 = vld [vmem:[%s7828 + $0x40] sm:$0xff]
      %v7834 = vld [vmem:[%s7828 + $0x48] sm:$0xff]
      %v7835 = vld [vmem:[%s7828 + $0x60] sm:$0xff]
      %v7836 = vld [vmem:[%s7828 + $0x68] sm:$0xff]
      %v7837 = vld [vmem:[%s7828 + $0x80] sm:$0xff]
      %v7838 = vld [vmem:[%s7828 + $0x88] sm:$0xff]
      %v7839 = vld [vmem:[%s7828 + $0xa0] sm:$0xff]
      %v7840 = vld [vmem:[%s7828 + $0xa8] sm:$0xff]
      %v7841 = vld [vmem:[%s7828 + $0xc0] sm:$0xff]
      %v7842 = vld [vmem:[%s7828 + $0xc8] sm:$0xff]
      %v7843 = vld [vmem:[%s7828 + $0xe0] sm:$0xff]
      %v7844 = vld [vmem:[%s7828 + $0xe8] sm:$0xff]
      %v7845 = vld [vmem:[%s7828 + $0x100] sm:$0xff]
      %v7846 = vld [vmem:[%s7828 + $0x108] sm:$0xff]
      %v7847 = vld [vmem:[%s7828 + $0x120] sm:$0xff]
      %v7848 = vld [vmem:[%s7828 + $0x128] sm:$0xff]
      %v7849 = vld [vmem:[%s7828 + $0x140] sm:$0xff]
      %v7850 = vld [vmem:[%s7828 + $0x148] sm:$0xff]
      %v7851 = vld [vmem:[%s7828 + $0x160] sm:$0xff]
      %v7852 = vld [vmem:[%s7828 + $0x168] sm:$0xff]
      %v7853 = vld [vmem:[%s7828 + $0x180] sm:$0xff]
      %v7854 = vld [vmem:[%s7828 + $0x188] sm:$0xff]
      %v7855 = vld [vmem:[%s7828 + $0x1a0] sm:$0xff]
      %v7856 = vld [vmem:[%s7828 + $0x1a8] sm:$0xff]
      %v7857 = vld [vmem:[%s7828 + $0x1c0] sm:$0xff]
      %v7858 = vld [vmem:[%s7828 + $0x1c8] sm:$0xff]
      %v7859 = vld [vmem:[%s7828 + $0x1e0] sm:$0xff]
      %v7860 = vld [vmem:[%s7828 + $0x1e8] sm:$0xff]
      %v7861 = vld [vmem:[%s7828 + $0x5] sm:$0xff]
      %v7862 = vld [vmem:[%s7828 + $0xd] sm:$0xff]
      %v7863 = vld [vmem:[%s7828 + $0x25] sm:$0xff]
      %v7864 = vld [vmem:[%s7828 + $0x2d] sm:$0xff]
      %v7865 = vld [vmem:[%s7828 + $0x45] sm:$0xff]
      %v7866 = vld [vmem:[%s7828 + $0x4d] sm:$0xff]
      %v7867 = vld [vmem:[%s7828 + $0x65] sm:$0xff]
      %v7868 = vld [vmem:[%s7828 + $0x6d] sm:$0xff]
      %v7869 = vld [vmem:[%s7828 + $0x85] sm:$0xff]
      %v7870 = vld [vmem:[%s7828 + $0x8d] sm:$0xff]
      %v7871 = vld [vmem:[%s7828 + $0xa5] sm:$0xff]
      %v7872 = vld [vmem:[%s7828 + $0xad] sm:$0xff]
      %v7873 = vld [vmem:[%s7828 + $0xc5] sm:$0xff]
      %v7874 = vld [vmem:[%s7828 + $0xcd] sm:$0xff]
      %v7875 = vld [vmem:[%s7828 + $0xe5] sm:$0xff]
      %v7876 = vld [vmem:[%s7828 + $0xed] sm:$0xff]
      %v7877 = vld [vmem:[%s7828 + $0x105] sm:$0xff]
      %v7878 = vld [vmem:[%s7828 + $0x10d] sm:$0xff]
      %v7879 = vld [vmem:[%s7828 + $0x125] sm:$0xff]
      %v7880 = vld [vmem:[%s7828 + $0x12d] sm:$0xff]
      %v7881 = vld [vmem:[%s7828 + $0x145] sm:$0xff]
      %v7882 = vld [vmem:[%s7828 + $0x14d] sm:$0xff]
      %v7883 = vld [vmem:[%s7828 + $0x165] sm:$0xff]
      %v7884 = vld [vmem:[%s7828 + $0x16d] sm:$0xff]
      %v7885 = vld [vmem:[%s7828 + $0x185] sm:$0xff]
      %v7886 = vld [vmem:[%s7828 + $0x18d] sm:$0xff]
      %v7887 = vld [vmem:[%s7828 + $0x1a5] sm:$0xff]
      %v7888 = vld [vmem:[%s7828 + $0x1ad] sm:$0xff]
      %v7889 = vld [vmem:[%s7828 + $0x1c5] sm:$0xff]
      %v7890 = vld [vmem:[%s7828 + $0x1cd] sm:$0xff]
      %v7891 = vld [vmem:[%s7828 + $0x1e5] sm:$0xff]
      %v7892 = vld [vmem:[%s7828 + $0x1ed] sm:$0xff]
      %v7893 = vld [vmem:[%s7828 + $0xa] sm:$0xff]
      %v7894 = vld [vmem:[%s7828 + $0x12] sm:$0xff]
      %v7895 = vld [vmem:[%s7828 + $0x2a] sm:$0xff]
      %v7896 = vld [vmem:[%s7828 + $0x32] sm:$0xff]
      %v7897 = vld [vmem:[%s7828 + $0x4a] sm:$0xff]
      %v7898 = vld [vmem:[%s7828 + $0x52] sm:$0xff]
      %v7899 = vld [vmem:[%s7828 + $0x6a] sm:$0xff]
      %v7900 = vld [vmem:[%s7828 + $0x72] sm:$0xff]
      %v7901 = vld [vmem:[%s7828 + $0x8a] sm:$0xff]
      %v7902 = vld [vmem:[%s7828 + $0x92] sm:$0xff]
      %v7903 = vld [vmem:[%s7828 + $0xaa] sm:$0xff]
      %v7904 = vld [vmem:[%s7828 + $0xb2] sm:$0xff]
      %v7905 = vld [vmem:[%s7828 + $0xca] sm:$0xff]
      %v7906 = vld [vmem:[%s7828 + $0xd2] sm:$0xff]
      %v7907 = vld [vmem:[%s7828 + $0xea] sm:$0xff]
      %v7908 = vld [vmem:[%s7828 + $0xf2] sm:$0xff]
      %v7909 = vld [vmem:[%s7828 + $0x10a] sm:$0xff]
      %v7910 = vld [vmem:[%s7828 + $0x112] sm:$0xff]
      %v7911 = vld [vmem:[%s7828 + $0x12a] sm:$0xff]
      %v7912 = vld [vmem:[%s7828 + $0x132] sm:$0xff]
      %v7913 = vld [vmem:[%s7828 + $0x14a] sm:$0xff]
      %v7914 = vld [vmem:[%s7828 + $0x152] sm:$0xff]
      %v7915 = vld [vmem:[%s7828 + $0x16a] sm:$0xff]
      %v7916 = vld [vmem:[%s7828 + $0x172] sm:$0xff]
      %v7917 = vld [vmem:[%s7828 + $0x18a] sm:$0xff]
      %v7918 = vld [vmem:[%s7828 + $0x192] sm:$0xff]
      %v7919 = vld [vmem:[%s7828 + $0x1aa] sm:$0xff]
      %v7920 = vld [vmem:[%s7828 + $0x1b2] sm:$0xff]
      %v7921 = vld [vmem:[%s7828 + $0x1ca] sm:$0xff]
      %v7922 = vld [vmem:[%s7828 + $0x1d2] sm:$0xff]
      %v7923 = vld [vmem:[%s7828 + $0x1ea] sm:$0xff]
      %v7924 = vld [vmem:[%s7828 + $0x1f2] sm:$0xff]
      %7957 = vrot.lane.b32.xlu0 %v7668, 2
      %v7958 = vpop.permute.xlu0 %7957
      %7959 = vrot.lane.b32.xlu0 %v7669, 2
      %v7960 = vpop.permute.xlu0 %7959
      %7961 = vrot.lane.b32.xlu0 %v7670, 2
      %v7962 = vpop.permute.xlu0 %7961
      %7963 = vrot.lane.b32.xlu0 %v7671, 2
      %v7964 = vpop.permute.xlu0 %7963
      %7965 = vrot.lane.b32.xlu0 %v7672, 2
      %v7966 = vpop.permute.xlu0 %7965
      %7967 = vrot.lane.b32.xlu0 %v7673, 2
      %v7968 = vpop.permute.xlu0 %7967
      %7969 = vrot.lane.b32.xlu0 %v7674, 2
      %v7970 = vpop.permute.xlu0 %7969
      %7971 = vrot.lane.b32.xlu0 %v7675, 2
      %v7972 = vpop.permute.xlu0 %7971
      %7973 = vrot.lane.b32.xlu0 %v7676, 2
      %v7974 = vpop.permute.xlu0 %7973
      %7975 = vrot.lane.b32.xlu0 %v7677, 2
      %v7976 = vpop.permute.xlu0 %7975
      %7977 = vrot.lane.b32.xlu0 %v7678, 2
      %v7978 = vpop.permute.xlu0 %7977
      %7979 = vrot.lane.b32.xlu0 %v7679, 2
      %v7980 = vpop.permute.xlu0 %7979
      %7981 = vrot.lane.b32.xlu0 %v7680, 2
      %v7982 = vpop.permute.xlu0 %7981
      %7983 = vrot.lane.b32.xlu0 %v7681, 2
      %v7984 = vpop.permute.xlu0 %7983
      %7985 = vrot.lane.b32.xlu0 %v7682, 2
      %v7986 = vpop.permute.xlu0 %7985
      %7987 = vrot.lane.b32.xlu0 %v7683, 2
      %v7988 = vpop.permute.xlu0 %7987
      %7989 = vrot.lane.b32.xlu0 %v7684, 2
      %v7990 = vpop.permute.xlu0 %7989
      %7991 = vrot.lane.b32.xlu0 %v7685, 2
      %v7992 = vpop.permute.xlu0 %7991
      %7993 = vrot.lane.b32.xlu0 %v7686, 2
      %v7994 = vpop.permute.xlu0 %7993
      %7995 = vrot.lane.b32.xlu0 %v7687, 2
      %v7996 = vpop.permute.xlu0 %7995
      %7997 = vrot.lane.b32.xlu0 %v7688, 2
      %v7998 = vpop.permute.xlu0 %7997
      %7999 = vrot.lane.b32.xlu0 %v7689, 2
      %v8000 = vpop.permute.xlu0 %7999
      %8001 = vrot.lane.b32.xlu0 %v7690, 2
      %v8002 = vpop.permute.xlu0 %8001
      %8003 = vrot.lane.b32.xlu0 %v7691, 2
      %v8004 = vpop.permute.xlu0 %8003
      %8005 = vrot.lane.b32.xlu0 %v7692, 2
      %v8006 = vpop.permute.xlu0 %8005
      %8007 = vrot.lane.b32.xlu0 %v7693, 2
      %v8008 = vpop.permute.xlu0 %8007
      %8009 = vrot.lane.b32.xlu0 %v7694, 2
      %v8010 = vpop.permute.xlu0 %8009
      %8011 = vrot.lane.b32.xlu0 %v7695, 2
      %v8012 = vpop.permute.xlu0 %8011
      %8013 = vrot.lane.b32.xlu0 %v7696, 2
      %v8014 = vpop.permute.xlu0 %8013
      %8015 = vrot.lane.b32.xlu0 %v7697, 2
      %v8016 = vpop.permute.xlu0 %8015
      %8017 = vrot.lane.b32.xlu0 %v7698, 2
      %v8018 = vpop.permute.xlu0 %8017
      %8019 = vrot.lane.b32.xlu0 %v7699, 2
      %v8020 = vpop.permute.xlu0 %8019
      %8085 = vrot.lane.b32.xlu0 %v7700, 4
      %v8086 = vpop.permute.xlu0 %8085
      %8087 = vrot.lane.b32.xlu0 %v7701, 4
      %v8088 = vpop.permute.xlu0 %8087
      %8089 = vrot.lane.b32.xlu0 %v7702, 4
      %v8090 = vpop.permute.xlu0 %8089
      %8091 = vrot.lane.b32.xlu0 %v7703, 4
      %v8092 = vpop.permute.xlu0 %8091
      %8093 = vrot.lane.b32.xlu0 %v7704, 4
      %v8094 = vpop.permute.xlu0 %8093
      %8095 = vrot.lane.b32.xlu0 %v7705, 4
      %v8096 = vpop.permute.xlu0 %8095
      %8097 = vrot.lane.b32.xlu0 %v7706, 4
      %v8098 = vpop.permute.xlu0 %8097
      %8099 = vrot.lane.b32.xlu0 %v7707, 4
      %v8100 = vpop.permute.xlu0 %8099
      %8101 = vrot.lane.b32.xlu0 %v7708, 4
      %v8102 = vpop.permute.xlu0 %8101
      %8103 = vrot.lane.b32.xlu0 %v7709, 4
      %v8104 = vpop.permute.xlu0 %8103
      %8105 = vrot.lane.b32.xlu0 %v7710, 4
      %v8106 = vpop.permute.xlu0 %8105
      %8107 = vrot.lane.b32.xlu0 %v7711, 4
      %v8108 = vpop.permute.xlu0 %8107
      %8109 = vrot.lane.b32.xlu0 %v7712, 4
      %v8110 = vpop.permute.xlu0 %8109
      %8111 = vrot.lane.b32.xlu0 %v7713, 4
      %v8112 = vpop.permute.xlu0 %8111
      %8113 = vrot.lane.b32.xlu0 %v7714, 4
      %v8114 = vpop.permute.xlu0 %8113
      %8115 = vrot.lane.b32.xlu0 %v7715, 4
      %v8116 = vpop.permute.xlu0 %8115
      %8117 = vrot.lane.b32.xlu0 %v7716, 4
      %v8118 = vpop.permute.xlu0 %8117
      %8119 = vrot.lane.b32.xlu0 %v7717, 4
      %v8120 = vpop.permute.xlu0 %8119
      %8121 = vrot.lane.b32.xlu0 %v7718, 4
      %v8122 = vpop.permute.xlu0 %8121
      %8123 = vrot.lane.b32.xlu0 %v7719, 4
      %v8124 = vpop.permute.xlu0 %8123
      %8125 = vrot.lane.b32.xlu0 %v7720, 4
      %v8126 = vpop.permute.xlu0 %8125
      %8127 = vrot.lane.b32.xlu0 %v7721, 4
      %v8128 = vpop.permute.xlu0 %8127
      %8129 = vrot.lane.b32.xlu0 %v7722, 4
      %v8130 = vpop.permute.xlu0 %8129
      %8131 = vrot.lane.b32.xlu0 %v7723, 4
      %v8132 = vpop.permute.xlu0 %8131
      %8133 = vrot.lane.b32.xlu0 %v7724, 4
      %v8134 = vpop.permute.xlu0 %8133
      %8135 = vrot.lane.b32.xlu0 %v7725, 4
      %v8136 = vpop.permute.xlu0 %8135
      %8137 = vrot.lane.b32.xlu0 %v7726, 4
      %v8138 = vpop.permute.xlu0 %8137
      %8139 = vrot.lane.b32.xlu0 %v7727, 4
      %v8140 = vpop.permute.xlu0 %8139
      %8141 = vrot.lane.b32.xlu0 %v7728, 4
      %v8142 = vpop.permute.xlu0 %8141
      %8143 = vrot.lane.b32.xlu0 %v7729, 4
      %v8144 = vpop.permute.xlu0 %8143
      %8145 = vrot.lane.b32.xlu0 %v7730, 4
      %v8146 = vpop.permute.xlu0 %8145
      %8147 = vrot.lane.b32.xlu0 %v7731, 4
      %v8148 = vpop.permute.xlu0 %8147
      %8213 = vrot.lane.b32.xlu0 %v7732, 6
      %v8214 = vpop.permute.xlu0 %8213
      %8215 = vrot.lane.b32.xlu0 %v7733, 6
      %v8216 = vpop.permute.xlu0 %8215
      %8217 = vrot.lane.b32.xlu0 %v7734, 6
      %v8218 = vpop.permute.xlu0 %8217
      %8219 = vrot.lane.b32.xlu0 %v7735, 6
      %v8220 = vpop.permute.xlu0 %8219
      %8221 = vrot.lane.b32.xlu0 %v7736, 6
      %v8222 = vpop.permute.xlu0 %8221
      %8223 = vrot.lane.b32.xlu0 %v7737, 6
      %v8224 = vpop.permute.xlu0 %8223
      %8225 = vrot.lane.b32.xlu0 %v7738, 6
      %v8226 = vpop.permute.xlu0 %8225
      %8227 = vrot.lane.b32.xlu0 %v7739, 6
      %v8228 = vpop.permute.xlu0 %8227
      %8229 = vrot.lane.b32.xlu0 %v7740, 6
      %v8230 = vpop.permute.xlu0 %8229
      %8231 = vrot.lane.b32.xlu0 %v7741, 6
      %v8232 = vpop.permute.xlu0 %8231
      %8233 = vrot.lane.b32.xlu0 %v7742, 6
      %v8234 = vpop.permute.xlu0 %8233
      %8235 = vrot.lane.b32.xlu0 %v7743, 6
      %v8236 = vpop.permute.xlu0 %8235
      %8237 = vrot.lane.b32.xlu0 %v7744, 6
      %v8238 = vpop.permute.xlu0 %8237
      %8239 = vrot.lane.b32.xlu0 %v7745, 6
      %v8240 = vpop.permute.xlu0 %8239
      %8241 = vrot.lane.b32.xlu0 %v7746, 6
      %v8242 = vpop.permute.xlu0 %8241
      %8243 = vrot.lane.b32.xlu0 %v7747, 6
      %v8244 = vpop.permute.xlu0 %8243
      %8245 = vrot.lane.b32.xlu0 %v7748, 6
      %v8246 = vpop.permute.xlu0 %8245
      %8247 = vrot.lane.b32.xlu0 %v7749, 6
      %v8248 = vpop.permute.xlu0 %8247
      %8249 = vrot.lane.b32.xlu0 %v7750, 6
      %v8250 = vpop.permute.xlu0 %8249
      %8251 = vrot.lane.b32.xlu0 %v7751, 6
      %v8252 = vpop.permute.xlu0 %8251
      %8253 = vrot.lane.b32.xlu0 %v7752, 6
      %v8254 = vpop.permute.xlu0 %8253
      %8255 = vrot.lane.b32.xlu0 %v7753, 6
      %v8256 = vpop.permute.xlu0 %8255
      %8257 = vrot.lane.b32.xlu0 %v7754, 6
      %v8258 = vpop.permute.xlu0 %8257
      %8259 = vrot.lane.b32.xlu0 %v7755, 6
      %v8260 = vpop.permute.xlu0 %8259
      %8261 = vrot.lane.b32.xlu0 %v7756, 6
      %v8262 = vpop.permute.xlu0 %8261
      %8263 = vrot.lane.b32.xlu0 %v7757, 6
      %v8264 = vpop.permute.xlu0 %8263
      %8265 = vrot.lane.b32.xlu0 %v7758, 6
      %v8266 = vpop.permute.xlu0 %8265
      %8267 = vrot.lane.b32.xlu0 %v7759, 6
      %v8268 = vpop.permute.xlu0 %8267
      %8269 = vrot.lane.b32.xlu0 %v7760, 6
      %v8270 = vpop.permute.xlu0 %8269
      %8271 = vrot.lane.b32.xlu0 %v7761, 6
      %v8272 = vpop.permute.xlu0 %8271
      %8273 = vrot.lane.b32.xlu0 %v7762, 6
      %v8274 = vpop.permute.xlu0 %8273
      %8275 = vrot.lane.b32.xlu0 %v7763, 6
      %v8276 = vpop.permute.xlu0 %8275
      %8341 = vrot.lane.b32.xlu0 %v7764, 8
      %v8342 = vpop.permute.xlu0 %8341
      %8343 = vrot.lane.b32.xlu0 %v7765, 8
      %v8344 = vpop.permute.xlu0 %8343
      %8345 = vrot.lane.b32.xlu0 %v7766, 8
      %v8346 = vpop.permute.xlu0 %8345
      %8347 = vrot.lane.b32.xlu0 %v7767, 8
      %v8348 = vpop.permute.xlu0 %8347
      %8349 = vrot.lane.b32.xlu0 %v7768, 8
      %v8350 = vpop.permute.xlu0 %8349
      %8351 = vrot.lane.b32.xlu0 %v7769, 8
      %v8352 = vpop.permute.xlu0 %8351
      %8353 = vrot.lane.b32.xlu0 %v7770, 8
      %v8354 = vpop.permute.xlu0 %8353
      %8355 = vrot.lane.b32.xlu0 %v7771, 8
      %v8356 = vpop.permute.xlu0 %8355
      %8357 = vrot.lane.b32.xlu0 %v7772, 8
      %v8358 = vpop.permute.xlu0 %8357
      %8359 = vrot.lane.b32.xlu0 %v7773, 8
      %v8360 = vpop.permute.xlu0 %8359
      %8361 = vrot.lane.b32.xlu0 %v7774, 8
      %v8362 = vpop.permute.xlu0 %8361
      %8363 = vrot.lane.b32.xlu0 %v7775, 8
      %v8364 = vpop.permute.xlu0 %8363
      %8365 = vrot.lane.b32.xlu0 %v7776, 8
      %v8366 = vpop.permute.xlu0 %8365
      %8367 = vrot.lane.b32.xlu0 %v7777, 8
      %v8368 = vpop.permute.xlu0 %8367
      %8369 = vrot.lane.b32.xlu0 %v7778, 8
      %v8370 = vpop.permute.xlu0 %8369
      %8371 = vrot.lane.b32.xlu0 %v7779, 8
      %v8372 = vpop.permute.xlu0 %8371
      %8373 = vrot.lane.b32.xlu0 %v7780, 8
      %v8374 = vpop.permute.xlu0 %8373
      %8375 = vrot.lane.b32.xlu0 %v7781, 8
      %v8376 = vpop.permute.xlu0 %8375
      %8377 = vrot.lane.b32.xlu0 %v7782, 8
      %v8378 = vpop.permute.xlu0 %8377
      %8379 = vrot.lane.b32.xlu0 %v7783, 8
      %v8380 = vpop.permute.xlu0 %8379
      %8381 = vrot.lane.b32.xlu0 %v7784, 8
      %v8382 = vpop.permute.xlu0 %8381
      %8383 = vrot.lane.b32.xlu0 %v7785, 8
      %v8384 = vpop.permute.xlu0 %8383
      %8385 = vrot.lane.b32.xlu0 %v7786, 8
      %v8386 = vpop.permute.xlu0 %8385
      %8387 = vrot.lane.b32.xlu0 %v7787, 8
      %v8388 = vpop.permute.xlu0 %8387
      %8389 = vrot.lane.b32.xlu0 %v7788, 8
      %v8390 = vpop.permute.xlu0 %8389
      %8391 = vrot.lane.b32.xlu0 %v7789, 8
      %v8392 = vpop.permute.xlu0 %8391
      %8393 = vrot.lane.b32.xlu0 %v7790, 8
      %v8394 = vpop.permute.xlu0 %8393
      %8395 = vrot.lane.b32.xlu0 %v7791, 8
      %v8396 = vpop.permute.xlu0 %8395
      %8397 = vrot.lane.b32.xlu0 %v7792, 8
      %v8398 = vpop.permute.xlu0 %8397
      %8399 = vrot.lane.b32.xlu0 %v7793, 8
      %v8400 = vpop.permute.xlu0 %8399
      %8401 = vrot.lane.b32.xlu0 %v7794, 8
      %v8402 = vpop.permute.xlu0 %8401
      %8403 = vrot.lane.b32.xlu0 %v7795, 8
      %v8404 = vpop.permute.xlu0 %8403
      %8469 = vrot.lane.b32.xlu0 %v7796, 10
      %v8470 = vpop.permute.xlu0 %8469
      %8471 = vrot.lane.b32.xlu0 %v7797, 10
      %v8472 = vpop.permute.xlu0 %8471
      %8473 = vrot.lane.b32.xlu0 %v7798, 10
      %v8474 = vpop.permute.xlu0 %8473
      %8475 = vrot.lane.b32.xlu0 %v7799, 10
      %v8476 = vpop.permute.xlu0 %8475
      %8477 = vrot.lane.b32.xlu0 %v7800, 10
      %v8478 = vpop.permute.xlu0 %8477
      %8479 = vrot.lane.b32.xlu0 %v7801, 10
      %v8480 = vpop.permute.xlu0 %8479
      %8481 = vrot.lane.b32.xlu0 %v7802, 10
      %v8482 = vpop.permute.xlu0 %8481
      %8483 = vrot.lane.b32.xlu0 %v7803, 10
      %v8484 = vpop.permute.xlu0 %8483
      %8485 = vrot.lane.b32.xlu0 %v7804, 10
      %v8486 = vpop.permute.xlu0 %8485
      %8487 = vrot.lane.b32.xlu0 %v7805, 10
      %v8488 = vpop.permute.xlu0 %8487
      %8489 = vrot.lane.b32.xlu0 %v7806, 10
      %v8490 = vpop.permute.xlu0 %8489
      %8491 = vrot.lane.b32.xlu0 %v7807, 10
      %v8492 = vpop.permute.xlu0 %8491
      %8493 = vrot.lane.b32.xlu0 %v7808, 10
      %v8494 = vpop.permute.xlu0 %8493
      %8495 = vrot.lane.b32.xlu0 %v7809, 10
      %v8496 = vpop.permute.xlu0 %8495
      %8497 = vrot.lane.b32.xlu0 %v7810, 10
      %v8498 = vpop.permute.xlu0 %8497
      %8499 = vrot.lane.b32.xlu0 %v7811, 10
      %v8500 = vpop.permute.xlu0 %8499
      %8501 = vrot.lane.b32.xlu0 %v7812, 10
      %v8502 = vpop.permute.xlu0 %8501
      %8503 = vrot.lane.b32.xlu0 %v7813, 10
      %v8504 = vpop.permute.xlu0 %8503
      %8505 = vrot.lane.b32.xlu0 %v7814, 10
      %v8506 = vpop.permute.xlu0 %8505
      %8507 = vrot.lane.b32.xlu0 %v7815, 10
      %v8508 = vpop.permute.xlu0 %8507
      %8509 = vrot.lane.b32.xlu0 %v7816, 10
      %v8510 = vpop.permute.xlu0 %8509
      %8511 = vrot.lane.b32.xlu0 %v7817, 10
      %v8512 = vpop.permute.xlu0 %8511
      %8513 = vrot.lane.b32.xlu0 %v7818, 10
      %v8514 = vpop.permute.xlu0 %8513
      %8515 = vrot.lane.b32.xlu0 %v7819, 10
      %v8516 = vpop.permute.xlu0 %8515
      %8517 = vrot.lane.b32.xlu0 %v7820, 10
      %v8518 = vpop.permute.xlu0 %8517
      %8519 = vrot.lane.b32.xlu0 %v7821, 10
      %v8520 = vpop.permute.xlu0 %8519
      %8521 = vrot.lane.b32.xlu0 %v7822, 10
      %v8522 = vpop.permute.xlu0 %8521
      %8523 = vrot.lane.b32.xlu0 %v7823, 10
      %v8524 = vpop.permute.xlu0 %8523
      %8525 = vrot.lane.b32.xlu0 %v7824, 10
      %v8526 = vpop.permute.xlu0 %8525
      %8527 = vrot.lane.b32.xlu0 %v7825, 10
      %v8528 = vpop.permute.xlu0 %8527
      %8529 = vrot.lane.b32.xlu0 %v7826, 10
      %v8530 = vpop.permute.xlu0 %8529
      %8531 = vrot.lane.b32.xlu0 %v7827, 10
      %v8532 = vpop.permute.xlu0 %8531
      %8597 = vrot.lane.b32.xlu0 %v7829, 12
      %v8598 = vpop.permute.xlu0 %8597
      %8599 = vrot.lane.b32.xlu0 %v7830, 12
      %v8600 = vpop.permute.xlu0 %8599
      %8601 = vrot.lane.b32.xlu0 %v7831, 12
      %v8602 = vpop.permute.xlu0 %8601
      %8603 = vrot.lane.b32.xlu0 %v7832, 12
      %v8604 = vpop.permute.xlu0 %8603
      %8605 = vrot.lane.b32.xlu0 %v7833, 12
      %v8606 = vpop.permute.xlu0 %8605
      %8607 = vrot.lane.b32.xlu0 %v7834, 12
      %v8608 = vpop.permute.xlu0 %8607
      %8609 = vrot.lane.b32.xlu0 %v7835, 12
      %v8610 = vpop.permute.xlu0 %8609
      %8611 = vrot.lane.b32.xlu0 %v7836, 12
      %v8612 = vpop.permute.xlu0 %8611
      %8613 = vrot.lane.b32.xlu0 %v7837, 12
      %v8614 = vpop.permute.xlu0 %8613
      %8615 = vrot.lane.b32.xlu0 %v7838, 12
      %v8616 = vpop.permute.xlu0 %8615
      %8617 = vrot.lane.b32.xlu0 %v7839, 12
      %v8618 = vpop.permute.xlu0 %8617
      %8619 = vrot.lane.b32.xlu0 %v7840, 12
      %v8620 = vpop.permute.xlu0 %8619
      %8621 = vrot.lane.b32.xlu0 %v7841, 12
      %v8622 = vpop.permute.xlu0 %8621
      %8623 = vrot.lane.b32.xlu0 %v7842, 12
      %v8624 = vpop.permute.xlu0 %8623
      %8625 = vrot.lane.b32.xlu0 %v7843, 12
      %v8626 = vpop.permute.xlu0 %8625
      %8627 = vrot.lane.b32.xlu0 %v7844, 12
      %v8628 = vpop.permute.xlu0 %8627
      %8629 = vrot.lane.b32.xlu0 %v7845, 12
      %v8630 = vpop.permute.xlu0 %8629
      %8631 = vrot.lane.b32.xlu0 %v7846, 12
      %v8632 = vpop.permute.xlu0 %8631
      %8633 = vrot.lane.b32.xlu0 %v7847, 12
      %v8634 = vpop.permute.xlu0 %8633
      %8635 = vrot.lane.b32.xlu0 %v7848, 12
      %v8636 = vpop.permute.xlu0 %8635
      %8637 = vrot.lane.b32.xlu0 %v7849, 12
      %v8638 = vpop.permute.xlu0 %8637
      %8639 = vrot.lane.b32.xlu0 %v7850, 12
      %v8640 = vpop.permute.xlu0 %8639
      %8641 = vrot.lane.b32.xlu0 %v7851, 12
      %v8642 = vpop.permute.xlu0 %8641
      %8643 = vrot.lane.b32.xlu0 %v7852, 12
      %v8644 = vpop.permute.xlu0 %8643
      %8645 = vrot.lane.b32.xlu0 %v7853, 12
      %v8646 = vpop.permute.xlu0 %8645
      %8647 = vrot.lane.b32.xlu0 %v7854, 12
      %v8648 = vpop.permute.xlu0 %8647
      %8649 = vrot.lane.b32.xlu0 %v7855, 12
      %v8650 = vpop.permute.xlu0 %8649
      %8651 = vrot.lane.b32.xlu0 %v7856, 12
      %v8652 = vpop.permute.xlu0 %8651
      %8653 = vrot.lane.b32.xlu0 %v7857, 12
      %v8654 = vpop.permute.xlu0 %8653
      %8655 = vrot.lane.b32.xlu0 %v7858, 12
      %v8656 = vpop.permute.xlu0 %8655
      %8657 = vrot.lane.b32.xlu0 %v7859, 12
      %v8658 = vpop.permute.xlu0 %8657
      %8659 = vrot.lane.b32.xlu0 %v7860, 12
      %v8660 = vpop.permute.xlu0 %8659
      %8725 = vrot.lane.b32.xlu0 %v7861, 14
      %v8726 = vpop.permute.xlu0 %8725
      %8727 = vrot.lane.b32.xlu0 %v7862, 14
      %v8728 = vpop.permute.xlu0 %8727
      %8729 = vrot.lane.b32.xlu0 %v7863, 14
      %v8730 = vpop.permute.xlu0 %8729
      %8731 = vrot.lane.b32.xlu0 %v7864, 14
      %v8732 = vpop.permute.xlu0 %8731
      %8733 = vrot.lane.b32.xlu0 %v7865, 14
      %v8734 = vpop.permute.xlu0 %8733
      %8735 = vrot.lane.b32.xlu0 %v7866, 14
      %v8736 = vpop.permute.xlu0 %8735
      %8737 = vrot.lane.b32.xlu0 %v7867, 14
      %v8738 = vpop.permute.xlu0 %8737
      %8739 = vrot.lane.b32.xlu0 %v7868, 14
      %v8740 = vpop.permute.xlu0 %8739
      %8741 = vrot.lane.b32.xlu0 %v7869, 14
      %v8742 = vpop.permute.xlu0 %8741
      %8743 = vrot.lane.b32.xlu0 %v7870, 14
      %v8744 = vpop.permute.xlu0 %8743
      %8745 = vrot.lane.b32.xlu0 %v7871, 14
      %v8746 = vpop.permute.xlu0 %8745
      %8747 = vrot.lane.b32.xlu0 %v7872, 14
      %v8748 = vpop.permute.xlu0 %8747
      %8749 = vrot.lane.b32.xlu0 %v7873, 14
      %v8750 = vpop.permute.xlu0 %8749
      %8751 = vrot.lane.b32.xlu0 %v7874, 14
      %v8752 = vpop.permute.xlu0 %8751
      %8753 = vrot.lane.b32.xlu0 %v7875, 14
      %v8754 = vpop.permute.xlu0 %8753
      %8755 = vrot.lane.b32.xlu0 %v7876, 14
      %v8756 = vpop.permute.xlu0 %8755
      %8757 = vrot.lane.b32.xlu0 %v7877, 14
      %v8758 = vpop.permute.xlu0 %8757
      %8759 = vrot.lane.b32.xlu0 %v7878, 14
      %v8760 = vpop.permute.xlu0 %8759
      %8761 = vrot.lane.b32.xlu0 %v7879, 14
      %v8762 = vpop.permute.xlu0 %8761
      %8763 = vrot.lane.b32.xlu0 %v7880, 14
      %v8764 = vpop.permute.xlu0 %8763
      %8765 = vrot.lane.b32.xlu0 %v7881, 14
      %v8766 = vpop.permute.xlu0 %8765
      %8767 = vrot.lane.b32.xlu0 %v7882, 14
      %v8768 = vpop.permute.xlu0 %8767
      %8769 = vrot.lane.b32.xlu0 %v7883, 14
      %v8770 = vpop.permute.xlu0 %8769
      %8771 = vrot.lane.b32.xlu0 %v7884, 14
      %v8772 = vpop.permute.xlu0 %8771
      %8773 = vrot.lane.b32.xlu0 %v7885, 14
      %v8774 = vpop.permute.xlu0 %8773
      %8775 = vrot.lane.b32.xlu0 %v7886, 14
      %v8776 = vpop.permute.xlu0 %8775
      %8777 = vrot.lane.b32.xlu0 %v7887, 14
      %v8778 = vpop.permute.xlu0 %8777
      %8779 = vrot.lane.b32.xlu0 %v7888, 14
      %v8780 = vpop.permute.xlu0 %8779
      %8781 = vrot.lane.b32.xlu0 %v7889, 14
      %v8782 = vpop.permute.xlu0 %8781
      %8783 = vrot.lane.b32.xlu0 %v7890, 14
      %v8784 = vpop.permute.xlu0 %8783
      %8785 = vrot.lane.b32.xlu0 %v7891, 14
      %v8786 = vpop.permute.xlu0 %8785
      %8787 = vrot.lane.b32.xlu0 %v7892, 14
      %v8788 = vpop.permute.xlu0 %8787
      %8853 = vrot.lane.b32.xlu0 %v7893, 16
      %v8854 = vpop.permute.xlu0 %8853
      %8855 = vrot.lane.b32.xlu0 %v7894, 16
      %v8856 = vpop.permute.xlu0 %8855
      %8857 = vrot.lane.b32.xlu0 %v7895, 16
      %v8858 = vpop.permute.xlu0 %8857
      %8859 = vrot.lane.b32.xlu0 %v7896, 16
      %v8860 = vpop.permute.xlu0 %8859
      %8861 = vrot.lane.b32.xlu0 %v7897, 16
      %v8862 = vpop.permute.xlu0 %8861
      %8863 = vrot.lane.b32.xlu0 %v7898, 16
      %v8864 = vpop.permute.xlu0 %8863
      %8865 = vrot.lane.b32.xlu0 %v7899, 16
      %v8866 = vpop.permute.xlu0 %8865
      %8867 = vrot.lane.b32.xlu0 %v7900, 16
      %v8868 = vpop.permute.xlu0 %8867
      %8869 = vrot.lane.b32.xlu0 %v7901, 16
      %v8870 = vpop.permute.xlu0 %8869
      %8871 = vrot.lane.b32.xlu0 %v7902, 16
      %v8872 = vpop.permute.xlu0 %8871
      %8873 = vrot.lane.b32.xlu0 %v7903, 16
      %v8874 = vpop.permute.xlu0 %8873
      %8875 = vrot.lane.b32.xlu0 %v7904, 16
      %v8876 = vpop.permute.xlu0 %8875
      %8877 = vrot.lane.b32.xlu0 %v7905, 16
      %v8878 = vpop.permute.xlu0 %8877
      %8879 = vrot.lane.b32.xlu0 %v7906, 16
      %v8880 = vpop.permute.xlu0 %8879
      %8881 = vrot.lane.b32.xlu0 %v7907, 16
      %v8882 = vpop.permute.xlu0 %8881
      %8883 = vrot.lane.b32.xlu0 %v7908, 16
      %v8884 = vpop.permute.xlu0 %8883
      %8885 = vrot.lane.b32.xlu0 %v7909, 16
      %v8886 = vpop.permute.xlu0 %8885
      %8887 = vrot.lane.b32.xlu0 %v7910, 16
      %v8888 = vpop.permute.xlu0 %8887
      %8889 = vrot.lane.b32.xlu0 %v7911, 16
      %v8890 = vpop.permute.xlu0 %8889
      %8891 = vrot.lane.b32.xlu0 %v7912, 16
      %v8892 = vpop.permute.xlu0 %8891
      %8893 = vrot.lane.b32.xlu0 %v7913, 16
      %v8894 = vpop.permute.xlu0 %8893
      %8895 = vrot.lane.b32.xlu0 %v7914, 16
      %v8896 = vpop.permute.xlu0 %8895
      %8897 = vrot.lane.b32.xlu0 %v7915, 16
      %v8898 = vpop.permute.xlu0 %8897
      %8899 = vrot.lane.b32.xlu0 %v7916, 16
      %v8900 = vpop.permute.xlu0 %8899
      %8901 = vrot.lane.b32.xlu0 %v7917, 16
      %v8902 = vpop.permute.xlu0 %8901
      %8903 = vrot.lane.b32.xlu0 %v7918, 16
      %v8904 = vpop.permute.xlu0 %8903
      %8905 = vrot.lane.b32.xlu0 %v7919, 16
      %v8906 = vpop.permute.xlu0 %8905
      %8907 = vrot.lane.b32.xlu0 %v7920, 16
      %v8908 = vpop.permute.xlu0 %8907
      %8909 = vrot.lane.b32.xlu0 %v7921, 16
      %v8910 = vpop.permute.xlu0 %8909
      %8911 = vrot.lane.b32.xlu0 %v7922, 16
      %v8912 = vpop.permute.xlu0 %8911
      %8913 = vrot.lane.b32.xlu0 %v7923, 16
      %v8914 = vpop.permute.xlu0 %8913
      %8915 = vrot.lane.b32.xlu0 %v7924, 16
      %v8916 = vpop.permute.xlu0 %8915
      %v8949 = vsel %vm794, %v7636, %v7958
      %v8950 = vsel %vm794, %v7637, %v7960
      %v8951 = vsel %vm794, %v7638, %v7962
      %v8952 = vsel %vm794, %v7639, %v7964
      %v8953 = vsel %vm794, %v7640, %v7966
      %v8954 = vsel %vm794, %v7641, %v7968
      %v8955 = vsel %vm794, %v7642, %v7970
      %v8956 = vsel %vm794, %v7643, %v7972
      %v8957 = vsel %vm794, %v7644, %v7974
      %v8958 = vsel %vm794, %v7645, %v7976
      %v8959 = vsel %vm794, %v7646, %v7978
      %v8960 = vsel %vm794, %v7647, %v7980
      %v8961 = vsel %vm794, %v7648, %v7982
      %v8962 = vsel %vm794, %v7649, %v7984
      %v8963 = vsel %vm794, %v7650, %v7986
      %v8964 = vsel %vm794, %v7651, %v7988
      %v8965 = vsel %vm794, %v7652, %v7990
      %v8966 = vsel %vm794, %v7653, %v7992
      %v8967 = vsel %vm794, %v7654, %v7994
      %v8968 = vsel %vm794, %v7655, %v7996
      %v8969 = vsel %vm794, %v7656, %v7998
      %v8970 = vsel %vm794, %v7657, %v8000
      %v8971 = vsel %vm794, %v7658, %v8002
      %v8972 = vsel %vm794, %v7659, %v8004
      %v8973 = vsel %vm794, %v7660, %v8006
      %v8974 = vsel %vm794, %v7661, %v8008
      %v8975 = vsel %vm794, %v7662, %v8010
      %v8976 = vsel %vm794, %v7663, %v8012
      %v8977 = vsel %vm794, %v7664, %v8014
      %v8978 = vsel %vm794, %v7665, %v8016
      %v8979 = vsel %vm794, %v7666, %v8018
      %v8980 = vsel %vm794, %v7667, %v8020
      %v8981 = vsel %vm3010, %v8949, %v8086
      %v8982 = vsel %vm3010, %v8950, %v8088
      %v8983 = vsel %vm3010, %v8951, %v8090
      %v8984 = vsel %vm3010, %v8952, %v8092
      %v8985 = vsel %vm3010, %v8953, %v8094
      %v8986 = vsel %vm3010, %v8954, %v8096
      %v8987 = vsel %vm3010, %v8955, %v8098
      %v8988 = vsel %vm3010, %v8956, %v8100
      %v8989 = vsel %vm3010, %v8957, %v8102
      %v8990 = vsel %vm3010, %v8958, %v8104
      %v8991 = vsel %vm3010, %v8959, %v8106
      %v8992 = vsel %vm3010, %v8960, %v8108
      %v8993 = vsel %vm3010, %v8961, %v8110
      %v8994 = vsel %vm3010, %v8962, %v8112
      %v8995 = vsel %vm3010, %v8963, %v8114
      %v8996 = vsel %vm3010, %v8964, %v8116
      %v8997 = vsel %vm3010, %v8965, %v8118
      %v8998 = vsel %vm3010, %v8966, %v8120
      %v8999 = vsel %vm3010, %v8967, %v8122
      %v9000 = vsel %vm3010, %v8968, %v8124
      %v9001 = vsel %vm3010, %v8969, %v8126
      %v9002 = vsel %vm3010, %v8970, %v8128
      %v9003 = vsel %vm3010, %v8971, %v8130
      %v9004 = vsel %vm3010, %v8972, %v8132
      %v9005 = vsel %vm3010, %v8973, %v8134
      %v9006 = vsel %vm3010, %v8974, %v8136
      %v9007 = vsel %vm3010, %v8975, %v8138
      %v9008 = vsel %vm3010, %v8976, %v8140
      %v9009 = vsel %vm3010, %v8977, %v8142
      %v9010 = vsel %vm3010, %v8978, %v8144
      %v9011 = vsel %vm3010, %v8979, %v8146
      %v9012 = vsel %vm3010, %v8980, %v8148
      %v9013 = vsel %vm3043, %v8981, %v8214
      %v9014 = vsel %vm3043, %v8982, %v8216
      %v9015 = vsel %vm3043, %v8983, %v8218
      %v9016 = vsel %vm3043, %v8984, %v8220
      %v9017 = vsel %vm3043, %v8985, %v8222
      %v9018 = vsel %vm3043, %v8986, %v8224
      %v9019 = vsel %vm3043, %v8987, %v8226
      %v9020 = vsel %vm3043, %v8988, %v8228
      %v9021 = vsel %vm3043, %v8989, %v8230
      %v9022 = vsel %vm3043, %v8990, %v8232
      %v9023 = vsel %vm3043, %v8991, %v8234
      %v9024 = vsel %vm3043, %v8992, %v8236
      %v9025 = vsel %vm3043, %v8993, %v8238
      %v9026 = vsel %vm3043, %v8994, %v8240
      %v9027 = vsel %vm3043, %v8995, %v8242
      %v9028 = vsel %vm3043, %v8996, %v8244
      %v9029 = vsel %vm3043, %v8997, %v8246
      %v9030 = vsel %vm3043, %v8998, %v8248
      %v9031 = vsel %vm3043, %v8999, %v8250
      %v9032 = vsel %vm3043, %v9000, %v8252
      %v9033 = vsel %vm3043, %v9001, %v8254
      %v9034 = vsel %vm3043, %v9002, %v8256
      %v9035 = vsel %vm3043, %v9003, %v8258
      %v9036 = vsel %vm3043, %v9004, %v8260
      %v9037 = vsel %vm3043, %v9005, %v8262
      %v9038 = vsel %vm3043, %v9006, %v8264
      %v9039 = vsel %vm3043, %v9007, %v8266
      %v9040 = vsel %vm3043, %v9008, %v8268
      %v9041 = vsel %vm3043, %v9009, %v8270
      %v9042 = vsel %vm3043, %v9010, %v8272
      %v9043 = vsel %vm3043, %v9011, %v8274
      %v9044 = vsel %vm3043, %v9012, %v8276
      %v9045 = vsel %vm3076, %v9013, %v8342
      %v9046 = vsel %vm3076, %v9014, %v8344
      %v9047 = vsel %vm3076, %v9015, %v8346
      %v9048 = vsel %vm3076, %v9016, %v8348
      %v9049 = vsel %vm3076, %v9017, %v8350
      %v9050 = vsel %vm3076, %v9018, %v8352
      %v9051 = vsel %vm3076, %v9019, %v8354
      %v9052 = vsel %vm3076, %v9020, %v8356
      %v9053 = vsel %vm3076, %v9021, %v8358
      %v9054 = vsel %vm3076, %v9022, %v8360
      %v9055 = vsel %vm3076, %v9023, %v8362
      %v9056 = vsel %vm3076, %v9024, %v8364
      %v9057 = vsel %vm3076, %v9025, %v8366
      %v9058 = vsel %vm3076, %v9026, %v8368
      %v9059 = vsel %vm3076, %v9027, %v8370
      %v9060 = vsel %vm3076, %v9028, %v8372
      %v9061 = vsel %vm3076, %v9029, %v8374
      %v9062 = vsel %vm3076, %v9030, %v8376
      %v9063 = vsel %vm3076, %v9031, %v8378
      %v9064 = vsel %vm3076, %v9032, %v8380
      %v9065 = vsel %vm3076, %v9033, %v8382
      %v9066 = vsel %vm3076, %v9034, %v8384
      %v9067 = vsel %vm3076, %v9035, %v8386
      %v9068 = vsel %vm3076, %v9036, %v8388
      %v9069 = vsel %vm3076, %v9037, %v8390
      %v9070 = vsel %vm3076, %v9038, %v8392
      %v9071 = vsel %vm3076, %v9039, %v8394
      %v9072 = vsel %vm3076, %v9040, %v8396
      %v9073 = vsel %vm3076, %v9041, %v8398
      %v9074 = vsel %vm3076, %v9042, %v8400
      %v9075 = vsel %vm3076, %v9043, %v8402
      %v9076 = vsel %vm3076, %v9044, %v8404
      %v9077 = vsel %vm3109, %v9045, %v8470
      %v9078 = vsel %vm3109, %v9046, %v8472
      %v9079 = vsel %vm3109, %v9047, %v8474
      %v9080 = vsel %vm3109, %v9048, %v8476
      %v9081 = vsel %vm3109, %v9049, %v8478
      %v9082 = vsel %vm3109, %v9050, %v8480
      %v9083 = vsel %vm3109, %v9051, %v8482
      %v9084 = vsel %vm3109, %v9052, %v8484
      %v9085 = vsel %vm3109, %v9053, %v8486
      %v9086 = vsel %vm3109, %v9054, %v8488
      %v9087 = vsel %vm3109, %v9055, %v8490
      %v9088 = vsel %vm3109, %v9056, %v8492
      %v9089 = vsel %vm3109, %v9057, %v8494
      %v9090 = vsel %vm3109, %v9058, %v8496
      %v9091 = vsel %vm3109, %v9059, %v8498
      %v9092 = vsel %vm3109, %v9060, %v8500
      %v9093 = vsel %vm3109, %v9061, %v8502
      %v9094 = vsel %vm3109, %v9062, %v8504
      %v9095 = vsel %vm3109, %v9063, %v8506
      %v9096 = vsel %vm3109, %v9064, %v8508
      %v9097 = vsel %vm3109, %v9065, %v8510
      %v9098 = vsel %vm3109, %v9066, %v8512
      %v9099 = vsel %vm3109, %v9067, %v8514
      %v9100 = vsel %vm3109, %v9068, %v8516
      %v9101 = vsel %vm3109, %v9069, %v8518
      %v9102 = vsel %vm3109, %v9070, %v8520
      %v9103 = vsel %vm3109, %v9071, %v8522
      %v9104 = vsel %vm3109, %v9072, %v8524
      %v9105 = vsel %vm3109, %v9073, %v8526
      %v9106 = vsel %vm3109, %v9074, %v8528
      %v9107 = vsel %vm3109, %v9075, %v8530
      %v9108 = vsel %vm3109, %v9076, %v8532
      %v9109 = vsel %vm3142, %v9077, %v8598
      %v9110 = vsel %vm3142, %v9078, %v8600
      %v9111 = vsel %vm3142, %v9079, %v8602
      %v9112 = vsel %vm3142, %v9080, %v8604
      %v9113 = vsel %vm3142, %v9081, %v8606
      %v9114 = vsel %vm3142, %v9082, %v8608
      %v9115 = vsel %vm3142, %v9083, %v8610
      %v9116 = vsel %vm3142, %v9084, %v8612
      %v9117 = vsel %vm3142, %v9085, %v8614
      %v9118 = vsel %vm3142, %v9086, %v8616
      %v9119 = vsel %vm3142, %v9087, %v8618
      %v9120 = vsel %vm3142, %v9088, %v8620
      %v9121 = vsel %vm3142, %v9089, %v8622
      %v9122 = vsel %vm3142, %v9090, %v8624
      %v9123 = vsel %vm3142, %v9091, %v8626
      %v9124 = vsel %vm3142, %v9092, %v8628
      %v9125 = vsel %vm3142, %v9093, %v8630
      %v9126 = vsel %vm3142, %v9094, %v8632
      %v9127 = vsel %vm3142, %v9095, %v8634
      %v9128 = vsel %vm3142, %v9096, %v8636
      %v9129 = vsel %vm3142, %v9097, %v8638
      %v9130 = vsel %vm3142, %v9098, %v8640
      %v9131 = vsel %vm3142, %v9099, %v8642
      %v9132 = vsel %vm3142, %v9100, %v8644
      %v9133 = vsel %vm3142, %v9101, %v8646
      %v9134 = vsel %vm3142, %v9102, %v8648
      %v9135 = vsel %vm3142, %v9103, %v8650
      %v9136 = vsel %vm3142, %v9104, %v8652
      %v9137 = vsel %vm3142, %v9105, %v8654
      %v9138 = vsel %vm3142, %v9106, %v8656
      %v9139 = vsel %vm3142, %v9107, %v8658
      %v9140 = vsel %vm3142, %v9108, %v8660
      %v9141 = vsel %vm3175, %v9109, %v8726
      %v9142 = vsel %vm3175, %v9110, %v8728
      %v9143 = vsel %vm3175, %v9111, %v8730
      %v9144 = vsel %vm3175, %v9112, %v8732
      %v9145 = vsel %vm3175, %v9113, %v8734
      %v9146 = vsel %vm3175, %v9114, %v8736
      %v9147 = vsel %vm3175, %v9115, %v8738
      %v9148 = vsel %vm3175, %v9116, %v8740
      %v9149 = vsel %vm3175, %v9117, %v8742
      %v9150 = vsel %vm3175, %v9118, %v8744
      %v9151 = vsel %vm3175, %v9119, %v8746
      %v9152 = vsel %vm3175, %v9120, %v8748
      %v9153 = vsel %vm3175, %v9121, %v8750
      %v9154 = vsel %vm3175, %v9122, %v8752
      %v9155 = vsel %vm3175, %v9123, %v8754
      %v9156 = vsel %vm3175, %v9124, %v8756
      %v9157 = vsel %vm3175, %v9125, %v8758
      %v9158 = vsel %vm3175, %v9126, %v8760
      %v9159 = vsel %vm3175, %v9127, %v8762
      %v9160 = vsel %vm3175, %v9128, %v8764
      %v9161 = vsel %vm3175, %v9129, %v8766
      %v9162 = vsel %vm3175, %v9130, %v8768
      %v9163 = vsel %vm3175, %v9131, %v8770
      %v9164 = vsel %vm3175, %v9132, %v8772
      %v9165 = vsel %vm3175, %v9133, %v8774
      %v9166 = vsel %vm3175, %v9134, %v8776
      %v9167 = vsel %vm3175, %v9135, %v8778
      %v9168 = vsel %vm3175, %v9136, %v8780
      %v9169 = vsel %vm3175, %v9137, %v8782
      %v9170 = vsel %vm3175, %v9138, %v8784
      %v9171 = vsel %vm3175, %v9139, %v8786
      %v9172 = vsel %vm3175, %v9140, %v8788
      %v9173 = vsel %vm394, %v9141, %v8854
      %v9174 = vsel %vm394, %v9142, %v8856
      %v9175 = vsel %vm394, %v9143, %v8858
      %v9176 = vsel %vm394, %v9144, %v8860
      %v9177 = vsel %vm394, %v9145, %v8862
      %v9178 = vsel %vm394, %v9146, %v8864
      %v9179 = vsel %vm394, %v9147, %v8866
      %v9180 = vsel %vm394, %v9148, %v8868
      %v9181 = vsel %vm394, %v9149, %v8870
      %v9182 = vsel %vm394, %v9150, %v8872
      %v9183 = vsel %vm394, %v9151, %v8874
      %v9184 = vsel %vm394, %v9152, %v8876
      %v9185 = vsel %vm394, %v9153, %v8878
      %v9186 = vsel %vm394, %v9154, %v8880
      %v9187 = vsel %vm394, %v9155, %v8882
      %v9188 = vsel %vm394, %v9156, %v8884
      %v9189 = vsel %vm394, %v9157, %v8886
      %v9190 = vsel %vm394, %v9158, %v8888
      %v9191 = vsel %vm394, %v9159, %v8890
      %v9192 = vsel %vm394, %v9160, %v8892
      %v9193 = vsel %vm394, %v9161, %v8894
      %v9194 = vsel %vm394, %v9162, %v8896
      %v9195 = vsel %vm394, %v9163, %v8898
      %v9196 = vsel %vm394, %v9164, %v8900
      %v9197 = vsel %vm394, %v9165, %v8902
      %v9198 = vsel %vm394, %v9166, %v8904
      %v9199 = vsel %vm394, %v9167, %v8906
      %v9200 = vsel %vm394, %v9168, %v8908
      %v9201 = vsel %vm394, %v9169, %v8910
      %v9202 = vsel %vm394, %v9170, %v8912
      %v9203 = vsel %vm394, %v9171, %v8914
      %v9204 = vsel %vm394, %v9172, %v8916
      %s9205 = scalar_lea.vmem %s4, 72
      %v9206 = vld [vmem:[%s9205] sm:$0xff]
      %v9207 = vld [vmem:[%s9205 + $0x8] sm:$0xff]
      %v9208 = vld [vmem:[%s9205 + $0x10] sm:$0x3]
      %v9210 = vsel %vm3243, %v9173, 0
      %v9213 = vsel %vm3243, %v9174, 0
      %v9216 = vsel %vm3243, %v9175, 0
      %v9219 = vsel %vm3243, %v9176, 0
      %v9222 = vsel %vm3243, %v9177, 0
      %v9225 = vsel %vm3243, %v9178, 0
      %v9228 = vsel %vm3243, %v9179, 0
      %v9231 = vsel %vm3243, %v9180, 0
      %v9234 = vsel %vm3243, %v9181, 0
      %v9237 = vsel %vm3243, %v9182, 0
      %v9240 = vsel %vm3243, %v9183, 0
      %v9243 = vsel %vm3243, %v9184, 0
      %v9246 = vsel %vm3243, %v9185, 0
      %v9249 = vsel %vm3243, %v9186, 0
      %v9252 = vsel %vm3243, %v9187, 0
      %v9255 = vsel %vm3243, %v9188, 0
      %v9258 = vsel %vm3243, %v9189, 0
      %v9261 = vsel %vm3243, %v9190, 0
      %v9264 = vsel %vm3243, %v9191, 0
      %v9267 = vsel %vm3243, %v9192, 0
      %v9270 = vsel %vm3243, %v9193, 0
      %v9273 = vsel %vm3243, %v9194, 0
      %v9276 = vsel %vm3243, %v9195, 0
      %v9279 = vsel %vm3243, %v9196, 0
      %v9282 = vsel %vm3243, %v9197, 0
      %v9285 = vsel %vm3243, %v9198, 0
      %v9288 = vsel %vm3243, %v9199, 0
      %v9291 = vsel %vm3243, %v9200, 0
      %v9294 = vsel %vm3243, %v9201, 0
      %v9297 = vsel %vm3243, %v9202, 0
      %v9300 = vsel %vm3243, %v9203, 0
      %v9303 = vsel %vm3243, %v9204, 0
      %v9306 = vsel %vm3340, %v9208, 0
      %9308 = vmatprep.subr.mxu0 0.0
      %9309 = vmatpush1.msra.mxu0 %v9206
      %9310 = vmatprep.subr.mxu0 0.0
      %9311 = vmatpush1.msra.mxu0 %v9207
      %9312 = vmatprep.subr.mxu0 0.0
      %9313 = vmatpush1.msra.mxu0 %v9306
      %9314 = vmatprep.subr.mxu0 0.0
      %9315 = vmatpush1.msra.mxu0 0.0
      %9316 = vmatprep.subr.mxu0 0.0
      %9317 = vmatpush1.msra.mxu0 0.0
      %9318 = vmatprep.subr.mxu0 0.0
      %9319 = vmatpush1.msra.mxu0 0.0
      %9320 = vmatprep.subr.mxu0 0.0
      %9321 = vmatpush1.msra.mxu0 0.0
      %9322 = vmatprep.subr.mxu0 0.0
      %9323 = vmatpush1.msra.mxu0 0.0
      %9324 = vmatprep.subr.mxu0 0.0
      %9325 = vmatpush1.msra.mxu0 0.0
      %9326 = vmatprep.subr.mxu0 0.0
      %9327 = vmatpush1.msra.mxu0 0.0
      %9328 = vmatprep.subr.mxu0 0.0
      %9329 = vmatpush1.msra.mxu0 0.0
      %9330 = vmatprep.subr.mxu0 0.0
      %9331 = vmatpush1.msra.mxu0 0.0
      %9332 = vmatprep.subr.mxu0 0.0
      %9333 = vmatpush1.msra.mxu0 0.0
      %9334 = vmatprep.subr.mxu0 0.0
      %9335 = vmatpush1.msra.mxu0 0.0
      %9336 = vmatprep.subr.mxu0 0.0
      %9337 = vmatpush1.msra.mxu0 0.0
      %9338 = vmatprep.subr.mxu0 0.0
      %9339 = vmatpush1.msra.mxu0 0.0
      %9340 = vmatprep.subr.mxu0 0.0
      %9341 = vmatpush1.msra.mxu0 0.0
      %9342 = vmatprep.subr.mxu0 0.0
      %9343 = vmatpush1.msra.mxu0 0.0
      %9344 = vmatprep.subr.mxu0 0.0
      %9345 = vmatpush1.msra.mxu0 0.0
      %9346 = vmatprep.subr.mxu0 0.0
      %9347 = vmatpush1.msra.mxu0 0.0
      %9348 = vmatprep.subr.mxu0 0.0
      %9349 = vmatpush1.msra.mxu0 0.0
      %9350 = vmatprep.subr.mxu0 0.0
      %9351 = vmatpush1.msra.mxu0 0.0
      %9352 = vmatprep.subr.mxu0 0.0
      %9353 = vmatpush1.msra.mxu0 0.0
      %9354 = vmatprep.subr.mxu0 0.0
      %9355 = vmatpush1.msra.mxu0 0.0
      %9356 = vmatprep.subr.mxu0 0.0
      %9357 = vmatpush1.msra.mxu0 0.0
      %9358 = vmatprep.subr.mxu0 0.0
      %9359 = vmatpush1.msra.mxu0 0.0
      %9360 = vmatprep.subr.mxu0 0.0
      %9361 = vmatpush1.msra.mxu0 0.0
      %9362 = vmatprep.subr.mxu0 0.0
      %9363 = vmatpush1.msra.mxu0 0.0
      %9364 = vmatprep.subr.mxu0 0.0
      %9365 = vmatpush1.msra.mxu0 0.0
      %9366 = vmatprep.subr.mxu0 0.0
      %9367 = vmatpush1.msra.mxu0 0.0
      %9368 = vmatprep.subr.mxu0 0.0
      %9369 = vmatpush1.msra.mxu0 0.0
      %9370 = vmatprep.subr.mxu0 0.0
      %9371 = vmatpush1.msra.mxu0 0.0
      %9372 = vmatprep.mubr.f32.mxu0 0.0
      %9373 = vmatmul.mubr.f32.gmra.mrb[0].mxu0 %v9210
      %v9374 = vpop.f32.mrb[0].mxu0
      %v9375 = vadd.f32 0.0, %v9374
      %v9376 = vpop.f32.mrb[0].mxu0
      %9377 = vmatprep.mubr.f32.mxu0 0.0
      %9378 = vmatmul.mubr.f32.gmra.mrb[0].mxu0 %v9213
      %v9379 = vpop.f32.mrb[0].mxu0
      %v9380 = vadd.f32 0.0, %v9379
      %v9381 = vpop.f32.mrb[0].mxu0
      %9382 = vmatprep.mubr.f32.mxu0 0.0
      %9383 = vmatmul.mubr.f32.gmra.mrb[0].mxu0 %v9216
      %v9384 = vpop.f32.mrb[0].mxu0
      %v9385 = vadd.f32 0.0, %v9384
      %v9386 = vpop.f32.mrb[0].mxu0
      %9387 = vmatprep.mubr.f32.mxu0 0.0
      %9388 = vmatmul.mubr.f32.gmra.mrb[0].mxu0 %v9219
      %v9389 = vpop.f32.mrb[0].mxu0
      %v9390 = vadd.f32 0.0, %v9389
      %v9391 = vpop.f32.mrb[0].mxu0
      %9392 = vmatprep.mubr.f32.mxu0 0.0
      %9393 = vmatmul.mubr.f32.gmra.mrb[0].mxu0 %v9222
      %v9394 = vpop.f32.mrb[0].mxu0
      %v9395 = vadd.f32 0.0, %v9394
      %v9396 = vpop.f32.mrb[0].mxu0
      %9397 = vmatprep.mubr.f32.mxu0 0.0
      %9398 = vmatmul.mubr.f32.gmra.mrb[0].mxu0 %v9225
      %v9399 = vpop.f32.mrb[0].mxu0
      %v9400 = vadd.f32 0.0, %v9399
      %v9401 = vpop.f32.mrb[0].mxu0
      %9402 = vmatprep.mubr.f32.mxu0 0.0
      %9403 = vmatmul.mubr.f32.gmra.mrb[0].mxu0 %v9228
      %v9404 = vpop.f32.mrb[0].mxu0
      %v9405 = vadd.f32 0.0, %v9404
      %v9406 = vpop.f32.mrb[0].mxu0
      %9407 = vmatprep.mubr.f32.mxu0 0.0
      %9408 = vmatmul.mubr.f32.gmra.mrb[0].mxu0 %v9231
      %v9409 = vpop.f32.mrb[0].mxu0
      %v9410 = vadd.f32 0.0, %v9409
      %v9411 = vpop.f32.mrb[0].mxu0
      %9412 = vmatprep.mubr.f32.mxu0 0.0
      %9413 = vmatmul.mubr.f32.gmra.mrb[0].mxu0 %v9234
      %v9414 = vpop.f32.mrb[0].mxu0
      %v9415 = vadd.f32 0.0, %v9414
      %v9416 = vpop.f32.mrb[0].mxu0
      %9417 = vmatprep.mubr.f32.mxu0 0.0
      %9418 = vmatmul.mubr.f32.gmra.mrb[0].mxu0 %v9237
      %v9419 = vpop.f32.mrb[0].mxu0
      %v9420 = vadd.f32 0.0, %v9419
      %v9421 = vpop.f32.mrb[0].mxu0
      %9422 = vmatprep.mubr.f32.mxu0 0.0
      %9423 = vmatmul.mubr.f32.gmra.mrb[0].mxu0 %v9240
      %v9424 = vpop.f32.mrb[0].mxu0
      %v9425 = vadd.f32 0.0, %v9424
      %v9426 = vpop.f32.mrb[0].mxu0
      %9427 = vmatprep.mubr.f32.mxu0 0.0
      %9428 = vmatmul.mubr.f32.gmra.mrb[0].mxu0 %v9243
      %v9429 = vpop.f32.mrb[0].mxu0
      %v9430 = vadd.f32 0.0, %v9429
      %v9431 = vpop.f32.mrb[0].mxu0
      %9432 = vmatprep.mubr.f32.mxu0 0.0
      %9433 = vmatmul.mubr.f32.gmra.mrb[0].mxu0 %v9246
      %v9434 = vpop.f32.mrb[0].mxu0
      %v9435 = vadd.f32 0.0, %v9434
      %v9436 = vpop.f32.mrb[0].mxu0
      %9437 = vmatprep.mubr.f32.mxu0 0.0
      %9438 = vmatmul.mubr.f32.gmra.mrb[0].mxu0 %v9249
      %v9439 = vpop.f32.mrb[0].mxu0
      %v9440 = vadd.f32 0.0, %v9439
      %v9441 = vpop.f32.mrb[0].mxu0
      %9442 = vmatprep.mubr.f32.mxu0 0.0
      %9443 = vmatmul.mubr.f32.gmra.mrb[0].mxu0 %v9252
      %v9444 = vpop.f32.mrb[0].mxu0
      %v9445 = vadd.f32 0.0, %v9444
      %v9446 = vpop.f32.mrb[0].mxu0
      %9447 = vmatprep.mubr.f32.mxu0 0.0
      %9448 = vmatmul.mubr.f32.gmra.mrb[0].mxu0 %v9255
      %v9449 = vpop.f32.mrb[0].mxu0
      %v9450 = vadd.f32 0.0, %v9449
      %v9451 = vpop.f32.mrb[0].mxu0
      %9452 = vmatprep.mubr.f32.mxu0 0.0
      %9453 = vmatmul.mubr.f32.gmra.mrb[0].mxu0 %v9258
      %v9454 = vpop.f32.mrb[0].mxu0
      %v9455 = vadd.f32 0.0, %v9454
      %v9456 = vpop.f32.mrb[0].mxu0
      %9457 = vmatprep.mubr.f32.mxu0 0.0
      %9458 = vmatmul.mubr.f32.gmra.mrb[0].mxu0 %v9261
      %v9459 = vpop.f32.mrb[0].mxu0
      %v9460 = vadd.f32 0.0, %v9459
      %v9461 = vpop.f32.mrb[0].mxu0
      %9462 = vmatprep.mubr.f32.mxu0 0.0
      %9463 = vmatmul.mubr.f32.gmra.mrb[0].mxu0 %v9264
      %v9464 = vpop.f32.mrb[0].mxu0
      %v9465 = vadd.f32 0.0, %v9464
      %v9466 = vpop.f32.mrb[0].mxu0
      %9467 = vmatprep.mubr.f32.mxu0 0.0
      %9468 = vmatmul.mubr.f32.gmra.mrb[0].mxu0 %v9267
      %v9469 = vpop.f32.mrb[0].mxu0
      %v9470 = vadd.f32 0.0, %v9469
      %v9471 = vpop.f32.mrb[0].mxu0
      %9472 = vmatprep.mubr.f32.mxu0 0.0
      %9473 = vmatmul.mubr.f32.gmra.mrb[0].mxu0 %v9270
      %v9474 = vpop.f32.mrb[0].mxu0
      %v9475 = vadd.f32 0.0, %v9474
      %v9476 = vpop.f32.mrb[0].mxu0
      %9477 = vmatprep.mubr.f32.mxu0 0.0
      %9478 = vmatmul.mubr.f32.gmra.mrb[0].mxu0 %v9273
      %v9479 = vpop.f32.mrb[0].mxu0
      %v9480 = vadd.f32 0.0, %v9479
      %v9481 = vpop.f32.mrb[0].mxu0
      %9482 = vmatprep.mubr.f32.mxu0 0.0
      %9483 = vmatmul.mubr.f32.gmra.mrb[0].mxu0 %v9276
      %v9484 = vpop.f32.mrb[0].mxu0
      %v9485 = vadd.f32 0.0, %v9484
      %v9486 = vpop.f32.mrb[0].mxu0
      %9487 = vmatprep.mubr.f32.mxu0 0.0
      %9488 = vmatmul.mubr.f32.gmra.mrb[0].mxu0 %v9279
      %v9489 = vpop.f32.mrb[0].mxu0
      %v9490 = vadd.f32 0.0, %v9489
      %v9491 = vpop.f32.mrb[0].mxu0
      %9492 = vmatprep.mubr.f32.mxu0 0.0
      %9493 = vmatmul.mubr.f32.gmra.mrb[0].mxu0 %v9282
      %v9494 = vpop.f32.mrb[0].mxu0
      %v9495 = vadd.f32 0.0, %v9494
      %v9496 = vpop.f32.mrb[0].mxu0
      %9497 = vmatprep.mubr.f32.mxu0 0.0
      %9498 = vmatmul.mubr.f32.gmra.mrb[0].mxu0 %v9285
      %v9499 = vpop.f32.mrb[0].mxu0
      %v9500 = vadd.f32 0.0, %v9499
      %v9501 = vpop.f32.mrb[0].mxu0
      %9502 = vmatprep.mubr.f32.mxu0 0.0
      %9503 = vmatmul.mubr.f32.gmra.mrb[0].mxu0 %v9288
      %v9504 = vpop.f32.mrb[0].mxu0
      %v9505 = vadd.f32 0.0, %v9504
      %v9506 = vpop.f32.mrb[0].mxu0
      %9507 = vmatprep.mubr.f32.mxu0 0.0
      %9508 = vmatmul.mubr.f32.gmra.mrb[0].mxu0 %v9291
      %v9509 = vpop.f32.mrb[0].mxu0
      %v9510 = vadd.f32 0.0, %v9509
      %v9511 = vpop.f32.mrb[0].mxu0
      %9512 = vmatprep.mubr.f32.mxu0 0.0
      %9513 = vmatmul.mubr.f32.gmra.mrb[0].mxu0 %v9294
      %v9514 = vpop.f32.mrb[0].mxu0
      %v9515 = vadd.f32 0.0, %v9514
      %v9516 = vpop.f32.mrb[0].mxu0
      %9517 = vmatprep.mubr.f32.mxu0 0.0
      %9518 = vmatmul.mubr.f32.gmra.mrb[0].mxu0 %v9297
      %v9519 = vpop.f32.mrb[0].mxu0
      %v9520 = vadd.f32 0.0, %v9519
      %v9521 = vpop.f32.mrb[0].mxu0
      %9522 = vmatprep.mubr.f32.mxu0 0.0
      %9523 = vmatmul.mubr.f32.gmra.mrb[0].mxu0 %v9300
      %v9524 = vpop.f32.mrb[0].mxu0
      %v9525 = vadd.f32 0.0, %v9524
      %v9526 = vpop.f32.mrb[0].mxu0
      %9527 = vmatprep.mubr.f32.mxu0 0.0
      %9528 = vmatmul.mubr.f32.gmra.mrb[0].mxu0 %v9303
      %v9529 = vpop.f32.mrb[0].mxu0
      %v9530 = vadd.f32 0.0, %v9529
      %v9531 = vpop.f32.mrb[0].mxu0
      %9532 = vdwg.mxu0
      %s9533 = scalar_lea.vmem %s5, 3
      %v9534 = vld [vmem:[%s9533] sm:$0x1]
      %v9536 = vlaneseq
      %v9537 = vshrl.u32 %v9536, 7
      %v9538 = vsub.s32 0, %v9537
      %v9539 = vrot.slane %v9534, %v9538
      %v9541 = vmul.f32 %v9375, %v9539
      %v9542 = vmul.f32 %v9380, %v9539
      %v9543 = vmul.f32 %v9385, %v9539
      %v9544 = vmul.f32 %v9390, %v9539
      %v9545 = vmul.f32 %v9395, %v9539
      %v9546 = vmul.f32 %v9400, %v9539
      %v9547 = vmul.f32 %v9405, %v9539
      %v9548 = vmul.f32 %v9410, %v9539
      %v9549 = vmul.f32 %v9415, %v9539
      %v9550 = vmul.f32 %v9420, %v9539
      %v9551 = vmul.f32 %v9425, %v9539
      %v9552 = vmul.f32 %v9430, %v9539
      %v9553 = vmul.f32 %v9435, %v9539
      %v9554 = vmul.f32 %v9440, %v9539
      %v9555 = vmul.f32 %v9445, %v9539
      %v9556 = vmul.f32 %v9450, %v9539
      %v9557 = vmul.f32 %v9455, %v9539
      %v9558 = vmul.f32 %v9460, %v9539
      %v9559 = vmul.f32 %v9465, %v9539
      %v9560 = vmul.f32 %v9470, %v9539
      %v9561 = vmul.f32 %v9475, %v9539
      %v9562 = vmul.f32 %v9480, %v9539
      %v9563 = vmul.f32 %v9485, %v9539
      %v9564 = vmul.f32 %v9490, %v9539
      %v9565 = vmul.f32 %v9495, %v9539
      %v9566 = vmul.f32 %v9500, %v9539
      %v9567 = vmul.f32 %v9505, %v9539
      %v9568 = vmul.f32 %v9510, %v9539
      %v9569 = vmul.f32 %v9515, %v9539
      %v9570 = vmul.f32 %v9520, %v9539
      %v9571 = vmul.f32 %v9525, %v9539
      %v9572 = vmul.f32 %v9530, %v9539
      %s9573 = scalar_lea.vmem %s6, 3
      %v9574 = vld [vmem:[%s9573] sm:$0x1]
      %v9576 = vlaneseq
      %v9577 = vshrl.u32 %v9576, 7
      %v9578 = vsub.s32 0, %v9577
      %v9579 = vrot.slane %v9574, %v9578
      %v9581 = vadd.f32 %v9541, %v9579
      %v9582 = vadd.f32 %v9542, %v9579
      %v9583 = vadd.f32 %v9543, %v9579
      %v9584 = vadd.f32 %v9544, %v9579
      %v9585 = vadd.f32 %v9545, %v9579
      %v9586 = vadd.f32 %v9546, %v9579
      %v9587 = vadd.f32 %v9547, %v9579
      %v9588 = vadd.f32 %v9548, %v9579
      %v9589 = vadd.f32 %v9549, %v9579
      %v9590 = vadd.f32 %v9550, %v9579
      %v9591 = vadd.f32 %v9551, %v9579
      %v9592 = vadd.f32 %v9552, %v9579
      %v9593 = vadd.f32 %v9553, %v9579
      %v9594 = vadd.f32 %v9554, %v9579
      %v9595 = vadd.f32 %v9555, %v9579
      %v9596 = vadd.f32 %v9556, %v9579
      %v9597 = vadd.f32 %v9557, %v9579
      %v9598 = vadd.f32 %v9558, %v9579
      %v9599 = vadd.f32 %v9559, %v9579
      %v9600 = vadd.f32 %v9560, %v9579
      %v9601 = vadd.f32 %v9561, %v9579
      %v9602 = vadd.f32 %v9562, %v9579
      %v9603 = vadd.f32 %v9563, %v9579
      %v9604 = vadd.f32 %v9564, %v9579
      %v9605 = vadd.f32 %v9565, %v9579
      %v9606 = vadd.f32 %v9566, %v9579
      %v9607 = vadd.f32 %v9567, %v9579
      %v9608 = vadd.f32 %v9568, %v9579
      %v9609 = vadd.f32 %v9569, %v9579
      %v9610 = vadd.f32 %v9570, %v9579
      %v9611 = vadd.f32 %v9571, %v9579
      %v9612 = vadd.f32 %v9572, %v9579
      %9645 = vrot.lane.b32.xlu0 %v5625, 4
      %v9646 = vpop.permute.xlu0 %9645
      %9647 = vrot.lane.b32.xlu0 %v5626, 4
      %v9648 = vpop.permute.xlu0 %9647
      %9649 = vrot.lane.b32.xlu0 %v5627, 4
      %v9650 = vpop.permute.xlu0 %9649
      %9651 = vrot.lane.b32.xlu0 %v5628, 4
      %v9652 = vpop.permute.xlu0 %9651
      %9653 = vrot.lane.b32.xlu0 %v5629, 4
      %v9654 = vpop.permute.xlu0 %9653
      %9655 = vrot.lane.b32.xlu0 %v5630, 4
      %v9656 = vpop.permute.xlu0 %9655
      %9657 = vrot.lane.b32.xlu0 %v5631, 4
      %v9658 = vpop.permute.xlu0 %9657
      %9659 = vrot.lane.b32.xlu0 %v5632, 4
      %v9660 = vpop.permute.xlu0 %9659
      %9661 = vrot.lane.b32.xlu0 %v5633, 4
      %v9662 = vpop.permute.xlu0 %9661
      %9663 = vrot.lane.b32.xlu0 %v5634, 4
      %v9664 = vpop.permute.xlu0 %9663
      %9665 = vrot.lane.b32.xlu0 %v5635, 4
      %v9666 = vpop.permute.xlu0 %9665
      %9667 = vrot.lane.b32.xlu0 %v5636, 4
      %v9668 = vpop.permute.xlu0 %9667
      %9669 = vrot.lane.b32.xlu0 %v5637, 4
      %v9670 = vpop.permute.xlu0 %9669
      %9671 = vrot.lane.b32.xlu0 %v5638, 4
      %v9672 = vpop.permute.xlu0 %9671
      %9673 = vrot.lane.b32.xlu0 %v5639, 4
      %v9674 = vpop.permute.xlu0 %9673
      %9675 = vrot.lane.b32.xlu0 %v5640, 4
      %v9676 = vpop.permute.xlu0 %9675
      %9677 = vrot.lane.b32.xlu0 %v5641, 4
      %v9678 = vpop.permute.xlu0 %9677
      %9679 = vrot.lane.b32.xlu0 %v5642, 4
      %v9680 = vpop.permute.xlu0 %9679
      %9681 = vrot.lane.b32.xlu0 %v5643, 4
      %v9682 = vpop.permute.xlu0 %9681
      %9683 = vrot.lane.b32.xlu0 %v5644, 4
      %v9684 = vpop.permute.xlu0 %9683
      %9685 = vrot.lane.b32.xlu0 %v5645, 4
      %v9686 = vpop.permute.xlu0 %9685
      %9687 = vrot.lane.b32.xlu0 %v5646, 4
      %v9688 = vpop.permute.xlu0 %9687
      %9689 = vrot.lane.b32.xlu0 %v5647, 4
      %v9690 = vpop.permute.xlu0 %9689
      %9691 = vrot.lane.b32.xlu0 %v5648, 4
      %v9692 = vpop.permute.xlu0 %9691
      %9693 = vrot.lane.b32.xlu0 %v5649, 4
      %v9694 = vpop.permute.xlu0 %9693
      %9695 = vrot.lane.b32.xlu0 %v5650, 4
      %v9696 = vpop.permute.xlu0 %9695
      %9697 = vrot.lane.b32.xlu0 %v5651, 4
      %v9698 = vpop.permute.xlu0 %9697
      %9699 = vrot.lane.b32.xlu0 %v5652, 4
      %v9700 = vpop.permute.xlu0 %9699
      %9701 = vrot.lane.b32.xlu0 %v5653, 4
      %v9702 = vpop.permute.xlu0 %9701
      %9703 = vrot.lane.b32.xlu0 %v5654, 4
      %v9704 = vpop.permute.xlu0 %9703
      %9705 = vrot.lane.b32.xlu0 %v5655, 4
      %v9706 = vpop.permute.xlu0 %9705
      %9707 = vrot.lane.b32.xlu0 %v5656, 4
      %v9708 = vpop.permute.xlu0 %9707
      %9773 = vrot.lane.b32.xlu0 %v7603, 8
      %v9774 = vpop.permute.xlu0 %9773
      %9775 = vrot.lane.b32.xlu0 %v7604, 8
      %v9776 = vpop.permute.xlu0 %9775
      %9777 = vrot.lane.b32.xlu0 %v7605, 8
      %v9778 = vpop.permute.xlu0 %9777
      %9779 = vrot.lane.b32.xlu0 %v7606, 8
      %v9780 = vpop.permute.xlu0 %9779
      %9781 = vrot.lane.b32.xlu0 %v7607, 8
      %v9782 = vpop.permute.xlu0 %9781
      %9783 = vrot.lane.b32.xlu0 %v7608, 8
      %v9784 = vpop.permute.xlu0 %9783
      %9785 = vrot.lane.b32.xlu0 %v7609, 8
      %v9786 = vpop.permute.xlu0 %9785
      %9787 = vrot.lane.b32.xlu0 %v7610, 8
      %v9788 = vpop.permute.xlu0 %9787
      %9789 = vrot.lane.b32.xlu0 %v7611, 8
      %v9790 = vpop.permute.xlu0 %9789
      %9791 = vrot.lane.b32.xlu0 %v7612, 8
      %v9792 = vpop.permute.xlu0 %9791
      %9793 = vrot.lane.b32.xlu0 %v7613, 8
      %v9794 = vpop.permute.xlu0 %9793
      %9795 = vrot.lane.b32.xlu0 %v7614, 8
      %v9796 = vpop.permute.xlu0 %9795
      %9797 = vrot.lane.b32.xlu0 %v7615, 8
      %v9798 = vpop.permute.xlu0 %9797
      %9799 = vrot.lane.b32.xlu0 %v7616, 8
      %v9800 = vpop.permute.xlu0 %9799
      %9801 = vrot.lane.b32.xlu0 %v7617, 8
      %v9802 = vpop.permute.xlu0 %9801
      %9803 = vrot.lane.b32.xlu0 %v7618, 8
      %v9804 = vpop.permute.xlu0 %9803
      %9805 = vrot.lane.b32.xlu0 %v7619, 8
      %v9806 = vpop.permute.xlu0 %9805
      %9807 = vrot.lane.b32.xlu0 %v7620, 8
      %v9808 = vpop.permute.xlu0 %9807
      %9809 = vrot.lane.b32.xlu0 %v7621, 8
      %v9810 = vpop.permute.xlu0 %9809
      %9811 = vrot.lane.b32.xlu0 %v7622, 8
      %v9812 = vpop.permute.xlu0 %9811
      %9813 = vrot.lane.b32.xlu0 %v7623, 8
      %v9814 = vpop.permute.xlu0 %9813
      %9815 = vrot.lane.b32.xlu0 %v7624, 8
      %v9816 = vpop.permute.xlu0 %9815
      %9817 = vrot.lane.b32.xlu0 %v7625, 8
      %v9818 = vpop.permute.xlu0 %9817
      %9819 = vrot.lane.b32.xlu0 %v7626, 8
      %v9820 = vpop.permute.xlu0 %9819
      %9821 = vrot.lane.b32.xlu0 %v7627, 8
      %v9822 = vpop.permute.xlu0 %9821
      %9823 = vrot.lane.b32.xlu0 %v7628, 8
      %v9824 = vpop.permute.xlu0 %9823
      %9825 = vrot.lane.b32.xlu0 %v7629, 8
      %v9826 = vpop.permute.xlu0 %9825
      %9827 = vrot.lane.b32.xlu0 %v7630, 8
      %v9828 = vpop.permute.xlu0 %9827
      %9829 = vrot.lane.b32.xlu0 %v7631, 8
      %v9830 = vpop.permute.xlu0 %9829
      %9831 = vrot.lane.b32.xlu0 %v7632, 8
      %v9832 = vpop.permute.xlu0 %9831
      %9833 = vrot.lane.b32.xlu0 %v7633, 8
      %v9834 = vpop.permute.xlu0 %9833
      %9835 = vrot.lane.b32.xlu0 %v7634, 8
      %v9836 = vpop.permute.xlu0 %9835
      %9901 = vrot.lane.b32.xlu0 %v9581, 12
      %v9902 = vpop.permute.xlu0 %9901
      %9903 = vrot.lane.b32.xlu0 %v9582, 12
      %v9904 = vpop.permute.xlu0 %9903
      %9905 = vrot.lane.b32.xlu0 %v9583, 12
      %v9906 = vpop.permute.xlu0 %9905
      %9907 = vrot.lane.b32.xlu0 %v9584, 12
      %v9908 = vpop.permute.xlu0 %9907
      %9909 = vrot.lane.b32.xlu0 %v9585, 12
      %v9910 = vpop.permute.xlu0 %9909
      %9911 = vrot.lane.b32.xlu0 %v9586, 12
      %v9912 = vpop.permute.xlu0 %9911
      %9913 = vrot.lane.b32.xlu0 %v9587, 12
      %v9914 = vpop.permute.xlu0 %9913
      %9915 = vrot.lane.b32.xlu0 %v9588, 12
      %v9916 = vpop.permute.xlu0 %9915
      %9917 = vrot.lane.b32.xlu0 %v9589, 12
      %v9918 = vpop.permute.xlu0 %9917
      %9919 = vrot.lane.b32.xlu0 %v9590, 12
      %v9920 = vpop.permute.xlu0 %9919
      %9921 = vrot.lane.b32.xlu0 %v9591, 12
      %v9922 = vpop.permute.xlu0 %9921
      %9923 = vrot.lane.b32.xlu0 %v9592, 12
      %v9924 = vpop.permute.xlu0 %9923
      %9925 = vrot.lane.b32.xlu0 %v9593, 12
      %v9926 = vpop.permute.xlu0 %9925
      %9927 = vrot.lane.b32.xlu0 %v9594, 12
      %v9928 = vpop.permute.xlu0 %9927
      %9929 = vrot.lane.b32.xlu0 %v9595, 12
      %v9930 = vpop.permute.xlu0 %9929
      %9931 = vrot.lane.b32.xlu0 %v9596, 12
      %v9932 = vpop.permute.xlu0 %9931
      %9933 = vrot.lane.b32.xlu0 %v9597, 12
      %v9934 = vpop.permute.xlu0 %9933
      %9935 = vrot.lane.b32.xlu0 %v9598, 12
      %v9936 = vpop.permute.xlu0 %9935
      %9937 = vrot.lane.b32.xlu0 %v9599, 12
      %v9938 = vpop.permute.xlu0 %9937
      %9939 = vrot.lane.b32.xlu0 %v9600, 12
      %v9940 = vpop.permute.xlu0 %9939
      %9941 = vrot.lane.b32.xlu0 %v9601, 12
      %v9942 = vpop.permute.xlu0 %9941
      %9943 = vrot.lane.b32.xlu0 %v9602, 12
      %v9944 = vpop.permute.xlu0 %9943
      %9945 = vrot.lane.b32.xlu0 %v9603, 12
      %v9946 = vpop.permute.xlu0 %9945
      %9947 = vrot.lane.b32.xlu0 %v9604, 12
      %v9948 = vpop.permute.xlu0 %9947
      %9949 = vrot.lane.b32.xlu0 %v9605, 12
      %v9950 = vpop.permute.xlu0 %9949
      %9951 = vrot.lane.b32.xlu0 %v9606, 12
      %v9952 = vpop.permute.xlu0 %9951
      %9953 = vrot.lane.b32.xlu0 %v9607, 12
      %v9954 = vpop.permute.xlu0 %9953
      %9955 = vrot.lane.b32.xlu0 %v9608, 12
      %v9956 = vpop.permute.xlu0 %9955
      %9957 = vrot.lane.b32.xlu0 %v9609, 12
      %v9958 = vpop.permute.xlu0 %9957
      %9959 = vrot.lane.b32.xlu0 %v9610, 12
      %v9960 = vpop.permute.xlu0 %9959
      %9961 = vrot.lane.b32.xlu0 %v9611, 12
      %v9962 = vpop.permute.xlu0 %9961
      %9963 = vrot.lane.b32.xlu0 %v9612, 12
      %v9964 = vpop.permute.xlu0 %9963
      %v9997 = vsel %vm3010, %v3647, %v9646
      %v9998 = vsel %vm3010, %v3648, %v9648
      %v9999 = vsel %vm3010, %v3649, %v9650
      %v10000 = vsel %vm3010, %v3650, %v9652
      %v10001 = vsel %vm3010, %v3651, %v9654
      %v10002 = vsel %vm3010, %v3652, %v9656
      %v10003 = vsel %vm3010, %v3653, %v9658
      %v10004 = vsel %vm3010, %v3654, %v9660
      %v10005 = vsel %vm3010, %v3655, %v9662
      %v10006 = vsel %vm3010, %v3656, %v9664
      %v10007 = vsel %vm3010, %v3657, %v9666
      %v10008 = vsel %vm3010, %v3658, %v9668
      %v10009 = vsel %vm3010, %v3659, %v9670
      %v10010 = vsel %vm3010, %v3660, %v9672
      %v10011 = vsel %vm3010, %v3661, %v9674
      %v10012 = vsel %vm3010, %v3662, %v9676
      %v10013 = vsel %vm3010, %v3663, %v9678
      %v10014 = vsel %vm3010, %v3664, %v9680
      %v10015 = vsel %vm3010, %v3665, %v9682
      %v10016 = vsel %vm3010, %v3666, %v9684
      %v10017 = vsel %vm3010, %v3667, %v9686
      %v10018 = vsel %vm3010, %v3668, %v9688
      %v10019 = vsel %vm3010, %v3669, %v9690
      %v10020 = vsel %vm3010, %v3670, %v9692
      %v10021 = vsel %vm3010, %v3671, %v9694
      %v10022 = vsel %vm3010, %v3672, %v9696
      %v10023 = vsel %vm3010, %v3673, %v9698
      %v10024 = vsel %vm3010, %v3674, %v9700
      %v10025 = vsel %vm3010, %v3675, %v9702
      %v10026 = vsel %vm3010, %v3676, %v9704
      %v10027 = vsel %vm3010, %v3677, %v9706
      %v10028 = vsel %vm3010, %v3678, %v9708
      %v10029 = vsel %vm3076, %v9997, %v9774
      %v10030 = vsel %vm3076, %v9998, %v9776
      %v10031 = vsel %vm3076, %v9999, %v9778
      %v10032 = vsel %vm3076, %v10000, %v9780
      %v10033 = vsel %vm3076, %v10001, %v9782
      %v10034 = vsel %vm3076, %v10002, %v9784
      %v10035 = vsel %vm3076, %v10003, %v9786
      %v10036 = vsel %vm3076, %v10004, %v9788
      %v10037 = vsel %vm3076, %v10005, %v9790
      %v10038 = vsel %vm3076, %v10006, %v9792
      %v10039 = vsel %vm3076, %v10007, %v9794
      %v10040 = vsel %vm3076, %v10008, %v9796
      %v10041 = vsel %vm3076, %v10009, %v9798
      %v10042 = vsel %vm3076, %v10010, %v9800
      %v10043 = vsel %vm3076, %v10011, %v9802
      %v10044 = vsel %vm3076, %v10012, %v9804
      %v10045 = vsel %vm3076, %v10013, %v9806
      %v10046 = vsel %vm3076, %v10014, %v9808
      %v10047 = vsel %vm3076, %v10015, %v9810
      %v10048 = vsel %vm3076, %v10016, %v9812
      %v10049 = vsel %vm3076, %v10017, %v9814
      %v10050 = vsel %vm3076, %v10018, %v9816
      %v10051 = vsel %vm3076, %v10019, %v9818
      %v10052 = vsel %vm3076, %v10020, %v9820
      %v10053 = vsel %vm3076, %v10021, %v9822
      %v10054 = vsel %vm3076, %v10022, %v9824
      %v10055 = vsel %vm3076, %v10023, %v9826
      %v10056 = vsel %vm3076, %v10024, %v9828
      %v10057 = vsel %vm3076, %v10025, %v9830
      %v10058 = vsel %vm3076, %v10026, %v9832
      %v10059 = vsel %vm3076, %v10027, %v9834
      %v10060 = vsel %vm3076, %v10028, %v9836
      %v10061 = vsel %vm3142, %v10029, %v9902
      %v10062 = vsel %vm3142, %v10030, %v9904
      %v10063 = vsel %vm3142, %v10031, %v9906
      %v10064 = vsel %vm3142, %v10032, %v9908
      %v10065 = vsel %vm3142, %v10033, %v9910
      %v10066 = vsel %vm3142, %v10034, %v9912
      %v10067 = vsel %vm3142, %v10035, %v9914
      %v10068 = vsel %vm3142, %v10036, %v9916
      %v10069 = vsel %vm3142, %v10037, %v9918
      %v10070 = vsel %vm3142, %v10038, %v9920
      %v10071 = vsel %vm3142, %v10039, %v9922
      %v10072 = vsel %vm3142, %v10040, %v9924
      %v10073 = vsel %vm3142, %v10041, %v9926
      %v10074 = vsel %vm3142, %v10042, %v9928
      %v10075 = vsel %vm3142, %v10043, %v9930
      %v10076 = vsel %vm3142, %v10044, %v9932
      %v10077 = vsel %vm3142, %v10045, %v9934
      %v10078 = vsel %vm3142, %v10046, %v9936
      %v10079 = vsel %vm3142, %v10047, %v9938
      %v10080 = vsel %vm3142, %v10048, %v9940
      %v10081 = vsel %vm3142, %v10049, %v9942
      %v10082 = vsel %vm3142, %v10050, %v9944
      %v10083 = vsel %vm3142, %v10051, %v9946
      %v10084 = vsel %vm3142, %v10052, %v9948
      %v10085 = vsel %vm3142, %v10053, %v9950
      %v10086 = vsel %vm3142, %v10054, %v9952
      %v10087 = vsel %vm3142, %v10055, %v9954
      %v10088 = vsel %vm3142, %v10056, %v9956
      %v10089 = vsel %vm3142, %v10057, %v9958
      %v10090 = vsel %vm3142, %v10058, %v9960
      %v10091 = vsel %vm3142, %v10059, %v9962
      %v10092 = vsel %vm3142, %v10060, %v9964
      %v10093 = vld [vmem:[%s7] sm:$0xff]
      %v10094 = vld [vmem:[%s7 + $0x8] sm:$0xff]
      %v10096 = vsel %vm394, %v10061, 0
      %v10099 = vsel %vm394, %v10062, 0
      %v10102 = vsel %vm394, %v10063, 0
      %v10105 = vsel %vm394, %v10064, 0
      %v10108 = vsel %vm394, %v10065, 0
      %v10111 = vsel %vm394, %v10066, 0
      %v10114 = vsel %vm394, %v10067, 0
      %v10117 = vsel %vm394, %v10068, 0
      %v10120 = vsel %vm394, %v10069, 0
      %v10123 = vsel %vm394, %v10070, 0
      %v10126 = vsel %vm394, %v10071, 0
      %v10129 = vsel %vm394, %v10072, 0
      %v10132 = vsel %vm394, %v10073, 0
      %v10135 = vsel %vm394, %v10074, 0
      %v10138 = vsel %vm394, %v10075, 0
      %v10141 = vsel %vm394, %v10076, 0
      %v10144 = vsel %vm394, %v10077, 0
      %v10147 = vsel %vm394, %v10078, 0
      %v10150 = vsel %vm394, %v10079, 0
      %v10153 = vsel %vm394, %v10080, 0
      %v10156 = vsel %vm394, %v10081, 0
      %v10159 = vsel %vm394, %v10082, 0
      %v10162 = vsel %vm394, %v10083, 0
      %v10165 = vsel %vm394, %v10084, 0
      %v10168 = vsel %vm394, %v10085, 0
      %v10171 = vsel %vm394, %v10086, 0
      %v10174 = vsel %vm394, %v10087, 0
      %v10177 = vsel %vm394, %v10088, 0
      %v10180 = vsel %vm394, %v10089, 0
      %v10183 = vsel %vm394, %v10090, 0
      %v10186 = vsel %vm394, %v10091, 0
      %v10189 = vsel %vm394, %v10092, 0
      %10191 = vmatprep.subr.mxu0 0.0
      %10192 = vmatpush1.msra.mxu0 %v10093
      %10193 = vmatprep.subr.mxu0 0.0
      %10194 = vmatpush1.msra.mxu0 %v10094
      %10195 = vmatprep.subr.mxu0 0.0
      %10196 = vmatpush1.msra.mxu0 0.0
      %10197 = vmatprep.subr.mxu0 0.0
      %10198 = vmatpush1.msra.mxu0 0.0
      %10199 = vmatprep.subr.mxu0 0.0
      %10200 = vmatpush1.msra.mxu0 0.0
      %10201 = vmatprep.subr.mxu0 0.0
      %10202 = vmatpush1.msra.mxu0 0.0
      %10203 = vmatprep.subr.mxu0 0.0
      %10204 = vmatpush1.msra.mxu0 0.0
      %10205 = vmatprep.subr.mxu0 0.0
      %10206 = vmatpush1.msra.mxu0 0.0
      %10207 = vmatprep.subr.mxu0 0.0
      %10208 = vmatpush1.msra.mxu0 0.0
      %10209 = vmatprep.subr.mxu0 0.0
      %10210 = vmatpush1.msra.mxu0 0.0
      %10211 = vmatprep.subr.mxu0 0.0
      %10212 = vmatpush1.msra.mxu0 0.0
      %10213 = vmatprep.subr.mxu0 0.0
      %10214 = vmatpush1.msra.mxu0 0.0
      %10215 = vmatprep.subr.mxu0 0.0
      %10216 = vmatpush1.msra.mxu0 0.0
      %10217 = vmatprep.subr.mxu0 0.0
      %10218 = vmatpush1.msra.mxu0 0.0
      %10219 = vmatprep.subr.mxu0 0.0
      %10220 = vmatpush1.msra.mxu0 0.0
      %10221 = vmatprep.subr.mxu0 0.0
      %10222 = vmatpush1.msra.mxu0 0.0
      %10223 = vmatprep.subr.mxu0 0.0
      %10224 = vmatpush1.msra.mxu0 0.0
      %10225 = vmatprep.subr.mxu0 0.0
      %10226 = vmatpush1.msra.mxu0 0.0
      %10227 = vmatprep.subr.mxu0 0.0
      %10228 = vmatpush1.msra.mxu0 0.0
      %10229 = vmatprep.subr.mxu0 0.0
      %10230 = vmatpush1.msra.mxu0 0.0
      %10231 = vmatprep.subr.mxu0 0.0
      %10232 = vmatpush1.msra.mxu0 0.0
      %10233 = vmatprep.subr.mxu0 0.0
      %10234 = vmatpush1.msra.mxu0 0.0
      %10235 = vmatprep.subr.mxu0 0.0
      %10236 = vmatpush1.msra.mxu0 0.0
      %10237 = vmatprep.subr.mxu0 0.0
      %10238 = vmatpush1.msra.mxu0 0.0
      %10239 = vmatprep.subr.mxu0 0.0
      %10240 = vmatpush1.msra.mxu0 0.0
      %10241 = vmatprep.subr.mxu0 0.0
      %10242 = vmatpush1.msra.mxu0 0.0
      %10243 = vmatprep.subr.mxu0 0.0
      %10244 = vmatpush1.msra.mxu0 0.0
      %10245 = vmatprep.subr.mxu0 0.0
      %10246 = vmatpush1.msra.mxu0 0.0
      %10247 = vmatprep.subr.mxu0 0.0
      %10248 = vmatpush1.msra.mxu0 0.0
      %10249 = vmatprep.subr.mxu0 0.0
      %10250 = vmatpush1.msra.mxu0 0.0
      %10251 = vmatprep.subr.mxu0 0.0
      %10252 = vmatpush1.msra.mxu0 0.0
      %10253 = vmatprep.subr.mxu0 0.0
      %10254 = vmatpush1.msra.mxu0 0.0
      %10255 = vmatprep.mubr.f32.mxu0 0.0
      %10256 = vmatmul.mubr.f32.gmra.mrb[0].mxu0 %v10096
      %v10257 = vpop.f32.mrb[0].mxu0
      %v10258 = vadd.f32 0.0, %v10257
      %v10259 = vpop.f32.mrb[0].mxu0
      %10260 = vmatprep.mubr.f32.mxu0 0.0
      %10261 = vmatmul.mubr.f32.gmra.mrb[0].mxu0 %v10099
      %v10262 = vpop.f32.mrb[0].mxu0
      %v10263 = vadd.f32 0.0, %v10262
      %v10264 = vpop.f32.mrb[0].mxu0
      %10265 = vmatprep.mubr.f32.mxu0 0.0
      %10266 = vmatmul.mubr.f32.gmra.mrb[0].mxu0 %v10102
      %v10267 = vpop.f32.mrb[0].mxu0
      %v10268 = vadd.f32 0.0, %v10267
      %v10269 = vpop.f32.mrb[0].mxu0
      %10270 = vmatprep.mubr.f32.mxu0 0.0
      %10271 = vmatmul.mubr.f32.gmra.mrb[0].mxu0 %v10105
      %v10272 = vpop.f32.mrb[0].mxu0
      %v10273 = vadd.f32 0.0, %v10272
      %v10274 = vpop.f32.mrb[0].mxu0
      %10275 = vmatprep.mubr.f32.mxu0 0.0
      %10276 = vmatmul.mubr.f32.gmra.mrb[0].mxu0 %v10108
      %v10277 = vpop.f32.mrb[0].mxu0
      %v10278 = vadd.f32 0.0, %v10277
      %v10279 = vpop.f32.mrb[0].mxu0
      %10280 = vmatprep.mubr.f32.mxu0 0.0
      %10281 = vmatmul.mubr.f32.gmra.mrb[0].mxu0 %v10111
      %v10282 = vpop.f32.mrb[0].mxu0
      %v10283 = vadd.f32 0.0, %v10282
      %v10284 = vpop.f32.mrb[0].mxu0
      %10285 = vmatprep.mubr.f32.mxu0 0.0
      %10286 = vmatmul.mubr.f32.gmra.mrb[0].mxu0 %v10114
      %v10287 = vpop.f32.mrb[0].mxu0
      %v10288 = vadd.f32 0.0, %v10287
      %v10289 = vpop.f32.mrb[0].mxu0
      %10290 = vmatprep.mubr.f32.mxu0 0.0
      %10291 = vmatmul.mubr.f32.gmra.mrb[0].mxu0 %v10117
      %v10292 = vpop.f32.mrb[0].mxu0
      %v10293 = vadd.f32 0.0, %v10292
      %v10294 = vpop.f32.mrb[0].mxu0
      %10295 = vmatprep.mubr.f32.mxu0 0.0
      %10296 = vmatmul.mubr.f32.gmra.mrb[0].mxu0 %v10120
      %v10297 = vpop.f32.mrb[0].mxu0
      %v10298 = vadd.f32 0.0, %v10297
      %v10299 = vpop.f32.mrb[0].mxu0
      %10300 = vmatprep.mubr.f32.mxu0 0.0
      %10301 = vmatmul.mubr.f32.gmra.mrb[0].mxu0 %v10123
      %v10302 = vpop.f32.mrb[0].mxu0
      %v10303 = vadd.f32 0.0, %v10302
      %v10304 = vpop.f32.mrb[0].mxu0
      %10305 = vmatprep.mubr.f32.mxu0 0.0
      %10306 = vmatmul.mubr.f32.gmra.mrb[0].mxu0 %v10126
      %v10307 = vpop.f32.mrb[0].mxu0
      %v10308 = vadd.f32 0.0, %v10307
      %v10309 = vpop.f32.mrb[0].mxu0
      %10310 = vmatprep.mubr.f32.mxu0 0.0
      %10311 = vmatmul.mubr.f32.gmra.mrb[0].mxu0 %v10129
      %v10312 = vpop.f32.mrb[0].mxu0
      %v10313 = vadd.f32 0.0, %v10312
      %v10314 = vpop.f32.mrb[0].mxu0
      %10315 = vmatprep.mubr.f32.mxu0 0.0
      %10316 = vmatmul.mubr.f32.gmra.mrb[0].mxu0 %v10132
      %v10317 = vpop.f32.mrb[0].mxu0
      %v10318 = vadd.f32 0.0, %v10317
      %v10319 = vpop.f32.mrb[0].mxu0
      %10320 = vmatprep.mubr.f32.mxu0 0.0
      %10321 = vmatmul.mubr.f32.gmra.mrb[0].mxu0 %v10135
      %v10322 = vpop.f32.mrb[0].mxu0
      %v10323 = vadd.f32 0.0, %v10322
      %v10324 = vpop.f32.mrb[0].mxu0
      %10325 = vmatprep.mubr.f32.mxu0 0.0
      %10326 = vmatmul.mubr.f32.gmra.mrb[0].mxu0 %v10138
      %v10327 = vpop.f32.mrb[0].mxu0
      %v10328 = vadd.f32 0.0, %v10327
      %v10329 = vpop.f32.mrb[0].mxu0
      %10330 = vmatprep.mubr.f32.mxu0 0.0
      %10331 = vmatmul.mubr.f32.gmra.mrb[0].mxu0 %v10141
      %v10332 = vpop.f32.mrb[0].mxu0
      %v10333 = vadd.f32 0.0, %v10332
      %v10334 = vpop.f32.mrb[0].mxu0
      %10335 = vmatprep.mubr.f32.mxu0 0.0
      %10336 = vmatmul.mubr.f32.gmra.mrb[0].mxu0 %v10144
      %v10337 = vpop.f32.mrb[0].mxu0
      %v10338 = vadd.f32 0.0, %v10337
      %v10339 = vpop.f32.mrb[0].mxu0
      %10340 = vmatprep.mubr.f32.mxu0 0.0
      %10341 = vmatmul.mubr.f32.gmra.mrb[0].mxu0 %v10147
      %v10342 = vpop.f32.mrb[0].mxu0
      %v10343 = vadd.f32 0.0, %v10342
      %v10344 = vpop.f32.mrb[0].mxu0
      %10345 = vmatprep.mubr.f32.mxu0 0.0
      %10346 = vmatmul.mubr.f32.gmra.mrb[0].mxu0 %v10150
      %v10347 = vpop.f32.mrb[0].mxu0
      %v10348 = vadd.f32 0.0, %v10347
      %v10349 = vpop.f32.mrb[0].mxu0
      %10350 = vmatprep.mubr.f32.mxu0 0.0
      %10351 = vmatmul.mubr.f32.gmra.mrb[0].mxu0 %v10153
      %v10352 = vpop.f32.mrb[0].mxu0
      %v10353 = vadd.f32 0.0, %v10352
      %v10354 = vpop.f32.mrb[0].mxu0
      %10355 = vmatprep.mubr.f32.mxu0 0.0
      %10356 = vmatmul.mubr.f32.gmra.mrb[0].mxu0 %v10156
      %v10357 = vpop.f32.mrb[0].mxu0
      %v10358 = vadd.f32 0.0, %v10357
      %v10359 = vpop.f32.mrb[0].mxu0
      %10360 = vmatprep.mubr.f32.mxu0 0.0
      %10361 = vmatmul.mubr.f32.gmra.mrb[0].mxu0 %v10159
      %v10362 = vpop.f32.mrb[0].mxu0
      %v10363 = vadd.f32 0.0, %v10362
      %v10364 = vpop.f32.mrb[0].mxu0
      %10365 = vmatprep.mubr.f32.mxu0 0.0
      %10366 = vmatmul.mubr.f32.gmra.mrb[0].mxu0 %v10162
      %v10367 = vpop.f32.mrb[0].mxu0
      %v10368 = vadd.f32 0.0, %v10367
      %v10369 = vpop.f32.mrb[0].mxu0
      %10370 = vmatprep.mubr.f32.mxu0 0.0
      %10371 = vmatmul.mubr.f32.gmra.mrb[0].mxu0 %v10165
      %v10372 = vpop.f32.mrb[0].mxu0
      %v10373 = vadd.f32 0.0, %v10372
      %v10374 = vpop.f32.mrb[0].mxu0
      %10375 = vmatprep.mubr.f32.mxu0 0.0
      %10376 = vmatmul.mubr.f32.gmra.mrb[0].mxu0 %v10168
      %v10377 = vpop.f32.mrb[0].mxu0
      %v10378 = vadd.f32 0.0, %v10377
      %v10379 = vpop.f32.mrb[0].mxu0
      %10380 = vmatprep.mubr.f32.mxu0 0.0
      %10381 = vmatmul.mubr.f32.gmra.mrb[0].mxu0 %v10171
      %v10382 = vpop.f32.mrb[0].mxu0
      %v10383 = vadd.f32 0.0, %v10382
      %v10384 = vpop.f32.mrb[0].mxu0
      %10385 = vmatprep.mubr.f32.mxu0 0.0
      %10386 = vmatmul.mubr.f32.gmra.mrb[0].mxu0 %v10174
      %v10387 = vpop.f32.mrb[0].mxu0
      %v10388 = vadd.f32 0.0, %v10387
      %v10389 = vpop.f32.mrb[0].mxu0
      %10390 = vmatprep.mubr.f32.mxu0 0.0
      %10391 = vmatmul.mubr.f32.gmra.mrb[0].mxu0 %v10177
      %v10392 = vpop.f32.mrb[0].mxu0
      %v10393 = vadd.f32 0.0, %v10392
      %v10394 = vpop.f32.mrb[0].mxu0
      %10395 = vmatprep.mubr.f32.mxu0 0.0
      %10396 = vmatmul.mubr.f32.gmra.mrb[0].mxu0 %v10180
      %v10397 = vpop.f32.mrb[0].mxu0
      %v10398 = vadd.f32 0.0, %v10397
      %v10399 = vpop.f32.mrb[0].mxu0
      %10400 = vmatprep.mubr.f32.mxu0 0.0
      %10401 = vmatmul.mubr.f32.gmra.mrb[0].mxu0 %v10183
      %v10402 = vpop.f32.mrb[0].mxu0
      %v10403 = vadd.f32 0.0, %v10402
      %v10404 = vpop.f32.mrb[0].mxu0
      %10405 = vmatprep.mubr.f32.mxu0 0.0
      %10406 = vmatmul.mubr.f32.gmra.mrb[0].mxu0 %v10186
      %v10407 = vpop.f32.mrb[0].mxu0
      %v10408 = vadd.f32 0.0, %v10407
      %v10409 = vpop.f32.mrb[0].mxu0
      %10410 = vmatprep.mubr.f32.mxu0 0.0
      %10411 = vmatmul.mubr.f32.gmra.mrb[0].mxu0 %v10189
      %v10412 = vpop.f32.mrb[0].mxu0
      %v10413 = vadd.f32 0.0, %v10412
      %v10414 = vpop.f32.mrb[0].mxu0
      %10415 = vdwg.mxu0
      %v10416 = vld [vmem:[%s8] sm:$0x1]
      %v10418 = vlaneseq
      %v10419 = vshrl.u32 %v10418, 7
      %v10420 = vsub.s32 0, %v10419
      %v10421 = vrot.slane %v10416, %v10420
      %v10423 = vmul.f32 %v10258, %v10421
      %v10424 = vmul.f32 %v10263, %v10421
      %v10425 = vmul.f32 %v10268, %v10421
      %v10426 = vmul.f32 %v10273, %v10421
      %v10427 = vmul.f32 %v10278, %v10421
      %v10428 = vmul.f32 %v10283, %v10421
      %v10429 = vmul.f32 %v10288, %v10421
      %v10430 = vmul.f32 %v10293, %v10421
      %v10431 = vmul.f32 %v10298, %v10421
      %v10432 = vmul.f32 %v10303, %v10421
      %v10433 = vmul.f32 %v10308, %v10421
      %v10434 = vmul.f32 %v10313, %v10421
      %v10435 = vmul.f32 %v10318, %v10421
      %v10436 = vmul.f32 %v10323, %v10421
      %v10437 = vmul.f32 %v10328, %v10421
      %v10438 = vmul.f32 %v10333, %v10421
      %v10439 = vmul.f32 %v10338, %v10421
      %v10440 = vmul.f32 %v10343, %v10421
      %v10441 = vmul.f32 %v10348, %v10421
      %v10442 = vmul.f32 %v10353, %v10421
      %v10443 = vmul.f32 %v10358, %v10421
      %v10444 = vmul.f32 %v10363, %v10421
      %v10445 = vmul.f32 %v10368, %v10421
      %v10446 = vmul.f32 %v10373, %v10421
      %v10447 = vmul.f32 %v10378, %v10421
      %v10448 = vmul.f32 %v10383, %v10421
      %v10449 = vmul.f32 %v10388, %v10421
      %v10450 = vmul.f32 %v10393, %v10421
      %v10451 = vmul.f32 %v10398, %v10421
      %v10452 = vmul.f32 %v10403, %v10421
      %v10453 = vmul.f32 %v10408, %v10421
      %v10454 = vmul.f32 %v10413, %v10421
      %v10455 = vld [vmem:[%s9] sm:$0x1]
      %v10457 = vlaneseq
      %v10458 = vshrl.u32 %v10457, 7
      %v10459 = vsub.s32 0, %v10458
      %v10460 = vrot.slane %v10455, %v10459
      %v10462 = vadd.f32 %v10423, %v10460
      %v10463 = vadd.f32 %v10424, %v10460
      %v10464 = vadd.f32 %v10425, %v10460
      %v10465 = vadd.f32 %v10426, %v10460
      %v10466 = vadd.f32 %v10427, %v10460
      %v10467 = vadd.f32 %v10428, %v10460
      %v10468 = vadd.f32 %v10429, %v10460
      %v10469 = vadd.f32 %v10430, %v10460
      %v10470 = vadd.f32 %v10431, %v10460
      %v10471 = vadd.f32 %v10432, %v10460
      %v10472 = vadd.f32 %v10433, %v10460
      %v10473 = vadd.f32 %v10434, %v10460
      %v10474 = vadd.f32 %v10435, %v10460
      %v10475 = vadd.f32 %v10436, %v10460
      %v10476 = vadd.f32 %v10437, %v10460
      %v10477 = vadd.f32 %v10438, %v10460
      %v10478 = vadd.f32 %v10439, %v10460
      %v10479 = vadd.f32 %v10440, %v10460
      %v10480 = vadd.f32 %v10441, %v10460
      %v10481 = vadd.f32 %v10442, %v10460
      %v10482 = vadd.f32 %v10443, %v10460
      %v10483 = vadd.f32 %v10444, %v10460
      %v10484 = vadd.f32 %v10445, %v10460
      %v10485 = vadd.f32 %v10446, %v10460
      %v10486 = vadd.f32 %v10447, %v10460
      %v10487 = vadd.f32 %v10448, %v10460
      %v10488 = vadd.f32 %v10449, %v10460
      %v10489 = vadd.f32 %v10450, %v10460
      %v10490 = vadd.f32 %v10451, %v10460
      %v10491 = vadd.f32 %v10452, %v10460
      %v10492 = vadd.f32 %v10453, %v10460
      %v10493 = vadd.f32 %v10454, %v10460
      %v10494 = vmul.f32 %v10462, 0.1
      %v10495 = vmul.f32 %v10463, 0.1
      %v10496 = vmul.f32 %v10464, 0.1
      %v10497 = vmul.f32 %v10465, 0.1
      %v10498 = vmul.f32 %v10466, 0.1
      %v10499 = vmul.f32 %v10467, 0.1
      %v10500 = vmul.f32 %v10468, 0.1
      %v10501 = vmul.f32 %v10469, 0.1
      %v10502 = vmul.f32 %v10470, 0.1
      %v10503 = vmul.f32 %v10471, 0.1
      %v10504 = vmul.f32 %v10472, 0.1
      %v10505 = vmul.f32 %v10473, 0.1
      %v10506 = vmul.f32 %v10474, 0.1
      %v10507 = vmul.f32 %v10475, 0.1
      %v10508 = vmul.f32 %v10476, 0.1
      %v10509 = vmul.f32 %v10477, 0.1
      %v10510 = vmul.f32 %v10478, 0.1
      %v10511 = vmul.f32 %v10479, 0.1
      %v10512 = vmul.f32 %v10480, 0.1
      %v10513 = vmul.f32 %v10481, 0.1
      %v10514 = vmul.f32 %v10482, 0.1
      %v10515 = vmul.f32 %v10483, 0.1
      %v10516 = vmul.f32 %v10484, 0.1
      %v10517 = vmul.f32 %v10485, 0.1
      %v10518 = vmul.f32 %v10486, 0.1
      %v10519 = vmul.f32 %v10487, 0.1
      %v10520 = vmul.f32 %v10488, 0.1
      %v10521 = vmul.f32 %v10489, 0.1
      %v10522 = vmul.f32 %v10490, 0.1
      %v10523 = vmul.f32 %v10491, 0.1
      %v10524 = vmul.f32 %v10492, 0.1
      %v10525 = vmul.f32 %v10493, 0.1
      %10526 = vrot.lane.b32.xlu0 %v762, 120
      %v10527 = vpop.permute.xlu0 %10526
      %10528 = vrot.lane.b32.xlu0 %v763, 120
      %v10529 = vpop.permute.xlu0 %10528
      %10530 = vrot.lane.b32.xlu0 %v764, 120
      %v10531 = vpop.permute.xlu0 %10530
      %10532 = vrot.lane.b32.xlu0 %v765, 120
      %v10533 = vpop.permute.xlu0 %10532
      %10534 = vrot.lane.b32.xlu0 %v766, 120
      %v10535 = vpop.permute.xlu0 %10534
      %10536 = vrot.lane.b32.xlu0 %v767, 120
      %v10537 = vpop.permute.xlu0 %10536
      %10538 = vrot.lane.b32.xlu0 %v768, 120
      %v10539 = vpop.permute.xlu0 %10538
      %10540 = vrot.lane.b32.xlu0 %v769, 120
      %v10541 = vpop.permute.xlu0 %10540
      %10542 = vrot.lane.b32.xlu0 %v770, 120
      %v10543 = vpop.permute.xlu0 %10542
      %10544 = vrot.lane.b32.xlu0 %v771, 120
      %v10545 = vpop.permute.xlu0 %10544
      %10546 = vrot.lane.b32.xlu0 %v772, 120
      %v10547 = vpop.permute.xlu0 %10546
      %10548 = vrot.lane.b32.xlu0 %v773, 120
      %v10549 = vpop.permute.xlu0 %10548
      %10550 = vrot.lane.b32.xlu0 %v774, 120
      %v10551 = vpop.permute.xlu0 %10550
      %10552 = vrot.lane.b32.xlu0 %v775, 120
      %v10553 = vpop.permute.xlu0 %10552
      %10554 = vrot.lane.b32.xlu0 %v776, 120
      %v10555 = vpop.permute.xlu0 %10554
      %10556 = vrot.lane.b32.xlu0 %v777, 120
      %v10557 = vpop.permute.xlu0 %10556
      %10558 = vrot.lane.b32.xlu0 %v778, 120
      %v10559 = vpop.permute.xlu0 %10558
      %10560 = vrot.lane.b32.xlu0 %v779, 120
      %v10561 = vpop.permute.xlu0 %10560
      %10562 = vrot.lane.b32.xlu0 %v780, 120
      %v10563 = vpop.permute.xlu0 %10562
      %10564 = vrot.lane.b32.xlu0 %v781, 120
      %v10565 = vpop.permute.xlu0 %10564
      %10566 = vrot.lane.b32.xlu0 %v782, 120
      %v10567 = vpop.permute.xlu0 %10566
      %10568 = vrot.lane.b32.xlu0 %v783, 120
      %v10569 = vpop.permute.xlu0 %10568
      %10570 = vrot.lane.b32.xlu0 %v784, 120
      %v10571 = vpop.permute.xlu0 %10570
      %10572 = vrot.lane.b32.xlu0 %v785, 120
      %v10573 = vpop.permute.xlu0 %10572
      %10574 = vrot.lane.b32.xlu0 %v786, 120
      %v10575 = vpop.permute.xlu0 %10574
      %10576 = vrot.lane.b32.xlu0 %v787, 120
      %v10577 = vpop.permute.xlu0 %10576
      %10578 = vrot.lane.b32.xlu0 %v788, 120
      %v10579 = vpop.permute.xlu0 %10578
      %10580 = vrot.lane.b32.xlu0 %v789, 120
      %v10581 = vpop.permute.xlu0 %10580
      %10582 = vrot.lane.b32.xlu0 %v790, 120
      %v10583 = vpop.permute.xlu0 %10582
      %10584 = vrot.lane.b32.xlu0 %v791, 120
      %v10585 = vpop.permute.xlu0 %10584
      %10586 = vrot.lane.b32.xlu0 %v792, 120
      %v10587 = vpop.permute.xlu0 %10586
      %10588 = vrot.lane.b32.xlu0 %v793, 120
      %v10589 = vpop.permute.xlu0 %10588
      %v10622 = vadd.f32 %v10494, %v10527
      %v10623 = vadd.f32 %v10495, %v10529
      %v10624 = vadd.f32 %v10496, %v10531
      %v10625 = vadd.f32 %v10497, %v10533
      %v10626 = vadd.f32 %v10498, %v10535
      %v10627 = vadd.f32 %v10499, %v10537
      %v10628 = vadd.f32 %v10500, %v10539
      %v10629 = vadd.f32 %v10501, %v10541
      %v10630 = vadd.f32 %v10502, %v10543
      %v10631 = vadd.f32 %v10503, %v10545
      %v10632 = vadd.f32 %v10504, %v10547
      %v10633 = vadd.f32 %v10505, %v10549
      %v10634 = vadd.f32 %v10506, %v10551
      %v10635 = vadd.f32 %v10507, %v10553
      %v10636 = vadd.f32 %v10508, %v10555
      %v10637 = vadd.f32 %v10509, %v10557
      %v10638 = vadd.f32 %v10510, %v10559
      %v10639 = vadd.f32 %v10511, %v10561
      %v10640 = vadd.f32 %v10512, %v10563
      %v10641 = vadd.f32 %v10513, %v10565
      %v10642 = vadd.f32 %v10514, %v10567
      %v10643 = vadd.f32 %v10515, %v10569
      %v10644 = vadd.f32 %v10516, %v10571
      %v10645 = vadd.f32 %v10517, %v10573
      %v10646 = vadd.f32 %v10518, %v10575
      %v10647 = vadd.f32 %v10519, %v10577
      %v10648 = vadd.f32 %v10520, %v10579
      %v10649 = vadd.f32 %v10521, %v10581
      %v10650 = vadd.f32 %v10522, %v10583
      %v10651 = vadd.f32 %v10523, %v10585
      %v10652 = vadd.f32 %v10524, %v10587
      %v10653 = vadd.f32 %v10525, %v10589
      %v10654 = vmax.f32 %v10622, 0.0
      %v10655 = vmax.f32 %v10623, 0.0
      %v10656 = vmax.f32 %v10624, 0.0
      %v10657 = vmax.f32 %v10625, 0.0
      %v10658 = vmax.f32 %v10626, 0.0
      %v10659 = vmax.f32 %v10627, 0.0
      %v10660 = vmax.f32 %v10628, 0.0
      %v10661 = vmax.f32 %v10629, 0.0
      %v10662 = vmax.f32 %v10630, 0.0
      %v10663 = vmax.f32 %v10631, 0.0
      %v10664 = vmax.f32 %v10632, 0.0
      %v10665 = vmax.f32 %v10633, 0.0
      %v10666 = vmax.f32 %v10634, 0.0
      %v10667 = vmax.f32 %v10635, 0.0
      %v10668 = vmax.f32 %v10636, 0.0
      %v10669 = vmax.f32 %v10637, 0.0
      %v10670 = vmax.f32 %v10638, 0.0
      %v10671 = vmax.f32 %v10639, 0.0
      %v10672 = vmax.f32 %v10640, 0.0
      %v10673 = vmax.f32 %v10641, 0.0
      %v10674 = vmax.f32 %v10642, 0.0
      %v10675 = vmax.f32 %v10643, 0.0
      %v10676 = vmax.f32 %v10644, 0.0
      %v10677 = vmax.f32 %v10645, 0.0
      %v10678 = vmax.f32 %v10646, 0.0
      %v10679 = vmax.f32 %v10647, 0.0
      %v10680 = vmax.f32 %v10648, 0.0
      %v10681 = vmax.f32 %v10649, 0.0
      %v10682 = vmax.f32 %v10650, 0.0
      %v10683 = vmax.f32 %v10651, 0.0
      %v10684 = vmax.f32 %v10652, 0.0
      %v10685 = vmax.f32 %v10653, 0.0
      %10686 = vst.msk [vmem:[%s359] sm:$0xff] %vm394, %v10654
      %10687 = vst.msk [vmem:[%s359 + $0x8] sm:$0xff] %vm394, %v10655
      %10688 = vst.msk [vmem:[%s359 + $0x10] sm:$0xff] %vm394, %v10656
      %10689 = vst.msk [vmem:[%s359 + $0x18] sm:$0xff] %vm394, %v10657
      %10690 = vst.msk [vmem:[%s359 + $0x20] sm:$0xff] %vm394, %v10658
      %10691 = vst.msk [vmem:[%s359 + $0x28] sm:$0xff] %vm394, %v10659
      %10692 = vst.msk [vmem:[%s359 + $0x30] sm:$0xff] %vm394, %v10660
      %10693 = vst.msk [vmem:[%s359 + $0x38] sm:$0xff] %vm394, %v10661
      %10694 = vst.msk [vmem:[%s359 + $0x40] sm:$0xff] %vm394, %v10662
      %10695 = vst.msk [vmem:[%s359 + $0x48] sm:$0xff] %vm394, %v10663
      %10696 = vst.msk [vmem:[%s359 + $0x50] sm:$0xff] %vm394, %v10664
      %10697 = vst.msk [vmem:[%s359 + $0x58] sm:$0xff] %vm394, %v10665
      %10698 = vst.msk [vmem:[%s359 + $0x60] sm:$0xff] %vm394, %v10666
      %10699 = vst.msk [vmem:[%s359 + $0x68] sm:$0xff] %vm394, %v10667
      %10700 = vst.msk [vmem:[%s359 + $0x70] sm:$0xff] %vm394, %v10668
      %10701 = vst.msk [vmem:[%s359 + $0x78] sm:$0xff] %vm394, %v10669
      %10702 = vst.msk [vmem:[%s359 + $0x80] sm:$0xff] %vm394, %v10670
      %10703 = vst.msk [vmem:[%s359 + $0x88] sm:$0xff] %vm394, %v10671
      %10704 = vst.msk [vmem:[%s359 + $0x90] sm:$0xff] %vm394, %v10672
      %10705 = vst.msk [vmem:[%s359 + $0x98] sm:$0xff] %vm394, %v10673
      %10706 = vst.msk [vmem:[%s359 + $0xa0] sm:$0xff] %vm394, %v10674
      %10707 = vst.msk [vmem:[%s359 + $0xa8] sm:$0xff] %vm394, %v10675
      %10708 = vst.msk [vmem:[%s359 + $0xb0] sm:$0xff] %vm394, %v10676
      %10709 = vst.msk [vmem:[%s359 + $0xb8] sm:$0xff] %vm394, %v10677
      %10710 = vst.msk [vmem:[%s359 + $0xc0] sm:$0xff] %vm394, %v10678
      %10711 = vst.msk [vmem:[%s359 + $0xc8] sm:$0xff] %vm394, %v10679
      %10712 = vst.msk [vmem:[%s359 + $0xd0] sm:$0xff] %vm394, %v10680
      %10713 = vst.msk [vmem:[%s359 + $0xd8] sm:$0xff] %vm394, %v10681
      %10714 = vst.msk [vmem:[%s359 + $0xe0] sm:$0xff] %vm394, %v10682
      %10715 = vst.msk [vmem:[%s359 + $0xe8] sm:$0xff] %vm394, %v10683
      %10716 = vst.msk [vmem:[%s359 + $0xf0] sm:$0xff] %vm394, %v10684
      %10717 = vst.msk [vmem:[%s359 + $0xf8] sm:$0xff] %vm394, %v10685
      %p10718 = scmp.lt.s32.totalorder %s21, 1
      %s10719 = scalar_select %p10718, %s21, 1
      %s10720 = smul.addr %s10719, 32
      %s10721 = smul.addr %s10720, 8
      %s10722 = scalar_lea.vmem %s10, %s10721
      // Predicated region
      $region61: #{basic_rfb_forward.1} parent=59 // pred_check
        %p10723 = pneg %p254
      $region62: #{basic_rfb_forward.1} parent=59 // pred_check_branch
        %10725 = sbr.rel (%p10723) target = $region64
      $region63: #{basic_rfb_forward.1} parent=59 // pred_region
        _
      $region64: #{basic_rfb_forward.1} parent=59 // pred_fallthru
        _
    $region60: #{basic_rfb_forward.1} parent=5 // pred_fallthru
      _
    %p10726 = scmp.le.s32.totalorder 2, %s16
    // Predicated region
    $region65: #{basic_rfb_forward.1} parent=5 // pred_check
      %p10727 = pneg %p10726
    $region66: #{basic_rfb_forward.1} parent=5 // pred_check_branch
      %10729 = sbr.rel (%p10727) target = $region68
    $region67: #{basic_rfb_forward.1} parent=5 // pred_region
      %s10730 = ssub.s32 %s16, 2
      // Predicated region
      $region69: #{basic_rfb_forward.1} parent=67 // pred_check
        %p10731 = pneg %p260
      $region70: #{basic_rfb_forward.1} parent=67 // pred_check_branch
        %10733 = sbr.rel (%p10731) target = $region72
      $region71: #{basic_rfb_forward.1} parent=67 // pred_region
        %p10734 = scmp.lt.s32.totalorder %s22, 1
        %s10735 = scalar_select %p10734, %s22, 1
        %s10736 = smul.addr %s10735, 32
        %s10737 = smul.addr %s10736, 8
        %s10738 = scalar_lea.vmem %s10, %s10737
      $region72: #{basic_rfb_forward.1} parent=67 // pred_fallthru
        _
    $region68: #{basic_rfb_forward.1} parent=5 // pred_fallthru
      _
  $region6: #{basic_rfb_forward.1} parent=0 // loop_footer
    %s20 = sadd.s32 1, %s16
  $region7: #{basic_rfb_forward.1} parent=0 // loop_footer_branch
    %15 = sbr.rel target = $region3
  $region8: #{basic_rfb_forward.1} parent=0 // loop_exit
    _

</llo_original>
